<compile_context>
chip_gen: v7x
topology: tpu7x:2x2x1
jax: 0.10.0
libtpu: 0.0.40
codegen_flags: <defaults>
</compile_context>

<pallas_src>
import numpy as np
import jax
import jax.numpy as jnp
from jax import lax
from jax.experimental import pallas as pl
from jax.experimental.pallas import tpu as pltpu


# ----------------------------------------------------------------------------
# Host-side construction of the PyTorch-exact bicubic interpolation matrices.
# ----------------------------------------------------------------------------
def _cubic_coeffs(t, a=-0.75):
    # aten get_cubic_upsample_coefficients (A = -0.75)
    def cc1(x):  # |x| <= 1
        return ((a + 2.0) * x - (a + 3.0)) * x * x + 1.0

    def cc2(x):  # 1 < |x| < 2
        return ((a * x - 5.0 * a) * x + 8.0 * a) * x - 4.0 * a

    return np.array([cc2(t + 1.0), cc1(t), cc1(1.0 - t), cc2(2.0 - t)],
                    dtype=np.float64)


def bicubic_matrix(in_size, scale=2):
    """(out, in) matrix A so that A @ v reproduces 1-D PyTorch bicubic
    upsampling with align_corners=False (edge-clamped taps)."""
    out_size = in_size * scale
    A = np.zeros((out_size, in_size), dtype=np.float64)
    for j in range(out_size):
        src = (j + 0.5) / scale - 0.5        # cubic: negative src NOT clamped
        fl = int(np.floor(src))
        t = src - fl
        coeffs = _cubic_coeffs(t)
        for k in range(4):
            idx = min(max(fl - 1 + k, 0), in_size - 1)   # edge clamp
            A[j, idx] += coeffs[k]
    return A


# ----------------------------------------------------------------------------
# Pallas kernel: one (image, output-row-tile) slab per grid step.
# ----------------------------------------------------------------------------
def upsample_block_kernel(x_ref, ah_ref, aw_ref, w_ref, b_ref, o_ref,
                          t_ref, u3_ref):
    # x_ref : (1, H, W, C)        f32   input image, channels-last (NHWC)
    # ah_ref: (Hp, H)             f32   height bicubic matrix, conv pad rows baked in
    # aw_ref: (Wp, W)             f32   width  bicubic matrix, conv pad rows baked in
    # w_ref : (3, 3*C, Cout)      bf16  conv weights, [dy, dx*C + c, o]
    # b_ref : (1, Cout)           f32   conv bias
    # o_ref : (1, Th*Wup, Cout)         output tile, pixel-major channels-last
    # t_ref : (Th+2, W, C)        f32   scratch: height-upsampled (pre-width) tile
    # u3_ref: (Th+2, Wup, 3*C)    bf16  scratch: upsampled tile, dx taps in lanes
    _, H, W, C = x_ref.shape
    Wp = aw_ref.shape[0]
    Wup = Wp - 2
    Thp = t_ref.shape[0]          # Th + 2 (conv halo rows included)
    Th = Thp - 2
    Cout = o_ref.shape[2]

    i = pl.program_id(1)
    # Th is a multiple of 8, so the dynamic row window into ah is sublane-aligned.
    row0 = pl.multiple_of(i * Th, 8)
    ah_t = ah_ref[pl.ds(row0, Thp), :]        # (Th+2, H) rows of the padded domain
    aw = aw_ref[...]                          # (Wp, W)
    xb = x_ref[0]                             # (H, W, C) f32

    # ---- pass 1: height upsample (+ top/bottom conv zero-pad), f32 ----------
    # One small matmul per input width position; pushed RHS is a raw-input
    # (H, C) column, streamed LHS is the constant Ah row window.  This keeps
    # the kernel free of lane<->sublane relayouts (no reshapes of big values).
    for w in range(W):
        t_ref[:, w, :] = jnp.dot(ah_t, xb[:, w, :],
                                 preferred_element_type=jnp.float32)

    # ---- pass 2: width upsample (+ left/right conv zero-pad), f32 -----------
    # Per upsampled row p: (Wp, W) @ (W, C) -> (Wp, C), landing directly in
    # channels-last layout.  The three dx-shifted views are stored side by side
    # in the lane dim, so the conv below needs no im2col concat and no
    # misaligned slices of a large buffer.
    for p in range(Thp):
        up = jnp.dot(aw, t_ref[p], preferred_element_type=jnp.float32)  # (Wp, C)
        up = up.astype(jnp.bfloat16)
        for dx in range(3):
            u3_ref[p, :, dx * C:(dx + 1) * C] = up[dx:dx + Wup, :]

    # ---- 3x3 conv as 3 streamed-LHS matmuls (one per dy tap) + bias + LReLU --
    acc = jnp.zeros((Th * Wup, Cout), jnp.float32)
    for dy in range(3):
        lhs = u3_ref[dy:dy + Th]                   # (Th, Wup, 3C), aligned slice
        lhs = lhs.reshape(Th * Wup, 3 * C)         # free view (Wup % 8 == 0)
        acc += jnp.dot(lhs, w_ref[dy], preferred_element_type=jnp.float32)
    acc = acc + b_ref[...]                         # (1, Cout) broadcast
    acc = jnp.where(acc >= 0, acc, 0.2 * acc)      # LeakyReLU(0.2)
    o_ref[0] = acc.astype(o_ref.dtype)


def upsample_block(x, conv_w, conv_b, ah_pad, aw_pad, *, n_row_tiles=2):
    """x: (N, C, H, W) f32.  conv_w: (Cout, Cin, 3, 3) (PyTorch OIHW).
    conv_b: (Cout,).  ah_pad: (2H+2, H).  aw_pad: (2W+2, W)."""
    N, C, H, W = x.shape
    Cout = conv_w.shape[0]
    Hup, Wup = 2 * H, 2 * W
    Hp, Wp = Hup + 2, Wup + 2

    NH = n_row_tiles
    assert Hup % NH == 0, "row-tile count must divide the upsampled height"
    Th = Hup // NH
    assert Th % 8 == 0, "row tile must be sublane aligned"

    # Layout plumbing (cheap, outside the kernel):
    #  - x -> NHWC f32 (upsample math stays in f32 for accuracy),
    #  - conv weights -> bf16 (3, 3*Cin, Cout) with lane order (dx, cin),
    #  - interpolation matrices stay f32.
    x_nhwc = jnp.transpose(x, (0, 2, 3, 1)).astype(jnp.float32)
    w3 = jnp.transpose(conv_w, (2, 3, 1, 0)).reshape(3, 3 * C, Cout)
    w3 = w3.astype(jnp.bfloat16)
    bias2d = conv_b.reshape(1, Cout).astype(jnp.float32)
    ah = ah_pad.astype(jnp.float32)
    aw = aw_pad.astype(jnp.float32)

    out_flat = pl.pallas_call(
        upsample_block_kernel,
        out_shape=jax.ShapeDtypeStruct((N, Hup * Wup, Cout), x.dtype),
        grid=(N, NH),
        in_specs=[
            pl.BlockSpec((1, H, W, C), lambda n, i: (n, 0, 0, 0)),
            pl.BlockSpec((Hp, H), lambda n, i: (0, 0)),
            pl.BlockSpec((Wp, W), lambda n, i: (0, 0)),
            pl.BlockSpec((3, 3 * C, Cout), lambda n, i: (0, 0, 0)),
            pl.BlockSpec((1, Cout), lambda n, i: (0, 0)),
        ],
        out_specs=pl.BlockSpec((1, Th * Wup, Cout), lambda n, i: (n, i, 0)),
        scratch_shapes=[
            pltpu.VMEM((Th + 2, W, C), jnp.float32),       # height-upsampled tile
            pltpu.VMEM((Th + 2, Wup, 3 * C), jnp.bfloat16),  # conv-ready tile
        ],
        compiler_params=pltpu.CompilerParams(
            # Both axes parallel: megacore / v7x dual-TC sharding gets >=2 steps.
            dimension_semantics=("parallel", "parallel"),
            # Demo tiles are tiny; at production sizes raise this (v6e) or size
            # Th so the two scratch tiles + double buffers stay under ~48 MiB (v7x).
            vmem_limit_bytes=32 << 20),
    )(x_nhwc, ah, aw, w3, bias2d)

    # Pixel-major channels-last slab from the kernel; NCHW plumbing outside.
    return jnp.transpose(out_flat.reshape(N, Hup, Wup, Cout), (0, 3, 1, 2))


if __name__ == "__main__":
    N, Cin, Cout, H, W = 2, 8, 8, 16, 16

    key = jax.random.PRNGKey(0)
    kx, kw, kb = jax.random.split(key, 3)
    x = jax.random.normal(kx, (N, Cin, H, W), dtype=jnp.float32)

    # Deterministic Conv2d-style init (uniform +/- 1/sqrt(fan_in)), OIHW layout.
    fan_in = Cin * 3 * 3
    bound = 1.0 / np.sqrt(fan_in)
    conv_w = jax.random.uniform(kw, (Cout, Cin, 3, 3), dtype=jnp.float32,
                                minval=-bound, maxval=bound)
    conv_b = jax.random.uniform(kb, (Cout,), dtype=jnp.float32,
                                minval=-bound, maxval=bound)

    # Bicubic matrices with the conv's zero padding (pad=1) baked in as
    # zero rows at both ends of the upsampled axis.
    Ah = bicubic_matrix(H, 2)                                   # (2H, H)
    Aw = bicubic_matrix(W, 2)                                   # (2W, W)
    ah_pad_np = np.zeros((2 * H + 2, H), dtype=np.float32)
    ah_pad_np[1:-1] = Ah
    aw_pad_np = np.zeros((2 * W + 2, W), dtype=np.float32)
    aw_pad_np[1:-1] = Aw
    ah_pad = jnp.asarray(ah_pad_np)
    aw_pad = jnp.asarray(aw_pad_np)

    out = upsample_block(x, conv_w, conv_b, ah_pad, aw_pad, n_row_tiles=2)
    out = jax.block_until_ready(out)
    assert out.shape == (N, Cout, 2 * H, 2 * W)

    # Pure-JAX f32 reference (same math) as a sanity check.
    u_ref = jnp.einsum('ph,nchw,qw->ncpq', ah_pad, x, aw_pad)
    ref = lax.conv_general_dilated(
        u_ref, conv_w, window_strides=(1, 1), padding='VALID',
        dimension_numbers=('NCHW', 'OIHW', 'NCHW'))
    ref = ref + conv_b[None, :, None, None]
    ref = jnp.where(ref >= 0, ref, 0.2 * ref)
    # Upsample in f32, only the conv matmul in bf16 (f32 accumulation).
    np.testing.assert_allclose(np.asarray(out), np.asarray(ref),
                               rtol=2e-2, atol=2e-2)

    print("KERNEL_OK")
</pallas_src>

<mosaic_0001>
module attributes {stable_mosaic.version = 11 : i64} {
  func.func @upsample_block_kernel(%arg0: i32, %arg1: i32, %arg2: memref<1x16x16x8xf32, #tpu.memory_space<vmem>>, %arg3: memref<34x16xf32, #tpu.memory_space<vmem>>, %arg4: memref<34x16xf32, #tpu.memory_space<vmem>>, %arg5: memref<3x24x8xbf16, #tpu.memory_space<vmem>>, %arg6: memref<1x8xf32, #tpu.memory_space<vmem>>, %arg7: memref<1x512x8xf32, #tpu.memory_space<vmem>>, %arg8: memref<18x16x8xf32, #tpu.memory_space<vmem>>, %arg9: memref<18x32x24xbf16, #tpu.memory_space<vmem>>) attributes {dimension_semantics = [#tpu.dimension_semantics<parallel>, #tpu.dimension_semantics<parallel>], iteration_bounds = array<i64: 2, 2>, scalar_prefetch = 0 : i64, scratch_operands = 2 : i64, tpu.core_type = #tpu.core_type<tc>, window_params = [{transform_indices = @transform_0, window_bounds = array<i64: 1, 16, 16, 8>}, {pipeline_mode = #tpu.pipeline_mode<synchronous>, transform_indices = @transform_1, window_bounds = array<i64: 34, 16>}, {pipeline_mode = #tpu.pipeline_mode<synchronous>, transform_indices = @transform_2, window_bounds = array<i64: 34, 16>}, {pipeline_mode = #tpu.pipeline_mode<synchronous>, transform_indices = @transform_3, window_bounds = array<i64: 3, 24, 8>}, {pipeline_mode = #tpu.pipeline_mode<synchronous>, transform_indices = @transform_4, window_bounds = array<i64: 1, 8>}, {transform_indices = @transform_5, window_bounds = array<i64: 1, 512, 8>}]} {
    %c16_i32 = arith.constant 16 : i32
    %0 = arith.muli %arg1, %c16_i32 : i32
    %1 = tpu.assume_multiple %0, 8 : i32
    %2 = arith.index_cast %1 : i32 to index
    %c0 = arith.constant 0 : index
    %3 = vector.load %arg3[%2, %c0] : memref<34x16xf32, #tpu.memory_space<vmem>>, vector<18x16xf32>
    %c0_0 = arith.constant 0 : index
    %c0_1 = arith.constant 0 : index
    %4 = vector.load %arg4[%c0_0, %c0_1] : memref<34x16xf32, #tpu.memory_space<vmem>>, vector<34x16xf32>
    %c0_2 = arith.constant 0 : index
    %c0_3 = arith.constant 0 : index
    %c0_4 = arith.constant 0 : index
    %c0_5 = arith.constant 0 : index
    %5 = vector.load %arg2[%c0_2, %c0_3, %c0_4, %c0_5] : memref<1x16x16x8xf32, #tpu.memory_space<vmem>>, vector<1x16x16x8xf32>
    %6 = vector.shape_cast %5 : vector<1x16x16x8xf32> to vector<16x16x8xf32>
    %7 = vector.extract_strided_slice %6 {offsets = [0, 0, 0], sizes = [16, 1, 8], strides = [1, 1, 1]} : vector<16x16x8xf32> to vector<16x1x8xf32>
    %8 = vector.shape_cast %7 : vector<16x1x8xf32> to vector<16x8xf32>
    %cst = arith.constant dense<0.000000e+00> : vector<18x8xf32>
    %9 = tpu.matmul %3, %8, %cst {dimension_numbers = #tpu.dot_dimension_numbers<[1], [0], [0], [1], [0, 0, 1, 1], [], []>} : vector<18x16xf32>, vector<16x8xf32>, vector<18x8xf32> -> vector<18x8xf32>
    %c0_6 = arith.constant 0 : index
    %c0_7 = arith.constant 0 : index
    %c0_8 = arith.constant 0 : index
    %10 = vector.load %arg8[%c0_6, %c0_7, %c0_8] : memref<18x16x8xf32, #tpu.memory_space<vmem>>, vector<18x1x8xf32>
    %11 = vector.shape_cast %10 : vector<18x1x8xf32> to vector<18x8xf32>
    %12 = vector.shape_cast %9 : vector<18x8xf32> to vector<18x1x8xf32>
    tpu.vector_store %arg8[%c0_6, %c0_7, %c0_8], %12 {strides = array<i32>} : memref<18x16x8xf32, #tpu.memory_space<vmem>>, vector<18x1x8xf32>,
    %13 = vector.extract_strided_slice %6 {offsets = [0, 1, 0], sizes = [16, 1, 8], strides = [1, 1, 1]} : vector<16x16x8xf32> to vector<16x1x8xf32>
    %14 = vector.shape_cast %13 : vector<16x1x8xf32> to vector<16x8xf32>
    %cst_9 = arith.constant dense<0.000000e+00> : vector<18x8xf32>
    %15 = tpu.matmul %3, %14, %cst_9 {dimension_numbers = #tpu.dot_dimension_numbers<[1], [0], [0], [1], [0, 0, 1, 1], [], []>} : vector<18x16xf32>, vector<16x8xf32>, vector<18x8xf32> -> vector<18x8xf32>
    %c0_10 = arith.constant 0 : index
    %c1 = arith.constant 1 : index
    %c0_11 = arith.constant 0 : index
    %16 = vector.load %arg8[%c0_10, %c1, %c0_11] : memref<18x16x8xf32, #tpu.memory_space<vmem>>, vector<18x1x8xf32>
    %17 = vector.shape_cast %16 : vector<18x1x8xf32> to vector<18x8xf32>
    %18 = vector.shape_cast %15 : vector<18x8xf32> to vector<18x1x8xf32>
    tpu.vector_store %arg8[%c0_10, %c1, %c0_11], %18 {strides = array<i32>} : memref<18x16x8xf32, #tpu.memory_space<vmem>>, vector<18x1x8xf32>,
    %19 = vector.extract_strided_slice %6 {offsets = [0, 2, 0], sizes = [16, 1, 8], strides = [1, 1, 1]} : vector<16x16x8xf32> to vector<16x1x8xf32>
    %20 = vector.shape_cast %19 : vector<16x1x8xf32> to vector<16x8xf32>
    %cst_12 = arith.constant dense<0.000000e+00> : vector<18x8xf32>
    %21 = tpu.matmul %3, %20, %cst_12 {dimension_numbers = #tpu.dot_dimension_numbers<[1], [0], [0], [1], [0, 0, 1, 1], [], []>} : vector<18x16xf32>, vector<16x8xf32>, vector<18x8xf32> -> vector<18x8xf32>
    %c0_13 = arith.constant 0 : index
    %c2 = arith.constant 2 : index
    %c0_14 = arith.constant 0 : index
    %22 = vector.load %arg8[%c0_13, %c2, %c0_14] : memref<18x16x8xf32, #tpu.memory_space<vmem>>, vector<18x1x8xf32>
    %23 = vector.shape_cast %22 : vector<18x1x8xf32> to vector<18x8xf32>
    %24 = vector.shape_cast %21 : vector<18x8xf32> to vector<18x1x8xf32>
    tpu.vector_store %arg8[%c0_13, %c2, %c0_14], %24 {strides = array<i32>} : memref<18x16x8xf32, #tpu.memory_space<vmem>>, vector<18x1x8xf32>,
    %25 = vector.extract_strided_slice %6 {offsets = [0, 3, 0], sizes = [16, 1, 8], strides = [1, 1, 1]} : vector<16x16x8xf32> to vector<16x1x8xf32>
    %26 = vector.shape_cast %25 : vector<16x1x8xf32> to vector<16x8xf32>
    %cst_15 = arith.constant dense<0.000000e+00> : vector<18x8xf32>
    %27 = tpu.matmul %3, %26, %cst_15 {dimension_numbers = #tpu.dot_dimension_numbers<[1], [0], [0], [1], [0, 0, 1, 1], [], []>} : vector<18x16xf32>, vector<16x8xf32>, vector<18x8xf32> -> vector<18x8xf32>
    %c0_16 = arith.constant 0 : index
    %c3 = arith.constant 3 : index
    %c0_17 = arith.constant 0 : index
    %28 = vector.load %arg8[%c0_16, %c3, %c0_17] : memref<18x16x8xf32, #tpu.memory_space<vmem>>, vector<18x1x8xf32>
    %29 = vector.shape_cast %28 : vector<18x1x8xf32> to vector<18x8xf32>
    %30 = vector.shape_cast %27 : vector<18x8xf32> to vector<18x1x8xf32>
    tpu.vector_store %arg8[%c0_16, %c3, %c0_17], %30 {strides = array<i32>} : memref<18x16x8xf32, #tpu.memory_space<vmem>>, vector<18x1x8xf32>,
    %31 = vector.extract_strided_slice %6 {offsets = [0, 4, 0], sizes = [16, 1, 8], strides = [1, 1, 1]} : vector<16x16x8xf32> to vector<16x1x8xf32>
    %32 = vector.shape_cast %31 : vector<16x1x8xf32> to vector<16x8xf32>
    %cst_18 = arith.constant dense<0.000000e+00> : vector<18x8xf32>
    %33 = tpu.matmul %3, %32, %cst_18 {dimension_numbers = #tpu.dot_dimension_numbers<[1], [0], [0], [1], [0, 0, 1, 1], [], []>} : vector<18x16xf32>, vector<16x8xf32>, vector<18x8xf32> -> vector<18x8xf32>
    %c0_19 = arith.constant 0 : index
    %c4 = arith.constant 4 : index
    %c0_20 = arith.constant 0 : index
    %34 = vector.load %arg8[%c0_19, %c4, %c0_20] : memref<18x16x8xf32, #tpu.memory_space<vmem>>, vector<18x1x8xf32>
    %35 = vector.shape_cast %34 : vector<18x1x8xf32> to vector<18x8xf32>
    %36 = vector.shape_cast %33 : vector<18x8xf32> to vector<18x1x8xf32>
    tpu.vector_store %arg8[%c0_19, %c4, %c0_20], %36 {strides = array<i32>} : memref<18x16x8xf32, #tpu.memory_space<vmem>>, vector<18x1x8xf32>,
    %37 = vector.extract_strided_slice %6 {offsets = [0, 5, 0], sizes = [16, 1, 8], strides = [1, 1, 1]} : vector<16x16x8xf32> to vector<16x1x8xf32>
    %38 = vector.shape_cast %37 : vector<16x1x8xf32> to vector<16x8xf32>
    %cst_21 = arith.constant dense<0.000000e+00> : vector<18x8xf32>
    %39 = tpu.matmul %3, %38, %cst_21 {dimension_numbers = #tpu.dot_dimension_numbers<[1], [0], [0], [1], [0, 0, 1, 1], [], []>} : vector<18x16xf32>, vector<16x8xf32>, vector<18x8xf32> -> vector<18x8xf32>
    %c0_22 = arith.constant 0 : index
    %c5 = arith.constant 5 : index
    %c0_23 = arith.constant 0 : index
    %40 = vector.load %arg8[%c0_22, %c5, %c0_23] : memref<18x16x8xf32, #tpu.memory_space<vmem>>, vector<18x1x8xf32>
    %41 = vector.shape_cast %40 : vector<18x1x8xf32> to vector<18x8xf32>
    %42 = vector.shape_cast %39 : vector<18x8xf32> to vector<18x1x8xf32>
    tpu.vector_store %arg8[%c0_22, %c5, %c0_23], %42 {strides = array<i32>} : memref<18x16x8xf32, #tpu.memory_space<vmem>>, vector<18x1x8xf32>,
    %43 = vector.extract_strided_slice %6 {offsets = [0, 6, 0], sizes = [16, 1, 8], strides = [1, 1, 1]} : vector<16x16x8xf32> to vector<16x1x8xf32>
    %44 = vector.shape_cast %43 : vector<16x1x8xf32> to vector<16x8xf32>
    %cst_24 = arith.constant dense<0.000000e+00> : vector<18x8xf32>
    %45 = tpu.matmul %3, %44, %cst_24 {dimension_numbers = #tpu.dot_dimension_numbers<[1], [0], [0], [1], [0, 0, 1, 1], [], []>} : vector<18x16xf32>, vector<16x8xf32>, vector<18x8xf32> -> vector<18x8xf32>
    %c0_25 = arith.constant 0 : index
    %c6 = arith.constant 6 : index
    %c0_26 = arith.constant 0 : index
    %46 = vector.load %arg8[%c0_25, %c6, %c0_26] : memref<18x16x8xf32, #tpu.memory_space<vmem>>, vector<18x1x8xf32>
    %47 = vector.shape_cast %46 : vector<18x1x8xf32> to vector<18x8xf32>
    %48 = vector.shape_cast %45 : vector<18x8xf32> to vector<18x1x8xf32>
    tpu.vector_store %arg8[%c0_25, %c6, %c0_26], %48 {strides = array<i32>} : memref<18x16x8xf32, #tpu.memory_space<vmem>>, vector<18x1x8xf32>,
    %49 = vector.extract_strided_slice %6 {offsets = [0, 7, 0], sizes = [16, 1, 8], strides = [1, 1, 1]} : vector<16x16x8xf32> to vector<16x1x8xf32>
    %50 = vector.shape_cast %49 : vector<16x1x8xf32> to vector<16x8xf32>
    %cst_27 = arith.constant dense<0.000000e+00> : vector<18x8xf32>
    %51 = tpu.matmul %3, %50, %cst_27 {dimension_numbers = #tpu.dot_dimension_numbers<[1], [0], [0], [1], [0, 0, 1, 1], [], []>} : vector<18x16xf32>, vector<16x8xf32>, vector<18x8xf32> -> vector<18x8xf32>
    %c0_28 = arith.constant 0 : index
    %c7 = arith.constant 7 : index
    %c0_29 = arith.constant 0 : index
    %52 = vector.load %arg8[%c0_28, %c7, %c0_29] : memref<18x16x8xf32, #tpu.memory_space<vmem>>, vector<18x1x8xf32>
    %53 = vector.shape_cast %52 : vector<18x1x8xf32> to vector<18x8xf32>
    %54 = vector.shape_cast %51 : vector<18x8xf32> to vector<18x1x8xf32>
    tpu.vector_store %arg8[%c0_28, %c7, %c0_29], %54 {strides = array<i32>} : memref<18x16x8xf32, #tpu.memory_space<vmem>>, vector<18x1x8xf32>,
    %55 = vector.extract_strided_slice %6 {offsets = [0, 8, 0], sizes = [16, 1, 8], strides = [1, 1, 1]} : vector<16x16x8xf32> to vector<16x1x8xf32>
    %56 = vector.shape_cast %55 : vector<16x1x8xf32> to vector<16x8xf32>
    %cst_30 = arith.constant dense<0.000000e+00> : vector<18x8xf32>
    %57 = tpu.matmul %3, %56, %cst_30 {dimension_numbers = #tpu.dot_dimension_numbers<[1], [0], [0], [1], [0, 0, 1, 1], [], []>} : vector<18x16xf32>, vector<16x8xf32>, vector<18x8xf32> -> vector<18x8xf32>
    %c0_31 = arith.constant 0 : index
    %c8 = arith.constant 8 : index
    %c0_32 = arith.constant 0 : index
    %58 = vector.load %arg8[%c0_31, %c8, %c0_32] : memref<18x16x8xf32, #tpu.memory_space<vmem>>, vector<18x1x8xf32>
    %59 = vector.shape_cast %58 : vector<18x1x8xf32> to vector<18x8xf32>
    %60 = vector.shape_cast %57 : vector<18x8xf32> to vector<18x1x8xf32>
    tpu.vector_store %arg8[%c0_31, %c8, %c0_32], %60 {strides = array<i32>} : memref<18x16x8xf32, #tpu.memory_space<vmem>>, vector<18x1x8xf32>,
    %61 = vector.extract_strided_slice %6 {offsets = [0, 9, 0], sizes = [16, 1, 8], strides = [1, 1, 1]} : vector<16x16x8xf32> to vector<16x1x8xf32>
    %62 = vector.shape_cast %61 : vector<16x1x8xf32> to vector<16x8xf32>
    %cst_33 = arith.constant dense<0.000000e+00> : vector<18x8xf32>
    %63 = tpu.matmul %3, %62, %cst_33 {dimension_numbers = #tpu.dot_dimension_numbers<[1], [0], [0], [1], [0, 0, 1, 1], [], []>} : vector<18x16xf32>, vector<16x8xf32>, vector<18x8xf32> -> vector<18x8xf32>
    %c0_34 = arith.constant 0 : index
    %c9 = arith.constant 9 : index
    %c0_35 = arith.constant 0 : index
    %64 = vector.load %arg8[%c0_34, %c9, %c0_35] : memref<18x16x8xf32, #tpu.memory_space<vmem>>, vector<18x1x8xf32>
    %65 = vector.shape_cast %64 : vector<18x1x8xf32> to vector<18x8xf32>
    %66 = vector.shape_cast %63 : vector<18x8xf32> to vector<18x1x8xf32>
    tpu.vector_store %arg8[%c0_34, %c9, %c0_35], %66 {strides = array<i32>} : memref<18x16x8xf32, #tpu.memory_space<vmem>>, vector<18x1x8xf32>,
    %67 = vector.extract_strided_slice %6 {offsets = [0, 10, 0], sizes = [16, 1, 8], strides = [1, 1, 1]} : vector<16x16x8xf32> to vector<16x1x8xf32>
    %68 = vector.shape_cast %67 : vector<16x1x8xf32> to vector<16x8xf32>
    %cst_36 = arith.constant dense<0.000000e+00> : vector<18x8xf32>
    %69 = tpu.matmul %3, %68, %cst_36 {dimension_numbers = #tpu.dot_dimension_numbers<[1], [0], [0], [1], [0, 0, 1, 1], [], []>} : vector<18x16xf32>, vector<16x8xf32>, vector<18x8xf32> -> vector<18x8xf32>
    %c0_37 = arith.constant 0 : index
    %c10 = arith.constant 10 : index
    %c0_38 = arith.constant 0 : index
    %70 = vector.load %arg8[%c0_37, %c10, %c0_38] : memref<18x16x8xf32, #tpu.memory_space<vmem>>, vector<18x1x8xf32>
    %71 = vector.shape_cast %70 : vector<18x1x8xf32> to vector<18x8xf32>
    %72 = vector.shape_cast %69 : vector<18x8xf32> to vector<18x1x8xf32>
    tpu.vector_store %arg8[%c0_37, %c10, %c0_38], %72 {strides = array<i32>} : memref<18x16x8xf32, #tpu.memory_space<vmem>>, vector<18x1x8xf32>,
    %73 = vector.extract_strided_slice %6 {offsets = [0, 11, 0], sizes = [16, 1, 8], strides = [1, 1, 1]} : vector<16x16x8xf32> to vector<16x1x8xf32>
    %74 = vector.shape_cast %73 : vector<16x1x8xf32> to vector<16x8xf32>
    %cst_39 = arith.constant dense<0.000000e+00> : vector<18x8xf32>
    %75 = tpu.matmul %3, %74, %cst_39 {dimension_numbers = #tpu.dot_dimension_numbers<[1], [0], [0], [1], [0, 0, 1, 1], [], []>} : vector<18x16xf32>, vector<16x8xf32>, vector<18x8xf32> -> vector<18x8xf32>
    %c0_40 = arith.constant 0 : index
    %c11 = arith.constant 11 : index
    %c0_41 = arith.constant 0 : index
    %76 = vector.load %arg8[%c0_40, %c11, %c0_41] : memref<18x16x8xf32, #tpu.memory_space<vmem>>, vector<18x1x8xf32>
    %77 = vector.shape_cast %76 : vector<18x1x8xf32> to vector<18x8xf32>
    %78 = vector.shape_cast %75 : vector<18x8xf32> to vector<18x1x8xf32>
    tpu.vector_store %arg8[%c0_40, %c11, %c0_41], %78 {strides = array<i32>} : memref<18x16x8xf32, #tpu.memory_space<vmem>>, vector<18x1x8xf32>,
    %79 = vector.extract_strided_slice %6 {offsets = [0, 12, 0], sizes = [16, 1, 8], strides = [1, 1, 1]} : vector<16x16x8xf32> to vector<16x1x8xf32>
    %80 = vector.shape_cast %79 : vector<16x1x8xf32> to vector<16x8xf32>
    %cst_42 = arith.constant dense<0.000000e+00> : vector<18x8xf32>
    %81 = tpu.matmul %3, %80, %cst_42 {dimension_numbers = #tpu.dot_dimension_numbers<[1], [0], [0], [1], [0, 0, 1, 1], [], []>} : vector<18x16xf32>, vector<16x8xf32>, vector<18x8xf32> -> vector<18x8xf32>
    %c0_43 = arith.constant 0 : index
    %c12 = arith.constant 12 : index
    %c0_44 = arith.constant 0 : index
    %82 = vector.load %arg8[%c0_43, %c12, %c0_44] : memref<18x16x8xf32, #tpu.memory_space<vmem>>, vector<18x1x8xf32>
    %83 = vector.shape_cast %82 : vector<18x1x8xf32> to vector<18x8xf32>
    %84 = vector.shape_cast %81 : vector<18x8xf32> to vector<18x1x8xf32>
    tpu.vector_store %arg8[%c0_43, %c12, %c0_44], %84 {strides = array<i32>} : memref<18x16x8xf32, #tpu.memory_space<vmem>>, vector<18x1x8xf32>,
    %85 = vector.extract_strided_slice %6 {offsets = [0, 13, 0], sizes = [16, 1, 8], strides = [1, 1, 1]} : vector<16x16x8xf32> to vector<16x1x8xf32>
    %86 = vector.shape_cast %85 : vector<16x1x8xf32> to vector<16x8xf32>
    %cst_45 = arith.constant dense<0.000000e+00> : vector<18x8xf32>
    %87 = tpu.matmul %3, %86, %cst_45 {dimension_numbers = #tpu.dot_dimension_numbers<[1], [0], [0], [1], [0, 0, 1, 1], [], []>} : vector<18x16xf32>, vector<16x8xf32>, vector<18x8xf32> -> vector<18x8xf32>
    %c0_46 = arith.constant 0 : index
    %c13 = arith.constant 13 : index
    %c0_47 = arith.constant 0 : index
    %88 = vector.load %arg8[%c0_46, %c13, %c0_47] : memref<18x16x8xf32, #tpu.memory_space<vmem>>, vector<18x1x8xf32>
    %89 = vector.shape_cast %88 : vector<18x1x8xf32> to vector<18x8xf32>
    %90 = vector.shape_cast %87 : vector<18x8xf32> to vector<18x1x8xf32>
    tpu.vector_store %arg8[%c0_46, %c13, %c0_47], %90 {strides = array<i32>} : memref<18x16x8xf32, #tpu.memory_space<vmem>>, vector<18x1x8xf32>,
    %91 = vector.extract_strided_slice %6 {offsets = [0, 14, 0], sizes = [16, 1, 8], strides = [1, 1, 1]} : vector<16x16x8xf32> to vector<16x1x8xf32>
    %92 = vector.shape_cast %91 : vector<16x1x8xf32> to vector<16x8xf32>
    %cst_48 = arith.constant dense<0.000000e+00> : vector<18x8xf32>
    %93 = tpu.matmul %3, %92, %cst_48 {dimension_numbers = #tpu.dot_dimension_numbers<[1], [0], [0], [1], [0, 0, 1, 1], [], []>} : vector<18x16xf32>, vector<16x8xf32>, vector<18x8xf32> -> vector<18x8xf32>
    %c0_49 = arith.constant 0 : index
    %c14 = arith.constant 14 : index
    %c0_50 = arith.constant 0 : index
    %94 = vector.load %arg8[%c0_49, %c14, %c0_50] : memref<18x16x8xf32, #tpu.memory_space<vmem>>, vector<18x1x8xf32>
    %95 = vector.shape_cast %94 : vector<18x1x8xf32> to vector<18x8xf32>
    %96 = vector.shape_cast %93 : vector<18x8xf32> to vector<18x1x8xf32>
    tpu.vector_store %arg8[%c0_49, %c14, %c0_50], %96 {strides = array<i32>} : memref<18x16x8xf32, #tpu.memory_space<vmem>>, vector<18x1x8xf32>,
    %97 = vector.extract_strided_slice %6 {offsets = [0, 15, 0], sizes = [16, 1, 8], strides = [1, 1, 1]} : vector<16x16x8xf32> to vector<16x1x8xf32>
    %98 = vector.shape_cast %97 : vector<16x1x8xf32> to vector<16x8xf32>
    %cst_51 = arith.constant dense<0.000000e+00> : vector<18x8xf32>
    %99 = tpu.matmul %3, %98, %cst_51 {dimension_numbers = #tpu.dot_dimension_numbers<[1], [0], [0], [1], [0, 0, 1, 1], [], []>} : vector<18x16xf32>, vector<16x8xf32>, vector<18x8xf32> -> vector<18x8xf32>
    %c0_52 = arith.constant 0 : index
    %c15 = arith.constant 15 : index
    %c0_53 = arith.constant 0 : index
    %100 = vector.load %arg8[%c0_52, %c15, %c0_53] : memref<18x16x8xf32, #tpu.memory_space<vmem>>, vector<18x1x8xf32>
    %101 = vector.shape_cast %100 : vector<18x1x8xf32> to vector<18x8xf32>
    %102 = vector.shape_cast %99 : vector<18x8xf32> to vector<18x1x8xf32>
    tpu.vector_store %arg8[%c0_52, %c15, %c0_53], %102 {strides = array<i32>} : memref<18x16x8xf32, #tpu.memory_space<vmem>>, vector<18x1x8xf32>,
    %c0_54 = arith.constant 0 : index
    %c0_55 = arith.constant 0 : index
    %c0_56 = arith.constant 0 : index
    %103 = vector.load %arg8[%c0_54, %c0_55, %c0_56] : memref<18x16x8xf32, #tpu.memory_space<vmem>>, vector<1x16x8xf32>
    %104 = vector.shape_cast %103 : vector<1x16x8xf32> to vector<16x8xf32>
    %cst_57 = arith.constant dense<0.000000e+00> : vector<34x8xf32>
    %105 = tpu.matmul %4, %104, %cst_57 {dimension_numbers = #tpu.dot_dimension_numbers<[1], [0], [0], [1], [0, 0, 1, 1], [], []>} : vector<34x16xf32>, vector<16x8xf32>, vector<34x8xf32> -> vector<34x8xf32>
    %106 = arith.truncf %105 : vector<34x8xf32> to vector<34x8xbf16>
    %107 = vector.extract_strided_slice %106 {offsets = [0, 0], sizes = [32, 8], strides = [1, 1]} : vector<34x8xbf16> to vector<32x8xbf16>
    %c0_58 = arith.constant 0 : index
    %c0_59 = arith.constant 0 : index
    %c0_60 = arith.constant 0 : index
    %108 = vector.load %arg9[%c0_58, %c0_59, %c0_60] : memref<18x32x24xbf16, #tpu.memory_space<vmem>>, vector<1x32x8xbf16>
    %109 = vector.shape_cast %108 : vector<1x32x8xbf16> to vector<32x8xbf16>
    %110 = vector.shape_cast %107 : vector<32x8xbf16> to vector<1x32x8xbf16>
    tpu.vector_store %arg9[%c0_58, %c0_59, %c0_60], %110 {strides = array<i32>} : memref<18x32x24xbf16, #tpu.memory_space<vmem>>, vector<1x32x8xbf16>,
    %111 = vector.extract_strided_slice %106 {offsets = [1, 0], sizes = [32, 8], strides = [1, 1]} : vector<34x8xbf16> to vector<32x8xbf16>
    %c0_61 = arith.constant 0 : index
    %c0_62 = arith.constant 0 : index
    %c8_63 = arith.constant 8 : index
    %112 = vector.load %arg9[%c0_61, %c0_62, %c8_63] : memref<18x32x24xbf16, #tpu.memory_space<vmem>>, vector<1x32x8xbf16>
    %113 = vector.shape_cast %112 : vector<1x32x8xbf16> to vector<32x8xbf16>
    %114 = vector.shape_cast %111 : vector<32x8xbf16> to vector<1x32x8xbf16>
    tpu.vector_store %arg9[%c0_61, %c0_62, %c8_63], %114 {strides = array<i32>} : memref<18x32x24xbf16, #tpu.memory_space<vmem>>, vector<1x32x8xbf16>,
    %115 = vector.extract_strided_slice %106 {offsets = [2, 0], sizes = [32, 8], strides = [1, 1]} : vector<34x8xbf16> to vector<32x8xbf16>
    %c0_64 = arith.constant 0 : index
    %c0_65 = arith.constant 0 : index
    %c16 = arith.constant 16 : index
    %116 = vector.load %arg9[%c0_64, %c0_65, %c16] : memref<18x32x24xbf16, #tpu.memory_space<vmem>>, vector<1x32x8xbf16>
    %117 = vector.shape_cast %116 : vector<1x32x8xbf16> to vector<32x8xbf16>
    %118 = vector.shape_cast %115 : vector<32x8xbf16> to vector<1x32x8xbf16>
    tpu.vector_store %arg9[%c0_64, %c0_65, %c16], %118 {strides = array<i32>} : memref<18x32x24xbf16, #tpu.memory_space<vmem>>, vector<1x32x8xbf16>,
    %c1_66 = arith.constant 1 : index
    %c0_67 = arith.constant 0 : index
    %c0_68 = arith.constant 0 : index
    %119 = vector.load %arg8[%c1_66, %c0_67, %c0_68] : memref<18x16x8xf32, #tpu.memory_space<vmem>>, vector<1x16x8xf32>
    %120 = vector.shape_cast %119 : vector<1x16x8xf32> to vector<16x8xf32>
    %cst_69 = arith.constant dense<0.000000e+00> : vector<34x8xf32>
    %121 = tpu.matmul %4, %120, %cst_69 {dimension_numbers = #tpu.dot_dimension_numbers<[1], [0], [0], [1], [0, 0, 1, 1], [], []>} : vector<34x16xf32>, vector<16x8xf32>, vector<34x8xf32> -> vector<34x8xf32>
    %122 = arith.truncf %121 : vector<34x8xf32> to vector<34x8xbf16>
    %123 = vector.extract_strided_slice %122 {offsets = [0, 0], sizes = [32, 8], strides = [1, 1]} : vector<34x8xbf16> to vector<32x8xbf16>
    %c1_70 = arith.constant 1 : index
    %c0_71 = arith.constant 0 : index
    %c0_72 = arith.constant 0 : index
    %124 = vector.load %arg9[%c1_70, %c0_71, %c0_72] : memref<18x32x24xbf16, #tpu.memory_space<vmem>>, vector<1x32x8xbf16>
    %125 = vector.shape_cast %124 : vector<1x32x8xbf16> to vector<32x8xbf16>
    %126 = vector.shape_cast %123 : vector<32x8xbf16> to vector<1x32x8xbf16>
    tpu.vector_store %arg9[%c1_70, %c0_71, %c0_72], %126 {strides = array<i32>} : memref<18x32x24xbf16, #tpu.memory_space<vmem>>, vector<1x32x8xbf16>,
    %127 = vector.extract_strided_slice %122 {offsets = [1, 0], sizes = [32, 8], strides = [1, 1]} : vector<34x8xbf16> to vector<32x8xbf16>
    %c1_73 = arith.constant 1 : index
    %c0_74 = arith.constant 0 : index
    %c8_75 = arith.constant 8 : index
    %128 = vector.load %arg9[%c1_73, %c0_74, %c8_75] : memref<18x32x24xbf16, #tpu.memory_space<vmem>>, vector<1x32x8xbf16>
    %129 = vector.shape_cast %128 : vector<1x32x8xbf16> to vector<32x8xbf16>
    %130 = vector.shape_cast %127 : vector<32x8xbf16> to vector<1x32x8xbf16>
    tpu.vector_store %arg9[%c1_73, %c0_74, %c8_75], %130 {strides = array<i32>} : memref<18x32x24xbf16, #tpu.memory_space<vmem>>, vector<1x32x8xbf16>,
    %131 = vector.extract_strided_slice %122 {offsets = [2, 0], sizes = [32, 8], strides = [1, 1]} : vector<34x8xbf16> to vector<32x8xbf16>
    %c1_76 = arith.constant 1 : index
    %c0_77 = arith.constant 0 : index
    %c16_78 = arith.constant 16 : index
    %132 = vector.load %arg9[%c1_76, %c0_77, %c16_78] : memref<18x32x24xbf16, #tpu.memory_space<vmem>>, vector<1x32x8xbf16>
    %133 = vector.shape_cast %132 : vector<1x32x8xbf16> to vector<32x8xbf16>
    %134 = vector.shape_cast %131 : vector<32x8xbf16> to vector<1x32x8xbf16>
    tpu.vector_store %arg9[%c1_76, %c0_77, %c16_78], %134 {strides = array<i32>} : memref<18x32x24xbf16, #tpu.memory_space<vmem>>, vector<1x32x8xbf16>,
    %c2_79 = arith.constant 2 : index
    %c0_80 = arith.constant 0 : index
    %c0_81 = arith.constant 0 : index
    %135 = vector.load %arg8[%c2_79, %c0_80, %c0_81] : memref<18x16x8xf32, #tpu.memory_space<vmem>>, vector<1x16x8xf32>
    %136 = vector.shape_cast %135 : vector<1x16x8xf32> to vector<16x8xf32>
    %cst_82 = arith.constant dense<0.000000e+00> : vector<34x8xf32>
    %137 = tpu.matmul %4, %136, %cst_82 {dimension_numbers = #tpu.dot_dimension_numbers<[1], [0], [0], [1], [0, 0, 1, 1], [], []>} : vector<34x16xf32>, vector<16x8xf32>, vector<34x8xf32> -> vector<34x8xf32>
    %138 = arith.truncf %137 : vector<34x8xf32> to vector<34x8xbf16>
    %139 = vector.extract_strided_slice %138 {offsets = [0, 0], sizes = [32, 8], strides = [1, 1]} : vector<34x8xbf16> to vector<32x8xbf16>
    %c2_83 = arith.constant 2 : index
    %c0_84 = arith.constant 0 : index
    %c0_85 = arith.constant 0 : index
    %140 = vector.load %arg9[%c2_83, %c0_84, %c0_85] : memref<18x32x24xbf16, #tpu.memory_space<vmem>>, vector<1x32x8xbf16>
    %141 = vector.shape_cast %140 : vector<1x32x8xbf16> to vector<32x8xbf16>
    %142 = vector.shape_cast %139 : vector<32x8xbf16> to vector<1x32x8xbf16>
    tpu.vector_store %arg9[%c2_83, %c0_84, %c0_85], %142 {strides = array<i32>} : memref<18x32x24xbf16, #tpu.memory_space<vmem>>, vector<1x32x8xbf16>,
    %143 = vector.extract_strided_slice %138 {offsets = [1, 0], sizes = [32, 8], strides = [1, 1]} : vector<34x8xbf16> to vector<32x8xbf16>
    %c2_86 = arith.constant 2 : index
    %c0_87 = arith.constant 0 : index
    %c8_88 = arith.constant 8 : index
    %144 = vector.load %arg9[%c2_86, %c0_87, %c8_88] : memref<18x32x24xbf16, #tpu.memory_space<vmem>>, vector<1x32x8xbf16>
    %145 = vector.shape_cast %144 : vector<1x32x8xbf16> to vector<32x8xbf16>
    %146 = vector.shape_cast %143 : vector<32x8xbf16> to vector<1x32x8xbf16>
    tpu.vector_store %arg9[%c2_86, %c0_87, %c8_88], %146 {strides = array<i32>} : memref<18x32x24xbf16, #tpu.memory_space<vmem>>, vector<1x32x8xbf16>,
    %147 = vector.extract_strided_slice %138 {offsets = [2, 0], sizes = [32, 8], strides = [1, 1]} : vector<34x8xbf16> to vector<32x8xbf16>
    %c2_89 = arith.constant 2 : index
    %c0_90 = arith.constant 0 : index
    %c16_91 = arith.constant 16 : index
    %148 = vector.load %arg9[%c2_89, %c0_90, %c16_91] : memref<18x32x24xbf16, #tpu.memory_space<vmem>>, vector<1x32x8xbf16>
    %149 = vector.shape_cast %148 : vector<1x32x8xbf16> to vector<32x8xbf16>
    %150 = vector.shape_cast %147 : vector<32x8xbf16> to vector<1x32x8xbf16>
    tpu.vector_store %arg9[%c2_89, %c0_90, %c16_91], %150 {strides = array<i32>} : memref<18x32x24xbf16, #tpu.memory_space<vmem>>, vector<1x32x8xbf16>,
    %c3_92 = arith.constant 3 : index
    %c0_93 = arith.constant 0 : index
    %c0_94 = arith.constant 0 : index
    %151 = vector.load %arg8[%c3_92, %c0_93, %c0_94] : memref<18x16x8xf32, #tpu.memory_space<vmem>>, vector<1x16x8xf32>
    %152 = vector.shape_cast %151 : vector<1x16x8xf32> to vector<16x8xf32>
    %cst_95 = arith.constant dense<0.000000e+00> : vector<34x8xf32>
    %153 = tpu.matmul %4, %152, %cst_95 {dimension_numbers = #tpu.dot_dimension_numbers<[1], [0], [0], [1], [0, 0, 1, 1], [], []>} : vector<34x16xf32>, vector<16x8xf32>, vector<34x8xf32> -> vector<34x8xf32>
    %154 = arith.truncf %153 : vector<34x8xf32> to vector<34x8xbf16>
    %155 = vector.extract_strided_slice %154 {offsets = [0, 0], sizes = [32, 8], strides = [1, 1]} : vector<34x8xbf16> to vector<32x8xbf16>
    %c3_96 = arith.constant 3 : index
    %c0_97 = arith.constant 0 : index
    %c0_98 = arith.constant 0 : index
    %156 = vector.load %arg9[%c3_96, %c0_97, %c0_98] : memref<18x32x24xbf16, #tpu.memory_space<vmem>>, vector<1x32x8xbf16>
    %157 = vector.shape_cast %156 : vector<1x32x8xbf16> to vector<32x8xbf16>
    %158 = vector.shape_cast %155 : vector<32x8xbf16> to vector<1x32x8xbf16>
    tpu.vector_store %arg9[%c3_96, %c0_97, %c0_98], %158 {strides = array<i32>} : memref<18x32x24xbf16, #tpu.memory_space<vmem>>, vector<1x32x8xbf16>,
    %159 = vector.extract_strided_slice %154 {offsets = [1, 0], sizes = [32, 8], strides = [1, 1]} : vector<34x8xbf16> to vector<32x8xbf16>
    %c3_99 = arith.constant 3 : index
    %c0_100 = arith.constant 0 : index
    %c8_101 = arith.constant 8 : index
    %160 = vector.load %arg9[%c3_99, %c0_100, %c8_101] : memref<18x32x24xbf16, #tpu.memory_space<vmem>>, vector<1x32x8xbf16>
    %161 = vector.shape_cast %160 : vector<1x32x8xbf16> to vector<32x8xbf16>
    %162 = vector.shape_cast %159 : vector<32x8xbf16> to vector<1x32x8xbf16>
    tpu.vector_store %arg9[%c3_99, %c0_100, %c8_101], %162 {strides = array<i32>} : memref<18x32x24xbf16, #tpu.memory_space<vmem>>, vector<1x32x8xbf16>,
    %163 = vector.extract_strided_slice %154 {offsets = [2, 0], sizes = [32, 8], strides = [1, 1]} : vector<34x8xbf16> to vector<32x8xbf16>
    %c3_102 = arith.constant 3 : index
    %c0_103 = arith.constant 0 : index
    %c16_104 = arith.constant 16 : index
    %164 = vector.load %arg9[%c3_102, %c0_103, %c16_104] : memref<18x32x24xbf16, #tpu.memory_space<vmem>>, vector<1x32x8xbf16>
    %165 = vector.shape_cast %164 : vector<1x32x8xbf16> to vector<32x8xbf16>
    %166 = vector.shape_cast %163 : vector<32x8xbf16> to vector<1x32x8xbf16>
    tpu.vector_store %arg9[%c3_102, %c0_103, %c16_104], %166 {strides = array<i32>} : memref<18x32x24xbf16, #tpu.memory_space<vmem>>, vector<1x32x8xbf16>,
    %c4_105 = arith.constant 4 : index
    %c0_106 = arith.constant 0 : index
    %c0_107 = arith.constant 0 : index
    %167 = vector.load %arg8[%c4_105, %c0_106, %c0_107] : memref<18x16x8xf32, #tpu.memory_space<vmem>>, vector<1x16x8xf32>
    %168 = vector.shape_cast %167 : vector<1x16x8xf32> to vector<16x8xf32>
    %cst_108 = arith.constant dense<0.000000e+00> : vector<34x8xf32>
    %169 = tpu.matmul %4, %168, %cst_108 {dimension_numbers = #tpu.dot_dimension_numbers<[1], [0], [0], [1], [0, 0, 1, 1], [], []>} : vector<34x16xf32>, vector<16x8xf32>, vector<34x8xf32> -> vector<34x8xf32>
    %170 = arith.truncf %169 : vector<34x8xf32> to vector<34x8xbf16>
    %171 = vector.extract_strided_slice %170 {offsets = [0, 0], sizes = [32, 8], strides = [1, 1]} : vector<34x8xbf16> to vector<32x8xbf16>
    %c4_109 = arith.constant 4 : index
    %c0_110 = arith.constant 0 : index
    %c0_111 = arith.constant 0 : index
    %172 = vector.load %arg9[%c4_109, %c0_110, %c0_111] : memref<18x32x24xbf16, #tpu.memory_space<vmem>>, vector<1x32x8xbf16>
    %173 = vector.shape_cast %172 : vector<1x32x8xbf16> to vector<32x8xbf16>
    %174 = vector.shape_cast %171 : vector<32x8xbf16> to vector<1x32x8xbf16>
    tpu.vector_store %arg9[%c4_109, %c0_110, %c0_111], %174 {strides = array<i32>} : memref<18x32x24xbf16, #tpu.memory_space<vmem>>, vector<1x32x8xbf16>,
    %175 = vector.extract_strided_slice %170 {offsets = [1, 0], sizes = [32, 8], strides = [1, 1]} : vector<34x8xbf16> to vector<32x8xbf16>
    %c4_112 = arith.constant 4 : index
    %c0_113 = arith.constant 0 : index
    %c8_114 = arith.constant 8 : index
    %176 = vector.load %arg9[%c4_112, %c0_113, %c8_114] : memref<18x32x24xbf16, #tpu.memory_space<vmem>>, vector<1x32x8xbf16>
    %177 = vector.shape_cast %176 : vector<1x32x8xbf16> to vector<32x8xbf16>
    %178 = vector.shape_cast %175 : vector<32x8xbf16> to vector<1x32x8xbf16>
    tpu.vector_store %arg9[%c4_112, %c0_113, %c8_114], %178 {strides = array<i32>} : memref<18x32x24xbf16, #tpu.memory_space<vmem>>, vector<1x32x8xbf16>,
    %179 = vector.extract_strided_slice %170 {offsets = [2, 0], sizes = [32, 8], strides = [1, 1]} : vector<34x8xbf16> to vector<32x8xbf16>
    %c4_115 = arith.constant 4 : index
    %c0_116 = arith.constant 0 : index
    %c16_117 = arith.constant 16 : index
    %180 = vector.load %arg9[%c4_115, %c0_116, %c16_117] : memref<18x32x24xbf16, #tpu.memory_space<vmem>>, vector<1x32x8xbf16>
    %181 = vector.shape_cast %180 : vector<1x32x8xbf16> to vector<32x8xbf16>
    %182 = vector.shape_cast %179 : vector<32x8xbf16> to vector<1x32x8xbf16>
    tpu.vector_store %arg9[%c4_115, %c0_116, %c16_117], %182 {strides = array<i32>} : memref<18x32x24xbf16, #tpu.memory_space<vmem>>, vector<1x32x8xbf16>,
    %c5_118 = arith.constant 5 : index
    %c0_119 = arith.constant 0 : index
    %c0_120 = arith.constant 0 : index
    %183 = vector.load %arg8[%c5_118, %c0_119, %c0_120] : memref<18x16x8xf32, #tpu.memory_space<vmem>>, vector<1x16x8xf32>
    %184 = vector.shape_cast %183 : vector<1x16x8xf32> to vector<16x8xf32>
    %cst_121 = arith.constant dense<0.000000e+00> : vector<34x8xf32>
    %185 = tpu.matmul %4, %184, %cst_121 {dimension_numbers = #tpu.dot_dimension_numbers<[1], [0], [0], [1], [0, 0, 1, 1], [], []>} : vector<34x16xf32>, vector<16x8xf32>, vector<34x8xf32> -> vector<34x8xf32>
    %186 = arith.truncf %185 : vector<34x8xf32> to vector<34x8xbf16>
    %187 = vector.extract_strided_slice %186 {offsets = [0, 0], sizes = [32, 8], strides = [1, 1]} : vector<34x8xbf16> to vector<32x8xbf16>
    %c5_122 = arith.constant 5 : index
    %c0_123 = arith.constant 0 : index
    %c0_124 = arith.constant 0 : index
    %188 = vector.load %arg9[%c5_122, %c0_123, %c0_124] : memref<18x32x24xbf16, #tpu.memory_space<vmem>>, vector<1x32x8xbf16>
    %189 = vector.shape_cast %188 : vector<1x32x8xbf16> to vector<32x8xbf16>
    %190 = vector.shape_cast %187 : vector<32x8xbf16> to vector<1x32x8xbf16>
    tpu.vector_store %arg9[%c5_122, %c0_123, %c0_124], %190 {strides = array<i32>} : memref<18x32x24xbf16, #tpu.memory_space<vmem>>, vector<1x32x8xbf16>,
    %191 = vector.extract_strided_slice %186 {offsets = [1, 0], sizes = [32, 8], strides = [1, 1]} : vector<34x8xbf16> to vector<32x8xbf16>
    %c5_125 = arith.constant 5 : index
    %c0_126 = arith.constant 0 : index
    %c8_127 = arith.constant 8 : index
    %192 = vector.load %arg9[%c5_125, %c0_126, %c8_127] : memref<18x32x24xbf16, #tpu.memory_space<vmem>>, vector<1x32x8xbf16>
    %193 = vector.shape_cast %192 : vector<1x32x8xbf16> to vector<32x8xbf16>
    %194 = vector.shape_cast %191 : vector<32x8xbf16> to vector<1x32x8xbf16>
    tpu.vector_store %arg9[%c5_125, %c0_126, %c8_127], %194 {strides = array<i32>} : memref<18x32x24xbf16, #tpu.memory_space<vmem>>, vector<1x32x8xbf16>,
    %195 = vector.extract_strided_slice %186 {offsets = [2, 0], sizes = [32, 8], strides = [1, 1]} : vector<34x8xbf16> to vector<32x8xbf16>
    %c5_128 = arith.constant 5 : index
    %c0_129 = arith.constant 0 : index
    %c16_130 = arith.constant 16 : index
    %196 = vector.load %arg9[%c5_128, %c0_129, %c16_130] : memref<18x32x24xbf16, #tpu.memory_space<vmem>>, vector<1x32x8xbf16>
    %197 = vector.shape_cast %196 : vector<1x32x8xbf16> to vector<32x8xbf16>
    %198 = vector.shape_cast %195 : vector<32x8xbf16> to vector<1x32x8xbf16>
    tpu.vector_store %arg9[%c5_128, %c0_129, %c16_130], %198 {strides = array<i32>} : memref<18x32x24xbf16, #tpu.memory_space<vmem>>, vector<1x32x8xbf16>,
    %c6_131 = arith.constant 6 : index
    %c0_132 = arith.constant 0 : index
    %c0_133 = arith.constant 0 : index
    %199 = vector.load %arg8[%c6_131, %c0_132, %c0_133] : memref<18x16x8xf32, #tpu.memory_space<vmem>>, vector<1x16x8xf32>
    %200 = vector.shape_cast %199 : vector<1x16x8xf32> to vector<16x8xf32>
    %cst_134 = arith.constant dense<0.000000e+00> : vector<34x8xf32>
    %201 = tpu.matmul %4, %200, %cst_134 {dimension_numbers = #tpu.dot_dimension_numbers<[1], [0], [0], [1], [0, 0, 1, 1], [], []>} : vector<34x16xf32>, vector<16x8xf32>, vector<34x8xf32> -> vector<34x8xf32>
    %202 = arith.truncf %201 : vector<34x8xf32> to vector<34x8xbf16>
    %203 = vector.extract_strided_slice %202 {offsets = [0, 0], sizes = [32, 8], strides = [1, 1]} : vector<34x8xbf16> to vector<32x8xbf16>
    %c6_135 = arith.constant 6 : index
    %c0_136 = arith.constant 0 : index
    %c0_137 = arith.constant 0 : index
    %204 = vector.load %arg9[%c6_135, %c0_136, %c0_137] : memref<18x32x24xbf16, #tpu.memory_space<vmem>>, vector<1x32x8xbf16>
    %205 = vector.shape_cast %204 : vector<1x32x8xbf16> to vector<32x8xbf16>
    %206 = vector.shape_cast %203 : vector<32x8xbf16> to vector<1x32x8xbf16>
    tpu.vector_store %arg9[%c6_135, %c0_136, %c0_137], %206 {strides = array<i32>} : memref<18x32x24xbf16, #tpu.memory_space<vmem>>, vector<1x32x8xbf16>,
    %207 = vector.extract_strided_slice %202 {offsets = [1, 0], sizes = [32, 8], strides = [1, 1]} : vector<34x8xbf16> to vector<32x8xbf16>
    %c6_138 = arith.constant 6 : index
    %c0_139 = arith.constant 0 : index
    %c8_140 = arith.constant 8 : index
    %208 = vector.load %arg9[%c6_138, %c0_139, %c8_140] : memref<18x32x24xbf16, #tpu.memory_space<vmem>>, vector<1x32x8xbf16>
    %209 = vector.shape_cast %208 : vector<1x32x8xbf16> to vector<32x8xbf16>
    %210 = vector.shape_cast %207 : vector<32x8xbf16> to vector<1x32x8xbf16>
    tpu.vector_store %arg9[%c6_138, %c0_139, %c8_140], %210 {strides = array<i32>} : memref<18x32x24xbf16, #tpu.memory_space<vmem>>, vector<1x32x8xbf16>,
    %211 = vector.extract_strided_slice %202 {offsets = [2, 0], sizes = [32, 8], strides = [1, 1]} : vector<34x8xbf16> to vector<32x8xbf16>
    %c6_141 = arith.constant 6 : index
    %c0_142 = arith.constant 0 : index
    %c16_143 = arith.constant 16 : index
    %212 = vector.load %arg9[%c6_141, %c0_142, %c16_143] : memref<18x32x24xbf16, #tpu.memory_space<vmem>>, vector<1x32x8xbf16>
    %213 = vector.shape_cast %212 : vector<1x32x8xbf16> to vector<32x8xbf16>
    %214 = vector.shape_cast %211 : vector<32x8xbf16> to vector<1x32x8xbf16>
    tpu.vector_store %arg9[%c6_141, %c0_142, %c16_143], %214 {strides = array<i32>} : memref<18x32x24xbf16, #tpu.memory_space<vmem>>, vector<1x32x8xbf16>,
    %c7_144 = arith.constant 7 : index
    %c0_145 = arith.constant 0 : index
    %c0_146 = arith.constant 0 : index
    %215 = vector.load %arg8[%c7_144, %c0_145, %c0_146] : memref<18x16x8xf32, #tpu.memory_space<vmem>>, vector<1x16x8xf32>
    %216 = vector.shape_cast %215 : vector<1x16x8xf32> to vector<16x8xf32>
    %cst_147 = arith.constant dense<0.000000e+00> : vector<34x8xf32>
    %217 = tpu.matmul %4, %216, %cst_147 {dimension_numbers = #tpu.dot_dimension_numbers<[1], [0], [0], [1], [0, 0, 1, 1], [], []>} : vector<34x16xf32>, vector<16x8xf32>, vector<34x8xf32> -> vector<34x8xf32>
    %218 = arith.truncf %217 : vector<34x8xf32> to vector<34x8xbf16>
    %219 = vector.extract_strided_slice %218 {offsets = [0, 0], sizes = [32, 8], strides = [1, 1]} : vector<34x8xbf16> to vector<32x8xbf16>
    %c7_148 = arith.constant 7 : index
    %c0_149 = arith.constant 0 : index
    %c0_150 = arith.constant 0 : index
    %220 = vector.load %arg9[%c7_148, %c0_149, %c0_150] : memref<18x32x24xbf16, #tpu.memory_space<vmem>>, vector<1x32x8xbf16>
    %221 = vector.shape_cast %220 : vector<1x32x8xbf16> to vector<32x8xbf16>
    %222 = vector.shape_cast %219 : vector<32x8xbf16> to vector<1x32x8xbf16>
    tpu.vector_store %arg9[%c7_148, %c0_149, %c0_150], %222 {strides = array<i32>} : memref<18x32x24xbf16, #tpu.memory_space<vmem>>, vector<1x32x8xbf16>,
    %223 = vector.extract_strided_slice %218 {offsets = [1, 0], sizes = [32, 8], strides = [1, 1]} : vector<34x8xbf16> to vector<32x8xbf16>
    %c7_151 = arith.constant 7 : index
    %c0_152 = arith.constant 0 : index
    %c8_153 = arith.constant 8 : index
    %224 = vector.load %arg9[%c7_151, %c0_152, %c8_153] : memref<18x32x24xbf16, #tpu.memory_space<vmem>>, vector<1x32x8xbf16>
    %225 = vector.shape_cast %224 : vector<1x32x8xbf16> to vector<32x8xbf16>
    %226 = vector.shape_cast %223 : vector<32x8xbf16> to vector<1x32x8xbf16>
    tpu.vector_store %arg9[%c7_151, %c0_152, %c8_153], %226 {strides = array<i32>} : memref<18x32x24xbf16, #tpu.memory_space<vmem>>, vector<1x32x8xbf16>,
    %227 = vector.extract_strided_slice %218 {offsets = [2, 0], sizes = [32, 8], strides = [1, 1]} : vector<34x8xbf16> to vector<32x8xbf16>
    %c7_154 = arith.constant 7 : index
    %c0_155 = arith.constant 0 : index
    %c16_156 = arith.constant 16 : index
    %228 = vector.load %arg9[%c7_154, %c0_155, %c16_156] : memref<18x32x24xbf16, #tpu.memory_space<vmem>>, vector<1x32x8xbf16>
    %229 = vector.shape_cast %228 : vector<1x32x8xbf16> to vector<32x8xbf16>
    %230 = vector.shape_cast %227 : vector<32x8xbf16> to vector<1x32x8xbf16>
    tpu.vector_store %arg9[%c7_154, %c0_155, %c16_156], %230 {strides = array<i32>} : memref<18x32x24xbf16, #tpu.memory_space<vmem>>, vector<1x32x8xbf16>,
    %c8_157 = arith.constant 8 : index
    %c0_158 = arith.constant 0 : index
    %c0_159 = arith.constant 0 : index
    %231 = vector.load %arg8[%c8_157, %c0_158, %c0_159] : memref<18x16x8xf32, #tpu.memory_space<vmem>>, vector<1x16x8xf32>
    %232 = vector.shape_cast %231 : vector<1x16x8xf32> to vector<16x8xf32>
    %cst_160 = arith.constant dense<0.000000e+00> : vector<34x8xf32>
    %233 = tpu.matmul %4, %232, %cst_160 {dimension_numbers = #tpu.dot_dimension_numbers<[1], [0], [0], [1], [0, 0, 1, 1], [], []>} : vector<34x16xf32>, vector<16x8xf32>, vector<34x8xf32> -> vector<34x8xf32>
    %234 = arith.truncf %233 : vector<34x8xf32> to vector<34x8xbf16>
    %235 = vector.extract_strided_slice %234 {offsets = [0, 0], sizes = [32, 8], strides = [1, 1]} : vector<34x8xbf16> to vector<32x8xbf16>
    %c8_161 = arith.constant 8 : index
    %c0_162 = arith.constant 0 : index
    %c0_163 = arith.constant 0 : index
    %236 = vector.load %arg9[%c8_161, %c0_162, %c0_163] : memref<18x32x24xbf16, #tpu.memory_space<vmem>>, vector<1x32x8xbf16>
    %237 = vector.shape_cast %236 : vector<1x32x8xbf16> to vector<32x8xbf16>
    %238 = vector.shape_cast %235 : vector<32x8xbf16> to vector<1x32x8xbf16>
    tpu.vector_store %arg9[%c8_161, %c0_162, %c0_163], %238 {strides = array<i32>} : memref<18x32x24xbf16, #tpu.memory_space<vmem>>, vector<1x32x8xbf16>,
    %239 = vector.extract_strided_slice %234 {offsets = [1, 0], sizes = [32, 8], strides = [1, 1]} : vector<34x8xbf16> to vector<32x8xbf16>
    %c8_164 = arith.constant 8 : index
    %c0_165 = arith.constant 0 : index
    %c8_166 = arith.constant 8 : index
    %240 = vector.load %arg9[%c8_164, %c0_165, %c8_166] : memref<18x32x24xbf16, #tpu.memory_space<vmem>>, vector<1x32x8xbf16>
    %241 = vector.shape_cast %240 : vector<1x32x8xbf16> to vector<32x8xbf16>
    %242 = vector.shape_cast %239 : vector<32x8xbf16> to vector<1x32x8xbf16>
    tpu.vector_store %arg9[%c8_164, %c0_165, %c8_166], %242 {strides = array<i32>} : memref<18x32x24xbf16, #tpu.memory_space<vmem>>, vector<1x32x8xbf16>,
    %243 = vector.extract_strided_slice %234 {offsets = [2, 0], sizes = [32, 8], strides = [1, 1]} : vector<34x8xbf16> to vector<32x8xbf16>
    %c8_167 = arith.constant 8 : index
    %c0_168 = arith.constant 0 : index
    %c16_169 = arith.constant 16 : index
    %244 = vector.load %arg9[%c8_167, %c0_168, %c16_169] : memref<18x32x24xbf16, #tpu.memory_space<vmem>>, vector<1x32x8xbf16>
    %245 = vector.shape_cast %244 : vector<1x32x8xbf16> to vector<32x8xbf16>
    %246 = vector.shape_cast %243 : vector<32x8xbf16> to vector<1x32x8xbf16>
    tpu.vector_store %arg9[%c8_167, %c0_168, %c16_169], %246 {strides = array<i32>} : memref<18x32x24xbf16, #tpu.memory_space<vmem>>, vector<1x32x8xbf16>,
    %c9_170 = arith.constant 9 : index
    %c0_171 = arith.constant 0 : index
    %c0_172 = arith.constant 0 : index
    %247 = vector.load %arg8[%c9_170, %c0_171, %c0_172] : memref<18x16x8xf32, #tpu.memory_space<vmem>>, vector<1x16x8xf32>
    %248 = vector.shape_cast %247 : vector<1x16x8xf32> to vector<16x8xf32>
    %cst_173 = arith.constant dense<0.000000e+00> : vector<34x8xf32>
    %249 = tpu.matmul %4, %248, %cst_173 {dimension_numbers = #tpu.dot_dimension_numbers<[1], [0], [0], [1], [0, 0, 1, 1], [], []>} : vector<34x16xf32>, vector<16x8xf32>, vector<34x8xf32> -> vector<34x8xf32>
    %250 = arith.truncf %249 : vector<34x8xf32> to vector<34x8xbf16>
    %251 = vector.extract_strided_slice %250 {offsets = [0, 0], sizes = [32, 8], strides = [1, 1]} : vector<34x8xbf16> to vector<32x8xbf16>
    %c9_174 = arith.constant 9 : index
    %c0_175 = arith.constant 0 : index
    %c0_176 = arith.constant 0 : index
    %252 = vector.load %arg9[%c9_174, %c0_175, %c0_176] : memref<18x32x24xbf16, #tpu.memory_space<vmem>>, vector<1x32x8xbf16>
    %253 = vector.shape_cast %252 : vector<1x32x8xbf16> to vector<32x8xbf16>
    %254 = vector.shape_cast %251 : vector<32x8xbf16> to vector<1x32x8xbf16>
    tpu.vector_store %arg9[%c9_174, %c0_175, %c0_176], %254 {strides = array<i32>} : memref<18x32x24xbf16, #tpu.memory_space<vmem>>, vector<1x32x8xbf16>,
    %255 = vector.extract_strided_slice %250 {offsets = [1, 0], sizes = [32, 8], strides = [1, 1]} : vector<34x8xbf16> to vector<32x8xbf16>
    %c9_177 = arith.constant 9 : index
    %c0_178 = arith.constant 0 : index
    %c8_179 = arith.constant 8 : index
    %256 = vector.load %arg9[%c9_177, %c0_178, %c8_179] : memref<18x32x24xbf16, #tpu.memory_space<vmem>>, vector<1x32x8xbf16>
    %257 = vector.shape_cast %256 : vector<1x32x8xbf16> to vector<32x8xbf16>
    %258 = vector.shape_cast %255 : vector<32x8xbf16> to vector<1x32x8xbf16>
    tpu.vector_store %arg9[%c9_177, %c0_178, %c8_179], %258 {strides = array<i32>} : memref<18x32x24xbf16, #tpu.memory_space<vmem>>, vector<1x32x8xbf16>,
    %259 = vector.extract_strided_slice %250 {offsets = [2, 0], sizes = [32, 8], strides = [1, 1]} : vector<34x8xbf16> to vector<32x8xbf16>
    %c9_180 = arith.constant 9 : index
    %c0_181 = arith.constant 0 : index
    %c16_182 = arith.constant 16 : index
    %260 = vector.load %arg9[%c9_180, %c0_181, %c16_182] : memref<18x32x24xbf16, #tpu.memory_space<vmem>>, vector<1x32x8xbf16>
    %261 = vector.shape_cast %260 : vector<1x32x8xbf16> to vector<32x8xbf16>
    %262 = vector.shape_cast %259 : vector<32x8xbf16> to vector<1x32x8xbf16>
    tpu.vector_store %arg9[%c9_180, %c0_181, %c16_182], %262 {strides = array<i32>} : memref<18x32x24xbf16, #tpu.memory_space<vmem>>, vector<1x32x8xbf16>,
    %c10_183 = arith.constant 10 : index
    %c0_184 = arith.constant 0 : index
    %c0_185 = arith.constant 0 : index
    %263 = vector.load %arg8[%c10_183, %c0_184, %c0_185] : memref<18x16x8xf32, #tpu.memory_space<vmem>>, vector<1x16x8xf32>
    %264 = vector.shape_cast %263 : vector<1x16x8xf32> to vector<16x8xf32>
    %cst_186 = arith.constant dense<0.000000e+00> : vector<34x8xf32>
    %265 = tpu.matmul %4, %264, %cst_186 {dimension_numbers = #tpu.dot_dimension_numbers<[1], [0], [0], [1], [0, 0, 1, 1], [], []>} : vector<34x16xf32>, vector<16x8xf32>, vector<34x8xf32> -> vector<34x8xf32>
    %266 = arith.truncf %265 : vector<34x8xf32> to vector<34x8xbf16>
    %267 = vector.extract_strided_slice %266 {offsets = [0, 0], sizes = [32, 8], strides = [1, 1]} : vector<34x8xbf16> to vector<32x8xbf16>
    %c10_187 = arith.constant 10 : index
    %c0_188 = arith.constant 0 : index
    %c0_189 = arith.constant 0 : index
    %268 = vector.load %arg9[%c10_187, %c0_188, %c0_189] : memref<18x32x24xbf16, #tpu.memory_space<vmem>>, vector<1x32x8xbf16>
    %269 = vector.shape_cast %268 : vector<1x32x8xbf16> to vector<32x8xbf16>
    %270 = vector.shape_cast %267 : vector<32x8xbf16> to vector<1x32x8xbf16>
    tpu.vector_store %arg9[%c10_187, %c0_188, %c0_189], %270 {strides = array<i32>} : memref<18x32x24xbf16, #tpu.memory_space<vmem>>, vector<1x32x8xbf16>,
    %271 = vector.extract_strided_slice %266 {offsets = [1, 0], sizes = [32, 8], strides = [1, 1]} : vector<34x8xbf16> to vector<32x8xbf16>
    %c10_190 = arith.constant 10 : index
    %c0_191 = arith.constant 0 : index
    %c8_192 = arith.constant 8 : index
    %272 = vector.load %arg9[%c10_190, %c0_191, %c8_192] : memref<18x32x24xbf16, #tpu.memory_space<vmem>>, vector<1x32x8xbf16>
    %273 = vector.shape_cast %272 : vector<1x32x8xbf16> to vector<32x8xbf16>
    %274 = vector.shape_cast %271 : vector<32x8xbf16> to vector<1x32x8xbf16>
    tpu.vector_store %arg9[%c10_190, %c0_191, %c8_192], %274 {strides = array<i32>} : memref<18x32x24xbf16, #tpu.memory_space<vmem>>, vector<1x32x8xbf16>,
    %275 = vector.extract_strided_slice %266 {offsets = [2, 0], sizes = [32, 8], strides = [1, 1]} : vector<34x8xbf16> to vector<32x8xbf16>
    %c10_193 = arith.constant 10 : index
    %c0_194 = arith.constant 0 : index
    %c16_195 = arith.constant 16 : index
    %276 = vector.load %arg9[%c10_193, %c0_194, %c16_195] : memref<18x32x24xbf16, #tpu.memory_space<vmem>>, vector<1x32x8xbf16>
    %277 = vector.shape_cast %276 : vector<1x32x8xbf16> to vector<32x8xbf16>
    %278 = vector.shape_cast %275 : vector<32x8xbf16> to vector<1x32x8xbf16>
    tpu.vector_store %arg9[%c10_193, %c0_194, %c16_195], %278 {strides = array<i32>} : memref<18x32x24xbf16, #tpu.memory_space<vmem>>, vector<1x32x8xbf16>,
    %c11_196 = arith.constant 11 : index
    %c0_197 = arith.constant 0 : index
    %c0_198 = arith.constant 0 : index
    %279 = vector.load %arg8[%c11_196, %c0_197, %c0_198] : memref<18x16x8xf32, #tpu.memory_space<vmem>>, vector<1x16x8xf32>
    %280 = vector.shape_cast %279 : vector<1x16x8xf32> to vector<16x8xf32>
    %cst_199 = arith.constant dense<0.000000e+00> : vector<34x8xf32>
    %281 = tpu.matmul %4, %280, %cst_199 {dimension_numbers = #tpu.dot_dimension_numbers<[1], [0], [0], [1], [0, 0, 1, 1], [], []>} : vector<34x16xf32>, vector<16x8xf32>, vector<34x8xf32> -> vector<34x8xf32>
    %282 = arith.truncf %281 : vector<34x8xf32> to vector<34x8xbf16>
    %283 = vector.extract_strided_slice %282 {offsets = [0, 0], sizes = [32, 8], strides = [1, 1]} : vector<34x8xbf16> to vector<32x8xbf16>
    %c11_200 = arith.constant 11 : index
    %c0_201 = arith.constant 0 : index
    %c0_202 = arith.constant 0 : index
    %284 = vector.load %arg9[%c11_200, %c0_201, %c0_202] : memref<18x32x24xbf16, #tpu.memory_space<vmem>>, vector<1x32x8xbf16>
    %285 = vector.shape_cast %284 : vector<1x32x8xbf16> to vector<32x8xbf16>
    %286 = vector.shape_cast %283 : vector<32x8xbf16> to vector<1x32x8xbf16>
    tpu.vector_store %arg9[%c11_200, %c0_201, %c0_202], %286 {strides = array<i32>} : memref<18x32x24xbf16, #tpu.memory_space<vmem>>, vector<1x32x8xbf16>,
    %287 = vector.extract_strided_slice %282 {offsets = [1, 0], sizes = [32, 8], strides = [1, 1]} : vector<34x8xbf16> to vector<32x8xbf16>
    %c11_203 = arith.constant 11 : index
    %c0_204 = arith.constant 0 : index
    %c8_205 = arith.constant 8 : index
    %288 = vector.load %arg9[%c11_203, %c0_204, %c8_205] : memref<18x32x24xbf16, #tpu.memory_space<vmem>>, vector<1x32x8xbf16>
    %289 = vector.shape_cast %288 : vector<1x32x8xbf16> to vector<32x8xbf16>
    %290 = vector.shape_cast %287 : vector<32x8xbf16> to vector<1x32x8xbf16>
    tpu.vector_store %arg9[%c11_203, %c0_204, %c8_205], %290 {strides = array<i32>} : memref<18x32x24xbf16, #tpu.memory_space<vmem>>, vector<1x32x8xbf16>,
    %291 = vector.extract_strided_slice %282 {offsets = [2, 0], sizes = [32, 8], strides = [1, 1]} : vector<34x8xbf16> to vector<32x8xbf16>
    %c11_206 = arith.constant 11 : index
    %c0_207 = arith.constant 0 : index
    %c16_208 = arith.constant 16 : index
    %292 = vector.load %arg9[%c11_206, %c0_207, %c16_208] : memref<18x32x24xbf16, #tpu.memory_space<vmem>>, vector<1x32x8xbf16>
    %293 = vector.shape_cast %292 : vector<1x32x8xbf16> to vector<32x8xbf16>
    %294 = vector.shape_cast %291 : vector<32x8xbf16> to vector<1x32x8xbf16>
    tpu.vector_store %arg9[%c11_206, %c0_207, %c16_208], %294 {strides = array<i32>} : memref<18x32x24xbf16, #tpu.memory_space<vmem>>, vector<1x32x8xbf16>,
    %c12_209 = arith.constant 12 : index
    %c0_210 = arith.constant 0 : index
    %c0_211 = arith.constant 0 : index
    %295 = vector.load %arg8[%c12_209, %c0_210, %c0_211] : memref<18x16x8xf32, #tpu.memory_space<vmem>>, vector<1x16x8xf32>
    %296 = vector.shape_cast %295 : vector<1x16x8xf32> to vector<16x8xf32>
    %cst_212 = arith.constant dense<0.000000e+00> : vector<34x8xf32>
    %297 = tpu.matmul %4, %296, %cst_212 {dimension_numbers = #tpu.dot_dimension_numbers<[1], [0], [0], [1], [0, 0, 1, 1], [], []>} : vector<34x16xf32>, vector<16x8xf32>, vector<34x8xf32> -> vector<34x8xf32>
    %298 = arith.truncf %297 : vector<34x8xf32> to vector<34x8xbf16>
    %299 = vector.extract_strided_slice %298 {offsets = [0, 0], sizes = [32, 8], strides = [1, 1]} : vector<34x8xbf16> to vector<32x8xbf16>
    %c12_213 = arith.constant 12 : index
    %c0_214 = arith.constant 0 : index
    %c0_215 = arith.constant 0 : index
    %300 = vector.load %arg9[%c12_213, %c0_214, %c0_215] : memref<18x32x24xbf16, #tpu.memory_space<vmem>>, vector<1x32x8xbf16>
    %301 = vector.shape_cast %300 : vector<1x32x8xbf16> to vector<32x8xbf16>
    %302 = vector.shape_cast %299 : vector<32x8xbf16> to vector<1x32x8xbf16>
    tpu.vector_store %arg9[%c12_213, %c0_214, %c0_215], %302 {strides = array<i32>} : memref<18x32x24xbf16, #tpu.memory_space<vmem>>, vector<1x32x8xbf16>,
    %303 = vector.extract_strided_slice %298 {offsets = [1, 0], sizes = [32, 8], strides = [1, 1]} : vector<34x8xbf16> to vector<32x8xbf16>
    %c12_216 = arith.constant 12 : index
    %c0_217 = arith.constant 0 : index
    %c8_218 = arith.constant 8 : index
    %304 = vector.load %arg9[%c12_216, %c0_217, %c8_218] : memref<18x32x24xbf16, #tpu.memory_space<vmem>>, vector<1x32x8xbf16>
    %305 = vector.shape_cast %304 : vector<1x32x8xbf16> to vector<32x8xbf16>
    %306 = vector.shape_cast %303 : vector<32x8xbf16> to vector<1x32x8xbf16>
    tpu.vector_store %arg9[%c12_216, %c0_217, %c8_218], %306 {strides = array<i32>} : memref<18x32x24xbf16, #tpu.memory_space<vmem>>, vector<1x32x8xbf16>,
    %307 = vector.extract_strided_slice %298 {offsets = [2, 0], sizes = [32, 8], strides = [1, 1]} : vector<34x8xbf16> to vector<32x8xbf16>
    %c12_219 = arith.constant 12 : index
    %c0_220 = arith.constant 0 : index
    %c16_221 = arith.constant 16 : index
    %308 = vector.load %arg9[%c12_219, %c0_220, %c16_221] : memref<18x32x24xbf16, #tpu.memory_space<vmem>>, vector<1x32x8xbf16>
    %309 = vector.shape_cast %308 : vector<1x32x8xbf16> to vector<32x8xbf16>
    %310 = vector.shape_cast %307 : vector<32x8xbf16> to vector<1x32x8xbf16>
    tpu.vector_store %arg9[%c12_219, %c0_220, %c16_221], %310 {strides = array<i32>} : memref<18x32x24xbf16, #tpu.memory_space<vmem>>, vector<1x32x8xbf16>,
    %c13_222 = arith.constant 13 : index
    %c0_223 = arith.constant 0 : index
    %c0_224 = arith.constant 0 : index
    %311 = vector.load %arg8[%c13_222, %c0_223, %c0_224] : memref<18x16x8xf32, #tpu.memory_space<vmem>>, vector<1x16x8xf32>
    %312 = vector.shape_cast %311 : vector<1x16x8xf32> to vector<16x8xf32>
    %cst_225 = arith.constant dense<0.000000e+00> : vector<34x8xf32>
    %313 = tpu.matmul %4, %312, %cst_225 {dimension_numbers = #tpu.dot_dimension_numbers<[1], [0], [0], [1], [0, 0, 1, 1], [], []>} : vector<34x16xf32>, vector<16x8xf32>, vector<34x8xf32> -> vector<34x8xf32>
    %314 = arith.truncf %313 : vector<34x8xf32> to vector<34x8xbf16>
    %315 = vector.extract_strided_slice %314 {offsets = [0, 0], sizes = [32, 8], strides = [1, 1]} : vector<34x8xbf16> to vector<32x8xbf16>
    %c13_226 = arith.constant 13 : index
    %c0_227 = arith.constant 0 : index
    %c0_228 = arith.constant 0 : index
    %316 = vector.load %arg9[%c13_226, %c0_227, %c0_228] : memref<18x32x24xbf16, #tpu.memory_space<vmem>>, vector<1x32x8xbf16>
    %317 = vector.shape_cast %316 : vector<1x32x8xbf16> to vector<32x8xbf16>
    %318 = vector.shape_cast %315 : vector<32x8xbf16> to vector<1x32x8xbf16>
    tpu.vector_store %arg9[%c13_226, %c0_227, %c0_228], %318 {strides = array<i32>} : memref<18x32x24xbf16, #tpu.memory_space<vmem>>, vector<1x32x8xbf16>,
    %319 = vector.extract_strided_slice %314 {offsets = [1, 0], sizes = [32, 8], strides = [1, 1]} : vector<34x8xbf16> to vector<32x8xbf16>
    %c13_229 = arith.constant 13 : index
    %c0_230 = arith.constant 0 : index
    %c8_231 = arith.constant 8 : index
    %320 = vector.load %arg9[%c13_229, %c0_230, %c8_231] : memref<18x32x24xbf16, #tpu.memory_space<vmem>>, vector<1x32x8xbf16>
    %321 = vector.shape_cast %320 : vector<1x32x8xbf16> to vector<32x8xbf16>
    %322 = vector.shape_cast %319 : vector<32x8xbf16> to vector<1x32x8xbf16>
    tpu.vector_store %arg9[%c13_229, %c0_230, %c8_231], %322 {strides = array<i32>} : memref<18x32x24xbf16, #tpu.memory_space<vmem>>, vector<1x32x8xbf16>,
    %323 = vector.extract_strided_slice %314 {offsets = [2, 0], sizes = [32, 8], strides = [1, 1]} : vector<34x8xbf16> to vector<32x8xbf16>
    %c13_232 = arith.constant 13 : index
    %c0_233 = arith.constant 0 : index
    %c16_234 = arith.constant 16 : index
    %324 = vector.load %arg9[%c13_232, %c0_233, %c16_234] : memref<18x32x24xbf16, #tpu.memory_space<vmem>>, vector<1x32x8xbf16>
    %325 = vector.shape_cast %324 : vector<1x32x8xbf16> to vector<32x8xbf16>
    %326 = vector.shape_cast %323 : vector<32x8xbf16> to vector<1x32x8xbf16>
    tpu.vector_store %arg9[%c13_232, %c0_233, %c16_234], %326 {strides = array<i32>} : memref<18x32x24xbf16, #tpu.memory_space<vmem>>, vector<1x32x8xbf16>,
    %c14_235 = arith.constant 14 : index
    %c0_236 = arith.constant 0 : index
    %c0_237 = arith.constant 0 : index
    %327 = vector.load %arg8[%c14_235, %c0_236, %c0_237] : memref<18x16x8xf32, #tpu.memory_space<vmem>>, vector<1x16x8xf32>
    %328 = vector.shape_cast %327 : vector<1x16x8xf32> to vector<16x8xf32>
    %cst_238 = arith.constant dense<0.000000e+00> : vector<34x8xf32>
    %329 = tpu.matmul %4, %328, %cst_238 {dimension_numbers = #tpu.dot_dimension_numbers<[1], [0], [0], [1], [0, 0, 1, 1], [], []>} : vector<34x16xf32>, vector<16x8xf32>, vector<34x8xf32> -> vector<34x8xf32>
    %330 = arith.truncf %329 : vector<34x8xf32> to vector<34x8xbf16>
    %331 = vector.extract_strided_slice %330 {offsets = [0, 0], sizes = [32, 8], strides = [1, 1]} : vector<34x8xbf16> to vector<32x8xbf16>
    %c14_239 = arith.constant 14 : index
    %c0_240 = arith.constant 0 : index
    %c0_241 = arith.constant 0 : index
    %332 = vector.load %arg9[%c14_239, %c0_240, %c0_241] : memref<18x32x24xbf16, #tpu.memory_space<vmem>>, vector<1x32x8xbf16>
    %333 = vector.shape_cast %332 : vector<1x32x8xbf16> to vector<32x8xbf16>
    %334 = vector.shape_cast %331 : vector<32x8xbf16> to vector<1x32x8xbf16>
    tpu.vector_store %arg9[%c14_239, %c0_240, %c0_241], %334 {strides = array<i32>} : memref<18x32x24xbf16, #tpu.memory_space<vmem>>, vector<1x32x8xbf16>,
    %335 = vector.extract_strided_slice %330 {offsets = [1, 0], sizes = [32, 8], strides = [1, 1]} : vector<34x8xbf16> to vector<32x8xbf16>
    %c14_242 = arith.constant 14 : index
    %c0_243 = arith.constant 0 : index
    %c8_244 = arith.constant 8 : index
    %336 = vector.load %arg9[%c14_242, %c0_243, %c8_244] : memref<18x32x24xbf16, #tpu.memory_space<vmem>>, vector<1x32x8xbf16>
    %337 = vector.shape_cast %336 : vector<1x32x8xbf16> to vector<32x8xbf16>
    %338 = vector.shape_cast %335 : vector<32x8xbf16> to vector<1x32x8xbf16>
    tpu.vector_store %arg9[%c14_242, %c0_243, %c8_244], %338 {strides = array<i32>} : memref<18x32x24xbf16, #tpu.memory_space<vmem>>, vector<1x32x8xbf16>,
    %339 = vector.extract_strided_slice %330 {offsets = [2, 0], sizes = [32, 8], strides = [1, 1]} : vector<34x8xbf16> to vector<32x8xbf16>
    %c14_245 = arith.constant 14 : index
    %c0_246 = arith.constant 0 : index
    %c16_247 = arith.constant 16 : index
    %340 = vector.load %arg9[%c14_245, %c0_246, %c16_247] : memref<18x32x24xbf16, #tpu.memory_space<vmem>>, vector<1x32x8xbf16>
    %341 = vector.shape_cast %340 : vector<1x32x8xbf16> to vector<32x8xbf16>
    %342 = vector.shape_cast %339 : vector<32x8xbf16> to vector<1x32x8xbf16>
    tpu.vector_store %arg9[%c14_245, %c0_246, %c16_247], %342 {strides = array<i32>} : memref<18x32x24xbf16, #tpu.memory_space<vmem>>, vector<1x32x8xbf16>,
    %c15_248 = arith.constant 15 : index
    %c0_249 = arith.constant 0 : index
    %c0_250 = arith.constant 0 : index
    %343 = vector.load %arg8[%c15_248, %c0_249, %c0_250] : memref<18x16x8xf32, #tpu.memory_space<vmem>>, vector<1x16x8xf32>
    %344 = vector.shape_cast %343 : vector<1x16x8xf32> to vector<16x8xf32>
    %cst_251 = arith.constant dense<0.000000e+00> : vector<34x8xf32>
    %345 = tpu.matmul %4, %344, %cst_251 {dimension_numbers = #tpu.dot_dimension_numbers<[1], [0], [0], [1], [0, 0, 1, 1], [], []>} : vector<34x16xf32>, vector<16x8xf32>, vector<34x8xf32> -> vector<34x8xf32>
    %346 = arith.truncf %345 : vector<34x8xf32> to vector<34x8xbf16>
    %347 = vector.extract_strided_slice %346 {offsets = [0, 0], sizes = [32, 8], strides = [1, 1]} : vector<34x8xbf16> to vector<32x8xbf16>
    %c15_252 = arith.constant 15 : index
    %c0_253 = arith.constant 0 : index
    %c0_254 = arith.constant 0 : index
    %348 = vector.load %arg9[%c15_252, %c0_253, %c0_254] : memref<18x32x24xbf16, #tpu.memory_space<vmem>>, vector<1x32x8xbf16>
    %349 = vector.shape_cast %348 : vector<1x32x8xbf16> to vector<32x8xbf16>
    %350 = vector.shape_cast %347 : vector<32x8xbf16> to vector<1x32x8xbf16>
    tpu.vector_store %arg9[%c15_252, %c0_253, %c0_254], %350 {strides = array<i32>} : memref<18x32x24xbf16, #tpu.memory_space<vmem>>, vector<1x32x8xbf16>,
    %351 = vector.extract_strided_slice %346 {offsets = [1, 0], sizes = [32, 8], strides = [1, 1]} : vector<34x8xbf16> to vector<32x8xbf16>
    %c15_255 = arith.constant 15 : index
    %c0_256 = arith.constant 0 : index
    %c8_257 = arith.constant 8 : index
    %352 = vector.load %arg9[%c15_255, %c0_256, %c8_257] : memref<18x32x24xbf16, #tpu.memory_space<vmem>>, vector<1x32x8xbf16>
    %353 = vector.shape_cast %352 : vector<1x32x8xbf16> to vector<32x8xbf16>
    %354 = vector.shape_cast %351 : vector<32x8xbf16> to vector<1x32x8xbf16>
    tpu.vector_store %arg9[%c15_255, %c0_256, %c8_257], %354 {strides = array<i32>} : memref<18x32x24xbf16, #tpu.memory_space<vmem>>, vector<1x32x8xbf16>,
    %355 = vector.extract_strided_slice %346 {offsets = [2, 0], sizes = [32, 8], strides = [1, 1]} : vector<34x8xbf16> to vector<32x8xbf16>
    %c15_258 = arith.constant 15 : index
    %c0_259 = arith.constant 0 : index
    %c16_260 = arith.constant 16 : index
    %356 = vector.load %arg9[%c15_258, %c0_259, %c16_260] : memref<18x32x24xbf16, #tpu.memory_space<vmem>>, vector<1x32x8xbf16>
    %357 = vector.shape_cast %356 : vector<1x32x8xbf16> to vector<32x8xbf16>
    %358 = vector.shape_cast %355 : vector<32x8xbf16> to vector<1x32x8xbf16>
    tpu.vector_store %arg9[%c15_258, %c0_259, %c16_260], %358 {strides = array<i32>} : memref<18x32x24xbf16, #tpu.memory_space<vmem>>, vector<1x32x8xbf16>,
    %c16_261 = arith.constant 16 : index
    %c0_262 = arith.constant 0 : index
    %c0_263 = arith.constant 0 : index
    %359 = vector.load %arg8[%c16_261, %c0_262, %c0_263] : memref<18x16x8xf32, #tpu.memory_space<vmem>>, vector<1x16x8xf32>
    %360 = vector.shape_cast %359 : vector<1x16x8xf32> to vector<16x8xf32>
    %cst_264 = arith.constant dense<0.000000e+00> : vector<34x8xf32>
    %361 = tpu.matmul %4, %360, %cst_264 {dimension_numbers = #tpu.dot_dimension_numbers<[1], [0], [0], [1], [0, 0, 1, 1], [], []>} : vector<34x16xf32>, vector<16x8xf32>, vector<34x8xf32> -> vector<34x8xf32>
    %362 = arith.truncf %361 : vector<34x8xf32> to vector<34x8xbf16>
    %363 = vector.extract_strided_slice %362 {offsets = [0, 0], sizes = [32, 8], strides = [1, 1]} : vector<34x8xbf16> to vector<32x8xbf16>
    %c16_265 = arith.constant 16 : index
    %c0_266 = arith.constant 0 : index
    %c0_267 = arith.constant 0 : index
    %364 = vector.load %arg9[%c16_265, %c0_266, %c0_267] : memref<18x32x24xbf16, #tpu.memory_space<vmem>>, vector<1x32x8xbf16>
    %365 = vector.shape_cast %364 : vector<1x32x8xbf16> to vector<32x8xbf16>
    %366 = vector.shape_cast %363 : vector<32x8xbf16> to vector<1x32x8xbf16>
    tpu.vector_store %arg9[%c16_265, %c0_266, %c0_267], %366 {strides = array<i32>} : memref<18x32x24xbf16, #tpu.memory_space<vmem>>, vector<1x32x8xbf16>,
    %367 = vector.extract_strided_slice %362 {offsets = [1, 0], sizes = [32, 8], strides = [1, 1]} : vector<34x8xbf16> to vector<32x8xbf16>
    %c16_268 = arith.constant 16 : index
    %c0_269 = arith.constant 0 : index
    %c8_270 = arith.constant 8 : index
    %368 = vector.load %arg9[%c16_268, %c0_269, %c8_270] : memref<18x32x24xbf16, #tpu.memory_space<vmem>>, vector<1x32x8xbf16>
    %369 = vector.shape_cast %368 : vector<1x32x8xbf16> to vector<32x8xbf16>
    %370 = vector.shape_cast %367 : vector<32x8xbf16> to vector<1x32x8xbf16>
    tpu.vector_store %arg9[%c16_268, %c0_269, %c8_270], %370 {strides = array<i32>} : memref<18x32x24xbf16, #tpu.memory_space<vmem>>, vector<1x32x8xbf16>,
    %371 = vector.extract_strided_slice %362 {offsets = [2, 0], sizes = [32, 8], strides = [1, 1]} : vector<34x8xbf16> to vector<32x8xbf16>
    %c16_271 = arith.constant 16 : index
    %c0_272 = arith.constant 0 : index
    %c16_273 = arith.constant 16 : index
    %372 = vector.load %arg9[%c16_271, %c0_272, %c16_273] : memref<18x32x24xbf16, #tpu.memory_space<vmem>>, vector<1x32x8xbf16>
    %373 = vector.shape_cast %372 : vector<1x32x8xbf16> to vector<32x8xbf16>
    %374 = vector.shape_cast %371 : vector<32x8xbf16> to vector<1x32x8xbf16>
    tpu.vector_store %arg9[%c16_271, %c0_272, %c16_273], %374 {strides = array<i32>} : memref<18x32x24xbf16, #tpu.memory_space<vmem>>, vector<1x32x8xbf16>,
    %c17 = arith.constant 17 : index
    %c0_274 = arith.constant 0 : index
    %c0_275 = arith.constant 0 : index
    %375 = vector.load %arg8[%c17, %c0_274, %c0_275] : memref<18x16x8xf32, #tpu.memory_space<vmem>>, vector<1x16x8xf32>
    %376 = vector.shape_cast %375 : vector<1x16x8xf32> to vector<16x8xf32>
    %cst_276 = arith.constant dense<0.000000e+00> : vector<34x8xf32>
    %377 = tpu.matmul %4, %376, %cst_276 {dimension_numbers = #tpu.dot_dimension_numbers<[1], [0], [0], [1], [0, 0, 1, 1], [], []>} : vector<34x16xf32>, vector<16x8xf32>, vector<34x8xf32> -> vector<34x8xf32>
    %378 = arith.truncf %377 : vector<34x8xf32> to vector<34x8xbf16>
    %379 = vector.extract_strided_slice %378 {offsets = [0, 0], sizes = [32, 8], strides = [1, 1]} : vector<34x8xbf16> to vector<32x8xbf16>
    %c17_277 = arith.constant 17 : index
    %c0_278 = arith.constant 0 : index
    %c0_279 = arith.constant 0 : index
    %380 = vector.load %arg9[%c17_277, %c0_278, %c0_279] : memref<18x32x24xbf16, #tpu.memory_space<vmem>>, vector<1x32x8xbf16>
    %381 = vector.shape_cast %380 : vector<1x32x8xbf16> to vector<32x8xbf16>
    %382 = vector.shape_cast %379 : vector<32x8xbf16> to vector<1x32x8xbf16>
    tpu.vector_store %arg9[%c17_277, %c0_278, %c0_279], %382 {strides = array<i32>} : memref<18x32x24xbf16, #tpu.memory_space<vmem>>, vector<1x32x8xbf16>,
    %383 = vector.extract_strided_slice %378 {offsets = [1, 0], sizes = [32, 8], strides = [1, 1]} : vector<34x8xbf16> to vector<32x8xbf16>
    %c17_280 = arith.constant 17 : index
    %c0_281 = arith.constant 0 : index
    %c8_282 = arith.constant 8 : index
    %384 = vector.load %arg9[%c17_280, %c0_281, %c8_282] : memref<18x32x24xbf16, #tpu.memory_space<vmem>>, vector<1x32x8xbf16>
    %385 = vector.shape_cast %384 : vector<1x32x8xbf16> to vector<32x8xbf16>
    %386 = vector.shape_cast %383 : vector<32x8xbf16> to vector<1x32x8xbf16>
    tpu.vector_store %arg9[%c17_280, %c0_281, %c8_282], %386 {strides = array<i32>} : memref<18x32x24xbf16, #tpu.memory_space<vmem>>, vector<1x32x8xbf16>,
    %387 = vector.extract_strided_slice %378 {offsets = [2, 0], sizes = [32, 8], strides = [1, 1]} : vector<34x8xbf16> to vector<32x8xbf16>
    %c17_283 = arith.constant 17 : index
    %c0_284 = arith.constant 0 : index
    %c16_285 = arith.constant 16 : index
    %388 = vector.load %arg9[%c17_283, %c0_284, %c16_285] : memref<18x32x24xbf16, #tpu.memory_space<vmem>>, vector<1x32x8xbf16>
    %389 = vector.shape_cast %388 : vector<1x32x8xbf16> to vector<32x8xbf16>
    %390 = vector.shape_cast %387 : vector<32x8xbf16> to vector<1x32x8xbf16>
    tpu.vector_store %arg9[%c17_283, %c0_284, %c16_285], %390 {strides = array<i32>} : memref<18x32x24xbf16, #tpu.memory_space<vmem>>, vector<1x32x8xbf16>,
    %cst_286 = arith.constant 0.000000e+00 : f32
    %391 = vector.broadcast %cst_286 : f32 to vector<512x8xf32>
    %c0_287 = arith.constant 0 : index
    %c0_288 = arith.constant 0 : index
    %c0_289 = arith.constant 0 : index
    %392 = vector.load %arg9[%c0_287, %c0_288, %c0_289] : memref<18x32x24xbf16, #tpu.memory_space<vmem>>, vector<16x32x24xbf16>
    %393 = vector.shape_cast %392 : vector<16x32x24xbf16> to vector<512x24xbf16>
    %c0_290 = arith.constant 0 : index
    %c0_291 = arith.constant 0 : index
    %c0_292 = arith.constant 0 : index
    %394 = vector.load %arg5[%c0_290, %c0_291, %c0_292] : memref<3x24x8xbf16, #tpu.memory_space<vmem>>, vector<1x24x8xbf16>
    %395 = vector.shape_cast %394 : vector<1x24x8xbf16> to vector<24x8xbf16>
    %cst_293 = arith.constant dense<0.000000e+00> : vector<512x8xf32>
    %396 = tpu.matmul %393, %395, %cst_293 {dimension_numbers = #tpu.dot_dimension_numbers<[1], [0], [0], [1], [0, 0, 1, 1], [], []>} : vector<512x24xbf16>, vector<24x8xbf16>, vector<512x8xf32> -> vector<512x8xf32>
    %397 = arith.addf %391, %396 : vector<512x8xf32>
    %c1_294 = arith.constant 1 : index
    %c0_295 = arith.constant 0 : index
    %c0_296 = arith.constant 0 : index
    %398 = vector.load %arg9[%c1_294, %c0_295, %c0_296] : memref<18x32x24xbf16, #tpu.memory_space<vmem>>, vector<16x32x24xbf16>
    %399 = vector.shape_cast %398 : vector<16x32x24xbf16> to vector<512x24xbf16>
    %c1_297 = arith.constant 1 : index
    %c0_298 = arith.constant 0 : index
    %c0_299 = arith.constant 0 : index
    %400 = vector.load %arg5[%c1_297, %c0_298, %c0_299] : memref<3x24x8xbf16, #tpu.memory_space<vmem>>, vector<1x24x8xbf16>
    %401 = vector.shape_cast %400 : vector<1x24x8xbf16> to vector<24x8xbf16>
    %cst_300 = arith.constant dense<0.000000e+00> : vector<512x8xf32>
    %402 = tpu.matmul %399, %401, %cst_300 {dimension_numbers = #tpu.dot_dimension_numbers<[1], [0], [0], [1], [0, 0, 1, 1], [], []>} : vector<512x24xbf16>, vector<24x8xbf16>, vector<512x8xf32> -> vector<512x8xf32>
    %403 = arith.addf %397, %402 : vector<512x8xf32>
    %c2_301 = arith.constant 2 : index
    %c0_302 = arith.constant 0 : index
    %c0_303 = arith.constant 0 : index
    %404 = vector.load %arg9[%c2_301, %c0_302, %c0_303] : memref<18x32x24xbf16, #tpu.memory_space<vmem>>, vector<16x32x24xbf16>
    %405 = vector.shape_cast %404 : vector<16x32x24xbf16> to vector<512x24xbf16>
    %c2_304 = arith.constant 2 : index
    %c0_305 = arith.constant 0 : index
    %c0_306 = arith.constant 0 : index
    %406 = vector.load %arg5[%c2_304, %c0_305, %c0_306] : memref<3x24x8xbf16, #tpu.memory_space<vmem>>, vector<1x24x8xbf16>
    %407 = vector.shape_cast %406 : vector<1x24x8xbf16> to vector<24x8xbf16>
    %cst_307 = arith.constant dense<0.000000e+00> : vector<512x8xf32>
    %408 = tpu.matmul %405, %407, %cst_307 {dimension_numbers = #tpu.dot_dimension_numbers<[1], [0], [0], [1], [0, 0, 1, 1], [], []>} : vector<512x24xbf16>, vector<24x8xbf16>, vector<512x8xf32> -> vector<512x8xf32>
    %409 = arith.addf %403, %408 : vector<512x8xf32>
    %c0_308 = arith.constant 0 : index
    %c0_309 = arith.constant 0 : index
    %410 = vector.load %arg6[%c0_308, %c0_309] : memref<1x8xf32, #tpu.memory_space<vmem>>, vector<1x8xf32>
    %411 = vector.broadcast %410 : vector<1x8xf32> to vector<512x8xf32>
    %412 = arith.addf %409, %411 : vector<512x8xf32>
    %cst_310 = arith.constant 0.000000e+00 : f32
    %413 = vector.broadcast %cst_310 : f32 to vector<512x8xf32>
    %414 = arith.cmpf oge, %412, %413 : vector<512x8xf32>
    %cst_311 = arith.constant 2.000000e-01 : f32
    %415 = vector.broadcast %cst_311 : f32 to vector<512x8xf32>
    %416 = arith.mulf %415, %412 : vector<512x8xf32>
    %417 = arith.select %414, %412, %416 : vector<512x8xi1>, vector<512x8xf32>
    %c0_312 = arith.constant 0 : index
    %c0_313 = arith.constant 0 : index
    %c0_314 = arith.constant 0 : index
    %418 = vector.load %arg7[%c0_312, %c0_313, %c0_314] : memref<1x512x8xf32, #tpu.memory_space<vmem>>, vector<1x512x8xf32>
    %419 = vector.shape_cast %418 : vector<1x512x8xf32> to vector<512x8xf32>
    %420 = vector.shape_cast %417 : vector<512x8xf32> to vector<1x512x8xf32>
    tpu.vector_store %arg7[%c0_312, %c0_313, %c0_314], %420 {strides = array<i32>} : memref<1x512x8xf32, #tpu.memory_space<vmem>>, vector<1x512x8xf32>,
    return
  }
  func.func @transform_0(%arg0: i32, %arg1: i32) -> (i32, i32, i32, i32) {
    %c0_i32 = arith.constant 0 : i32
    %c0_i32_0 = arith.constant 0 : i32
    %c0_i32_1 = arith.constant 0 : i32
    %c0_i32_2 = arith.constant 0 : i32
    return %arg0, %c0_i32, %c0_i32_0, %c0_i32_1 : i32, i32, i32, i32
  }
  func.func @transform_1(%arg0: i32, %arg1: i32) -> (i32, i32) {
    %c0_i32 = arith.constant 0 : i32
    %c0_i32_0 = arith.constant 0 : i32
    %c0_i32_1 = arith.constant 0 : i32
    return %c0_i32, %c0_i32_0 : i32, i32
  }
  func.func @transform_2(%arg0: i32, %arg1: i32) -> (i32, i32) {
    %c0_i32 = arith.constant 0 : i32
    %c0_i32_0 = arith.constant 0 : i32
    %c0_i32_1 = arith.constant 0 : i32
    return %c0_i32, %c0_i32_0 : i32, i32
  }
  func.func @transform_3(%arg0: i32, %arg1: i32) -> (i32, i32, i32) {
    %c0_i32 = arith.constant 0 : i32
    %c0_i32_0 = arith.constant 0 : i32
    %c0_i32_1 = arith.constant 0 : i32
    %c0_i32_2 = arith.constant 0 : i32
    return %c0_i32, %c0_i32_0, %c0_i32_1 : i32, i32, i32
  }
  func.func @transform_4(%arg0: i32, %arg1: i32) -> (i32, i32) {
    %c0_i32 = arith.constant 0 : i32
    %c0_i32_0 = arith.constant 0 : i32
    %c0_i32_1 = arith.constant 0 : i32
    return %c0_i32, %c0_i32_0 : i32, i32
  }
  func.func @transform_5(%arg0: i32, %arg1: i32) -> (i32, i32, i32) {
    %c0_i32 = arith.constant 0 : i32
    %c0_i32_0 = arith.constant 0 : i32
    return %arg0, %arg1, %c0_i32 : i32, i32, i32
  }
}

</mosaic_0001>

<llo_original>
// kernel: tpu_custom_call.1
$region0: #{tpu_custom_call.1}
  #allocation0 [shape = 'u32[]', space=smem, size = 0x4, offset = 0x4, fixed_abs, tag = 'smem constant byte address 0x4 - core index']
  #allocation1 [shape = 'u32[144,128]{1,0:T(1,128)}', space=vmem, size = 0x12000, scoped, tag = 'internal scratch']
  #allocation2 [shape = 'f32[18,16,8]{2,1,0:T(8,128)}', space=vmem, size = 0x24000, scoped, tag = 'scratch operand']
  #allocation3 [shape = 'bf16[18,32,24]{2,1,0:T(16,128)(2,1)}', space=vmem, size = 0x24000, scoped, tag = 'scratch operand']
  %s0 = inlined_call_operand.vmem [shape: f32[2,16,16,8], index: 0, kind: input, shape index: {}]
  %s1 = inlined_call_operand.vmem [shape: f32[34,16], index: 1, kind: input, shape index: {}]
  %s2 = inlined_call_operand.vmem [shape: f32[34,16], index: 2, kind: input, shape index: {}]
  %s3 = inlined_call_operand.vmem [shape: bf16[3,24,8], index: 3, kind: input, shape index: {}]
  %s4 = inlined_call_operand.vmem [shape: f32[1,8], index: 4, kind: input, shape index: {}]
  %s5 = inlined_call_operand.vmem [shape: f32[2,1024,8], index: 5, kind: output, shape index: {}]
  %s6 = sld [smem:[#allocation0]]
  $region53: #{tpu_custom_call.1} parent=0
    _
  %s8 = ssub.s32 1, %s6
  %s9 = scalar_select 0, %s8, %s6
  loop: start=0, step=1, limit=6
  $region2: #{tpu_custom_call.1} parent=0 // loop_pre_header
    _
  $region3: #{tpu_custom_call.1} parent=0 // loop_header
    %s11 = sphi 0, %s15
    %p12 = scmp.ge.s32.totalorder %s11, 6
    %s18 = sphi 0, %s30
    %s19 = sphi 0, %s26
    %s20 = sphi 0, %s18
    %s21 = sphi 0, %s19
    %s22 = sphi 0, %s20
    %s23 = sphi 0, %s21
    %s33 = sphi 0, %s35
    %s36 = sphi 0, %s33
    %s37 = sphi 0, %s36
    %s53 = sphi 0, %s37
    %s57 = sphi 0, %s57
    %s59 = sphi 0, %s57
    %s60 = sphi 0, %s59
    %s74 = sphi 0, %s60
    %s78 = sphi 0, %s78
    %s80 = sphi 0, %s78
    %s81 = sphi 0, %s80
    %s95 = sphi 0, %s81
    %s99 = sphi 0, %s99
    %s101 = sphi 0, %s99
    %s102 = sphi 0, %s101
    %s116 = sphi 0, %s102
    %s120 = sphi 0, %s120
    %s122 = sphi 0, %s120
    %s123 = sphi 0, %s122
    %s137 = sphi 0, %s123
    %s145 = sphi 0, %s147
    %s148 = sphi 0, %s145
    %s149 = sphi 0, %s148
    %s165 = sphi 0, %s149
  $region4: #{tpu_custom_call.1} parent=0 // loop_header_branch
    %14 = sbr.rel (%p12) target = $region8
  $region5: #{tpu_custom_call.1} parent=0 // loop_body
    %s16 = ssub.s32 %s11, 1
    %s17 = ssub.s32 %s11, 2
    %s24 = sadd.s32 1, %s19
    %p25 = scmp.ge.s32.totalorder %s24, 2
    %s26 = scalar_select %p25, 0, %s24
    %s27 = sadd.s32 1, %s18
    %s28 = scalar_select %p25, %s27, %s18
    %p29 = scmp.ge.s32.totalorder %s28, 2
    %s30 = scalar_select %p29, 0, %s28
    %s31 = ssub.s32 %s18, %s30
    %p32 = scmp.eq.s32.totalorder %s31, 0
    %s34 = sadd.s32 %s33, 1
    %s35 = scalar_select %p32, %s33, %s34
    %p38 = pneg %p32
    %p39 = scmp.eq.s32.totalorder %s11, 3
    %p40 = por %p38, %p39
    %p41 = scmp.ne.s32.totalorder %s33, %s36
    %p42 = scmp.eq.s32.totalorder %s11, 0
    %p43 = por %p41, %p42
    %p44 = scmp.ne.s32.totalorder %s33, %s36
    %p45 = scmp.eq.s32.totalorder %s16, 3
    %p46 = por %p44, %p45
    %p47 = scmp.ne.s32.totalorder %s36, %s37
    %p48 = scmp.eq.s32.totalorder %s16, 0
    %p49 = por %p47, %p48
    %p50 = scmp.ne.s32.totalorder %s36, %s37
    %p51 = scmp.eq.s32.totalorder %s17, 3
    %p52 = por %p50, %p51
    %p54 = scmp.ne.s32.totalorder %s37, %s53
    %p55 = scmp.eq.s32.totalorder %s17, 0
    %p56 = por %p54, %p55
    %s58 = sadd.s32 %s57, 1
    %p61 = scmp.eq.s32.totalorder %s11, 3
    %p62 = scmp.ne.s32.totalorder %s57, %s59
    %p63 = scmp.eq.s32.totalorder %s11, 0
    %p64 = por %p62, %p63
    %p65 = scmp.ne.s32.totalorder %s57, %s59
    %p66 = scmp.eq.s32.totalorder %s16, 3
    %p67 = por %p65, %p66
    %p68 = scmp.ne.s32.totalorder %s59, %s60
    %p69 = scmp.eq.s32.totalorder %s16, 0
    %p70 = por %p68, %p69
    %p71 = scmp.ne.s32.totalorder %s59, %s60
    %p72 = scmp.eq.s32.totalorder %s17, 3
    %p73 = por %p71, %p72
    %p75 = scmp.ne.s32.totalorder %s60, %s74
    %p76 = scmp.eq.s32.totalorder %s17, 0
    %p77 = por %p75, %p76
    %s79 = sadd.s32 %s78, 1
    %p82 = scmp.eq.s32.totalorder %s11, 3
    %p83 = scmp.ne.s32.totalorder %s78, %s80
    %p84 = scmp.eq.s32.totalorder %s11, 0
    %p85 = por %p83, %p84
    %p86 = scmp.ne.s32.totalorder %s78, %s80
    %p87 = scmp.eq.s32.totalorder %s16, 3
    %p88 = por %p86, %p87
    %p89 = scmp.ne.s32.totalorder %s80, %s81
    %p90 = scmp.eq.s32.totalorder %s16, 0
    %p91 = por %p89, %p90
    %p92 = scmp.ne.s32.totalorder %s80, %s81
    %p93 = scmp.eq.s32.totalorder %s17, 3
    %p94 = por %p92, %p93
    %p96 = scmp.ne.s32.totalorder %s81, %s95
    %p97 = scmp.eq.s32.totalorder %s17, 0
    %p98 = por %p96, %p97
    %s100 = sadd.s32 %s99, 1
    %p103 = scmp.eq.s32.totalorder %s11, 3
    %p104 = scmp.ne.s32.totalorder %s99, %s101
    %p105 = scmp.eq.s32.totalorder %s11, 0
    %p106 = por %p104, %p105
    %p107 = scmp.ne.s32.totalorder %s99, %s101
    %p108 = scmp.eq.s32.totalorder %s16, 3
    %p109 = por %p107, %p108
    %p110 = scmp.ne.s32.totalorder %s101, %s102
    %p111 = scmp.eq.s32.totalorder %s16, 0
    %p112 = por %p110, %p111
    %p113 = scmp.ne.s32.totalorder %s101, %s102
    %p114 = scmp.eq.s32.totalorder %s17, 3
    %p115 = por %p113, %p114
    %p117 = scmp.ne.s32.totalorder %s102, %s116
    %p118 = scmp.eq.s32.totalorder %s17, 0
    %p119 = por %p117, %p118
    %s121 = sadd.s32 %s120, 1
    %p124 = scmp.eq.s32.totalorder %s11, 3
    %p125 = scmp.ne.s32.totalorder %s120, %s122
    %p126 = scmp.eq.s32.totalorder %s11, 0
    %p127 = por %p125, %p126
    %p128 = scmp.ne.s32.totalorder %s120, %s122
    %p129 = scmp.eq.s32.totalorder %s16, 3
    %p130 = por %p128, %p129
    %p131 = scmp.ne.s32.totalorder %s122, %s123
    %p132 = scmp.eq.s32.totalorder %s16, 0
    %p133 = por %p131, %p132
    %p134 = scmp.ne.s32.totalorder %s122, %s123
    %p135 = scmp.eq.s32.totalorder %s17, 3
    %p136 = por %p134, %p135
    %p138 = scmp.ne.s32.totalorder %s123, %s137
    %p139 = scmp.eq.s32.totalorder %s17, 0
    %p140 = por %p138, %p139
    %s141 = ssub.s32 %s18, %s30
    %s142 = ssub.s32 %s19, %s26
    %s143 = sor.u32 %s141, %s142
    %p144 = scmp.eq.s32.totalorder %s143, 0
    %s146 = sadd.s32 %s145, 1
    %s147 = scalar_select %p144, %s145, %s146
    %p150 = pneg %p144
    %p151 = scmp.eq.s32.totalorder %s11, 3
    %p152 = por %p150, %p151
    %p153 = scmp.ne.s32.totalorder %s145, %s148
    %p154 = scmp.eq.s32.totalorder %s11, 0
    %p155 = por %p153, %p154
    %p156 = scmp.ne.s32.totalorder %s145, %s148
    %p157 = scmp.eq.s32.totalorder %s16, 3
    %p158 = por %p156, %p157
    %p159 = scmp.ne.s32.totalorder %s148, %s149
    %p160 = scmp.eq.s32.totalorder %s16, 0
    %p161 = por %p159, %p160
    %p162 = scmp.ne.s32.totalorder %s148, %s149
    %p163 = scmp.eq.s32.totalorder %s17, 3
    %p164 = por %p162, %p163
    %p166 = scmp.ne.s32.totalorder %s149, %s165
    %p167 = scmp.eq.s32.totalorder %s17, 0
    %p168 = por %p166, %p167
    %p169 = scmp.le.s32.totalorder 1, %s11
    %p170 = scmp.lt.s32.totalorder %s11, 5
    %p171 = pnand %p169, %p170
    %p172 = pneg %p171
    // Predicated region
    $region9: #{tpu_custom_call.1} parent=5 // pred_check
      _
    $region10: #{tpu_custom_call.1} parent=5 // pred_check_branch
      %174 = sbr.rel (%p171) target = $region12
    $region11: #{tpu_custom_call.1} parent=5 // pred_region
      %s175 = ssub.s32 %s11, 1
      // Predicated region
      $region13: #{tpu_custom_call.1} parent=11 // pred_check
        %p176 = pneg %p70
      $region14: #{tpu_custom_call.1} parent=11 // pred_check_branch
        %178 = sbr.rel (%p176) target = $region16
      $region15: #{tpu_custom_call.1} parent=11 // pred_region
        _
      $region16: #{tpu_custom_call.1} parent=11 // pred_fallthru
        _
      // Predicated region
      $region17: #{tpu_custom_call.1} parent=11 // pred_check
        %p179 = pneg %p91
      $region18: #{tpu_custom_call.1} parent=11 // pred_check_branch
        %181 = sbr.rel (%p179) target = $region20
      $region19: #{tpu_custom_call.1} parent=11 // pred_region
        _
      $region20: #{tpu_custom_call.1} parent=11 // pred_fallthru
        _
      // Predicated region
      $region21: #{tpu_custom_call.1} parent=11 // pred_check
        %p182 = pneg %p112
      $region22: #{tpu_custom_call.1} parent=11 // pred_check_branch
        %184 = sbr.rel (%p182) target = $region24
      $region23: #{tpu_custom_call.1} parent=11 // pred_region
        _
      $region24: #{tpu_custom_call.1} parent=11 // pred_fallthru
        _
      // Predicated region
      $region25: #{tpu_custom_call.1} parent=11 // pred_check
        %p185 = pneg %p133
      $region26: #{tpu_custom_call.1} parent=11 // pred_check_branch
        %187 = sbr.rel (%p185) target = $region28
      $region27: #{tpu_custom_call.1} parent=11 // pred_region
        _
      $region28: #{tpu_custom_call.1} parent=11 // pred_fallthru
        _
    $region12: #{tpu_custom_call.1} parent=5 // pred_fallthru
      _
    %p188 = scmp.lt.s32.totalorder %s11, 4
    // Predicated region
    $region29: #{tpu_custom_call.1} parent=5 // pred_check
      %p189 = pneg %p188
    $region30: #{tpu_custom_call.1} parent=5 // pred_check_branch
      %191 = sbr.rel (%p189) target = $region32
    $region31: #{tpu_custom_call.1} parent=5 // pred_region
      // Predicated region
      $region33: #{tpu_custom_call.1} parent=31 // pred_check
        %p192 = pneg %p43
      $region34: #{tpu_custom_call.1} parent=31 // pred_check_branch
        %194 = sbr.rel (%p192) target = $region36
      $region35: #{tpu_custom_call.1} parent=31 // pred_region
        %p195 = scmp.lt.s32.totalorder %s18, 1
        %s196 = scalar_select %p195, %s18, 1
        %s197 = smul.addr %s196, 32
        %s198 = smul.addr %s197, 8
        %s199 = scalar_lea.vmem %s0, %s198
      $region36: #{tpu_custom_call.1} parent=31 // pred_fallthru
        _
    $region32: #{tpu_custom_call.1} parent=5 // pred_fallthru
      _
    %p200 = scmp.le.s32.totalorder 1, %s11
    %p201 = scmp.lt.s32.totalorder %s11, 5
    %p202 = pnand %p200, %p201
    %p203 = pneg %p202
    // Predicated region
    $region37: #{tpu_custom_call.1} parent=5 // pred_check
      _
    $region38: #{tpu_custom_call.1} parent=5 // pred_check_branch
      %205 = sbr.rel (%p202) target = $region40
    $region39: #{tpu_custom_call.1} parent=5 // pred_region
      %s206 = ssub.s32 %s11, 1
      %p207 = scmp.lt.s32.totalorder %s20, 1
      %s208 = scalar_select %p207, %s20, 1
      %s209 = smul.addr %s208, 32
      %s210 = smul.addr %s209, 8
      %s211 = scalar_lea.vmem %s0, %s210
      %p212 = pneg %p49
      %p213 = pneg %p46
      %p214 = pneg %p70
      %p215 = pneg %p67
      %p216 = pneg %p91
      %p217 = pneg %p88
      %p218 = pneg %p112
      %p219 = pneg %p109
      %p220 = pneg %p133
      %p221 = pneg %p130
      %p222 = pneg %p161
      %p223 = pneg %p158
      %s224 = smul.u32 64, %s21
      %p225 = scmp.lt.s32.totalorder %s20, 1
      %s226 = scalar_select %p225, %s20, 1
      %p227 = scmp.lt.s32.totalorder %s224, 127
      %s228 = scalar_select %p227, %s224, 127
      %s229 = smul.addr %s226, 128
      %s230 = sadd.s32 %s228, %s229
      %s231 = smul.addr %s230, 8
      %s232 = scalar_lea.vmem %s5, %s231
      %p233 = scmp.lt.s32.totalorder %s20, 1
      %s234 = scalar_select %p233, %s20, 1
      %s235 = smul.addr %s234, 32
      %s236 = smul.addr %s235, 8
      %s237 = scalar_lea.vmem %s0, %s236
      %s238 = smul.u32 64, %s21
      %p239 = scmp.lt.s32.totalorder %s20, 1
      %s240 = scalar_select %p239, %s20, 1
      %p241 = scmp.lt.s32.totalorder %s238, 127
      %s242 = scalar_select %p241, %s238, 127
      %s243 = smul.addr %s240, 128
      %s244 = sadd.s32 %s242, %s243
      %s245 = smul.addr %s244, 8
      %s246 = scalar_lea.vmem %s5, %s245
      %s247 = smul.u32 64, %s21
      %s249 = smul.u32 %s21, 16
      %s250 = scalar_lea.vmem %s1, %s249
      %v251 = vld [vmem:[%s250] sm:$0xff]
      %v252 = vld [vmem:[%s250 + $0x8] sm:$0xff]
      %v253 = vld [vmem:[%s250 + $0x10] sm:$0x3]
      %v254 = vld [vmem:[%s2] sm:$0xff]
      %v255 = vld [vmem:[%s2 + $0x8] sm:$0xff]
      %v256 = vld [vmem:[%s2 + $0x10] sm:$0xff]
      %v257 = vld [vmem:[%s2 + $0x18] sm:$0xff]
      %v258 = vld [vmem:[%s2 + $0x20] sm:$0x3]
      %v259 = vld [vmem:[%s237] sm:$0xff]
      %v260 = vld [vmem:[%s237 + $0x8] sm:$0xff]
      %v261 = vld [vmem:[%s237 + $0x10] sm:$0xff]
      %v262 = vld [vmem:[%s237 + $0x18] sm:$0xff]
      %v263 = vld [vmem:[%s237 + $0x20] sm:$0xff]
      %v264 = vld [vmem:[%s237 + $0x28] sm:$0xff]
      %v265 = vld [vmem:[%s237 + $0x30] sm:$0xff]
      %v266 = vld [vmem:[%s237 + $0x38] sm:$0xff]
      %v267 = vld [vmem:[%s237 + $0x40] sm:$0xff]
      %v268 = vld [vmem:[%s237 + $0x48] sm:$0xff]
      %v269 = vld [vmem:[%s237 + $0x50] sm:$0xff]
      %v270 = vld [vmem:[%s237 + $0x58] sm:$0xff]
      %v271 = vld [vmem:[%s237 + $0x60] sm:$0xff]
      %v272 = vld [vmem:[%s237 + $0x68] sm:$0xff]
      %v273 = vld [vmem:[%s237 + $0x70] sm:$0xff]
      %v274 = vld [vmem:[%s237 + $0x78] sm:$0xff]
      %v275 = vld [vmem:[%s237 + $0x80] sm:$0xff]
      %v276 = vld [vmem:[%s237 + $0x88] sm:$0xff]
      %v277 = vld [vmem:[%s237 + $0x90] sm:$0xff]
      %v278 = vld [vmem:[%s237 + $0x98] sm:$0xff]
      %v279 = vld [vmem:[%s237 + $0xa0] sm:$0xff]
      %v280 = vld [vmem:[%s237 + $0xa8] sm:$0xff]
      %v281 = vld [vmem:[%s237 + $0xb0] sm:$0xff]
      %v282 = vld [vmem:[%s237 + $0xb8] sm:$0xff]
      %v283 = vld [vmem:[%s237 + $0xc0] sm:$0xff]
      %v284 = vld [vmem:[%s237 + $0xc8] sm:$0xff]
      %v285 = vld [vmem:[%s237 + $0xd0] sm:$0xff]
      %v286 = vld [vmem:[%s237 + $0xd8] sm:$0xff]
      %v287 = vld [vmem:[%s237 + $0xe0] sm:$0xff]
      %v288 = vld [vmem:[%s237 + $0xe8] sm:$0xff]
      %v289 = vld [vmem:[%s237 + $0xf0] sm:$0xff]
      %v290 = vld [vmem:[%s237 + $0xf8] sm:$0xff]
      %v307 = vrot.slane %v261, 7
      %vm308 = vcmask 1041409
      %v309 = vsel %vm308, %v307, %v259
      %v310 = vrot.slane %v263, 6
      %vm311 = vcmask 1042434
      %v312 = vsel %vm311, %v310, %v309
      %v313 = vrot.slane %v265, 5
      %vm314 = vcmask 1043459
      %v315 = vsel %vm314, %v313, %v312
      %v316 = vrot.slane %v267, 4
      %vm317 = vcmask 1044484
      %v318 = vsel %vm317, %v316, %v315
      %v319 = vrot.slane %v269, 3
      %vm320 = vcmask 1045509
      %v321 = vsel %vm320, %v319, %v318
      %v322 = vrot.slane %v271, 2
      %vm323 = vcmask 1046534
      %v324 = vsel %vm323, %v322, %v321
      %v325 = vrot.slane %v273, 1
      %vm326 = vcmask 1047559
      %v327 = vsel %vm326, %v325, %v324
      %v328 = vrot.slane %v277, 7
      %v329 = vsel %vm308, %v328, %v275
      %v330 = vrot.slane %v279, 6
      %v331 = vsel %vm311, %v330, %v329
      %v332 = vrot.slane %v281, 5
      %v333 = vsel %vm314, %v332, %v331
      %v334 = vrot.slane %v283, 4
      %v335 = vsel %vm317, %v334, %v333
      %v336 = vrot.slane %v285, 3
      %v337 = vsel %vm320, %v336, %v335
      %v338 = vrot.slane %v287, 2
      %v339 = vsel %vm323, %v338, %v337
      %v340 = vrot.slane %v289, 1
      %v341 = vsel %vm326, %v340, %v339
      %vm344 = vcmask 130048
      %v346 = vsel %vm344, %v251, 0
      %v349 = vsel %vm344, %v252, 0
      %v352 = vsel %vm344, %v253, 0
      %354 = vmatprep.subr.mxu0 0.0
      %355 = vmatpush1.msra.mxu0 %v327
      %356 = vmatprep.subr.mxu0 0.0
      %357 = vmatpush1.msra.mxu0 %v341
      %358 = vmatprep.subr.mxu0 0.0
      %359 = vmatpush1.msra.mxu0 0.0
      %360 = vmatprep.subr.mxu0 0.0
      %361 = vmatpush1.msra.mxu0 0.0
      %362 = vmatprep.subr.mxu0 0.0
      %363 = vmatpush1.msra.mxu0 0.0
      %364 = vmatprep.subr.mxu0 0.0
      %365 = vmatpush1.msra.mxu0 0.0
      %366 = vmatprep.subr.mxu0 0.0
      %367 = vmatpush1.msra.mxu0 0.0
      %368 = vmatprep.subr.mxu0 0.0
      %369 = vmatpush1.msra.mxu0 0.0
      %370 = vmatprep.subr.mxu0 0.0
      %371 = vmatpush1.msra.mxu0 0.0
      %372 = vmatprep.subr.mxu0 0.0
      %373 = vmatpush1.msra.mxu0 0.0
      %374 = vmatprep.subr.mxu0 0.0
      %375 = vmatpush1.msra.mxu0 0.0
      %376 = vmatprep.subr.mxu0 0.0
      %377 = vmatpush1.msra.mxu0 0.0
      %378 = vmatprep.subr.mxu0 0.0
      %379 = vmatpush1.msra.mxu0 0.0
      %380 = vmatprep.subr.mxu0 0.0
      %381 = vmatpush1.msra.mxu0 0.0
      %382 = vmatprep.subr.mxu0 0.0
      %383 = vmatpush1.msra.mxu0 0.0
      %384 = vmatprep.subr.mxu0 0.0
      %385 = vmatpush1.msra.mxu0 0.0
      %386 = vmatprep.subr.mxu0 0.0
      %387 = vmatpush1.msra.mxu0 0.0
      %388 = vmatprep.subr.mxu0 0.0
      %389 = vmatpush1.msra.mxu0 0.0
      %390 = vmatprep.subr.mxu0 0.0
      %391 = vmatpush1.msra.mxu0 0.0
      %392 = vmatprep.subr.mxu0 0.0
      %393 = vmatpush1.msra.mxu0 0.0
      %394 = vmatprep.subr.mxu0 0.0
      %395 = vmatpush1.msra.mxu0 0.0
      %396 = vmatprep.subr.mxu0 0.0
      %397 = vmatpush1.msra.mxu0 0.0
      %398 = vmatprep.subr.mxu0 0.0
      %399 = vmatpush1.msra.mxu0 0.0
      %400 = vmatprep.subr.mxu0 0.0
      %401 = vmatpush1.msra.mxu0 0.0
      %402 = vmatprep.subr.mxu0 0.0
      %403 = vmatpush1.msra.mxu0 0.0
      %404 = vmatprep.subr.mxu0 0.0
      %405 = vmatpush1.msra.mxu0 0.0
      %406 = vmatprep.subr.mxu0 0.0
      %407 = vmatpush1.msra.mxu0 0.0
      %408 = vmatprep.subr.mxu0 0.0
      %409 = vmatpush1.msra.mxu0 0.0
      %410 = vmatprep.subr.mxu0 0.0
      %411 = vmatpush1.msra.mxu0 0.0
      %412 = vmatprep.subr.mxu0 0.0
      %413 = vmatpush1.msra.mxu0 0.0
      %414 = vmatprep.subr.mxu0 0.0
      %415 = vmatpush1.msra.mxu0 0.0
      %416 = vmatprep.subr.mxu0 0.0
      %417 = vmatpush1.msra.mxu0 0.0
      %418 = vmatprep.mubr.f32.mxu0 0.0
      %419 = vmatmul.mubr.f32.gmra.mrb[0].mxu0 %v346
      %v420 = vpop.f32.mrb[0].mxu0
      %v421 = vadd.f32 0.0, %v420
      %v422 = vpop.f32.mrb[0].mxu0
      %423 = vmatprep.mubr.f32.mxu0 0.0
      %424 = vmatmul.mubr.f32.gmra.mrb[0].mxu0 %v349
      %v425 = vpop.f32.mrb[0].mxu0
      %v426 = vadd.f32 0.0, %v425
      %v427 = vpop.f32.mrb[0].mxu0
      %428 = vmatprep.mubr.f32.mxu0 0.0
      %429 = vmatmul.mubr.f32.gmra.mrb[0].mxu0 %v352
      %v430 = vpop.f32.mrb[0].mxu0
      %v431 = vadd.f32 0.0, %v430
      %v432 = vpop.f32.mrb[0].mxu0
      %433 = vdwg.mxu0
      %v437 = vcombine.high %v421, %v421
      %v439 = vunpack.c.l.s4 1966171168
      %v440 = vunpack.c.0.s8 %v439
      %v441 = vlaneseq
      %v442 = vshrl.u32 %v441, 7
      %v443 = vsub.s32 %v440, %v442
      %v444 = vrot.slane %v421, %v443
      %v446 = vunpack.c.l.s4 1966171168
      %v447 = vunpack.c.0.s8 %v446
      %v448 = vlaneseq
      %v449 = vshrl.u32 %v448, 7
      %v450 = vsub.s32 %v447, %v449
      %v451 = vrot.slane %v437, %v450
      %v452 = vcombine.high %v444, %v444
      %v453 = vcombine.high %v451, %v451
      %v455 = vunpack.c.l.s4 1966171168
      %v456 = vunpack.c.0.s8 %v455
      %v457 = vlaneseq
      %v458 = vshrl.u32 %v457, 7
      %v459 = vsub.s32 %v456, %v458
      %v460 = vrot.slane %v444, %v459
      %v462 = vunpack.c.l.s4 1966171168
      %v463 = vunpack.c.0.s8 %v462
      %v464 = vlaneseq
      %v465 = vshrl.u32 %v464, 7
      %v466 = vsub.s32 %v463, %v465
      %v467 = vrot.slane %v451, %v466
      %v469 = vunpack.c.l.s4 1966171168
      %v470 = vunpack.c.0.s8 %v469
      %v471 = vlaneseq
      %v472 = vshrl.u32 %v471, 7
      %v473 = vsub.s32 %v470, %v472
      %v474 = vrot.slane %v452, %v473
      %v476 = vunpack.c.l.s4 1966171168
      %v477 = vunpack.c.0.s8 %v476
      %v478 = vlaneseq
      %v479 = vshrl.u32 %v478, 7
      %v480 = vsub.s32 %v477, %v479
      %v481 = vrot.slane %v453, %v480
      %v482 = vcombine.high %v460, %v460
      %v483 = vcombine.high %v467, %v467
      %v484 = vcombine.high %v474, %v474
      %v485 = vcombine.high %v481, %v481
      %v486 = vcombine.high %v426, %v426
      %v488 = vunpack.c.l.s4 1966171168
      %v489 = vunpack.c.0.s8 %v488
      %v490 = vlaneseq
      %v491 = vshrl.u32 %v490, 7
      %v492 = vsub.s32 %v489, %v491
      %v493 = vrot.slane %v426, %v492
      %v495 = vunpack.c.l.s4 1966171168
      %v496 = vunpack.c.0.s8 %v495
      %v497 = vlaneseq
      %v498 = vshrl.u32 %v497, 7
      %v499 = vsub.s32 %v496, %v498
      %v500 = vrot.slane %v486, %v499
      %v501 = vcombine.high %v493, %v493
      %v502 = vcombine.high %v500, %v500
      %v504 = vunpack.c.l.s4 1966171168
      %v505 = vunpack.c.0.s8 %v504
      %v506 = vlaneseq
      %v507 = vshrl.u32 %v506, 7
      %v508 = vsub.s32 %v505, %v507
      %v509 = vrot.slane %v493, %v508
      %v511 = vunpack.c.l.s4 1966171168
      %v512 = vunpack.c.0.s8 %v511
      %v513 = vlaneseq
      %v514 = vshrl.u32 %v513, 7
      %v515 = vsub.s32 %v512, %v514
      %v516 = vrot.slane %v500, %v515
      %v518 = vunpack.c.l.s4 1966171168
      %v519 = vunpack.c.0.s8 %v518
      %v520 = vlaneseq
      %v521 = vshrl.u32 %v520, 7
      %v522 = vsub.s32 %v519, %v521
      %v523 = vrot.slane %v501, %v522
      %v525 = vunpack.c.l.s4 1966171168
      %v526 = vunpack.c.0.s8 %v525
      %v527 = vlaneseq
      %v528 = vshrl.u32 %v527, 7
      %v529 = vsub.s32 %v526, %v528
      %v530 = vrot.slane %v502, %v529
      %v531 = vcombine.high %v509, %v509
      %v532 = vcombine.high %v516, %v516
      %v533 = vcombine.high %v523, %v523
      %v534 = vcombine.high %v530, %v530
      %v536 = vunpack.c.l.s4 1966171168
      %v537 = vunpack.c.0.s8 %v536
      %v538 = vlaneseq
      %v539 = vshrl.u32 %v538, 7
      %v540 = vsub.s32 %v537, %v539
      %v541 = vrot.slane %v431, %v540
      %v542 = vcombine.high %v541, %v541
      %v544 = vunpack.c.l.s4 1966171168
      %v545 = vunpack.c.0.s8 %v544
      %v546 = vlaneseq
      %v547 = vshrl.u32 %v546, 7
      %v548 = vsub.s32 %v545, %v547
      %v549 = vrot.slane %v541, %v548
      %v551 = vunpack.c.l.s4 1966171168
      %v552 = vunpack.c.0.s8 %v551
      %v553 = vlaneseq
      %v554 = vshrl.u32 %v553, 7
      %v555 = vsub.s32 %v552, %v554
      %v556 = vrot.slane %v542, %v555
      %vm575 = vcmask 57344
      %576 = vst.msk [vmem:[#allocation2] sm:$0x1] %vm575, %v460
      %577 = vst.msk [vmem:[#allocation2 + $0x10] sm:$0x1] %vm575, %v474
      %578 = vst.msk [vmem:[#allocation2 + $0x20] sm:$0x1] %vm575, %v482
      %579 = vst.msk [vmem:[#allocation2 + $0x30] sm:$0x1] %vm575, %v484
      %580 = vst.msk [vmem:[#allocation2 + $0x40] sm:$0x1] %vm575, %v467
      %581 = vst.msk [vmem:[#allocation2 + $0x50] sm:$0x1] %vm575, %v481
      %582 = vst.msk [vmem:[#allocation2 + $0x60] sm:$0x1] %vm575, %v483
      %583 = vst.msk [vmem:[#allocation2 + $0x70] sm:$0x1] %vm575, %v485
      %584 = vst.msk [vmem:[#allocation2 + $0x80] sm:$0x1] %vm575, %v509
      %585 = vst.msk [vmem:[#allocation2 + $0x90] sm:$0x1] %vm575, %v523
      %586 = vst.msk [vmem:[#allocation2 + $0xa0] sm:$0x1] %vm575, %v531
      %587 = vst.msk [vmem:[#allocation2 + $0xb0] sm:$0x1] %vm575, %v533
      %588 = vst.msk [vmem:[#allocation2 + $0xc0] sm:$0x1] %vm575, %v516
      %589 = vst.msk [vmem:[#allocation2 + $0xd0] sm:$0x1] %vm575, %v530
      %590 = vst.msk [vmem:[#allocation2 + $0xe0] sm:$0x1] %vm575, %v532
      %591 = vst.msk [vmem:[#allocation2 + $0xf0] sm:$0x1] %vm575, %v534
      %592 = vst.msk [vmem:[#allocation2 + $0x100] sm:$0x1] %vm575, %v549
      %593 = vst.msk [vmem:[#allocation2 + $0x110] sm:$0x1] %vm575, %v556
      %v594 = vrot.slane %v259, 1
      %v595 = vsel %vm308, %v261, %v594
      %v596 = vrot.slane %v263, 7
      %v597 = vsel %vm311, %v596, %v595
      %v598 = vrot.slane %v265, 6
      %v599 = vsel %vm314, %v598, %v597
      %v600 = vrot.slane %v267, 5
      %v601 = vsel %vm317, %v600, %v599
      %v602 = vrot.slane %v269, 4
      %v603 = vsel %vm320, %v602, %v601
      %v604 = vrot.slane %v271, 3
      %v605 = vsel %vm323, %v604, %v603
      %v606 = vrot.slane %v273, 2
      %v607 = vsel %vm326, %v606, %v605
      %v608 = vrot.slane %v275, 1
      %v609 = vsel %vm308, %v277, %v608
      %v610 = vrot.slane %v279, 7
      %v611 = vsel %vm311, %v610, %v609
      %v612 = vrot.slane %v281, 6
      %v613 = vsel %vm314, %v612, %v611
      %v614 = vrot.slane %v283, 5
      %v615 = vsel %vm317, %v614, %v613
      %v616 = vrot.slane %v285, 4
      %v617 = vsel %vm320, %v616, %v615
      %v618 = vrot.slane %v287, 3
      %v619 = vsel %vm323, %v618, %v617
      %v620 = vrot.slane %v289, 2
      %v621 = vsel %vm326, %v620, %v619
      %624 = vmatprep.subr.mxu0 0.0
      %625 = vmatpush1.msra.mxu0 %v607
      %626 = vmatprep.subr.mxu0 0.0
      %627 = vmatpush1.msra.mxu0 %v621
      %628 = vmatprep.subr.mxu0 0.0
      %629 = vmatpush1.msra.mxu0 0.0
      %630 = vmatprep.subr.mxu0 0.0
      %631 = vmatpush1.msra.mxu0 0.0
      %632 = vmatprep.subr.mxu0 0.0
      %633 = vmatpush1.msra.mxu0 0.0
      %634 = vmatprep.subr.mxu0 0.0
      %635 = vmatpush1.msra.mxu0 0.0
      %636 = vmatprep.subr.mxu0 0.0
      %637 = vmatpush1.msra.mxu0 0.0
      %638 = vmatprep.subr.mxu0 0.0
      %639 = vmatpush1.msra.mxu0 0.0
      %640 = vmatprep.subr.mxu0 0.0
      %641 = vmatpush1.msra.mxu0 0.0
      %642 = vmatprep.subr.mxu0 0.0
      %643 = vmatpush1.msra.mxu0 0.0
      %644 = vmatprep.subr.mxu0 0.0
      %645 = vmatpush1.msra.mxu0 0.0
      %646 = vmatprep.subr.mxu0 0.0
      %647 = vmatpush1.msra.mxu0 0.0
      %648 = vmatprep.subr.mxu0 0.0
      %649 = vmatpush1.msra.mxu0 0.0
      %650 = vmatprep.subr.mxu0 0.0
      %651 = vmatpush1.msra.mxu0 0.0
      %652 = vmatprep.subr.mxu0 0.0
      %653 = vmatpush1.msra.mxu0 0.0
      %654 = vmatprep.subr.mxu0 0.0
      %655 = vmatpush1.msra.mxu0 0.0
      %656 = vmatprep.subr.mxu0 0.0
      %657 = vmatpush1.msra.mxu0 0.0
      %658 = vmatprep.subr.mxu0 0.0
      %659 = vmatpush1.msra.mxu0 0.0
      %660 = vmatprep.subr.mxu0 0.0
      %661 = vmatpush1.msra.mxu0 0.0
      %662 = vmatprep.subr.mxu0 0.0
      %663 = vmatpush1.msra.mxu0 0.0
      %664 = vmatprep.subr.mxu0 0.0
      %665 = vmatpush1.msra.mxu0 0.0
      %666 = vmatprep.subr.mxu0 0.0
      %667 = vmatpush1.msra.mxu0 0.0
      %668 = vmatprep.subr.mxu0 0.0
      %669 = vmatpush1.msra.mxu0 0.0
      %670 = vmatprep.subr.mxu0 0.0
      %671 = vmatpush1.msra.mxu0 0.0
      %672 = vmatprep.subr.mxu0 0.0
      %673 = vmatpush1.msra.mxu0 0.0
      %674 = vmatprep.subr.mxu0 0.0
      %675 = vmatpush1.msra.mxu0 0.0
      %676 = vmatprep.subr.mxu0 0.0
      %677 = vmatpush1.msra.mxu0 0.0
      %678 = vmatprep.subr.mxu0 0.0
      %679 = vmatpush1.msra.mxu0 0.0
      %680 = vmatprep.subr.mxu0 0.0
      %681 = vmatpush1.msra.mxu0 0.0
      %682 = vmatprep.subr.mxu0 0.0
      %683 = vmatpush1.msra.mxu0 0.0
      %684 = vmatprep.subr.mxu0 0.0
      %685 = vmatpush1.msra.mxu0 0.0
      %686 = vmatprep.subr.mxu0 0.0
      %687 = vmatpush1.msra.mxu0 0.0
      %688 = vmatprep.mubr.f32.mxu0 0.0
      %689 = vmatmul.mubr.f32.gmra.mrb[0].mxu0 %v346
      %v690 = vpop.f32.mrb[0].mxu0
      %v691 = vadd.f32 0.0, %v690
      %v692 = vpop.f32.mrb[0].mxu0
      %693 = vmatprep.mubr.f32.mxu0 0.0
      %694 = vmatmul.mubr.f32.gmra.mrb[0].mxu0 %v349
      %v695 = vpop.f32.mrb[0].mxu0
      %v696 = vadd.f32 0.0, %v695
      %v697 = vpop.f32.mrb[0].mxu0
      %698 = vmatprep.mubr.f32.mxu0 0.0
      %699 = vmatmul.mubr.f32.gmra.mrb[0].mxu0 %v352
      %v700 = vpop.f32.mrb[0].mxu0
      %v701 = vadd.f32 0.0, %v700
      %v702 = vpop.f32.mrb[0].mxu0
      %703 = vdwg.mxu0
      %v707 = vcombine.high %v691, %v691
      %v709 = vunpack.c.l.s4 1966171168
      %v710 = vunpack.c.0.s8 %v709
      %v711 = vlaneseq
      %v712 = vshrl.u32 %v711, 7
      %v713 = vsub.s32 %v710, %v712
      %v714 = vrot.slane %v691, %v713
      %v716 = vunpack.c.l.s4 1966171168
      %v717 = vunpack.c.0.s8 %v716
      %v718 = vlaneseq
      %v719 = vshrl.u32 %v718, 7
      %v720 = vsub.s32 %v717, %v719
      %v721 = vrot.slane %v707, %v720
      %v722 = vcombine.high %v714, %v714
      %v723 = vcombine.high %v721, %v721
      %v725 = vunpack.c.l.s4 1966171168
      %v726 = vunpack.c.0.s8 %v725
      %v727 = vlaneseq
      %v728 = vshrl.u32 %v727, 7
      %v729 = vsub.s32 %v726, %v728
      %v730 = vrot.slane %v714, %v729
      %v732 = vunpack.c.l.s4 1966171168
      %v733 = vunpack.c.0.s8 %v732
      %v734 = vlaneseq
      %v735 = vshrl.u32 %v734, 7
      %v736 = vsub.s32 %v733, %v735
      %v737 = vrot.slane %v721, %v736
      %v739 = vunpack.c.l.s4 1966171168
      %v740 = vunpack.c.0.s8 %v739
      %v741 = vlaneseq
      %v742 = vshrl.u32 %v741, 7
      %v743 = vsub.s32 %v740, %v742
      %v744 = vrot.slane %v722, %v743
      %v746 = vunpack.c.l.s4 1966171168
      %v747 = vunpack.c.0.s8 %v746
      %v748 = vlaneseq
      %v749 = vshrl.u32 %v748, 7
      %v750 = vsub.s32 %v747, %v749
      %v751 = vrot.slane %v723, %v750
      %v752 = vcombine.high %v730, %v730
      %v753 = vcombine.high %v737, %v737
      %v754 = vcombine.high %v744, %v744
      %v755 = vcombine.high %v751, %v751
      %v756 = vcombine.high %v696, %v696
      %v758 = vunpack.c.l.s4 1966171168
      %v759 = vunpack.c.0.s8 %v758
      %v760 = vlaneseq
      %v761 = vshrl.u32 %v760, 7
      %v762 = vsub.s32 %v759, %v761
      %v763 = vrot.slane %v696, %v762
      %v765 = vunpack.c.l.s4 1966171168
      %v766 = vunpack.c.0.s8 %v765
      %v767 = vlaneseq
      %v768 = vshrl.u32 %v767, 7
      %v769 = vsub.s32 %v766, %v768
      %v770 = vrot.slane %v756, %v769
      %v771 = vcombine.high %v763, %v763
      %v772 = vcombine.high %v770, %v770
      %v774 = vunpack.c.l.s4 1966171168
      %v775 = vunpack.c.0.s8 %v774
      %v776 = vlaneseq
      %v777 = vshrl.u32 %v776, 7
      %v778 = vsub.s32 %v775, %v777
      %v779 = vrot.slane %v763, %v778
      %v781 = vunpack.c.l.s4 1966171168
      %v782 = vunpack.c.0.s8 %v781
      %v783 = vlaneseq
      %v784 = vshrl.u32 %v783, 7
      %v785 = vsub.s32 %v782, %v784
      %v786 = vrot.slane %v770, %v785
      %v788 = vunpack.c.l.s4 1966171168
      %v789 = vunpack.c.0.s8 %v788
      %v790 = vlaneseq
      %v791 = vshrl.u32 %v790, 7
      %v792 = vsub.s32 %v789, %v791
      %v793 = vrot.slane %v771, %v792
      %v795 = vunpack.c.l.s4 1966171168
      %v796 = vunpack.c.0.s8 %v795
      %v797 = vlaneseq
      %v798 = vshrl.u32 %v797, 7
      %v799 = vsub.s32 %v796, %v798
      %v800 = vrot.slane %v772, %v799
      %v801 = vcombine.high %v779, %v779
      %v802 = vcombine.high %v786, %v786
      %v803 = vcombine.high %v793, %v793
      %v804 = vcombine.high %v800, %v800
      %v806 = vunpack.c.l.s4 1966171168
      %v807 = vunpack.c.0.s8 %v806
      %v808 = vlaneseq
      %v809 = vshrl.u32 %v808, 7
      %v810 = vsub.s32 %v807, %v809
      %v811 = vrot.slane %v701, %v810
      %v812 = vcombine.high %v811, %v811
      %v814 = vunpack.c.l.s4 1966171168
      %v815 = vunpack.c.0.s8 %v814
      %v816 = vlaneseq
      %v817 = vshrl.u32 %v816, 7
      %v818 = vsub.s32 %v815, %v817
      %v819 = vrot.slane %v811, %v818
      %v821 = vunpack.c.l.s4 1966171168
      %v822 = vunpack.c.0.s8 %v821
      %v823 = vlaneseq
      %v824 = vshrl.u32 %v823, 7
      %v825 = vsub.s32 %v822, %v824
      %v826 = vrot.slane %v812, %v825
      %845 = vst.msk [vmem:[#allocation2 + $0x1] sm:$0x1] %vm575, %v730
      %846 = vst.msk [vmem:[#allocation2 + $0x11] sm:$0x1] %vm575, %v744
      %847 = vst.msk [vmem:[#allocation2 + $0x21] sm:$0x1] %vm575, %v752
      %848 = vst.msk [vmem:[#allocation2 + $0x31] sm:$0x1] %vm575, %v754
      %849 = vst.msk [vmem:[#allocation2 + $0x41] sm:$0x1] %vm575, %v737
      %850 = vst.msk [vmem:[#allocation2 + $0x51] sm:$0x1] %vm575, %v751
      %851 = vst.msk [vmem:[#allocation2 + $0x61] sm:$0x1] %vm575, %v753
      %852 = vst.msk [vmem:[#allocation2 + $0x71] sm:$0x1] %vm575, %v755
      %853 = vst.msk [vmem:[#allocation2 + $0x81] sm:$0x1] %vm575, %v779
      %854 = vst.msk [vmem:[#allocation2 + $0x91] sm:$0x1] %vm575, %v793
      %855 = vst.msk [vmem:[#allocation2 + $0xa1] sm:$0x1] %vm575, %v801
      %856 = vst.msk [vmem:[#allocation2 + $0xb1] sm:$0x1] %vm575, %v803
      %857 = vst.msk [vmem:[#allocation2 + $0xc1] sm:$0x1] %vm575, %v786
      %858 = vst.msk [vmem:[#allocation2 + $0xd1] sm:$0x1] %vm575, %v800
      %859 = vst.msk [vmem:[#allocation2 + $0xe1] sm:$0x1] %vm575, %v802
      %860 = vst.msk [vmem:[#allocation2 + $0xf1] sm:$0x1] %vm575, %v804
      %861 = vst.msk [vmem:[#allocation2 + $0x101] sm:$0x1] %vm575, %v819
      %862 = vst.msk [vmem:[#allocation2 + $0x111] sm:$0x1] %vm575, %v826
      %v863 = vrot.slane %v259, 2
      %v864 = vrot.slane %v261, 1
      %v865 = vsel %vm308, %v864, %v863
      %v866 = vsel %vm311, %v263, %v865
      %v867 = vrot.slane %v265, 7
      %v868 = vsel %vm314, %v867, %v866
      %v869 = vrot.slane %v267, 6
      %v870 = vsel %vm317, %v869, %v868
      %v871 = vrot.slane %v269, 5
      %v872 = vsel %vm320, %v871, %v870
      %v873 = vrot.slane %v271, 4
      %v874 = vsel %vm323, %v873, %v872
      %v875 = vrot.slane %v273, 3
      %v876 = vsel %vm326, %v875, %v874
      %v877 = vrot.slane %v275, 2
      %v878 = vrot.slane %v277, 1
      %v879 = vsel %vm308, %v878, %v877
      %v880 = vsel %vm311, %v279, %v879
      %v881 = vrot.slane %v281, 7
      %v882 = vsel %vm314, %v881, %v880
      %v883 = vrot.slane %v283, 6
      %v884 = vsel %vm317, %v883, %v882
      %v885 = vrot.slane %v285, 5
      %v886 = vsel %vm320, %v885, %v884
      %v887 = vrot.slane %v287, 4
      %v888 = vsel %vm323, %v887, %v886
      %v889 = vrot.slane %v289, 3
      %v890 = vsel %vm326, %v889, %v888
      %893 = vmatprep.subr.mxu0 0.0
      %894 = vmatpush1.msra.mxu0 %v876
      %895 = vmatprep.subr.mxu0 0.0
      %896 = vmatpush1.msra.mxu0 %v890
      %897 = vmatprep.subr.mxu0 0.0
      %898 = vmatpush1.msra.mxu0 0.0
      %899 = vmatprep.subr.mxu0 0.0
      %900 = vmatpush1.msra.mxu0 0.0
      %901 = vmatprep.subr.mxu0 0.0
      %902 = vmatpush1.msra.mxu0 0.0
      %903 = vmatprep.subr.mxu0 0.0
      %904 = vmatpush1.msra.mxu0 0.0
      %905 = vmatprep.subr.mxu0 0.0
      %906 = vmatpush1.msra.mxu0 0.0
      %907 = vmatprep.subr.mxu0 0.0
      %908 = vmatpush1.msra.mxu0 0.0
      %909 = vmatprep.subr.mxu0 0.0
      %910 = vmatpush1.msra.mxu0 0.0
      %911 = vmatprep.subr.mxu0 0.0
      %912 = vmatpush1.msra.mxu0 0.0
      %913 = vmatprep.subr.mxu0 0.0
      %914 = vmatpush1.msra.mxu0 0.0
      %915 = vmatprep.subr.mxu0 0.0
      %916 = vmatpush1.msra.mxu0 0.0
      %917 = vmatprep.subr.mxu0 0.0
      %918 = vmatpush1.msra.mxu0 0.0
      %919 = vmatprep.subr.mxu0 0.0
      %920 = vmatpush1.msra.mxu0 0.0
      %921 = vmatprep.subr.mxu0 0.0
      %922 = vmatpush1.msra.mxu0 0.0
      %923 = vmatprep.subr.mxu0 0.0
      %924 = vmatpush1.msra.mxu0 0.0
      %925 = vmatprep.subr.mxu0 0.0
      %926 = vmatpush1.msra.mxu0 0.0
      %927 = vmatprep.subr.mxu0 0.0
      %928 = vmatpush1.msra.mxu0 0.0
      %929 = vmatprep.subr.mxu0 0.0
      %930 = vmatpush1.msra.mxu0 0.0
      %931 = vmatprep.subr.mxu0 0.0
      %932 = vmatpush1.msra.mxu0 0.0
      %933 = vmatprep.subr.mxu0 0.0
      %934 = vmatpush1.msra.mxu0 0.0
      %935 = vmatprep.subr.mxu0 0.0
      %936 = vmatpush1.msra.mxu0 0.0
      %937 = vmatprep.subr.mxu0 0.0
      %938 = vmatpush1.msra.mxu0 0.0
      %939 = vmatprep.subr.mxu0 0.0
      %940 = vmatpush1.msra.mxu0 0.0
      %941 = vmatprep.subr.mxu0 0.0
      %942 = vmatpush1.msra.mxu0 0.0
      %943 = vmatprep.subr.mxu0 0.0
      %944 = vmatpush1.msra.mxu0 0.0
      %945 = vmatprep.subr.mxu0 0.0
      %946 = vmatpush1.msra.mxu0 0.0
      %947 = vmatprep.subr.mxu0 0.0
      %948 = vmatpush1.msra.mxu0 0.0
      %949 = vmatprep.subr.mxu0 0.0
      %950 = vmatpush1.msra.mxu0 0.0
      %951 = vmatprep.subr.mxu0 0.0
      %952 = vmatpush1.msra.mxu0 0.0
      %953 = vmatprep.subr.mxu0 0.0
      %954 = vmatpush1.msra.mxu0 0.0
      %955 = vmatprep.subr.mxu0 0.0
      %956 = vmatpush1.msra.mxu0 0.0
      %957 = vmatprep.mubr.f32.mxu0 0.0
      %958 = vmatmul.mubr.f32.gmra.mrb[0].mxu0 %v346
      %v959 = vpop.f32.mrb[0].mxu0
      %v960 = vadd.f32 0.0, %v959
      %v961 = vpop.f32.mrb[0].mxu0
      %962 = vmatprep.mubr.f32.mxu0 0.0
      %963 = vmatmul.mubr.f32.gmra.mrb[0].mxu0 %v349
      %v964 = vpop.f32.mrb[0].mxu0
      %v965 = vadd.f32 0.0, %v964
      %v966 = vpop.f32.mrb[0].mxu0
      %967 = vmatprep.mubr.f32.mxu0 0.0
      %968 = vmatmul.mubr.f32.gmra.mrb[0].mxu0 %v352
      %v969 = vpop.f32.mrb[0].mxu0
      %v970 = vadd.f32 0.0, %v969
      %v971 = vpop.f32.mrb[0].mxu0
      %972 = vdwg.mxu0
      %v976 = vcombine.high %v960, %v960
      %v978 = vunpack.c.l.s4 1966171168
      %v979 = vunpack.c.0.s8 %v978
      %v980 = vlaneseq
      %v981 = vshrl.u32 %v980, 7
      %v982 = vsub.s32 %v979, %v981
      %v983 = vrot.slane %v960, %v982
      %v985 = vunpack.c.l.s4 1966171168
      %v986 = vunpack.c.0.s8 %v985
      %v987 = vlaneseq
      %v988 = vshrl.u32 %v987, 7
      %v989 = vsub.s32 %v986, %v988
      %v990 = vrot.slane %v976, %v989
      %v991 = vcombine.high %v983, %v983
      %v992 = vcombine.high %v990, %v990
      %v994 = vunpack.c.l.s4 1966171168
      %v995 = vunpack.c.0.s8 %v994
      %v996 = vlaneseq
      %v997 = vshrl.u32 %v996, 7
      %v998 = vsub.s32 %v995, %v997
      %v999 = vrot.slane %v983, %v998
      %v1001 = vunpack.c.l.s4 1966171168
      %v1002 = vunpack.c.0.s8 %v1001
      %v1003 = vlaneseq
      %v1004 = vshrl.u32 %v1003, 7
      %v1005 = vsub.s32 %v1002, %v1004
      %v1006 = vrot.slane %v990, %v1005
      %v1008 = vunpack.c.l.s4 1966171168
      %v1009 = vunpack.c.0.s8 %v1008
      %v1010 = vlaneseq
      %v1011 = vshrl.u32 %v1010, 7
      %v1012 = vsub.s32 %v1009, %v1011
      %v1013 = vrot.slane %v991, %v1012
      %v1015 = vunpack.c.l.s4 1966171168
      %v1016 = vunpack.c.0.s8 %v1015
      %v1017 = vlaneseq
      %v1018 = vshrl.u32 %v1017, 7
      %v1019 = vsub.s32 %v1016, %v1018
      %v1020 = vrot.slane %v992, %v1019
      %v1021 = vcombine.high %v999, %v999
      %v1022 = vcombine.high %v1006, %v1006
      %v1023 = vcombine.high %v1013, %v1013
      %v1024 = vcombine.high %v1020, %v1020
      %v1025 = vcombine.high %v965, %v965
      %v1027 = vunpack.c.l.s4 1966171168
      %v1028 = vunpack.c.0.s8 %v1027
      %v1029 = vlaneseq
      %v1030 = vshrl.u32 %v1029, 7
      %v1031 = vsub.s32 %v1028, %v1030
      %v1032 = vrot.slane %v965, %v1031
      %v1034 = vunpack.c.l.s4 1966171168
      %v1035 = vunpack.c.0.s8 %v1034
      %v1036 = vlaneseq
      %v1037 = vshrl.u32 %v1036, 7
      %v1038 = vsub.s32 %v1035, %v1037
      %v1039 = vrot.slane %v1025, %v1038
      %v1040 = vcombine.high %v1032, %v1032
      %v1041 = vcombine.high %v1039, %v1039
      %v1043 = vunpack.c.l.s4 1966171168
      %v1044 = vunpack.c.0.s8 %v1043
      %v1045 = vlaneseq
      %v1046 = vshrl.u32 %v1045, 7
      %v1047 = vsub.s32 %v1044, %v1046
      %v1048 = vrot.slane %v1032, %v1047
      %v1050 = vunpack.c.l.s4 1966171168
      %v1051 = vunpack.c.0.s8 %v1050
      %v1052 = vlaneseq
      %v1053 = vshrl.u32 %v1052, 7
      %v1054 = vsub.s32 %v1051, %v1053
      %v1055 = vrot.slane %v1039, %v1054
      %v1057 = vunpack.c.l.s4 1966171168
      %v1058 = vunpack.c.0.s8 %v1057
      %v1059 = vlaneseq
      %v1060 = vshrl.u32 %v1059, 7
      %v1061 = vsub.s32 %v1058, %v1060
      %v1062 = vrot.slane %v1040, %v1061
      %v1064 = vunpack.c.l.s4 1966171168
      %v1065 = vunpack.c.0.s8 %v1064
      %v1066 = vlaneseq
      %v1067 = vshrl.u32 %v1066, 7
      %v1068 = vsub.s32 %v1065, %v1067
      %v1069 = vrot.slane %v1041, %v1068
      %v1070 = vcombine.high %v1048, %v1048
      %v1071 = vcombine.high %v1055, %v1055
      %v1072 = vcombine.high %v1062, %v1062
      %v1073 = vcombine.high %v1069, %v1069
      %v1075 = vunpack.c.l.s4 1966171168
      %v1076 = vunpack.c.0.s8 %v1075
      %v1077 = vlaneseq
      %v1078 = vshrl.u32 %v1077, 7
      %v1079 = vsub.s32 %v1076, %v1078
      %v1080 = vrot.slane %v970, %v1079
      %v1081 = vcombine.high %v1080, %v1080
      %v1083 = vunpack.c.l.s4 1966171168
      %v1084 = vunpack.c.0.s8 %v1083
      %v1085 = vlaneseq
      %v1086 = vshrl.u32 %v1085, 7
      %v1087 = vsub.s32 %v1084, %v1086
      %v1088 = vrot.slane %v1080, %v1087
      %v1090 = vunpack.c.l.s4 1966171168
      %v1091 = vunpack.c.0.s8 %v1090
      %v1092 = vlaneseq
      %v1093 = vshrl.u32 %v1092, 7
      %v1094 = vsub.s32 %v1091, %v1093
      %v1095 = vrot.slane %v1081, %v1094
      %1114 = vst.msk [vmem:[#allocation2 + $0x2] sm:$0x1] %vm575, %v999
      %1115 = vst.msk [vmem:[#allocation2 + $0x12] sm:$0x1] %vm575, %v1013
      %1116 = vst.msk [vmem:[#allocation2 + $0x22] sm:$0x1] %vm575, %v1021
      %1117 = vst.msk [vmem:[#allocation2 + $0x32] sm:$0x1] %vm575, %v1023
      %1118 = vst.msk [vmem:[#allocation2 + $0x42] sm:$0x1] %vm575, %v1006
      %1119 = vst.msk [vmem:[#allocation2 + $0x52] sm:$0x1] %vm575, %v1020
      %1120 = vst.msk [vmem:[#allocation2 + $0x62] sm:$0x1] %vm575, %v1022
      %1121 = vst.msk [vmem:[#allocation2 + $0x72] sm:$0x1] %vm575, %v1024
      %1122 = vst.msk [vmem:[#allocation2 + $0x82] sm:$0x1] %vm575, %v1048
      %1123 = vst.msk [vmem:[#allocation2 + $0x92] sm:$0x1] %vm575, %v1062
      %1124 = vst.msk [vmem:[#allocation2 + $0xa2] sm:$0x1] %vm575, %v1070
      %1125 = vst.msk [vmem:[#allocation2 + $0xb2] sm:$0x1] %vm575, %v1072
      %1126 = vst.msk [vmem:[#allocation2 + $0xc2] sm:$0x1] %vm575, %v1055
      %1127 = vst.msk [vmem:[#allocation2 + $0xd2] sm:$0x1] %vm575, %v1069
      %1128 = vst.msk [vmem:[#allocation2 + $0xe2] sm:$0x1] %vm575, %v1071
      %1129 = vst.msk [vmem:[#allocation2 + $0xf2] sm:$0x1] %vm575, %v1073
      %1130 = vst.msk [vmem:[#allocation2 + $0x102] sm:$0x1] %vm575, %v1088
      %1131 = vst.msk [vmem:[#allocation2 + $0x112] sm:$0x1] %vm575, %v1095
      %v1132 = vrot.slane %v259, 3
      %v1133 = vrot.slane %v261, 2
      %v1134 = vsel %vm308, %v1133, %v1132
      %v1135 = vrot.slane %v263, 1
      %v1136 = vsel %vm311, %v1135, %v1134
      %v1137 = vsel %vm314, %v265, %v1136
      %v1138 = vrot.slane %v267, 7
      %v1139 = vsel %vm317, %v1138, %v1137
      %v1140 = vrot.slane %v269, 6
      %v1141 = vsel %vm320, %v1140, %v1139
      %v1142 = vrot.slane %v271, 5
      %v1143 = vsel %vm323, %v1142, %v1141
      %v1144 = vrot.slane %v273, 4
      %v1145 = vsel %vm326, %v1144, %v1143
      %v1146 = vrot.slane %v275, 3
      %v1147 = vrot.slane %v277, 2
      %v1148 = vsel %vm308, %v1147, %v1146
      %v1149 = vrot.slane %v279, 1
      %v1150 = vsel %vm311, %v1149, %v1148
      %v1151 = vsel %vm314, %v281, %v1150
      %v1152 = vrot.slane %v283, 7
      %v1153 = vsel %vm317, %v1152, %v1151
      %v1154 = vrot.slane %v285, 6
      %v1155 = vsel %vm320, %v1154, %v1153
      %v1156 = vrot.slane %v287, 5
      %v1157 = vsel %vm323, %v1156, %v1155
      %v1158 = vrot.slane %v289, 4
      %v1159 = vsel %vm326, %v1158, %v1157
      %1162 = vmatprep.subr.mxu0 0.0
      %1163 = vmatpush1.msra.mxu0 %v1145
      %1164 = vmatprep.subr.mxu0 0.0
      %1165 = vmatpush1.msra.mxu0 %v1159
      %1166 = vmatprep.subr.mxu0 0.0
      %1167 = vmatpush1.msra.mxu0 0.0
      %1168 = vmatprep.subr.mxu0 0.0
      %1169 = vmatpush1.msra.mxu0 0.0
      %1170 = vmatprep.subr.mxu0 0.0
      %1171 = vmatpush1.msra.mxu0 0.0
      %1172 = vmatprep.subr.mxu0 0.0
      %1173 = vmatpush1.msra.mxu0 0.0
      %1174 = vmatprep.subr.mxu0 0.0
      %1175 = vmatpush1.msra.mxu0 0.0
      %1176 = vmatprep.subr.mxu0 0.0
      %1177 = vmatpush1.msra.mxu0 0.0
      %1178 = vmatprep.subr.mxu0 0.0
      %1179 = vmatpush1.msra.mxu0 0.0
      %1180 = vmatprep.subr.mxu0 0.0
      %1181 = vmatpush1.msra.mxu0 0.0
      %1182 = vmatprep.subr.mxu0 0.0
      %1183 = vmatpush1.msra.mxu0 0.0
      %1184 = vmatprep.subr.mxu0 0.0
      %1185 = vmatpush1.msra.mxu0 0.0
      %1186 = vmatprep.subr.mxu0 0.0
      %1187 = vmatpush1.msra.mxu0 0.0
      %1188 = vmatprep.subr.mxu0 0.0
      %1189 = vmatpush1.msra.mxu0 0.0
      %1190 = vmatprep.subr.mxu0 0.0
      %1191 = vmatpush1.msra.mxu0 0.0
      %1192 = vmatprep.subr.mxu0 0.0
      %1193 = vmatpush1.msra.mxu0 0.0
      %1194 = vmatprep.subr.mxu0 0.0
      %1195 = vmatpush1.msra.mxu0 0.0
      %1196 = vmatprep.subr.mxu0 0.0
      %1197 = vmatpush1.msra.mxu0 0.0
      %1198 = vmatprep.subr.mxu0 0.0
      %1199 = vmatpush1.msra.mxu0 0.0
      %1200 = vmatprep.subr.mxu0 0.0
      %1201 = vmatpush1.msra.mxu0 0.0
      %1202 = vmatprep.subr.mxu0 0.0
      %1203 = vmatpush1.msra.mxu0 0.0
      %1204 = vmatprep.subr.mxu0 0.0
      %1205 = vmatpush1.msra.mxu0 0.0
      %1206 = vmatprep.subr.mxu0 0.0
      %1207 = vmatpush1.msra.mxu0 0.0
      %1208 = vmatprep.subr.mxu0 0.0
      %1209 = vmatpush1.msra.mxu0 0.0
      %1210 = vmatprep.subr.mxu0 0.0
      %1211 = vmatpush1.msra.mxu0 0.0
      %1212 = vmatprep.subr.mxu0 0.0
      %1213 = vmatpush1.msra.mxu0 0.0
      %1214 = vmatprep.subr.mxu0 0.0
      %1215 = vmatpush1.msra.mxu0 0.0
      %1216 = vmatprep.subr.mxu0 0.0
      %1217 = vmatpush1.msra.mxu0 0.0
      %1218 = vmatprep.subr.mxu0 0.0
      %1219 = vmatpush1.msra.mxu0 0.0
      %1220 = vmatprep.subr.mxu0 0.0
      %1221 = vmatpush1.msra.mxu0 0.0
      %1222 = vmatprep.subr.mxu0 0.0
      %1223 = vmatpush1.msra.mxu0 0.0
      %1224 = vmatprep.subr.mxu0 0.0
      %1225 = vmatpush1.msra.mxu0 0.0
      %1226 = vmatprep.mubr.f32.mxu0 0.0
      %1227 = vmatmul.mubr.f32.gmra.mrb[0].mxu0 %v346
      %v1228 = vpop.f32.mrb[0].mxu0
      %v1229 = vadd.f32 0.0, %v1228
      %v1230 = vpop.f32.mrb[0].mxu0
      %1231 = vmatprep.mubr.f32.mxu0 0.0
      %1232 = vmatmul.mubr.f32.gmra.mrb[0].mxu0 %v349
      %v1233 = vpop.f32.mrb[0].mxu0
      %v1234 = vadd.f32 0.0, %v1233
      %v1235 = vpop.f32.mrb[0].mxu0
      %1236 = vmatprep.mubr.f32.mxu0 0.0
      %1237 = vmatmul.mubr.f32.gmra.mrb[0].mxu0 %v352
      %v1238 = vpop.f32.mrb[0].mxu0
      %v1239 = vadd.f32 0.0, %v1238
      %v1240 = vpop.f32.mrb[0].mxu0
      %1241 = vdwg.mxu0
      %v1245 = vcombine.high %v1229, %v1229
      %v1247 = vunpack.c.l.s4 1966171168
      %v1248 = vunpack.c.0.s8 %v1247
      %v1249 = vlaneseq
      %v1250 = vshrl.u32 %v1249, 7
      %v1251 = vsub.s32 %v1248, %v1250
      %v1252 = vrot.slane %v1229, %v1251
      %v1254 = vunpack.c.l.s4 1966171168
      %v1255 = vunpack.c.0.s8 %v1254
      %v1256 = vlaneseq
      %v1257 = vshrl.u32 %v1256, 7
      %v1258 = vsub.s32 %v1255, %v1257
      %v1259 = vrot.slane %v1245, %v1258
      %v1260 = vcombine.high %v1252, %v1252
      %v1261 = vcombine.high %v1259, %v1259
      %v1263 = vunpack.c.l.s4 1966171168
      %v1264 = vunpack.c.0.s8 %v1263
      %v1265 = vlaneseq
      %v1266 = vshrl.u32 %v1265, 7
      %v1267 = vsub.s32 %v1264, %v1266
      %v1268 = vrot.slane %v1252, %v1267
      %v1270 = vunpack.c.l.s4 1966171168
      %v1271 = vunpack.c.0.s8 %v1270
      %v1272 = vlaneseq
      %v1273 = vshrl.u32 %v1272, 7
      %v1274 = vsub.s32 %v1271, %v1273
      %v1275 = vrot.slane %v1259, %v1274
      %v1277 = vunpack.c.l.s4 1966171168
      %v1278 = vunpack.c.0.s8 %v1277
      %v1279 = vlaneseq
      %v1280 = vshrl.u32 %v1279, 7
      %v1281 = vsub.s32 %v1278, %v1280
      %v1282 = vrot.slane %v1260, %v1281
      %v1284 = vunpack.c.l.s4 1966171168
      %v1285 = vunpack.c.0.s8 %v1284
      %v1286 = vlaneseq
      %v1287 = vshrl.u32 %v1286, 7
      %v1288 = vsub.s32 %v1285, %v1287
      %v1289 = vrot.slane %v1261, %v1288
      %v1290 = vcombine.high %v1268, %v1268
      %v1291 = vcombine.high %v1275, %v1275
      %v1292 = vcombine.high %v1282, %v1282
      %v1293 = vcombine.high %v1289, %v1289
      %v1294 = vcombine.high %v1234, %v1234
      %v1296 = vunpack.c.l.s4 1966171168
      %v1297 = vunpack.c.0.s8 %v1296
      %v1298 = vlaneseq
      %v1299 = vshrl.u32 %v1298, 7
      %v1300 = vsub.s32 %v1297, %v1299
      %v1301 = vrot.slane %v1234, %v1300
      %v1303 = vunpack.c.l.s4 1966171168
      %v1304 = vunpack.c.0.s8 %v1303
      %v1305 = vlaneseq
      %v1306 = vshrl.u32 %v1305, 7
      %v1307 = vsub.s32 %v1304, %v1306
      %v1308 = vrot.slane %v1294, %v1307
      %v1309 = vcombine.high %v1301, %v1301
      %v1310 = vcombine.high %v1308, %v1308
      %v1312 = vunpack.c.l.s4 1966171168
      %v1313 = vunpack.c.0.s8 %v1312
      %v1314 = vlaneseq
      %v1315 = vshrl.u32 %v1314, 7
      %v1316 = vsub.s32 %v1313, %v1315
      %v1317 = vrot.slane %v1301, %v1316
      %v1319 = vunpack.c.l.s4 1966171168
      %v1320 = vunpack.c.0.s8 %v1319
      %v1321 = vlaneseq
      %v1322 = vshrl.u32 %v1321, 7
      %v1323 = vsub.s32 %v1320, %v1322
      %v1324 = vrot.slane %v1308, %v1323
      %v1326 = vunpack.c.l.s4 1966171168
      %v1327 = vunpack.c.0.s8 %v1326
      %v1328 = vlaneseq
      %v1329 = vshrl.u32 %v1328, 7
      %v1330 = vsub.s32 %v1327, %v1329
      %v1331 = vrot.slane %v1309, %v1330
      %v1333 = vunpack.c.l.s4 1966171168
      %v1334 = vunpack.c.0.s8 %v1333
      %v1335 = vlaneseq
      %v1336 = vshrl.u32 %v1335, 7
      %v1337 = vsub.s32 %v1334, %v1336
      %v1338 = vrot.slane %v1310, %v1337
      %v1339 = vcombine.high %v1317, %v1317
      %v1340 = vcombine.high %v1324, %v1324
      %v1341 = vcombine.high %v1331, %v1331
      %v1342 = vcombine.high %v1338, %v1338
      %v1344 = vunpack.c.l.s4 1966171168
      %v1345 = vunpack.c.0.s8 %v1344
      %v1346 = vlaneseq
      %v1347 = vshrl.u32 %v1346, 7
      %v1348 = vsub.s32 %v1345, %v1347
      %v1349 = vrot.slane %v1239, %v1348
      %v1350 = vcombine.high %v1349, %v1349
      %v1352 = vunpack.c.l.s4 1966171168
      %v1353 = vunpack.c.0.s8 %v1352
      %v1354 = vlaneseq
      %v1355 = vshrl.u32 %v1354, 7
      %v1356 = vsub.s32 %v1353, %v1355
      %v1357 = vrot.slane %v1349, %v1356
      %v1359 = vunpack.c.l.s4 1966171168
      %v1360 = vunpack.c.0.s8 %v1359
      %v1361 = vlaneseq
      %v1362 = vshrl.u32 %v1361, 7
      %v1363 = vsub.s32 %v1360, %v1362
      %v1364 = vrot.slane %v1350, %v1363
      %1383 = vst.msk [vmem:[#allocation2 + $0x3] sm:$0x1] %vm575, %v1268
      %1384 = vst.msk [vmem:[#allocation2 + $0x13] sm:$0x1] %vm575, %v1282
      %1385 = vst.msk [vmem:[#allocation2 + $0x23] sm:$0x1] %vm575, %v1290
      %1386 = vst.msk [vmem:[#allocation2 + $0x33] sm:$0x1] %vm575, %v1292
      %1387 = vst.msk [vmem:[#allocation2 + $0x43] sm:$0x1] %vm575, %v1275
      %1388 = vst.msk [vmem:[#allocation2 + $0x53] sm:$0x1] %vm575, %v1289
      %1389 = vst.msk [vmem:[#allocation2 + $0x63] sm:$0x1] %vm575, %v1291
      %1390 = vst.msk [vmem:[#allocation2 + $0x73] sm:$0x1] %vm575, %v1293
      %1391 = vst.msk [vmem:[#allocation2 + $0x83] sm:$0x1] %vm575, %v1317
      %1392 = vst.msk [vmem:[#allocation2 + $0x93] sm:$0x1] %vm575, %v1331
      %1393 = vst.msk [vmem:[#allocation2 + $0xa3] sm:$0x1] %vm575, %v1339
      %1394 = vst.msk [vmem:[#allocation2 + $0xb3] sm:$0x1] %vm575, %v1341
      %1395 = vst.msk [vmem:[#allocation2 + $0xc3] sm:$0x1] %vm575, %v1324
      %1396 = vst.msk [vmem:[#allocation2 + $0xd3] sm:$0x1] %vm575, %v1338
      %1397 = vst.msk [vmem:[#allocation2 + $0xe3] sm:$0x1] %vm575, %v1340
      %1398 = vst.msk [vmem:[#allocation2 + $0xf3] sm:$0x1] %vm575, %v1342
      %1399 = vst.msk [vmem:[#allocation2 + $0x103] sm:$0x1] %vm575, %v1357
      %1400 = vst.msk [vmem:[#allocation2 + $0x113] sm:$0x1] %vm575, %v1364
      %v1401 = vrot.slane %v259, 4
      %v1402 = vrot.slane %v261, 3
      %v1403 = vsel %vm308, %v1402, %v1401
      %v1404 = vrot.slane %v263, 2
      %v1405 = vsel %vm311, %v1404, %v1403
      %v1406 = vrot.slane %v265, 1
      %v1407 = vsel %vm314, %v1406, %v1405
      %v1408 = vsel %vm317, %v267, %v1407
      %v1409 = vrot.slane %v269, 7
      %v1410 = vsel %vm320, %v1409, %v1408
      %v1411 = vrot.slane %v271, 6
      %v1412 = vsel %vm323, %v1411, %v1410
      %v1413 = vrot.slane %v273, 5
      %v1414 = vsel %vm326, %v1413, %v1412
      %v1415 = vrot.slane %v275, 4
      %v1416 = vrot.slane %v277, 3
      %v1417 = vsel %vm308, %v1416, %v1415
      %v1418 = vrot.slane %v279, 2
      %v1419 = vsel %vm311, %v1418, %v1417
      %v1420 = vrot.slane %v281, 1
      %v1421 = vsel %vm314, %v1420, %v1419
      %v1422 = vsel %vm317, %v283, %v1421
      %v1423 = vrot.slane %v285, 7
      %v1424 = vsel %vm320, %v1423, %v1422
      %v1425 = vrot.slane %v287, 6
      %v1426 = vsel %vm323, %v1425, %v1424
      %v1427 = vrot.slane %v289, 5
      %v1428 = vsel %vm326, %v1427, %v1426
      %1431 = vmatprep.subr.mxu0 0.0
      %1432 = vmatpush1.msra.mxu0 %v1414
      %1433 = vmatprep.subr.mxu0 0.0
      %1434 = vmatpush1.msra.mxu0 %v1428
      %1435 = vmatprep.subr.mxu0 0.0
      %1436 = vmatpush1.msra.mxu0 0.0
      %1437 = vmatprep.subr.mxu0 0.0
      %1438 = vmatpush1.msra.mxu0 0.0
      %1439 = vmatprep.subr.mxu0 0.0
      %1440 = vmatpush1.msra.mxu0 0.0
      %1441 = vmatprep.subr.mxu0 0.0
      %1442 = vmatpush1.msra.mxu0 0.0
      %1443 = vmatprep.subr.mxu0 0.0
      %1444 = vmatpush1.msra.mxu0 0.0
      %1445 = vmatprep.subr.mxu0 0.0
      %1446 = vmatpush1.msra.mxu0 0.0
      %1447 = vmatprep.subr.mxu0 0.0
      %1448 = vmatpush1.msra.mxu0 0.0
      %1449 = vmatprep.subr.mxu0 0.0
      %1450 = vmatpush1.msra.mxu0 0.0
      %1451 = vmatprep.subr.mxu0 0.0
      %1452 = vmatpush1.msra.mxu0 0.0
      %1453 = vmatprep.subr.mxu0 0.0
      %1454 = vmatpush1.msra.mxu0 0.0
      %1455 = vmatprep.subr.mxu0 0.0
      %1456 = vmatpush1.msra.mxu0 0.0
      %1457 = vmatprep.subr.mxu0 0.0
      %1458 = vmatpush1.msra.mxu0 0.0
      %1459 = vmatprep.subr.mxu0 0.0
      %1460 = vmatpush1.msra.mxu0 0.0
      %1461 = vmatprep.subr.mxu0 0.0
      %1462 = vmatpush1.msra.mxu0 0.0
      %1463 = vmatprep.subr.mxu0 0.0
      %1464 = vmatpush1.msra.mxu0 0.0
      %1465 = vmatprep.subr.mxu0 0.0
      %1466 = vmatpush1.msra.mxu0 0.0
      %1467 = vmatprep.subr.mxu0 0.0
      %1468 = vmatpush1.msra.mxu0 0.0
      %1469 = vmatprep.subr.mxu0 0.0
      %1470 = vmatpush1.msra.mxu0 0.0
      %1471 = vmatprep.subr.mxu0 0.0
      %1472 = vmatpush1.msra.mxu0 0.0
      %1473 = vmatprep.subr.mxu0 0.0
      %1474 = vmatpush1.msra.mxu0 0.0
      %1475 = vmatprep.subr.mxu0 0.0
      %1476 = vmatpush1.msra.mxu0 0.0
      %1477 = vmatprep.subr.mxu0 0.0
      %1478 = vmatpush1.msra.mxu0 0.0
      %1479 = vmatprep.subr.mxu0 0.0
      %1480 = vmatpush1.msra.mxu0 0.0
      %1481 = vmatprep.subr.mxu0 0.0
      %1482 = vmatpush1.msra.mxu0 0.0
      %1483 = vmatprep.subr.mxu0 0.0
      %1484 = vmatpush1.msra.mxu0 0.0
      %1485 = vmatprep.subr.mxu0 0.0
      %1486 = vmatpush1.msra.mxu0 0.0
      %1487 = vmatprep.subr.mxu0 0.0
      %1488 = vmatpush1.msra.mxu0 0.0
      %1489 = vmatprep.subr.mxu0 0.0
      %1490 = vmatpush1.msra.mxu0 0.0
      %1491 = vmatprep.subr.mxu0 0.0
      %1492 = vmatpush1.msra.mxu0 0.0
      %1493 = vmatprep.subr.mxu0 0.0
      %1494 = vmatpush1.msra.mxu0 0.0
      %1495 = vmatprep.mubr.f32.mxu0 0.0
      %1496 = vmatmul.mubr.f32.gmra.mrb[0].mxu0 %v346
      %v1497 = vpop.f32.mrb[0].mxu0
      %v1498 = vadd.f32 0.0, %v1497
      %v1499 = vpop.f32.mrb[0].mxu0
      %1500 = vmatprep.mubr.f32.mxu0 0.0
      %1501 = vmatmul.mubr.f32.gmra.mrb[0].mxu0 %v349
      %v1502 = vpop.f32.mrb[0].mxu0
      %v1503 = vadd.f32 0.0, %v1502
      %v1504 = vpop.f32.mrb[0].mxu0
      %1505 = vmatprep.mubr.f32.mxu0 0.0
      %1506 = vmatmul.mubr.f32.gmra.mrb[0].mxu0 %v352
      %v1507 = vpop.f32.mrb[0].mxu0
      %v1508 = vadd.f32 0.0, %v1507
      %v1509 = vpop.f32.mrb[0].mxu0
      %1510 = vdwg.mxu0
      %v1514 = vcombine.high %v1498, %v1498
      %v1516 = vunpack.c.l.s4 1966171168
      %v1517 = vunpack.c.0.s8 %v1516
      %v1518 = vlaneseq
      %v1519 = vshrl.u32 %v1518, 7
      %v1520 = vsub.s32 %v1517, %v1519
      %v1521 = vrot.slane %v1498, %v1520
      %v1523 = vunpack.c.l.s4 1966171168
      %v1524 = vunpack.c.0.s8 %v1523
      %v1525 = vlaneseq
      %v1526 = vshrl.u32 %v1525, 7
      %v1527 = vsub.s32 %v1524, %v1526
      %v1528 = vrot.slane %v1514, %v1527
      %v1529 = vcombine.high %v1521, %v1521
      %v1530 = vcombine.high %v1528, %v1528
      %v1532 = vunpack.c.l.s4 1966171168
      %v1533 = vunpack.c.0.s8 %v1532
      %v1534 = vlaneseq
      %v1535 = vshrl.u32 %v1534, 7
      %v1536 = vsub.s32 %v1533, %v1535
      %v1537 = vrot.slane %v1521, %v1536
      %v1539 = vunpack.c.l.s4 1966171168
      %v1540 = vunpack.c.0.s8 %v1539
      %v1541 = vlaneseq
      %v1542 = vshrl.u32 %v1541, 7
      %v1543 = vsub.s32 %v1540, %v1542
      %v1544 = vrot.slane %v1528, %v1543
      %v1546 = vunpack.c.l.s4 1966171168
      %v1547 = vunpack.c.0.s8 %v1546
      %v1548 = vlaneseq
      %v1549 = vshrl.u32 %v1548, 7
      %v1550 = vsub.s32 %v1547, %v1549
      %v1551 = vrot.slane %v1529, %v1550
      %v1553 = vunpack.c.l.s4 1966171168
      %v1554 = vunpack.c.0.s8 %v1553
      %v1555 = vlaneseq
      %v1556 = vshrl.u32 %v1555, 7
      %v1557 = vsub.s32 %v1554, %v1556
      %v1558 = vrot.slane %v1530, %v1557
      %v1559 = vcombine.high %v1537, %v1537
      %v1560 = vcombine.high %v1544, %v1544
      %v1561 = vcombine.high %v1551, %v1551
      %v1562 = vcombine.high %v1558, %v1558
      %v1563 = vcombine.high %v1503, %v1503
      %v1565 = vunpack.c.l.s4 1966171168
      %v1566 = vunpack.c.0.s8 %v1565
      %v1567 = vlaneseq
      %v1568 = vshrl.u32 %v1567, 7
      %v1569 = vsub.s32 %v1566, %v1568
      %v1570 = vrot.slane %v1503, %v1569
      %v1572 = vunpack.c.l.s4 1966171168
      %v1573 = vunpack.c.0.s8 %v1572
      %v1574 = vlaneseq
      %v1575 = vshrl.u32 %v1574, 7
      %v1576 = vsub.s32 %v1573, %v1575
      %v1577 = vrot.slane %v1563, %v1576
      %v1578 = vcombine.high %v1570, %v1570
      %v1579 = vcombine.high %v1577, %v1577
      %v1581 = vunpack.c.l.s4 1966171168
      %v1582 = vunpack.c.0.s8 %v1581
      %v1583 = vlaneseq
      %v1584 = vshrl.u32 %v1583, 7
      %v1585 = vsub.s32 %v1582, %v1584
      %v1586 = vrot.slane %v1570, %v1585
      %v1588 = vunpack.c.l.s4 1966171168
      %v1589 = vunpack.c.0.s8 %v1588
      %v1590 = vlaneseq
      %v1591 = vshrl.u32 %v1590, 7
      %v1592 = vsub.s32 %v1589, %v1591
      %v1593 = vrot.slane %v1577, %v1592
      %v1595 = vunpack.c.l.s4 1966171168
      %v1596 = vunpack.c.0.s8 %v1595
      %v1597 = vlaneseq
      %v1598 = vshrl.u32 %v1597, 7
      %v1599 = vsub.s32 %v1596, %v1598
      %v1600 = vrot.slane %v1578, %v1599
      %v1602 = vunpack.c.l.s4 1966171168
      %v1603 = vunpack.c.0.s8 %v1602
      %v1604 = vlaneseq
      %v1605 = vshrl.u32 %v1604, 7
      %v1606 = vsub.s32 %v1603, %v1605
      %v1607 = vrot.slane %v1579, %v1606
      %v1608 = vcombine.high %v1586, %v1586
      %v1609 = vcombine.high %v1593, %v1593
      %v1610 = vcombine.high %v1600, %v1600
      %v1611 = vcombine.high %v1607, %v1607
      %v1613 = vunpack.c.l.s4 1966171168
      %v1614 = vunpack.c.0.s8 %v1613
      %v1615 = vlaneseq
      %v1616 = vshrl.u32 %v1615, 7
      %v1617 = vsub.s32 %v1614, %v1616
      %v1618 = vrot.slane %v1508, %v1617
      %v1619 = vcombine.high %v1618, %v1618
      %v1621 = vunpack.c.l.s4 1966171168
      %v1622 = vunpack.c.0.s8 %v1621
      %v1623 = vlaneseq
      %v1624 = vshrl.u32 %v1623, 7
      %v1625 = vsub.s32 %v1622, %v1624
      %v1626 = vrot.slane %v1618, %v1625
      %v1628 = vunpack.c.l.s4 1966171168
      %v1629 = vunpack.c.0.s8 %v1628
      %v1630 = vlaneseq
      %v1631 = vshrl.u32 %v1630, 7
      %v1632 = vsub.s32 %v1629, %v1631
      %v1633 = vrot.slane %v1619, %v1632
      %1652 = vst.msk [vmem:[#allocation2 + $0x4] sm:$0x1] %vm575, %v1537
      %1653 = vst.msk [vmem:[#allocation2 + $0x14] sm:$0x1] %vm575, %v1551
      %1654 = vst.msk [vmem:[#allocation2 + $0x24] sm:$0x1] %vm575, %v1559
      %1655 = vst.msk [vmem:[#allocation2 + $0x34] sm:$0x1] %vm575, %v1561
      %1656 = vst.msk [vmem:[#allocation2 + $0x44] sm:$0x1] %vm575, %v1544
      %1657 = vst.msk [vmem:[#allocation2 + $0x54] sm:$0x1] %vm575, %v1558
      %1658 = vst.msk [vmem:[#allocation2 + $0x64] sm:$0x1] %vm575, %v1560
      %1659 = vst.msk [vmem:[#allocation2 + $0x74] sm:$0x1] %vm575, %v1562
      %1660 = vst.msk [vmem:[#allocation2 + $0x84] sm:$0x1] %vm575, %v1586
      %1661 = vst.msk [vmem:[#allocation2 + $0x94] sm:$0x1] %vm575, %v1600
      %1662 = vst.msk [vmem:[#allocation2 + $0xa4] sm:$0x1] %vm575, %v1608
      %1663 = vst.msk [vmem:[#allocation2 + $0xb4] sm:$0x1] %vm575, %v1610
      %1664 = vst.msk [vmem:[#allocation2 + $0xc4] sm:$0x1] %vm575, %v1593
      %1665 = vst.msk [vmem:[#allocation2 + $0xd4] sm:$0x1] %vm575, %v1607
      %1666 = vst.msk [vmem:[#allocation2 + $0xe4] sm:$0x1] %vm575, %v1609
      %1667 = vst.msk [vmem:[#allocation2 + $0xf4] sm:$0x1] %vm575, %v1611
      %1668 = vst.msk [vmem:[#allocation2 + $0x104] sm:$0x1] %vm575, %v1626
      %1669 = vst.msk [vmem:[#allocation2 + $0x114] sm:$0x1] %vm575, %v1633
      %v1670 = vrot.slane %v259, 5
      %v1671 = vrot.slane %v261, 4
      %v1672 = vsel %vm308, %v1671, %v1670
      %v1673 = vrot.slane %v263, 3
      %v1674 = vsel %vm311, %v1673, %v1672
      %v1675 = vrot.slane %v265, 2
      %v1676 = vsel %vm314, %v1675, %v1674
      %v1677 = vrot.slane %v267, 1
      %v1678 = vsel %vm317, %v1677, %v1676
      %v1679 = vsel %vm320, %v269, %v1678
      %v1680 = vrot.slane %v271, 7
      %v1681 = vsel %vm323, %v1680, %v1679
      %v1682 = vrot.slane %v273, 6
      %v1683 = vsel %vm326, %v1682, %v1681
      %v1684 = vrot.slane %v275, 5
      %v1685 = vrot.slane %v277, 4
      %v1686 = vsel %vm308, %v1685, %v1684
      %v1687 = vrot.slane %v279, 3
      %v1688 = vsel %vm311, %v1687, %v1686
      %v1689 = vrot.slane %v281, 2
      %v1690 = vsel %vm314, %v1689, %v1688
      %v1691 = vrot.slane %v283, 1
      %v1692 = vsel %vm317, %v1691, %v1690
      %v1693 = vsel %vm320, %v285, %v1692
      %v1694 = vrot.slane %v287, 7
      %v1695 = vsel %vm323, %v1694, %v1693
      %v1696 = vrot.slane %v289, 6
      %v1697 = vsel %vm326, %v1696, %v1695
      %1700 = vmatprep.subr.mxu0 0.0
      %1701 = vmatpush1.msra.mxu0 %v1683
      %1702 = vmatprep.subr.mxu0 0.0
      %1703 = vmatpush1.msra.mxu0 %v1697
      %1704 = vmatprep.subr.mxu0 0.0
      %1705 = vmatpush1.msra.mxu0 0.0
      %1706 = vmatprep.subr.mxu0 0.0
      %1707 = vmatpush1.msra.mxu0 0.0
      %1708 = vmatprep.subr.mxu0 0.0
      %1709 = vmatpush1.msra.mxu0 0.0
      %1710 = vmatprep.subr.mxu0 0.0
      %1711 = vmatpush1.msra.mxu0 0.0
      %1712 = vmatprep.subr.mxu0 0.0
      %1713 = vmatpush1.msra.mxu0 0.0
      %1714 = vmatprep.subr.mxu0 0.0
      %1715 = vmatpush1.msra.mxu0 0.0
      %1716 = vmatprep.subr.mxu0 0.0
      %1717 = vmatpush1.msra.mxu0 0.0
      %1718 = vmatprep.subr.mxu0 0.0
      %1719 = vmatpush1.msra.mxu0 0.0
      %1720 = vmatprep.subr.mxu0 0.0
      %1721 = vmatpush1.msra.mxu0 0.0
      %1722 = vmatprep.subr.mxu0 0.0
      %1723 = vmatpush1.msra.mxu0 0.0
      %1724 = vmatprep.subr.mxu0 0.0
      %1725 = vmatpush1.msra.mxu0 0.0
      %1726 = vmatprep.subr.mxu0 0.0
      %1727 = vmatpush1.msra.mxu0 0.0
      %1728 = vmatprep.subr.mxu0 0.0
      %1729 = vmatpush1.msra.mxu0 0.0
      %1730 = vmatprep.subr.mxu0 0.0
      %1731 = vmatpush1.msra.mxu0 0.0
      %1732 = vmatprep.subr.mxu0 0.0
      %1733 = vmatpush1.msra.mxu0 0.0
      %1734 = vmatprep.subr.mxu0 0.0
      %1735 = vmatpush1.msra.mxu0 0.0
      %1736 = vmatprep.subr.mxu0 0.0
      %1737 = vmatpush1.msra.mxu0 0.0
      %1738 = vmatprep.subr.mxu0 0.0
      %1739 = vmatpush1.msra.mxu0 0.0
      %1740 = vmatprep.subr.mxu0 0.0
      %1741 = vmatpush1.msra.mxu0 0.0
      %1742 = vmatprep.subr.mxu0 0.0
      %1743 = vmatpush1.msra.mxu0 0.0
      %1744 = vmatprep.subr.mxu0 0.0
      %1745 = vmatpush1.msra.mxu0 0.0
      %1746 = vmatprep.subr.mxu0 0.0
      %1747 = vmatpush1.msra.mxu0 0.0
      %1748 = vmatprep.subr.mxu0 0.0
      %1749 = vmatpush1.msra.mxu0 0.0
      %1750 = vmatprep.subr.mxu0 0.0
      %1751 = vmatpush1.msra.mxu0 0.0
      %1752 = vmatprep.subr.mxu0 0.0
      %1753 = vmatpush1.msra.mxu0 0.0
      %1754 = vmatprep.subr.mxu0 0.0
      %1755 = vmatpush1.msra.mxu0 0.0
      %1756 = vmatprep.subr.mxu0 0.0
      %1757 = vmatpush1.msra.mxu0 0.0
      %1758 = vmatprep.subr.mxu0 0.0
      %1759 = vmatpush1.msra.mxu0 0.0
      %1760 = vmatprep.subr.mxu0 0.0
      %1761 = vmatpush1.msra.mxu0 0.0
      %1762 = vmatprep.subr.mxu0 0.0
      %1763 = vmatpush1.msra.mxu0 0.0
      %1764 = vmatprep.mubr.f32.mxu0 0.0
      %1765 = vmatmul.mubr.f32.gmra.mrb[0].mxu0 %v346
      %v1766 = vpop.f32.mrb[0].mxu0
      %v1767 = vadd.f32 0.0, %v1766
      %v1768 = vpop.f32.mrb[0].mxu0
      %1769 = vmatprep.mubr.f32.mxu0 0.0
      %1770 = vmatmul.mubr.f32.gmra.mrb[0].mxu0 %v349
      %v1771 = vpop.f32.mrb[0].mxu0
      %v1772 = vadd.f32 0.0, %v1771
      %v1773 = vpop.f32.mrb[0].mxu0
      %1774 = vmatprep.mubr.f32.mxu0 0.0
      %1775 = vmatmul.mubr.f32.gmra.mrb[0].mxu0 %v352
      %v1776 = vpop.f32.mrb[0].mxu0
      %v1777 = vadd.f32 0.0, %v1776
      %v1778 = vpop.f32.mrb[0].mxu0
      %1779 = vdwg.mxu0
      %v1783 = vcombine.high %v1767, %v1767
      %v1785 = vunpack.c.l.s4 1966171168
      %v1786 = vunpack.c.0.s8 %v1785
      %v1787 = vlaneseq
      %v1788 = vshrl.u32 %v1787, 7
      %v1789 = vsub.s32 %v1786, %v1788
      %v1790 = vrot.slane %v1767, %v1789
      %v1792 = vunpack.c.l.s4 1966171168
      %v1793 = vunpack.c.0.s8 %v1792
      %v1794 = vlaneseq
      %v1795 = vshrl.u32 %v1794, 7
      %v1796 = vsub.s32 %v1793, %v1795
      %v1797 = vrot.slane %v1783, %v1796
      %v1798 = vcombine.high %v1790, %v1790
      %v1799 = vcombine.high %v1797, %v1797
      %v1801 = vunpack.c.l.s4 1966171168
      %v1802 = vunpack.c.0.s8 %v1801
      %v1803 = vlaneseq
      %v1804 = vshrl.u32 %v1803, 7
      %v1805 = vsub.s32 %v1802, %v1804
      %v1806 = vrot.slane %v1790, %v1805
      %v1808 = vunpack.c.l.s4 1966171168
      %v1809 = vunpack.c.0.s8 %v1808
      %v1810 = vlaneseq
      %v1811 = vshrl.u32 %v1810, 7
      %v1812 = vsub.s32 %v1809, %v1811
      %v1813 = vrot.slane %v1797, %v1812
      %v1815 = vunpack.c.l.s4 1966171168
      %v1816 = vunpack.c.0.s8 %v1815
      %v1817 = vlaneseq
      %v1818 = vshrl.u32 %v1817, 7
      %v1819 = vsub.s32 %v1816, %v1818
      %v1820 = vrot.slane %v1798, %v1819
      %v1822 = vunpack.c.l.s4 1966171168
      %v1823 = vunpack.c.0.s8 %v1822
      %v1824 = vlaneseq
      %v1825 = vshrl.u32 %v1824, 7
      %v1826 = vsub.s32 %v1823, %v1825
      %v1827 = vrot.slane %v1799, %v1826
      %v1828 = vcombine.high %v1806, %v1806
      %v1829 = vcombine.high %v1813, %v1813
      %v1830 = vcombine.high %v1820, %v1820
      %v1831 = vcombine.high %v1827, %v1827
      %v1832 = vcombine.high %v1772, %v1772
      %v1834 = vunpack.c.l.s4 1966171168
      %v1835 = vunpack.c.0.s8 %v1834
      %v1836 = vlaneseq
      %v1837 = vshrl.u32 %v1836, 7
      %v1838 = vsub.s32 %v1835, %v1837
      %v1839 = vrot.slane %v1772, %v1838
      %v1841 = vunpack.c.l.s4 1966171168
      %v1842 = vunpack.c.0.s8 %v1841
      %v1843 = vlaneseq
      %v1844 = vshrl.u32 %v1843, 7
      %v1845 = vsub.s32 %v1842, %v1844
      %v1846 = vrot.slane %v1832, %v1845
      %v1847 = vcombine.high %v1839, %v1839
      %v1848 = vcombine.high %v1846, %v1846
      %v1850 = vunpack.c.l.s4 1966171168
      %v1851 = vunpack.c.0.s8 %v1850
      %v1852 = vlaneseq
      %v1853 = vshrl.u32 %v1852, 7
      %v1854 = vsub.s32 %v1851, %v1853
      %v1855 = vrot.slane %v1839, %v1854
      %v1857 = vunpack.c.l.s4 1966171168
      %v1858 = vunpack.c.0.s8 %v1857
      %v1859 = vlaneseq
      %v1860 = vshrl.u32 %v1859, 7
      %v1861 = vsub.s32 %v1858, %v1860
      %v1862 = vrot.slane %v1846, %v1861
      %v1864 = vunpack.c.l.s4 1966171168
      %v1865 = vunpack.c.0.s8 %v1864
      %v1866 = vlaneseq
      %v1867 = vshrl.u32 %v1866, 7
      %v1868 = vsub.s32 %v1865, %v1867
      %v1869 = vrot.slane %v1847, %v1868
      %v1871 = vunpack.c.l.s4 1966171168
      %v1872 = vunpack.c.0.s8 %v1871
      %v1873 = vlaneseq
      %v1874 = vshrl.u32 %v1873, 7
      %v1875 = vsub.s32 %v1872, %v1874
      %v1876 = vrot.slane %v1848, %v1875
      %v1877 = vcombine.high %v1855, %v1855
      %v1878 = vcombine.high %v1862, %v1862
      %v1879 = vcombine.high %v1869, %v1869
      %v1880 = vcombine.high %v1876, %v1876
      %v1882 = vunpack.c.l.s4 1966171168
      %v1883 = vunpack.c.0.s8 %v1882
      %v1884 = vlaneseq
      %v1885 = vshrl.u32 %v1884, 7
      %v1886 = vsub.s32 %v1883, %v1885
      %v1887 = vrot.slane %v1777, %v1886
      %v1888 = vcombine.high %v1887, %v1887
      %v1890 = vunpack.c.l.s4 1966171168
      %v1891 = vunpack.c.0.s8 %v1890
      %v1892 = vlaneseq
      %v1893 = vshrl.u32 %v1892, 7
      %v1894 = vsub.s32 %v1891, %v1893
      %v1895 = vrot.slane %v1887, %v1894
      %v1897 = vunpack.c.l.s4 1966171168
      %v1898 = vunpack.c.0.s8 %v1897
      %v1899 = vlaneseq
      %v1900 = vshrl.u32 %v1899, 7
      %v1901 = vsub.s32 %v1898, %v1900
      %v1902 = vrot.slane %v1888, %v1901
      %1921 = vst.msk [vmem:[#allocation2 + $0x5] sm:$0x1] %vm575, %v1806
      %1922 = vst.msk [vmem:[#allocation2 + $0x15] sm:$0x1] %vm575, %v1820
      %1923 = vst.msk [vmem:[#allocation2 + $0x25] sm:$0x1] %vm575, %v1828
      %1924 = vst.msk [vmem:[#allocation2 + $0x35] sm:$0x1] %vm575, %v1830
      %1925 = vst.msk [vmem:[#allocation2 + $0x45] sm:$0x1] %vm575, %v1813
      %1926 = vst.msk [vmem:[#allocation2 + $0x55] sm:$0x1] %vm575, %v1827
      %1927 = vst.msk [vmem:[#allocation2 + $0x65] sm:$0x1] %vm575, %v1829
      %1928 = vst.msk [vmem:[#allocation2 + $0x75] sm:$0x1] %vm575, %v1831
      %1929 = vst.msk [vmem:[#allocation2 + $0x85] sm:$0x1] %vm575, %v1855
      %1930 = vst.msk [vmem:[#allocation2 + $0x95] sm:$0x1] %vm575, %v1869
      %1931 = vst.msk [vmem:[#allocation2 + $0xa5] sm:$0x1] %vm575, %v1877
      %1932 = vst.msk [vmem:[#allocation2 + $0xb5] sm:$0x1] %vm575, %v1879
      %1933 = vst.msk [vmem:[#allocation2 + $0xc5] sm:$0x1] %vm575, %v1862
      %1934 = vst.msk [vmem:[#allocation2 + $0xd5] sm:$0x1] %vm575, %v1876
      %1935 = vst.msk [vmem:[#allocation2 + $0xe5] sm:$0x1] %vm575, %v1878
      %1936 = vst.msk [vmem:[#allocation2 + $0xf5] sm:$0x1] %vm575, %v1880
      %1937 = vst.msk [vmem:[#allocation2 + $0x105] sm:$0x1] %vm575, %v1895
      %1938 = vst.msk [vmem:[#allocation2 + $0x115] sm:$0x1] %vm575, %v1902
      %v1939 = vrot.slane %v259, 6
      %v1940 = vrot.slane %v261, 5
      %v1941 = vsel %vm308, %v1940, %v1939
      %v1942 = vrot.slane %v263, 4
      %v1943 = vsel %vm311, %v1942, %v1941
      %v1944 = vrot.slane %v265, 3
      %v1945 = vsel %vm314, %v1944, %v1943
      %v1946 = vrot.slane %v267, 2
      %v1947 = vsel %vm317, %v1946, %v1945
      %v1948 = vrot.slane %v269, 1
      %v1949 = vsel %vm320, %v1948, %v1947
      %v1950 = vsel %vm323, %v271, %v1949
      %v1951 = vrot.slane %v273, 7
      %v1952 = vsel %vm326, %v1951, %v1950
      %v1953 = vrot.slane %v275, 6
      %v1954 = vrot.slane %v277, 5
      %v1955 = vsel %vm308, %v1954, %v1953
      %v1956 = vrot.slane %v279, 4
      %v1957 = vsel %vm311, %v1956, %v1955
      %v1958 = vrot.slane %v281, 3
      %v1959 = vsel %vm314, %v1958, %v1957
      %v1960 = vrot.slane %v283, 2
      %v1961 = vsel %vm317, %v1960, %v1959
      %v1962 = vrot.slane %v285, 1
      %v1963 = vsel %vm320, %v1962, %v1961
      %v1964 = vsel %vm323, %v287, %v1963
      %v1965 = vrot.slane %v289, 7
      %v1966 = vsel %vm326, %v1965, %v1964
      %1969 = vmatprep.subr.mxu0 0.0
      %1970 = vmatpush1.msra.mxu0 %v1952
      %1971 = vmatprep.subr.mxu0 0.0
      %1972 = vmatpush1.msra.mxu0 %v1966
      %1973 = vmatprep.subr.mxu0 0.0
      %1974 = vmatpush1.msra.mxu0 0.0
      %1975 = vmatprep.subr.mxu0 0.0
      %1976 = vmatpush1.msra.mxu0 0.0
      %1977 = vmatprep.subr.mxu0 0.0
      %1978 = vmatpush1.msra.mxu0 0.0
      %1979 = vmatprep.subr.mxu0 0.0
      %1980 = vmatpush1.msra.mxu0 0.0
      %1981 = vmatprep.subr.mxu0 0.0
      %1982 = vmatpush1.msra.mxu0 0.0
      %1983 = vmatprep.subr.mxu0 0.0
      %1984 = vmatpush1.msra.mxu0 0.0
      %1985 = vmatprep.subr.mxu0 0.0
      %1986 = vmatpush1.msra.mxu0 0.0
      %1987 = vmatprep.subr.mxu0 0.0
      %1988 = vmatpush1.msra.mxu0 0.0
      %1989 = vmatprep.subr.mxu0 0.0
      %1990 = vmatpush1.msra.mxu0 0.0
      %1991 = vmatprep.subr.mxu0 0.0
      %1992 = vmatpush1.msra.mxu0 0.0
      %1993 = vmatprep.subr.mxu0 0.0
      %1994 = vmatpush1.msra.mxu0 0.0
      %1995 = vmatprep.subr.mxu0 0.0
      %1996 = vmatpush1.msra.mxu0 0.0
      %1997 = vmatprep.subr.mxu0 0.0
      %1998 = vmatpush1.msra.mxu0 0.0
      %1999 = vmatprep.subr.mxu0 0.0
      %2000 = vmatpush1.msra.mxu0 0.0
      %2001 = vmatprep.subr.mxu0 0.0
      %2002 = vmatpush1.msra.mxu0 0.0
      %2003 = vmatprep.subr.mxu0 0.0
      %2004 = vmatpush1.msra.mxu0 0.0
      %2005 = vmatprep.subr.mxu0 0.0
      %2006 = vmatpush1.msra.mxu0 0.0
      %2007 = vmatprep.subr.mxu0 0.0
      %2008 = vmatpush1.msra.mxu0 0.0
      %2009 = vmatprep.subr.mxu0 0.0
      %2010 = vmatpush1.msra.mxu0 0.0
      %2011 = vmatprep.subr.mxu0 0.0
      %2012 = vmatpush1.msra.mxu0 0.0
      %2013 = vmatprep.subr.mxu0 0.0
      %2014 = vmatpush1.msra.mxu0 0.0
      %2015 = vmatprep.subr.mxu0 0.0
      %2016 = vmatpush1.msra.mxu0 0.0
      %2017 = vmatprep.subr.mxu0 0.0
      %2018 = vmatpush1.msra.mxu0 0.0
      %2019 = vmatprep.subr.mxu0 0.0
      %2020 = vmatpush1.msra.mxu0 0.0
      %2021 = vmatprep.subr.mxu0 0.0
      %2022 = vmatpush1.msra.mxu0 0.0
      %2023 = vmatprep.subr.mxu0 0.0
      %2024 = vmatpush1.msra.mxu0 0.0
      %2025 = vmatprep.subr.mxu0 0.0
      %2026 = vmatpush1.msra.mxu0 0.0
      %2027 = vmatprep.subr.mxu0 0.0
      %2028 = vmatpush1.msra.mxu0 0.0
      %2029 = vmatprep.subr.mxu0 0.0
      %2030 = vmatpush1.msra.mxu0 0.0
      %2031 = vmatprep.subr.mxu0 0.0
      %2032 = vmatpush1.msra.mxu0 0.0
      %2033 = vmatprep.mubr.f32.mxu0 0.0
      %2034 = vmatmul.mubr.f32.gmra.mrb[0].mxu0 %v346
      %v2035 = vpop.f32.mrb[0].mxu0
      %v2036 = vadd.f32 0.0, %v2035
      %v2037 = vpop.f32.mrb[0].mxu0
      %2038 = vmatprep.mubr.f32.mxu0 0.0
      %2039 = vmatmul.mubr.f32.gmra.mrb[0].mxu0 %v349
      %v2040 = vpop.f32.mrb[0].mxu0
      %v2041 = vadd.f32 0.0, %v2040
      %v2042 = vpop.f32.mrb[0].mxu0
      %2043 = vmatprep.mubr.f32.mxu0 0.0
      %2044 = vmatmul.mubr.f32.gmra.mrb[0].mxu0 %v352
      %v2045 = vpop.f32.mrb[0].mxu0
      %v2046 = vadd.f32 0.0, %v2045
      %v2047 = vpop.f32.mrb[0].mxu0
      %2048 = vdwg.mxu0
      %v2052 = vcombine.high %v2036, %v2036
      %v2054 = vunpack.c.l.s4 1966171168
      %v2055 = vunpack.c.0.s8 %v2054
      %v2056 = vlaneseq
      %v2057 = vshrl.u32 %v2056, 7
      %v2058 = vsub.s32 %v2055, %v2057
      %v2059 = vrot.slane %v2036, %v2058
      %v2061 = vunpack.c.l.s4 1966171168
      %v2062 = vunpack.c.0.s8 %v2061
      %v2063 = vlaneseq
      %v2064 = vshrl.u32 %v2063, 7
      %v2065 = vsub.s32 %v2062, %v2064
      %v2066 = vrot.slane %v2052, %v2065
      %v2067 = vcombine.high %v2059, %v2059
      %v2068 = vcombine.high %v2066, %v2066
      %v2070 = vunpack.c.l.s4 1966171168
      %v2071 = vunpack.c.0.s8 %v2070
      %v2072 = vlaneseq
      %v2073 = vshrl.u32 %v2072, 7
      %v2074 = vsub.s32 %v2071, %v2073
      %v2075 = vrot.slane %v2059, %v2074
      %v2077 = vunpack.c.l.s4 1966171168
      %v2078 = vunpack.c.0.s8 %v2077
      %v2079 = vlaneseq
      %v2080 = vshrl.u32 %v2079, 7
      %v2081 = vsub.s32 %v2078, %v2080
      %v2082 = vrot.slane %v2066, %v2081
      %v2084 = vunpack.c.l.s4 1966171168
      %v2085 = vunpack.c.0.s8 %v2084
      %v2086 = vlaneseq
      %v2087 = vshrl.u32 %v2086, 7
      %v2088 = vsub.s32 %v2085, %v2087
      %v2089 = vrot.slane %v2067, %v2088
      %v2091 = vunpack.c.l.s4 1966171168
      %v2092 = vunpack.c.0.s8 %v2091
      %v2093 = vlaneseq
      %v2094 = vshrl.u32 %v2093, 7
      %v2095 = vsub.s32 %v2092, %v2094
      %v2096 = vrot.slane %v2068, %v2095
      %v2097 = vcombine.high %v2075, %v2075
      %v2098 = vcombine.high %v2082, %v2082
      %v2099 = vcombine.high %v2089, %v2089
      %v2100 = vcombine.high %v2096, %v2096
      %v2101 = vcombine.high %v2041, %v2041
      %v2103 = vunpack.c.l.s4 1966171168
      %v2104 = vunpack.c.0.s8 %v2103
      %v2105 = vlaneseq
      %v2106 = vshrl.u32 %v2105, 7
      %v2107 = vsub.s32 %v2104, %v2106
      %v2108 = vrot.slane %v2041, %v2107
      %v2110 = vunpack.c.l.s4 1966171168
      %v2111 = vunpack.c.0.s8 %v2110
      %v2112 = vlaneseq
      %v2113 = vshrl.u32 %v2112, 7
      %v2114 = vsub.s32 %v2111, %v2113
      %v2115 = vrot.slane %v2101, %v2114
      %v2116 = vcombine.high %v2108, %v2108
      %v2117 = vcombine.high %v2115, %v2115
      %v2119 = vunpack.c.l.s4 1966171168
      %v2120 = vunpack.c.0.s8 %v2119
      %v2121 = vlaneseq
      %v2122 = vshrl.u32 %v2121, 7
      %v2123 = vsub.s32 %v2120, %v2122
      %v2124 = vrot.slane %v2108, %v2123
      %v2126 = vunpack.c.l.s4 1966171168
      %v2127 = vunpack.c.0.s8 %v2126
      %v2128 = vlaneseq
      %v2129 = vshrl.u32 %v2128, 7
      %v2130 = vsub.s32 %v2127, %v2129
      %v2131 = vrot.slane %v2115, %v2130
      %v2133 = vunpack.c.l.s4 1966171168
      %v2134 = vunpack.c.0.s8 %v2133
      %v2135 = vlaneseq
      %v2136 = vshrl.u32 %v2135, 7
      %v2137 = vsub.s32 %v2134, %v2136
      %v2138 = vrot.slane %v2116, %v2137
      %v2140 = vunpack.c.l.s4 1966171168
      %v2141 = vunpack.c.0.s8 %v2140
      %v2142 = vlaneseq
      %v2143 = vshrl.u32 %v2142, 7
      %v2144 = vsub.s32 %v2141, %v2143
      %v2145 = vrot.slane %v2117, %v2144
      %v2146 = vcombine.high %v2124, %v2124
      %v2147 = vcombine.high %v2131, %v2131
      %v2148 = vcombine.high %v2138, %v2138
      %v2149 = vcombine.high %v2145, %v2145
      %v2151 = vunpack.c.l.s4 1966171168
      %v2152 = vunpack.c.0.s8 %v2151
      %v2153 = vlaneseq
      %v2154 = vshrl.u32 %v2153, 7
      %v2155 = vsub.s32 %v2152, %v2154
      %v2156 = vrot.slane %v2046, %v2155
      %v2157 = vcombine.high %v2156, %v2156
      %v2159 = vunpack.c.l.s4 1966171168
      %v2160 = vunpack.c.0.s8 %v2159
      %v2161 = vlaneseq
      %v2162 = vshrl.u32 %v2161, 7
      %v2163 = vsub.s32 %v2160, %v2162
      %v2164 = vrot.slane %v2156, %v2163
      %v2166 = vunpack.c.l.s4 1966171168
      %v2167 = vunpack.c.0.s8 %v2166
      %v2168 = vlaneseq
      %v2169 = vshrl.u32 %v2168, 7
      %v2170 = vsub.s32 %v2167, %v2169
      %v2171 = vrot.slane %v2157, %v2170
      %2190 = vst.msk [vmem:[#allocation2 + $0x6] sm:$0x1] %vm575, %v2075
      %2191 = vst.msk [vmem:[#allocation2 + $0x16] sm:$0x1] %vm575, %v2089
      %2192 = vst.msk [vmem:[#allocation2 + $0x26] sm:$0x1] %vm575, %v2097
      %2193 = vst.msk [vmem:[#allocation2 + $0x36] sm:$0x1] %vm575, %v2099
      %2194 = vst.msk [vmem:[#allocation2 + $0x46] sm:$0x1] %vm575, %v2082
      %2195 = vst.msk [vmem:[#allocation2 + $0x56] sm:$0x1] %vm575, %v2096
      %2196 = vst.msk [vmem:[#allocation2 + $0x66] sm:$0x1] %vm575, %v2098
      %2197 = vst.msk [vmem:[#allocation2 + $0x76] sm:$0x1] %vm575, %v2100
      %2198 = vst.msk [vmem:[#allocation2 + $0x86] sm:$0x1] %vm575, %v2124
      %2199 = vst.msk [vmem:[#allocation2 + $0x96] sm:$0x1] %vm575, %v2138
      %2200 = vst.msk [vmem:[#allocation2 + $0xa6] sm:$0x1] %vm575, %v2146
      %2201 = vst.msk [vmem:[#allocation2 + $0xb6] sm:$0x1] %vm575, %v2148
      %2202 = vst.msk [vmem:[#allocation2 + $0xc6] sm:$0x1] %vm575, %v2131
      %2203 = vst.msk [vmem:[#allocation2 + $0xd6] sm:$0x1] %vm575, %v2145
      %2204 = vst.msk [vmem:[#allocation2 + $0xe6] sm:$0x1] %vm575, %v2147
      %2205 = vst.msk [vmem:[#allocation2 + $0xf6] sm:$0x1] %vm575, %v2149
      %2206 = vst.msk [vmem:[#allocation2 + $0x106] sm:$0x1] %vm575, %v2164
      %2207 = vst.msk [vmem:[#allocation2 + $0x116] sm:$0x1] %vm575, %v2171
      %v2208 = vrot.slane %v259, 7
      %v2209 = vrot.slane %v261, 6
      %v2210 = vsel %vm308, %v2209, %v2208
      %v2211 = vrot.slane %v263, 5
      %v2212 = vsel %vm311, %v2211, %v2210
      %v2213 = vrot.slane %v265, 4
      %v2214 = vsel %vm314, %v2213, %v2212
      %v2215 = vrot.slane %v267, 3
      %v2216 = vsel %vm317, %v2215, %v2214
      %v2217 = vrot.slane %v269, 2
      %v2218 = vsel %vm320, %v2217, %v2216
      %v2219 = vrot.slane %v271, 1
      %v2220 = vsel %vm323, %v2219, %v2218
      %v2221 = vsel %vm326, %v273, %v2220
      %v2222 = vrot.slane %v275, 7
      %v2223 = vrot.slane %v277, 6
      %v2224 = vsel %vm308, %v2223, %v2222
      %v2225 = vrot.slane %v279, 5
      %v2226 = vsel %vm311, %v2225, %v2224
      %v2227 = vrot.slane %v281, 4
      %v2228 = vsel %vm314, %v2227, %v2226
      %v2229 = vrot.slane %v283, 3
      %v2230 = vsel %vm317, %v2229, %v2228
      %v2231 = vrot.slane %v285, 2
      %v2232 = vsel %vm320, %v2231, %v2230
      %v2233 = vrot.slane %v287, 1
      %v2234 = vsel %vm323, %v2233, %v2232
      %v2235 = vsel %vm326, %v289, %v2234
      %2238 = vmatprep.subr.mxu0 0.0
      %2239 = vmatpush1.msra.mxu0 %v2221
      %2240 = vmatprep.subr.mxu0 0.0
      %2241 = vmatpush1.msra.mxu0 %v2235
      %2242 = vmatprep.subr.mxu0 0.0
      %2243 = vmatpush1.msra.mxu0 0.0
      %2244 = vmatprep.subr.mxu0 0.0
      %2245 = vmatpush1.msra.mxu0 0.0
      %2246 = vmatprep.subr.mxu0 0.0
      %2247 = vmatpush1.msra.mxu0 0.0
      %2248 = vmatprep.subr.mxu0 0.0
      %2249 = vmatpush1.msra.mxu0 0.0
      %2250 = vmatprep.subr.mxu0 0.0
      %2251 = vmatpush1.msra.mxu0 0.0
      %2252 = vmatprep.subr.mxu0 0.0
      %2253 = vmatpush1.msra.mxu0 0.0
      %2254 = vmatprep.subr.mxu0 0.0
      %2255 = vmatpush1.msra.mxu0 0.0
      %2256 = vmatprep.subr.mxu0 0.0
      %2257 = vmatpush1.msra.mxu0 0.0
      %2258 = vmatprep.subr.mxu0 0.0
      %2259 = vmatpush1.msra.mxu0 0.0
      %2260 = vmatprep.subr.mxu0 0.0
      %2261 = vmatpush1.msra.mxu0 0.0
      %2262 = vmatprep.subr.mxu0 0.0
      %2263 = vmatpush1.msra.mxu0 0.0
      %2264 = vmatprep.subr.mxu0 0.0
      %2265 = vmatpush1.msra.mxu0 0.0
      %2266 = vmatprep.subr.mxu0 0.0
      %2267 = vmatpush1.msra.mxu0 0.0
      %2268 = vmatprep.subr.mxu0 0.0
      %2269 = vmatpush1.msra.mxu0 0.0
      %2270 = vmatprep.subr.mxu0 0.0
      %2271 = vmatpush1.msra.mxu0 0.0
      %2272 = vmatprep.subr.mxu0 0.0
      %2273 = vmatpush1.msra.mxu0 0.0
      %2274 = vmatprep.subr.mxu0 0.0
      %2275 = vmatpush1.msra.mxu0 0.0
      %2276 = vmatprep.subr.mxu0 0.0
      %2277 = vmatpush1.msra.mxu0 0.0
      %2278 = vmatprep.subr.mxu0 0.0
      %2279 = vmatpush1.msra.mxu0 0.0
      %2280 = vmatprep.subr.mxu0 0.0
      %2281 = vmatpush1.msra.mxu0 0.0
      %2282 = vmatprep.subr.mxu0 0.0
      %2283 = vmatpush1.msra.mxu0 0.0
      %2284 = vmatprep.subr.mxu0 0.0
      %2285 = vmatpush1.msra.mxu0 0.0
      %2286 = vmatprep.subr.mxu0 0.0
      %2287 = vmatpush1.msra.mxu0 0.0
      %2288 = vmatprep.subr.mxu0 0.0
      %2289 = vmatpush1.msra.mxu0 0.0
      %2290 = vmatprep.subr.mxu0 0.0
      %2291 = vmatpush1.msra.mxu0 0.0
      %2292 = vmatprep.subr.mxu0 0.0
      %2293 = vmatpush1.msra.mxu0 0.0
      %2294 = vmatprep.subr.mxu0 0.0
      %2295 = vmatpush1.msra.mxu0 0.0
      %2296 = vmatprep.subr.mxu0 0.0
      %2297 = vmatpush1.msra.mxu0 0.0
      %2298 = vmatprep.subr.mxu0 0.0
      %2299 = vmatpush1.msra.mxu0 0.0
      %2300 = vmatprep.subr.mxu0 0.0
      %2301 = vmatpush1.msra.mxu0 0.0
      %2302 = vmatprep.mubr.f32.mxu0 0.0
      %2303 = vmatmul.mubr.f32.gmra.mrb[0].mxu0 %v346
      %v2304 = vpop.f32.mrb[0].mxu0
      %v2305 = vadd.f32 0.0, %v2304
      %v2306 = vpop.f32.mrb[0].mxu0
      %2307 = vmatprep.mubr.f32.mxu0 0.0
      %2308 = vmatmul.mubr.f32.gmra.mrb[0].mxu0 %v349
      %v2309 = vpop.f32.mrb[0].mxu0
      %v2310 = vadd.f32 0.0, %v2309
      %v2311 = vpop.f32.mrb[0].mxu0
      %2312 = vmatprep.mubr.f32.mxu0 0.0
      %2313 = vmatmul.mubr.f32.gmra.mrb[0].mxu0 %v352
      %v2314 = vpop.f32.mrb[0].mxu0
      %v2315 = vadd.f32 0.0, %v2314
      %v2316 = vpop.f32.mrb[0].mxu0
      %2317 = vdwg.mxu0
      %v2321 = vcombine.high %v2305, %v2305
      %v2323 = vunpack.c.l.s4 1966171168
      %v2324 = vunpack.c.0.s8 %v2323
      %v2325 = vlaneseq
      %v2326 = vshrl.u32 %v2325, 7
      %v2327 = vsub.s32 %v2324, %v2326
      %v2328 = vrot.slane %v2305, %v2327
      %v2330 = vunpack.c.l.s4 1966171168
      %v2331 = vunpack.c.0.s8 %v2330
      %v2332 = vlaneseq
      %v2333 = vshrl.u32 %v2332, 7
      %v2334 = vsub.s32 %v2331, %v2333
      %v2335 = vrot.slane %v2321, %v2334
      %v2336 = vcombine.high %v2328, %v2328
      %v2337 = vcombine.high %v2335, %v2335
      %v2339 = vunpack.c.l.s4 1966171168
      %v2340 = vunpack.c.0.s8 %v2339
      %v2341 = vlaneseq
      %v2342 = vshrl.u32 %v2341, 7
      %v2343 = vsub.s32 %v2340, %v2342
      %v2344 = vrot.slane %v2328, %v2343
      %v2346 = vunpack.c.l.s4 1966171168
      %v2347 = vunpack.c.0.s8 %v2346
      %v2348 = vlaneseq
      %v2349 = vshrl.u32 %v2348, 7
      %v2350 = vsub.s32 %v2347, %v2349
      %v2351 = vrot.slane %v2335, %v2350
      %v2353 = vunpack.c.l.s4 1966171168
      %v2354 = vunpack.c.0.s8 %v2353
      %v2355 = vlaneseq
      %v2356 = vshrl.u32 %v2355, 7
      %v2357 = vsub.s32 %v2354, %v2356
      %v2358 = vrot.slane %v2336, %v2357
      %v2360 = vunpack.c.l.s4 1966171168
      %v2361 = vunpack.c.0.s8 %v2360
      %v2362 = vlaneseq
      %v2363 = vshrl.u32 %v2362, 7
      %v2364 = vsub.s32 %v2361, %v2363
      %v2365 = vrot.slane %v2337, %v2364
      %v2366 = vcombine.high %v2344, %v2344
      %v2367 = vcombine.high %v2351, %v2351
      %v2368 = vcombine.high %v2358, %v2358
      %v2369 = vcombine.high %v2365, %v2365
      %v2370 = vcombine.high %v2310, %v2310
      %v2372 = vunpack.c.l.s4 1966171168
      %v2373 = vunpack.c.0.s8 %v2372
      %v2374 = vlaneseq
      %v2375 = vshrl.u32 %v2374, 7
      %v2376 = vsub.s32 %v2373, %v2375
      %v2377 = vrot.slane %v2310, %v2376
      %v2379 = vunpack.c.l.s4 1966171168
      %v2380 = vunpack.c.0.s8 %v2379
      %v2381 = vlaneseq
      %v2382 = vshrl.u32 %v2381, 7
      %v2383 = vsub.s32 %v2380, %v2382
      %v2384 = vrot.slane %v2370, %v2383
      %v2385 = vcombine.high %v2377, %v2377
      %v2386 = vcombine.high %v2384, %v2384
      %v2388 = vunpack.c.l.s4 1966171168
      %v2389 = vunpack.c.0.s8 %v2388
      %v2390 = vlaneseq
      %v2391 = vshrl.u32 %v2390, 7
      %v2392 = vsub.s32 %v2389, %v2391
      %v2393 = vrot.slane %v2377, %v2392
      %v2395 = vunpack.c.l.s4 1966171168
      %v2396 = vunpack.c.0.s8 %v2395
      %v2397 = vlaneseq
      %v2398 = vshrl.u32 %v2397, 7
      %v2399 = vsub.s32 %v2396, %v2398
      %v2400 = vrot.slane %v2384, %v2399
      %v2402 = vunpack.c.l.s4 1966171168
      %v2403 = vunpack.c.0.s8 %v2402
      %v2404 = vlaneseq
      %v2405 = vshrl.u32 %v2404, 7
      %v2406 = vsub.s32 %v2403, %v2405
      %v2407 = vrot.slane %v2385, %v2406
      %v2409 = vunpack.c.l.s4 1966171168
      %v2410 = vunpack.c.0.s8 %v2409
      %v2411 = vlaneseq
      %v2412 = vshrl.u32 %v2411, 7
      %v2413 = vsub.s32 %v2410, %v2412
      %v2414 = vrot.slane %v2386, %v2413
      %v2415 = vcombine.high %v2393, %v2393
      %v2416 = vcombine.high %v2400, %v2400
      %v2417 = vcombine.high %v2407, %v2407
      %v2418 = vcombine.high %v2414, %v2414
      %v2420 = vunpack.c.l.s4 1966171168
      %v2421 = vunpack.c.0.s8 %v2420
      %v2422 = vlaneseq
      %v2423 = vshrl.u32 %v2422, 7
      %v2424 = vsub.s32 %v2421, %v2423
      %v2425 = vrot.slane %v2315, %v2424
      %v2426 = vcombine.high %v2425, %v2425
      %v2428 = vunpack.c.l.s4 1966171168
      %v2429 = vunpack.c.0.s8 %v2428
      %v2430 = vlaneseq
      %v2431 = vshrl.u32 %v2430, 7
      %v2432 = vsub.s32 %v2429, %v2431
      %v2433 = vrot.slane %v2425, %v2432
      %v2435 = vunpack.c.l.s4 1966171168
      %v2436 = vunpack.c.0.s8 %v2435
      %v2437 = vlaneseq
      %v2438 = vshrl.u32 %v2437, 7
      %v2439 = vsub.s32 %v2436, %v2438
      %v2440 = vrot.slane %v2426, %v2439
      %2459 = vst.msk [vmem:[#allocation2 + $0x7] sm:$0x1] %vm575, %v2344
      %2460 = vst.msk [vmem:[#allocation2 + $0x17] sm:$0x1] %vm575, %v2358
      %2461 = vst.msk [vmem:[#allocation2 + $0x27] sm:$0x1] %vm575, %v2366
      %2462 = vst.msk [vmem:[#allocation2 + $0x37] sm:$0x1] %vm575, %v2368
      %2463 = vst.msk [vmem:[#allocation2 + $0x47] sm:$0x1] %vm575, %v2351
      %2464 = vst.msk [vmem:[#allocation2 + $0x57] sm:$0x1] %vm575, %v2365
      %2465 = vst.msk [vmem:[#allocation2 + $0x67] sm:$0x1] %vm575, %v2367
      %2466 = vst.msk [vmem:[#allocation2 + $0x77] sm:$0x1] %vm575, %v2369
      %2467 = vst.msk [vmem:[#allocation2 + $0x87] sm:$0x1] %vm575, %v2393
      %2468 = vst.msk [vmem:[#allocation2 + $0x97] sm:$0x1] %vm575, %v2407
      %2469 = vst.msk [vmem:[#allocation2 + $0xa7] sm:$0x1] %vm575, %v2415
      %2470 = vst.msk [vmem:[#allocation2 + $0xb7] sm:$0x1] %vm575, %v2417
      %2471 = vst.msk [vmem:[#allocation2 + $0xc7] sm:$0x1] %vm575, %v2400
      %2472 = vst.msk [vmem:[#allocation2 + $0xd7] sm:$0x1] %vm575, %v2414
      %2473 = vst.msk [vmem:[#allocation2 + $0xe7] sm:$0x1] %vm575, %v2416
      %2474 = vst.msk [vmem:[#allocation2 + $0xf7] sm:$0x1] %vm575, %v2418
      %2475 = vst.msk [vmem:[#allocation2 + $0x107] sm:$0x1] %vm575, %v2433
      %2476 = vst.msk [vmem:[#allocation2 + $0x117] sm:$0x1] %vm575, %v2440
      %v2493 = vrot.slane %v262, 7
      %v2494 = vsel %vm308, %v2493, %v260
      %v2495 = vrot.slane %v264, 6
      %v2496 = vsel %vm311, %v2495, %v2494
      %v2497 = vrot.slane %v266, 5
      %v2498 = vsel %vm314, %v2497, %v2496
      %v2499 = vrot.slane %v268, 4
      %v2500 = vsel %vm317, %v2499, %v2498
      %v2501 = vrot.slane %v270, 3
      %v2502 = vsel %vm320, %v2501, %v2500
      %v2503 = vrot.slane %v272, 2
      %v2504 = vsel %vm323, %v2503, %v2502
      %v2505 = vrot.slane %v274, 1
      %v2506 = vsel %vm326, %v2505, %v2504
      %v2507 = vrot.slane %v278, 7
      %v2508 = vsel %vm308, %v2507, %v276
      %v2509 = vrot.slane %v280, 6
      %v2510 = vsel %vm311, %v2509, %v2508
      %v2511 = vrot.slane %v282, 5
      %v2512 = vsel %vm314, %v2511, %v2510
      %v2513 = vrot.slane %v284, 4
      %v2514 = vsel %vm317, %v2513, %v2512
      %v2515 = vrot.slane %v286, 3
      %v2516 = vsel %vm320, %v2515, %v2514
      %v2517 = vrot.slane %v288, 2
      %v2518 = vsel %vm323, %v2517, %v2516
      %v2519 = vrot.slane %v290, 1
      %v2520 = vsel %vm326, %v2519, %v2518
      %2523 = vmatprep.subr.mxu0 0.0
      %2524 = vmatpush1.msra.mxu0 %v2506
      %2525 = vmatprep.subr.mxu0 0.0
      %2526 = vmatpush1.msra.mxu0 %v2520
      %2527 = vmatprep.subr.mxu0 0.0
      %2528 = vmatpush1.msra.mxu0 0.0
      %2529 = vmatprep.subr.mxu0 0.0
      %2530 = vmatpush1.msra.mxu0 0.0
      %2531 = vmatprep.subr.mxu0 0.0
      %2532 = vmatpush1.msra.mxu0 0.0
      %2533 = vmatprep.subr.mxu0 0.0
      %2534 = vmatpush1.msra.mxu0 0.0
      %2535 = vmatprep.subr.mxu0 0.0
      %2536 = vmatpush1.msra.mxu0 0.0
      %2537 = vmatprep.subr.mxu0 0.0
      %2538 = vmatpush1.msra.mxu0 0.0
      %2539 = vmatprep.subr.mxu0 0.0
      %2540 = vmatpush1.msra.mxu0 0.0
      %2541 = vmatprep.subr.mxu0 0.0
      %2542 = vmatpush1.msra.mxu0 0.0
      %2543 = vmatprep.subr.mxu0 0.0
      %2544 = vmatpush1.msra.mxu0 0.0
      %2545 = vmatprep.subr.mxu0 0.0
      %2546 = vmatpush1.msra.mxu0 0.0
      %2547 = vmatprep.subr.mxu0 0.0
      %2548 = vmatpush1.msra.mxu0 0.0
      %2549 = vmatprep.subr.mxu0 0.0
      %2550 = vmatpush1.msra.mxu0 0.0
      %2551 = vmatprep.subr.mxu0 0.0
      %2552 = vmatpush1.msra.mxu0 0.0
      %2553 = vmatprep.subr.mxu0 0.0
      %2554 = vmatpush1.msra.mxu0 0.0
      %2555 = vmatprep.subr.mxu0 0.0
      %2556 = vmatpush1.msra.mxu0 0.0
      %2557 = vmatprep.subr.mxu0 0.0
      %2558 = vmatpush1.msra.mxu0 0.0
      %2559 = vmatprep.subr.mxu0 0.0
      %2560 = vmatpush1.msra.mxu0 0.0
      %2561 = vmatprep.subr.mxu0 0.0
      %2562 = vmatpush1.msra.mxu0 0.0
      %2563 = vmatprep.subr.mxu0 0.0
      %2564 = vmatpush1.msra.mxu0 0.0
      %2565 = vmatprep.subr.mxu0 0.0
      %2566 = vmatpush1.msra.mxu0 0.0
      %2567 = vmatprep.subr.mxu0 0.0
      %2568 = vmatpush1.msra.mxu0 0.0
      %2569 = vmatprep.subr.mxu0 0.0
      %2570 = vmatpush1.msra.mxu0 0.0
      %2571 = vmatprep.subr.mxu0 0.0
      %2572 = vmatpush1.msra.mxu0 0.0
      %2573 = vmatprep.subr.mxu0 0.0
      %2574 = vmatpush1.msra.mxu0 0.0
      %2575 = vmatprep.subr.mxu0 0.0
      %2576 = vmatpush1.msra.mxu0 0.0
      %2577 = vmatprep.subr.mxu0 0.0
      %2578 = vmatpush1.msra.mxu0 0.0
      %2579 = vmatprep.subr.mxu0 0.0
      %2580 = vmatpush1.msra.mxu0 0.0
      %2581 = vmatprep.subr.mxu0 0.0
      %2582 = vmatpush1.msra.mxu0 0.0
      %2583 = vmatprep.subr.mxu0 0.0
      %2584 = vmatpush1.msra.mxu0 0.0
      %2585 = vmatprep.subr.mxu0 0.0
      %2586 = vmatpush1.msra.mxu0 0.0
      %2587 = vmatprep.mubr.f32.mxu0 0.0
      %2588 = vmatmul.mubr.f32.gmra.mrb[0].mxu0 %v346
      %v2589 = vpop.f32.mrb[0].mxu0
      %v2590 = vadd.f32 0.0, %v2589
      %v2591 = vpop.f32.mrb[0].mxu0
      %2592 = vmatprep.mubr.f32.mxu0 0.0
      %2593 = vmatmul.mubr.f32.gmra.mrb[0].mxu0 %v349
      %v2594 = vpop.f32.mrb[0].mxu0
      %v2595 = vadd.f32 0.0, %v2594
      %v2596 = vpop.f32.mrb[0].mxu0
      %2597 = vmatprep.mubr.f32.mxu0 0.0
      %2598 = vmatmul.mubr.f32.gmra.mrb[0].mxu0 %v352
      %v2599 = vpop.f32.mrb[0].mxu0
      %v2600 = vadd.f32 0.0, %v2599
      %v2601 = vpop.f32.mrb[0].mxu0
      %2602 = vdwg.mxu0
      %v2606 = vcombine.high %v2590, %v2590
      %v2608 = vunpack.c.l.s4 1966171168
      %v2609 = vunpack.c.0.s8 %v2608
      %v2610 = vlaneseq
      %v2611 = vshrl.u32 %v2610, 7
      %v2612 = vsub.s32 %v2609, %v2611
      %v2613 = vrot.slane %v2590, %v2612
      %v2615 = vunpack.c.l.s4 1966171168
      %v2616 = vunpack.c.0.s8 %v2615
      %v2617 = vlaneseq
      %v2618 = vshrl.u32 %v2617, 7
      %v2619 = vsub.s32 %v2616, %v2618
      %v2620 = vrot.slane %v2606, %v2619
      %v2621 = vcombine.high %v2613, %v2613
      %v2622 = vcombine.high %v2620, %v2620
      %v2624 = vunpack.c.l.s4 1966171168
      %v2625 = vunpack.c.0.s8 %v2624
      %v2626 = vlaneseq
      %v2627 = vshrl.u32 %v2626, 7
      %v2628 = vsub.s32 %v2625, %v2627
      %v2629 = vrot.slane %v2613, %v2628
      %v2631 = vunpack.c.l.s4 1966171168
      %v2632 = vunpack.c.0.s8 %v2631
      %v2633 = vlaneseq
      %v2634 = vshrl.u32 %v2633, 7
      %v2635 = vsub.s32 %v2632, %v2634
      %v2636 = vrot.slane %v2620, %v2635
      %v2638 = vunpack.c.l.s4 1966171168
      %v2639 = vunpack.c.0.s8 %v2638
      %v2640 = vlaneseq
      %v2641 = vshrl.u32 %v2640, 7
      %v2642 = vsub.s32 %v2639, %v2641
      %v2643 = vrot.slane %v2621, %v2642
      %v2645 = vunpack.c.l.s4 1966171168
      %v2646 = vunpack.c.0.s8 %v2645
      %v2647 = vlaneseq
      %v2648 = vshrl.u32 %v2647, 7
      %v2649 = vsub.s32 %v2646, %v2648
      %v2650 = vrot.slane %v2622, %v2649
      %v2651 = vcombine.high %v2629, %v2629
      %v2652 = vcombine.high %v2636, %v2636
      %v2653 = vcombine.high %v2643, %v2643
      %v2654 = vcombine.high %v2650, %v2650
      %v2655 = vcombine.high %v2595, %v2595
      %v2657 = vunpack.c.l.s4 1966171168
      %v2658 = vunpack.c.0.s8 %v2657
      %v2659 = vlaneseq
      %v2660 = vshrl.u32 %v2659, 7
      %v2661 = vsub.s32 %v2658, %v2660
      %v2662 = vrot.slane %v2595, %v2661
      %v2664 = vunpack.c.l.s4 1966171168
      %v2665 = vunpack.c.0.s8 %v2664
      %v2666 = vlaneseq
      %v2667 = vshrl.u32 %v2666, 7
      %v2668 = vsub.s32 %v2665, %v2667
      %v2669 = vrot.slane %v2655, %v2668
      %v2670 = vcombine.high %v2662, %v2662
      %v2671 = vcombine.high %v2669, %v2669
      %v2673 = vunpack.c.l.s4 1966171168
      %v2674 = vunpack.c.0.s8 %v2673
      %v2675 = vlaneseq
      %v2676 = vshrl.u32 %v2675, 7
      %v2677 = vsub.s32 %v2674, %v2676
      %v2678 = vrot.slane %v2662, %v2677
      %v2680 = vunpack.c.l.s4 1966171168
      %v2681 = vunpack.c.0.s8 %v2680
      %v2682 = vlaneseq
      %v2683 = vshrl.u32 %v2682, 7
      %v2684 = vsub.s32 %v2681, %v2683
      %v2685 = vrot.slane %v2669, %v2684
      %v2687 = vunpack.c.l.s4 1966171168
      %v2688 = vunpack.c.0.s8 %v2687
      %v2689 = vlaneseq
      %v2690 = vshrl.u32 %v2689, 7
      %v2691 = vsub.s32 %v2688, %v2690
      %v2692 = vrot.slane %v2670, %v2691
      %v2694 = vunpack.c.l.s4 1966171168
      %v2695 = vunpack.c.0.s8 %v2694
      %v2696 = vlaneseq
      %v2697 = vshrl.u32 %v2696, 7
      %v2698 = vsub.s32 %v2695, %v2697
      %v2699 = vrot.slane %v2671, %v2698
      %v2700 = vcombine.high %v2678, %v2678
      %v2701 = vcombine.high %v2685, %v2685
      %v2702 = vcombine.high %v2692, %v2692
      %v2703 = vcombine.high %v2699, %v2699
      %v2705 = vunpack.c.l.s4 1966171168
      %v2706 = vunpack.c.0.s8 %v2705
      %v2707 = vlaneseq
      %v2708 = vshrl.u32 %v2707, 7
      %v2709 = vsub.s32 %v2706, %v2708
      %v2710 = vrot.slane %v2600, %v2709
      %v2711 = vcombine.high %v2710, %v2710
      %v2713 = vunpack.c.l.s4 1966171168
      %v2714 = vunpack.c.0.s8 %v2713
      %v2715 = vlaneseq
      %v2716 = vshrl.u32 %v2715, 7
      %v2717 = vsub.s32 %v2714, %v2716
      %v2718 = vrot.slane %v2710, %v2717
      %v2720 = vunpack.c.l.s4 1966171168
      %v2721 = vunpack.c.0.s8 %v2720
      %v2722 = vlaneseq
      %v2723 = vshrl.u32 %v2722, 7
      %v2724 = vsub.s32 %v2721, %v2723
      %v2725 = vrot.slane %v2711, %v2724
      %2744 = vst.msk [vmem:[#allocation2 + $0x8] sm:$0x1] %vm575, %v2629
      %2745 = vst.msk [vmem:[#allocation2 + $0x18] sm:$0x1] %vm575, %v2643
      %2746 = vst.msk [vmem:[#allocation2 + $0x28] sm:$0x1] %vm575, %v2651
      %2747 = vst.msk [vmem:[#allocation2 + $0x38] sm:$0x1] %vm575, %v2653
      %2748 = vst.msk [vmem:[#allocation2 + $0x48] sm:$0x1] %vm575, %v2636
      %2749 = vst.msk [vmem:[#allocation2 + $0x58] sm:$0x1] %vm575, %v2650
      %2750 = vst.msk [vmem:[#allocation2 + $0x68] sm:$0x1] %vm575, %v2652
      %2751 = vst.msk [vmem:[#allocation2 + $0x78] sm:$0x1] %vm575, %v2654
      %2752 = vst.msk [vmem:[#allocation2 + $0x88] sm:$0x1] %vm575, %v2678
      %2753 = vst.msk [vmem:[#allocation2 + $0x98] sm:$0x1] %vm575, %v2692
      %2754 = vst.msk [vmem:[#allocation2 + $0xa8] sm:$0x1] %vm575, %v2700
      %2755 = vst.msk [vmem:[#allocation2 + $0xb8] sm:$0x1] %vm575, %v2702
      %2756 = vst.msk [vmem:[#allocation2 + $0xc8] sm:$0x1] %vm575, %v2685
      %2757 = vst.msk [vmem:[#allocation2 + $0xd8] sm:$0x1] %vm575, %v2699
      %2758 = vst.msk [vmem:[#allocation2 + $0xe8] sm:$0x1] %vm575, %v2701
      %2759 = vst.msk [vmem:[#allocation2 + $0xf8] sm:$0x1] %vm575, %v2703
      %2760 = vst.msk [vmem:[#allocation2 + $0x108] sm:$0x1] %vm575, %v2718
      %2761 = vst.msk [vmem:[#allocation2 + $0x118] sm:$0x1] %vm575, %v2725
      %v2762 = vrot.slane %v260, 1
      %v2763 = vsel %vm308, %v262, %v2762
      %v2764 = vrot.slane %v264, 7
      %v2765 = vsel %vm311, %v2764, %v2763
      %v2766 = vrot.slane %v266, 6
      %v2767 = vsel %vm314, %v2766, %v2765
      %v2768 = vrot.slane %v268, 5
      %v2769 = vsel %vm317, %v2768, %v2767
      %v2770 = vrot.slane %v270, 4
      %v2771 = vsel %vm320, %v2770, %v2769
      %v2772 = vrot.slane %v272, 3
      %v2773 = vsel %vm323, %v2772, %v2771
      %v2774 = vrot.slane %v274, 2
      %v2775 = vsel %vm326, %v2774, %v2773
      %v2776 = vrot.slane %v276, 1
      %v2777 = vsel %vm308, %v278, %v2776
      %v2778 = vrot.slane %v280, 7
      %v2779 = vsel %vm311, %v2778, %v2777
      %v2780 = vrot.slane %v282, 6
      %v2781 = vsel %vm314, %v2780, %v2779
      %v2782 = vrot.slane %v284, 5
      %v2783 = vsel %vm317, %v2782, %v2781
      %v2784 = vrot.slane %v286, 4
      %v2785 = vsel %vm320, %v2784, %v2783
      %v2786 = vrot.slane %v288, 3
      %v2787 = vsel %vm323, %v2786, %v2785
      %v2788 = vrot.slane %v290, 2
      %v2789 = vsel %vm326, %v2788, %v2787
      %2792 = vmatprep.subr.mxu0 0.0
      %2793 = vmatpush1.msra.mxu0 %v2775
      %2794 = vmatprep.subr.mxu0 0.0
      %2795 = vmatpush1.msra.mxu0 %v2789
      %2796 = vmatprep.subr.mxu0 0.0
      %2797 = vmatpush1.msra.mxu0 0.0
      %2798 = vmatprep.subr.mxu0 0.0
      %2799 = vmatpush1.msra.mxu0 0.0
      %2800 = vmatprep.subr.mxu0 0.0
      %2801 = vmatpush1.msra.mxu0 0.0
      %2802 = vmatprep.subr.mxu0 0.0
      %2803 = vmatpush1.msra.mxu0 0.0
      %2804 = vmatprep.subr.mxu0 0.0
      %2805 = vmatpush1.msra.mxu0 0.0
      %2806 = vmatprep.subr.mxu0 0.0
      %2807 = vmatpush1.msra.mxu0 0.0
      %2808 = vmatprep.subr.mxu0 0.0
      %2809 = vmatpush1.msra.mxu0 0.0
      %2810 = vmatprep.subr.mxu0 0.0
      %2811 = vmatpush1.msra.mxu0 0.0
      %2812 = vmatprep.subr.mxu0 0.0
      %2813 = vmatpush1.msra.mxu0 0.0
      %2814 = vmatprep.subr.mxu0 0.0
      %2815 = vmatpush1.msra.mxu0 0.0
      %2816 = vmatprep.subr.mxu0 0.0
      %2817 = vmatpush1.msra.mxu0 0.0
      %2818 = vmatprep.subr.mxu0 0.0
      %2819 = vmatpush1.msra.mxu0 0.0
      %2820 = vmatprep.subr.mxu0 0.0
      %2821 = vmatpush1.msra.mxu0 0.0
      %2822 = vmatprep.subr.mxu0 0.0
      %2823 = vmatpush1.msra.mxu0 0.0
      %2824 = vmatprep.subr.mxu0 0.0
      %2825 = vmatpush1.msra.mxu0 0.0
      %2826 = vmatprep.subr.mxu0 0.0
      %2827 = vmatpush1.msra.mxu0 0.0
      %2828 = vmatprep.subr.mxu0 0.0
      %2829 = vmatpush1.msra.mxu0 0.0
      %2830 = vmatprep.subr.mxu0 0.0
      %2831 = vmatpush1.msra.mxu0 0.0
      %2832 = vmatprep.subr.mxu0 0.0
      %2833 = vmatpush1.msra.mxu0 0.0
      %2834 = vmatprep.subr.mxu0 0.0
      %2835 = vmatpush1.msra.mxu0 0.0
      %2836 = vmatprep.subr.mxu0 0.0
      %2837 = vmatpush1.msra.mxu0 0.0
      %2838 = vmatprep.subr.mxu0 0.0
      %2839 = vmatpush1.msra.mxu0 0.0
      %2840 = vmatprep.subr.mxu0 0.0
      %2841 = vmatpush1.msra.mxu0 0.0
      %2842 = vmatprep.subr.mxu0 0.0
      %2843 = vmatpush1.msra.mxu0 0.0
      %2844 = vmatprep.subr.mxu0 0.0
      %2845 = vmatpush1.msra.mxu0 0.0
      %2846 = vmatprep.subr.mxu0 0.0
      %2847 = vmatpush1.msra.mxu0 0.0
      %2848 = vmatprep.subr.mxu0 0.0
      %2849 = vmatpush1.msra.mxu0 0.0
      %2850 = vmatprep.subr.mxu0 0.0
      %2851 = vmatpush1.msra.mxu0 0.0
      %2852 = vmatprep.subr.mxu0 0.0
      %2853 = vmatpush1.msra.mxu0 0.0
      %2854 = vmatprep.subr.mxu0 0.0
      %2855 = vmatpush1.msra.mxu0 0.0
      %2856 = vmatprep.mubr.f32.mxu0 0.0
      %2857 = vmatmul.mubr.f32.gmra.mrb[0].mxu0 %v346
      %v2858 = vpop.f32.mrb[0].mxu0
      %v2859 = vadd.f32 0.0, %v2858
      %v2860 = vpop.f32.mrb[0].mxu0
      %2861 = vmatprep.mubr.f32.mxu0 0.0
      %2862 = vmatmul.mubr.f32.gmra.mrb[0].mxu0 %v349
      %v2863 = vpop.f32.mrb[0].mxu0
      %v2864 = vadd.f32 0.0, %v2863
      %v2865 = vpop.f32.mrb[0].mxu0
      %2866 = vmatprep.mubr.f32.mxu0 0.0
      %2867 = vmatmul.mubr.f32.gmra.mrb[0].mxu0 %v352
      %v2868 = vpop.f32.mrb[0].mxu0
      %v2869 = vadd.f32 0.0, %v2868
      %v2870 = vpop.f32.mrb[0].mxu0
      %2871 = vdwg.mxu0
      %v2875 = vcombine.high %v2859, %v2859
      %v2877 = vunpack.c.l.s4 1966171168
      %v2878 = vunpack.c.0.s8 %v2877
      %v2879 = vlaneseq
      %v2880 = vshrl.u32 %v2879, 7
      %v2881 = vsub.s32 %v2878, %v2880
      %v2882 = vrot.slane %v2859, %v2881
      %v2884 = vunpack.c.l.s4 1966171168
      %v2885 = vunpack.c.0.s8 %v2884
      %v2886 = vlaneseq
      %v2887 = vshrl.u32 %v2886, 7
      %v2888 = vsub.s32 %v2885, %v2887
      %v2889 = vrot.slane %v2875, %v2888
      %v2890 = vcombine.high %v2882, %v2882
      %v2891 = vcombine.high %v2889, %v2889
      %v2893 = vunpack.c.l.s4 1966171168
      %v2894 = vunpack.c.0.s8 %v2893
      %v2895 = vlaneseq
      %v2896 = vshrl.u32 %v2895, 7
      %v2897 = vsub.s32 %v2894, %v2896
      %v2898 = vrot.slane %v2882, %v2897
      %v2900 = vunpack.c.l.s4 1966171168
      %v2901 = vunpack.c.0.s8 %v2900
      %v2902 = vlaneseq
      %v2903 = vshrl.u32 %v2902, 7
      %v2904 = vsub.s32 %v2901, %v2903
      %v2905 = vrot.slane %v2889, %v2904
      %v2907 = vunpack.c.l.s4 1966171168
      %v2908 = vunpack.c.0.s8 %v2907
      %v2909 = vlaneseq
      %v2910 = vshrl.u32 %v2909, 7
      %v2911 = vsub.s32 %v2908, %v2910
      %v2912 = vrot.slane %v2890, %v2911
      %v2914 = vunpack.c.l.s4 1966171168
      %v2915 = vunpack.c.0.s8 %v2914
      %v2916 = vlaneseq
      %v2917 = vshrl.u32 %v2916, 7
      %v2918 = vsub.s32 %v2915, %v2917
      %v2919 = vrot.slane %v2891, %v2918
      %v2920 = vcombine.high %v2898, %v2898
      %v2921 = vcombine.high %v2905, %v2905
      %v2922 = vcombine.high %v2912, %v2912
      %v2923 = vcombine.high %v2919, %v2919
      %v2924 = vcombine.high %v2864, %v2864
      %v2926 = vunpack.c.l.s4 1966171168
      %v2927 = vunpack.c.0.s8 %v2926
      %v2928 = vlaneseq
      %v2929 = vshrl.u32 %v2928, 7
      %v2930 = vsub.s32 %v2927, %v2929
      %v2931 = vrot.slane %v2864, %v2930
      %v2933 = vunpack.c.l.s4 1966171168
      %v2934 = vunpack.c.0.s8 %v2933
      %v2935 = vlaneseq
      %v2936 = vshrl.u32 %v2935, 7
      %v2937 = vsub.s32 %v2934, %v2936
      %v2938 = vrot.slane %v2924, %v2937
      %v2939 = vcombine.high %v2931, %v2931
      %v2940 = vcombine.high %v2938, %v2938
      %v2942 = vunpack.c.l.s4 1966171168
      %v2943 = vunpack.c.0.s8 %v2942
      %v2944 = vlaneseq
      %v2945 = vshrl.u32 %v2944, 7
      %v2946 = vsub.s32 %v2943, %v2945
      %v2947 = vrot.slane %v2931, %v2946
      %v2949 = vunpack.c.l.s4 1966171168
      %v2950 = vunpack.c.0.s8 %v2949
      %v2951 = vlaneseq
      %v2952 = vshrl.u32 %v2951, 7
      %v2953 = vsub.s32 %v2950, %v2952
      %v2954 = vrot.slane %v2938, %v2953
      %v2956 = vunpack.c.l.s4 1966171168
      %v2957 = vunpack.c.0.s8 %v2956
      %v2958 = vlaneseq
      %v2959 = vshrl.u32 %v2958, 7
      %v2960 = vsub.s32 %v2957, %v2959
      %v2961 = vrot.slane %v2939, %v2960
      %v2963 = vunpack.c.l.s4 1966171168
      %v2964 = vunpack.c.0.s8 %v2963
      %v2965 = vlaneseq
      %v2966 = vshrl.u32 %v2965, 7
      %v2967 = vsub.s32 %v2964, %v2966
      %v2968 = vrot.slane %v2940, %v2967
      %v2969 = vcombine.high %v2947, %v2947
      %v2970 = vcombine.high %v2954, %v2954
      %v2971 = vcombine.high %v2961, %v2961
      %v2972 = vcombine.high %v2968, %v2968
      %v2974 = vunpack.c.l.s4 1966171168
      %v2975 = vunpack.c.0.s8 %v2974
      %v2976 = vlaneseq
      %v2977 = vshrl.u32 %v2976, 7
      %v2978 = vsub.s32 %v2975, %v2977
      %v2979 = vrot.slane %v2869, %v2978
      %v2980 = vcombine.high %v2979, %v2979
      %v2982 = vunpack.c.l.s4 1966171168
      %v2983 = vunpack.c.0.s8 %v2982
      %v2984 = vlaneseq
      %v2985 = vshrl.u32 %v2984, 7
      %v2986 = vsub.s32 %v2983, %v2985
      %v2987 = vrot.slane %v2979, %v2986
      %v2989 = vunpack.c.l.s4 1966171168
      %v2990 = vunpack.c.0.s8 %v2989
      %v2991 = vlaneseq
      %v2992 = vshrl.u32 %v2991, 7
      %v2993 = vsub.s32 %v2990, %v2992
      %v2994 = vrot.slane %v2980, %v2993
      %3013 = vst.msk [vmem:[#allocation2 + $0x9] sm:$0x1] %vm575, %v2898
      %3014 = vst.msk [vmem:[#allocation2 + $0x19] sm:$0x1] %vm575, %v2912
      %3015 = vst.msk [vmem:[#allocation2 + $0x29] sm:$0x1] %vm575, %v2920
      %3016 = vst.msk [vmem:[#allocation2 + $0x39] sm:$0x1] %vm575, %v2922
      %3017 = vst.msk [vmem:[#allocation2 + $0x49] sm:$0x1] %vm575, %v2905
      %3018 = vst.msk [vmem:[#allocation2 + $0x59] sm:$0x1] %vm575, %v2919
      %3019 = vst.msk [vmem:[#allocation2 + $0x69] sm:$0x1] %vm575, %v2921
      %3020 = vst.msk [vmem:[#allocation2 + $0x79] sm:$0x1] %vm575, %v2923
      %3021 = vst.msk [vmem:[#allocation2 + $0x89] sm:$0x1] %vm575, %v2947
      %3022 = vst.msk [vmem:[#allocation2 + $0x99] sm:$0x1] %vm575, %v2961
      %3023 = vst.msk [vmem:[#allocation2 + $0xa9] sm:$0x1] %vm575, %v2969
      %3024 = vst.msk [vmem:[#allocation2 + $0xb9] sm:$0x1] %vm575, %v2971
      %3025 = vst.msk [vmem:[#allocation2 + $0xc9] sm:$0x1] %vm575, %v2954
      %3026 = vst.msk [vmem:[#allocation2 + $0xd9] sm:$0x1] %vm575, %v2968
      %3027 = vst.msk [vmem:[#allocation2 + $0xe9] sm:$0x1] %vm575, %v2970
      %3028 = vst.msk [vmem:[#allocation2 + $0xf9] sm:$0x1] %vm575, %v2972
      %3029 = vst.msk [vmem:[#allocation2 + $0x109] sm:$0x1] %vm575, %v2987
      %3030 = vst.msk [vmem:[#allocation2 + $0x119] sm:$0x1] %vm575, %v2994
      %v3031 = vrot.slane %v260, 2
      %v3032 = vrot.slane %v262, 1
      %v3033 = vsel %vm308, %v3032, %v3031
      %v3034 = vsel %vm311, %v264, %v3033
      %v3035 = vrot.slane %v266, 7
      %v3036 = vsel %vm314, %v3035, %v3034
      %v3037 = vrot.slane %v268, 6
      %v3038 = vsel %vm317, %v3037, %v3036
      %v3039 = vrot.slane %v270, 5
      %v3040 = vsel %vm320, %v3039, %v3038
      %v3041 = vrot.slane %v272, 4
      %v3042 = vsel %vm323, %v3041, %v3040
      %v3043 = vrot.slane %v274, 3
      %v3044 = vsel %vm326, %v3043, %v3042
      %v3045 = vrot.slane %v276, 2
      %v3046 = vrot.slane %v278, 1
      %v3047 = vsel %vm308, %v3046, %v3045
      %v3048 = vsel %vm311, %v280, %v3047
      %v3049 = vrot.slane %v282, 7
      %v3050 = vsel %vm314, %v3049, %v3048
      %v3051 = vrot.slane %v284, 6
      %v3052 = vsel %vm317, %v3051, %v3050
      %v3053 = vrot.slane %v286, 5
      %v3054 = vsel %vm320, %v3053, %v3052
      %v3055 = vrot.slane %v288, 4
      %v3056 = vsel %vm323, %v3055, %v3054
      %v3057 = vrot.slane %v290, 3
      %v3058 = vsel %vm326, %v3057, %v3056
      %3061 = vmatprep.subr.mxu0 0.0
      %3062 = vmatpush1.msra.mxu0 %v3044
      %3063 = vmatprep.subr.mxu0 0.0
      %3064 = vmatpush1.msra.mxu0 %v3058
      %3065 = vmatprep.subr.mxu0 0.0
      %3066 = vmatpush1.msra.mxu0 0.0
      %3067 = vmatprep.subr.mxu0 0.0
      %3068 = vmatpush1.msra.mxu0 0.0
      %3069 = vmatprep.subr.mxu0 0.0
      %3070 = vmatpush1.msra.mxu0 0.0
      %3071 = vmatprep.subr.mxu0 0.0
      %3072 = vmatpush1.msra.mxu0 0.0
      %3073 = vmatprep.subr.mxu0 0.0
      %3074 = vmatpush1.msra.mxu0 0.0
      %3075 = vmatprep.subr.mxu0 0.0
      %3076 = vmatpush1.msra.mxu0 0.0
      %3077 = vmatprep.subr.mxu0 0.0
      %3078 = vmatpush1.msra.mxu0 0.0
      %3079 = vmatprep.subr.mxu0 0.0
      %3080 = vmatpush1.msra.mxu0 0.0
      %3081 = vmatprep.subr.mxu0 0.0
      %3082 = vmatpush1.msra.mxu0 0.0
      %3083 = vmatprep.subr.mxu0 0.0
      %3084 = vmatpush1.msra.mxu0 0.0
      %3085 = vmatprep.subr.mxu0 0.0
      %3086 = vmatpush1.msra.mxu0 0.0
      %3087 = vmatprep.subr.mxu0 0.0
      %3088 = vmatpush1.msra.mxu0 0.0
      %3089 = vmatprep.subr.mxu0 0.0
      %3090 = vmatpush1.msra.mxu0 0.0
      %3091 = vmatprep.subr.mxu0 0.0
      %3092 = vmatpush1.msra.mxu0 0.0
      %3093 = vmatprep.subr.mxu0 0.0
      %3094 = vmatpush1.msra.mxu0 0.0
      %3095 = vmatprep.subr.mxu0 0.0
      %3096 = vmatpush1.msra.mxu0 0.0
      %3097 = vmatprep.subr.mxu0 0.0
      %3098 = vmatpush1.msra.mxu0 0.0
      %3099 = vmatprep.subr.mxu0 0.0
      %3100 = vmatpush1.msra.mxu0 0.0
      %3101 = vmatprep.subr.mxu0 0.0
      %3102 = vmatpush1.msra.mxu0 0.0
      %3103 = vmatprep.subr.mxu0 0.0
      %3104 = vmatpush1.msra.mxu0 0.0
      %3105 = vmatprep.subr.mxu0 0.0
      %3106 = vmatpush1.msra.mxu0 0.0
      %3107 = vmatprep.subr.mxu0 0.0
      %3108 = vmatpush1.msra.mxu0 0.0
      %3109 = vmatprep.subr.mxu0 0.0
      %3110 = vmatpush1.msra.mxu0 0.0
      %3111 = vmatprep.subr.mxu0 0.0
      %3112 = vmatpush1.msra.mxu0 0.0
      %3113 = vmatprep.subr.mxu0 0.0
      %3114 = vmatpush1.msra.mxu0 0.0
      %3115 = vmatprep.subr.mxu0 0.0
      %3116 = vmatpush1.msra.mxu0 0.0
      %3117 = vmatprep.subr.mxu0 0.0
      %3118 = vmatpush1.msra.mxu0 0.0
      %3119 = vmatprep.subr.mxu0 0.0
      %3120 = vmatpush1.msra.mxu0 0.0
      %3121 = vmatprep.subr.mxu0 0.0
      %3122 = vmatpush1.msra.mxu0 0.0
      %3123 = vmatprep.subr.mxu0 0.0
      %3124 = vmatpush1.msra.mxu0 0.0
      %3125 = vmatprep.mubr.f32.mxu0 0.0
      %3126 = vmatmul.mubr.f32.gmra.mrb[0].mxu0 %v346
      %v3127 = vpop.f32.mrb[0].mxu0
      %v3128 = vadd.f32 0.0, %v3127
      %v3129 = vpop.f32.mrb[0].mxu0
      %3130 = vmatprep.mubr.f32.mxu0 0.0
      %3131 = vmatmul.mubr.f32.gmra.mrb[0].mxu0 %v349
      %v3132 = vpop.f32.mrb[0].mxu0
      %v3133 = vadd.f32 0.0, %v3132
      %v3134 = vpop.f32.mrb[0].mxu0
      %3135 = vmatprep.mubr.f32.mxu0 0.0
      %3136 = vmatmul.mubr.f32.gmra.mrb[0].mxu0 %v352
      %v3137 = vpop.f32.mrb[0].mxu0
      %v3138 = vadd.f32 0.0, %v3137
      %v3139 = vpop.f32.mrb[0].mxu0
      %3140 = vdwg.mxu0
      %v3144 = vcombine.high %v3128, %v3128
      %v3146 = vunpack.c.l.s4 1966171168
      %v3147 = vunpack.c.0.s8 %v3146
      %v3148 = vlaneseq
      %v3149 = vshrl.u32 %v3148, 7
      %v3150 = vsub.s32 %v3147, %v3149
      %v3151 = vrot.slane %v3128, %v3150
      %v3153 = vunpack.c.l.s4 1966171168
      %v3154 = vunpack.c.0.s8 %v3153
      %v3155 = vlaneseq
      %v3156 = vshrl.u32 %v3155, 7
      %v3157 = vsub.s32 %v3154, %v3156
      %v3158 = vrot.slane %v3144, %v3157
      %v3159 = vcombine.high %v3151, %v3151
      %v3160 = vcombine.high %v3158, %v3158
      %v3162 = vunpack.c.l.s4 1966171168
      %v3163 = vunpack.c.0.s8 %v3162
      %v3164 = vlaneseq
      %v3165 = vshrl.u32 %v3164, 7
      %v3166 = vsub.s32 %v3163, %v3165
      %v3167 = vrot.slane %v3151, %v3166
      %v3169 = vunpack.c.l.s4 1966171168
      %v3170 = vunpack.c.0.s8 %v3169
      %v3171 = vlaneseq
      %v3172 = vshrl.u32 %v3171, 7
      %v3173 = vsub.s32 %v3170, %v3172
      %v3174 = vrot.slane %v3158, %v3173
      %v3176 = vunpack.c.l.s4 1966171168
      %v3177 = vunpack.c.0.s8 %v3176
      %v3178 = vlaneseq
      %v3179 = vshrl.u32 %v3178, 7
      %v3180 = vsub.s32 %v3177, %v3179
      %v3181 = vrot.slane %v3159, %v3180
      %v3183 = vunpack.c.l.s4 1966171168
      %v3184 = vunpack.c.0.s8 %v3183
      %v3185 = vlaneseq
      %v3186 = vshrl.u32 %v3185, 7
      %v3187 = vsub.s32 %v3184, %v3186
      %v3188 = vrot.slane %v3160, %v3187
      %v3189 = vcombine.high %v3167, %v3167
      %v3190 = vcombine.high %v3174, %v3174
      %v3191 = vcombine.high %v3181, %v3181
      %v3192 = vcombine.high %v3188, %v3188
      %v3193 = vcombine.high %v3133, %v3133
      %v3195 = vunpack.c.l.s4 1966171168
      %v3196 = vunpack.c.0.s8 %v3195
      %v3197 = vlaneseq
      %v3198 = vshrl.u32 %v3197, 7
      %v3199 = vsub.s32 %v3196, %v3198
      %v3200 = vrot.slane %v3133, %v3199
      %v3202 = vunpack.c.l.s4 1966171168
      %v3203 = vunpack.c.0.s8 %v3202
      %v3204 = vlaneseq
      %v3205 = vshrl.u32 %v3204, 7
      %v3206 = vsub.s32 %v3203, %v3205
      %v3207 = vrot.slane %v3193, %v3206
      %v3208 = vcombine.high %v3200, %v3200
      %v3209 = vcombine.high %v3207, %v3207
      %v3211 = vunpack.c.l.s4 1966171168
      %v3212 = vunpack.c.0.s8 %v3211
      %v3213 = vlaneseq
      %v3214 = vshrl.u32 %v3213, 7
      %v3215 = vsub.s32 %v3212, %v3214
      %v3216 = vrot.slane %v3200, %v3215
      %v3218 = vunpack.c.l.s4 1966171168
      %v3219 = vunpack.c.0.s8 %v3218
      %v3220 = vlaneseq
      %v3221 = vshrl.u32 %v3220, 7
      %v3222 = vsub.s32 %v3219, %v3221
      %v3223 = vrot.slane %v3207, %v3222
      %v3225 = vunpack.c.l.s4 1966171168
      %v3226 = vunpack.c.0.s8 %v3225
      %v3227 = vlaneseq
      %v3228 = vshrl.u32 %v3227, 7
      %v3229 = vsub.s32 %v3226, %v3228
      %v3230 = vrot.slane %v3208, %v3229
      %v3232 = vunpack.c.l.s4 1966171168
      %v3233 = vunpack.c.0.s8 %v3232
      %v3234 = vlaneseq
      %v3235 = vshrl.u32 %v3234, 7
      %v3236 = vsub.s32 %v3233, %v3235
      %v3237 = vrot.slane %v3209, %v3236
      %v3238 = vcombine.high %v3216, %v3216
      %v3239 = vcombine.high %v3223, %v3223
      %v3240 = vcombine.high %v3230, %v3230
      %v3241 = vcombine.high %v3237, %v3237
      %v3243 = vunpack.c.l.s4 1966171168
      %v3244 = vunpack.c.0.s8 %v3243
      %v3245 = vlaneseq
      %v3246 = vshrl.u32 %v3245, 7
      %v3247 = vsub.s32 %v3244, %v3246
      %v3248 = vrot.slane %v3138, %v3247
      %v3249 = vcombine.high %v3248, %v3248
      %v3251 = vunpack.c.l.s4 1966171168
      %v3252 = vunpack.c.0.s8 %v3251
      %v3253 = vlaneseq
      %v3254 = vshrl.u32 %v3253, 7
      %v3255 = vsub.s32 %v3252, %v3254
      %v3256 = vrot.slane %v3248, %v3255
      %v3258 = vunpack.c.l.s4 1966171168
      %v3259 = vunpack.c.0.s8 %v3258
      %v3260 = vlaneseq
      %v3261 = vshrl.u32 %v3260, 7
      %v3262 = vsub.s32 %v3259, %v3261
      %v3263 = vrot.slane %v3249, %v3262
      %3282 = vst.msk [vmem:[#allocation2 + $0xa] sm:$0x1] %vm575, %v3167
      %3283 = vst.msk [vmem:[#allocation2 + $0x1a] sm:$0x1] %vm575, %v3181
      %3284 = vst.msk [vmem:[#allocation2 + $0x2a] sm:$0x1] %vm575, %v3189
      %3285 = vst.msk [vmem:[#allocation2 + $0x3a] sm:$0x1] %vm575, %v3191
      %3286 = vst.msk [vmem:[#allocation2 + $0x4a] sm:$0x1] %vm575, %v3174
      %3287 = vst.msk [vmem:[#allocation2 + $0x5a] sm:$0x1] %vm575, %v3188
      %3288 = vst.msk [vmem:[#allocation2 + $0x6a] sm:$0x1] %vm575, %v3190
      %3289 = vst.msk [vmem:[#allocation2 + $0x7a] sm:$0x1] %vm575, %v3192
      %3290 = vst.msk [vmem:[#allocation2 + $0x8a] sm:$0x1] %vm575, %v3216
      %3291 = vst.msk [vmem:[#allocation2 + $0x9a] sm:$0x1] %vm575, %v3230
      %3292 = vst.msk [vmem:[#allocation2 + $0xaa] sm:$0x1] %vm575, %v3238
      %3293 = vst.msk [vmem:[#allocation2 + $0xba] sm:$0x1] %vm575, %v3240
      %3294 = vst.msk [vmem:[#allocation2 + $0xca] sm:$0x1] %vm575, %v3223
      %3295 = vst.msk [vmem:[#allocation2 + $0xda] sm:$0x1] %vm575, %v3237
      %3296 = vst.msk [vmem:[#allocation2 + $0xea] sm:$0x1] %vm575, %v3239
      %3297 = vst.msk [vmem:[#allocation2 + $0xfa] sm:$0x1] %vm575, %v3241
      %3298 = vst.msk [vmem:[#allocation2 + $0x10a] sm:$0x1] %vm575, %v3256
      %3299 = vst.msk [vmem:[#allocation2 + $0x11a] sm:$0x1] %vm575, %v3263
      %v3300 = vrot.slane %v260, 3
      %v3301 = vrot.slane %v262, 2
      %v3302 = vsel %vm308, %v3301, %v3300
      %v3303 = vrot.slane %v264, 1
      %v3304 = vsel %vm311, %v3303, %v3302
      %v3305 = vsel %vm314, %v266, %v3304
      %v3306 = vrot.slane %v268, 7
      %v3307 = vsel %vm317, %v3306, %v3305
      %v3308 = vrot.slane %v270, 6
      %v3309 = vsel %vm320, %v3308, %v3307
      %v3310 = vrot.slane %v272, 5
      %v3311 = vsel %vm323, %v3310, %v3309
      %v3312 = vrot.slane %v274, 4
      %v3313 = vsel %vm326, %v3312, %v3311
      %v3314 = vrot.slane %v276, 3
      %v3315 = vrot.slane %v278, 2
      %v3316 = vsel %vm308, %v3315, %v3314
      %v3317 = vrot.slane %v280, 1
      %v3318 = vsel %vm311, %v3317, %v3316
      %v3319 = vsel %vm314, %v282, %v3318
      %v3320 = vrot.slane %v284, 7
      %v3321 = vsel %vm317, %v3320, %v3319
      %v3322 = vrot.slane %v286, 6
      %v3323 = vsel %vm320, %v3322, %v3321
      %v3324 = vrot.slane %v288, 5
      %v3325 = vsel %vm323, %v3324, %v3323
      %v3326 = vrot.slane %v290, 4
      %v3327 = vsel %vm326, %v3326, %v3325
      %3330 = vmatprep.subr.mxu0 0.0
      %3331 = vmatpush1.msra.mxu0 %v3313
      %3332 = vmatprep.subr.mxu0 0.0
      %3333 = vmatpush1.msra.mxu0 %v3327
      %3334 = vmatprep.subr.mxu0 0.0
      %3335 = vmatpush1.msra.mxu0 0.0
      %3336 = vmatprep.subr.mxu0 0.0
      %3337 = vmatpush1.msra.mxu0 0.0
      %3338 = vmatprep.subr.mxu0 0.0
      %3339 = vmatpush1.msra.mxu0 0.0
      %3340 = vmatprep.subr.mxu0 0.0
      %3341 = vmatpush1.msra.mxu0 0.0
      %3342 = vmatprep.subr.mxu0 0.0
      %3343 = vmatpush1.msra.mxu0 0.0
      %3344 = vmatprep.subr.mxu0 0.0
      %3345 = vmatpush1.msra.mxu0 0.0
      %3346 = vmatprep.subr.mxu0 0.0
      %3347 = vmatpush1.msra.mxu0 0.0
      %3348 = vmatprep.subr.mxu0 0.0
      %3349 = vmatpush1.msra.mxu0 0.0
      %3350 = vmatprep.subr.mxu0 0.0
      %3351 = vmatpush1.msra.mxu0 0.0
      %3352 = vmatprep.subr.mxu0 0.0
      %3353 = vmatpush1.msra.mxu0 0.0
      %3354 = vmatprep.subr.mxu0 0.0
      %3355 = vmatpush1.msra.mxu0 0.0
      %3356 = vmatprep.subr.mxu0 0.0
      %3357 = vmatpush1.msra.mxu0 0.0
      %3358 = vmatprep.subr.mxu0 0.0
      %3359 = vmatpush1.msra.mxu0 0.0
      %3360 = vmatprep.subr.mxu0 0.0
      %3361 = vmatpush1.msra.mxu0 0.0
      %3362 = vmatprep.subr.mxu0 0.0
      %3363 = vmatpush1.msra.mxu0 0.0
      %3364 = vmatprep.subr.mxu0 0.0
      %3365 = vmatpush1.msra.mxu0 0.0
      %3366 = vmatprep.subr.mxu0 0.0
      %3367 = vmatpush1.msra.mxu0 0.0
      %3368 = vmatprep.subr.mxu0 0.0
      %3369 = vmatpush1.msra.mxu0 0.0
      %3370 = vmatprep.subr.mxu0 0.0
      %3371 = vmatpush1.msra.mxu0 0.0
      %3372 = vmatprep.subr.mxu0 0.0
      %3373 = vmatpush1.msra.mxu0 0.0
      %3374 = vmatprep.subr.mxu0 0.0
      %3375 = vmatpush1.msra.mxu0 0.0
      %3376 = vmatprep.subr.mxu0 0.0
      %3377 = vmatpush1.msra.mxu0 0.0
      %3378 = vmatprep.subr.mxu0 0.0
      %3379 = vmatpush1.msra.mxu0 0.0
      %3380 = vmatprep.subr.mxu0 0.0
      %3381 = vmatpush1.msra.mxu0 0.0
      %3382 = vmatprep.subr.mxu0 0.0
      %3383 = vmatpush1.msra.mxu0 0.0
      %3384 = vmatprep.subr.mxu0 0.0
      %3385 = vmatpush1.msra.mxu0 0.0
      %3386 = vmatprep.subr.mxu0 0.0
      %3387 = vmatpush1.msra.mxu0 0.0
      %3388 = vmatprep.subr.mxu0 0.0
      %3389 = vmatpush1.msra.mxu0 0.0
      %3390 = vmatprep.subr.mxu0 0.0
      %3391 = vmatpush1.msra.mxu0 0.0
      %3392 = vmatprep.subr.mxu0 0.0
      %3393 = vmatpush1.msra.mxu0 0.0
      %3394 = vmatprep.mubr.f32.mxu0 0.0
      %3395 = vmatmul.mubr.f32.gmra.mrb[0].mxu0 %v346
      %v3396 = vpop.f32.mrb[0].mxu0
      %v3397 = vadd.f32 0.0, %v3396
      %v3398 = vpop.f32.mrb[0].mxu0
      %3399 = vmatprep.mubr.f32.mxu0 0.0
      %3400 = vmatmul.mubr.f32.gmra.mrb[0].mxu0 %v349
      %v3401 = vpop.f32.mrb[0].mxu0
      %v3402 = vadd.f32 0.0, %v3401
      %v3403 = vpop.f32.mrb[0].mxu0
      %3404 = vmatprep.mubr.f32.mxu0 0.0
      %3405 = vmatmul.mubr.f32.gmra.mrb[0].mxu0 %v352
      %v3406 = vpop.f32.mrb[0].mxu0
      %v3407 = vadd.f32 0.0, %v3406
      %v3408 = vpop.f32.mrb[0].mxu0
      %3409 = vdwg.mxu0
      %v3413 = vcombine.high %v3397, %v3397
      %v3415 = vunpack.c.l.s4 1966171168
      %v3416 = vunpack.c.0.s8 %v3415
      %v3417 = vlaneseq
      %v3418 = vshrl.u32 %v3417, 7
      %v3419 = vsub.s32 %v3416, %v3418
      %v3420 = vrot.slane %v3397, %v3419
      %v3422 = vunpack.c.l.s4 1966171168
      %v3423 = vunpack.c.0.s8 %v3422
      %v3424 = vlaneseq
      %v3425 = vshrl.u32 %v3424, 7
      %v3426 = vsub.s32 %v3423, %v3425
      %v3427 = vrot.slane %v3413, %v3426
      %v3428 = vcombine.high %v3420, %v3420
      %v3429 = vcombine.high %v3427, %v3427
      %v3431 = vunpack.c.l.s4 1966171168
      %v3432 = vunpack.c.0.s8 %v3431
      %v3433 = vlaneseq
      %v3434 = vshrl.u32 %v3433, 7
      %v3435 = vsub.s32 %v3432, %v3434
      %v3436 = vrot.slane %v3420, %v3435
      %v3438 = vunpack.c.l.s4 1966171168
      %v3439 = vunpack.c.0.s8 %v3438
      %v3440 = vlaneseq
      %v3441 = vshrl.u32 %v3440, 7
      %v3442 = vsub.s32 %v3439, %v3441
      %v3443 = vrot.slane %v3427, %v3442
      %v3445 = vunpack.c.l.s4 1966171168
      %v3446 = vunpack.c.0.s8 %v3445
      %v3447 = vlaneseq
      %v3448 = vshrl.u32 %v3447, 7
      %v3449 = vsub.s32 %v3446, %v3448
      %v3450 = vrot.slane %v3428, %v3449
      %v3452 = vunpack.c.l.s4 1966171168
      %v3453 = vunpack.c.0.s8 %v3452
      %v3454 = vlaneseq
      %v3455 = vshrl.u32 %v3454, 7
      %v3456 = vsub.s32 %v3453, %v3455
      %v3457 = vrot.slane %v3429, %v3456
      %v3458 = vcombine.high %v3436, %v3436
      %v3459 = vcombine.high %v3443, %v3443
      %v3460 = vcombine.high %v3450, %v3450
      %v3461 = vcombine.high %v3457, %v3457
      %v3462 = vcombine.high %v3402, %v3402
      %v3464 = vunpack.c.l.s4 1966171168
      %v3465 = vunpack.c.0.s8 %v3464
      %v3466 = vlaneseq
      %v3467 = vshrl.u32 %v3466, 7
      %v3468 = vsub.s32 %v3465, %v3467
      %v3469 = vrot.slane %v3402, %v3468
      %v3471 = vunpack.c.l.s4 1966171168
      %v3472 = vunpack.c.0.s8 %v3471
      %v3473 = vlaneseq
      %v3474 = vshrl.u32 %v3473, 7
      %v3475 = vsub.s32 %v3472, %v3474
      %v3476 = vrot.slane %v3462, %v3475
      %v3477 = vcombine.high %v3469, %v3469
      %v3478 = vcombine.high %v3476, %v3476
      %v3480 = vunpack.c.l.s4 1966171168
      %v3481 = vunpack.c.0.s8 %v3480
      %v3482 = vlaneseq
      %v3483 = vshrl.u32 %v3482, 7
      %v3484 = vsub.s32 %v3481, %v3483
      %v3485 = vrot.slane %v3469, %v3484
      %v3487 = vunpack.c.l.s4 1966171168
      %v3488 = vunpack.c.0.s8 %v3487
      %v3489 = vlaneseq
      %v3490 = vshrl.u32 %v3489, 7
      %v3491 = vsub.s32 %v3488, %v3490
      %v3492 = vrot.slane %v3476, %v3491
      %v3494 = vunpack.c.l.s4 1966171168
      %v3495 = vunpack.c.0.s8 %v3494
      %v3496 = vlaneseq
      %v3497 = vshrl.u32 %v3496, 7
      %v3498 = vsub.s32 %v3495, %v3497
      %v3499 = vrot.slane %v3477, %v3498
      %v3501 = vunpack.c.l.s4 1966171168
      %v3502 = vunpack.c.0.s8 %v3501
      %v3503 = vlaneseq
      %v3504 = vshrl.u32 %v3503, 7
      %v3505 = vsub.s32 %v3502, %v3504
      %v3506 = vrot.slane %v3478, %v3505
      %v3507 = vcombine.high %v3485, %v3485
      %v3508 = vcombine.high %v3492, %v3492
      %v3509 = vcombine.high %v3499, %v3499
      %v3510 = vcombine.high %v3506, %v3506
      %v3512 = vunpack.c.l.s4 1966171168
      %v3513 = vunpack.c.0.s8 %v3512
      %v3514 = vlaneseq
      %v3515 = vshrl.u32 %v3514, 7
      %v3516 = vsub.s32 %v3513, %v3515
      %v3517 = vrot.slane %v3407, %v3516
      %v3518 = vcombine.high %v3517, %v3517
      %v3520 = vunpack.c.l.s4 1966171168
      %v3521 = vunpack.c.0.s8 %v3520
      %v3522 = vlaneseq
      %v3523 = vshrl.u32 %v3522, 7
      %v3524 = vsub.s32 %v3521, %v3523
      %v3525 = vrot.slane %v3517, %v3524
      %v3527 = vunpack.c.l.s4 1966171168
      %v3528 = vunpack.c.0.s8 %v3527
      %v3529 = vlaneseq
      %v3530 = vshrl.u32 %v3529, 7
      %v3531 = vsub.s32 %v3528, %v3530
      %v3532 = vrot.slane %v3518, %v3531
      %3551 = vst.msk [vmem:[#allocation2 + $0xb] sm:$0x1] %vm575, %v3436
      %3552 = vst.msk [vmem:[#allocation2 + $0x1b] sm:$0x1] %vm575, %v3450
      %3553 = vst.msk [vmem:[#allocation2 + $0x2b] sm:$0x1] %vm575, %v3458
      %3554 = vst.msk [vmem:[#allocation2 + $0x3b] sm:$0x1] %vm575, %v3460
      %3555 = vst.msk [vmem:[#allocation2 + $0x4b] sm:$0x1] %vm575, %v3443
      %3556 = vst.msk [vmem:[#allocation2 + $0x5b] sm:$0x1] %vm575, %v3457
      %3557 = vst.msk [vmem:[#allocation2 + $0x6b] sm:$0x1] %vm575, %v3459
      %3558 = vst.msk [vmem:[#allocation2 + $0x7b] sm:$0x1] %vm575, %v3461
      %3559 = vst.msk [vmem:[#allocation2 + $0x8b] sm:$0x1] %vm575, %v3485
      %3560 = vst.msk [vmem:[#allocation2 + $0x9b] sm:$0x1] %vm575, %v3499
      %3561 = vst.msk [vmem:[#allocation2 + $0xab] sm:$0x1] %vm575, %v3507
      %3562 = vst.msk [vmem:[#allocation2 + $0xbb] sm:$0x1] %vm575, %v3509
      %3563 = vst.msk [vmem:[#allocation2 + $0xcb] sm:$0x1] %vm575, %v3492
      %3564 = vst.msk [vmem:[#allocation2 + $0xdb] sm:$0x1] %vm575, %v3506
      %3565 = vst.msk [vmem:[#allocation2 + $0xeb] sm:$0x1] %vm575, %v3508
      %3566 = vst.msk [vmem:[#allocation2 + $0xfb] sm:$0x1] %vm575, %v3510
      %3567 = vst.msk [vmem:[#allocation2 + $0x10b] sm:$0x1] %vm575, %v3525
      %3568 = vst.msk [vmem:[#allocation2 + $0x11b] sm:$0x1] %vm575, %v3532
      %v3569 = vrot.slane %v260, 4
      %v3570 = vrot.slane %v262, 3
      %v3571 = vsel %vm308, %v3570, %v3569
      %v3572 = vrot.slane %v264, 2
      %v3573 = vsel %vm311, %v3572, %v3571
      %v3574 = vrot.slane %v266, 1
      %v3575 = vsel %vm314, %v3574, %v3573
      %v3576 = vsel %vm317, %v268, %v3575
      %v3577 = vrot.slane %v270, 7
      %v3578 = vsel %vm320, %v3577, %v3576
      %v3579 = vrot.slane %v272, 6
      %v3580 = vsel %vm323, %v3579, %v3578
      %v3581 = vrot.slane %v274, 5
      %v3582 = vsel %vm326, %v3581, %v3580
      %v3583 = vrot.slane %v276, 4
      %v3584 = vrot.slane %v278, 3
      %v3585 = vsel %vm308, %v3584, %v3583
      %v3586 = vrot.slane %v280, 2
      %v3587 = vsel %vm311, %v3586, %v3585
      %v3588 = vrot.slane %v282, 1
      %v3589 = vsel %vm314, %v3588, %v3587
      %v3590 = vsel %vm317, %v284, %v3589
      %v3591 = vrot.slane %v286, 7
      %v3592 = vsel %vm320, %v3591, %v3590
      %v3593 = vrot.slane %v288, 6
      %v3594 = vsel %vm323, %v3593, %v3592
      %v3595 = vrot.slane %v290, 5
      %v3596 = vsel %vm326, %v3595, %v3594
      %3599 = vmatprep.subr.mxu0 0.0
      %3600 = vmatpush1.msra.mxu0 %v3582
      %3601 = vmatprep.subr.mxu0 0.0
      %3602 = vmatpush1.msra.mxu0 %v3596
      %3603 = vmatprep.subr.mxu0 0.0
      %3604 = vmatpush1.msra.mxu0 0.0
      %3605 = vmatprep.subr.mxu0 0.0
      %3606 = vmatpush1.msra.mxu0 0.0
      %3607 = vmatprep.subr.mxu0 0.0
      %3608 = vmatpush1.msra.mxu0 0.0
      %3609 = vmatprep.subr.mxu0 0.0
      %3610 = vmatpush1.msra.mxu0 0.0
      %3611 = vmatprep.subr.mxu0 0.0
      %3612 = vmatpush1.msra.mxu0 0.0
      %3613 = vmatprep.subr.mxu0 0.0
      %3614 = vmatpush1.msra.mxu0 0.0
      %3615 = vmatprep.subr.mxu0 0.0
      %3616 = vmatpush1.msra.mxu0 0.0
      %3617 = vmatprep.subr.mxu0 0.0
      %3618 = vmatpush1.msra.mxu0 0.0
      %3619 = vmatprep.subr.mxu0 0.0
      %3620 = vmatpush1.msra.mxu0 0.0
      %3621 = vmatprep.subr.mxu0 0.0
      %3622 = vmatpush1.msra.mxu0 0.0
      %3623 = vmatprep.subr.mxu0 0.0
      %3624 = vmatpush1.msra.mxu0 0.0
      %3625 = vmatprep.subr.mxu0 0.0
      %3626 = vmatpush1.msra.mxu0 0.0
      %3627 = vmatprep.subr.mxu0 0.0
      %3628 = vmatpush1.msra.mxu0 0.0
      %3629 = vmatprep.subr.mxu0 0.0
      %3630 = vmatpush1.msra.mxu0 0.0
      %3631 = vmatprep.subr.mxu0 0.0
      %3632 = vmatpush1.msra.mxu0 0.0
      %3633 = vmatprep.subr.mxu0 0.0
      %3634 = vmatpush1.msra.mxu0 0.0
      %3635 = vmatprep.subr.mxu0 0.0
      %3636 = vmatpush1.msra.mxu0 0.0
      %3637 = vmatprep.subr.mxu0 0.0
      %3638 = vmatpush1.msra.mxu0 0.0
      %3639 = vmatprep.subr.mxu0 0.0
      %3640 = vmatpush1.msra.mxu0 0.0
      %3641 = vmatprep.subr.mxu0 0.0
      %3642 = vmatpush1.msra.mxu0 0.0
      %3643 = vmatprep.subr.mxu0 0.0
      %3644 = vmatpush1.msra.mxu0 0.0
      %3645 = vmatprep.subr.mxu0 0.0
      %3646 = vmatpush1.msra.mxu0 0.0
      %3647 = vmatprep.subr.mxu0 0.0
      %3648 = vmatpush1.msra.mxu0 0.0
      %3649 = vmatprep.subr.mxu0 0.0
      %3650 = vmatpush1.msra.mxu0 0.0
      %3651 = vmatprep.subr.mxu0 0.0
      %3652 = vmatpush1.msra.mxu0 0.0
      %3653 = vmatprep.subr.mxu0 0.0
      %3654 = vmatpush1.msra.mxu0 0.0
      %3655 = vmatprep.subr.mxu0 0.0
      %3656 = vmatpush1.msra.mxu0 0.0
      %3657 = vmatprep.subr.mxu0 0.0
      %3658 = vmatpush1.msra.mxu0 0.0
      %3659 = vmatprep.subr.mxu0 0.0
      %3660 = vmatpush1.msra.mxu0 0.0
      %3661 = vmatprep.subr.mxu0 0.0
      %3662 = vmatpush1.msra.mxu0 0.0
      %3663 = vmatprep.mubr.f32.mxu0 0.0
      %3664 = vmatmul.mubr.f32.gmra.mrb[0].mxu0 %v346
      %v3665 = vpop.f32.mrb[0].mxu0
      %v3666 = vadd.f32 0.0, %v3665
      %v3667 = vpop.f32.mrb[0].mxu0
      %3668 = vmatprep.mubr.f32.mxu0 0.0
      %3669 = vmatmul.mubr.f32.gmra.mrb[0].mxu0 %v349
      %v3670 = vpop.f32.mrb[0].mxu0
      %v3671 = vadd.f32 0.0, %v3670
      %v3672 = vpop.f32.mrb[0].mxu0
      %3673 = vmatprep.mubr.f32.mxu0 0.0
      %3674 = vmatmul.mubr.f32.gmra.mrb[0].mxu0 %v352
      %v3675 = vpop.f32.mrb[0].mxu0
      %v3676 = vadd.f32 0.0, %v3675
      %v3677 = vpop.f32.mrb[0].mxu0
      %3678 = vdwg.mxu0
      %v3682 = vcombine.high %v3666, %v3666
      %v3684 = vunpack.c.l.s4 1966171168
      %v3685 = vunpack.c.0.s8 %v3684
      %v3686 = vlaneseq
      %v3687 = vshrl.u32 %v3686, 7
      %v3688 = vsub.s32 %v3685, %v3687
      %v3689 = vrot.slane %v3666, %v3688
      %v3691 = vunpack.c.l.s4 1966171168
      %v3692 = vunpack.c.0.s8 %v3691
      %v3693 = vlaneseq
      %v3694 = vshrl.u32 %v3693, 7
      %v3695 = vsub.s32 %v3692, %v3694
      %v3696 = vrot.slane %v3682, %v3695
      %v3697 = vcombine.high %v3689, %v3689
      %v3698 = vcombine.high %v3696, %v3696
      %v3700 = vunpack.c.l.s4 1966171168
      %v3701 = vunpack.c.0.s8 %v3700
      %v3702 = vlaneseq
      %v3703 = vshrl.u32 %v3702, 7
      %v3704 = vsub.s32 %v3701, %v3703
      %v3705 = vrot.slane %v3689, %v3704
      %v3707 = vunpack.c.l.s4 1966171168
      %v3708 = vunpack.c.0.s8 %v3707
      %v3709 = vlaneseq
      %v3710 = vshrl.u32 %v3709, 7
      %v3711 = vsub.s32 %v3708, %v3710
      %v3712 = vrot.slane %v3696, %v3711
      %v3714 = vunpack.c.l.s4 1966171168
      %v3715 = vunpack.c.0.s8 %v3714
      %v3716 = vlaneseq
      %v3717 = vshrl.u32 %v3716, 7
      %v3718 = vsub.s32 %v3715, %v3717
      %v3719 = vrot.slane %v3697, %v3718
      %v3721 = vunpack.c.l.s4 1966171168
      %v3722 = vunpack.c.0.s8 %v3721
      %v3723 = vlaneseq
      %v3724 = vshrl.u32 %v3723, 7
      %v3725 = vsub.s32 %v3722, %v3724
      %v3726 = vrot.slane %v3698, %v3725
      %v3727 = vcombine.high %v3705, %v3705
      %v3728 = vcombine.high %v3712, %v3712
      %v3729 = vcombine.high %v3719, %v3719
      %v3730 = vcombine.high %v3726, %v3726
      %v3731 = vcombine.high %v3671, %v3671
      %v3733 = vunpack.c.l.s4 1966171168
      %v3734 = vunpack.c.0.s8 %v3733
      %v3735 = vlaneseq
      %v3736 = vshrl.u32 %v3735, 7
      %v3737 = vsub.s32 %v3734, %v3736
      %v3738 = vrot.slane %v3671, %v3737
      %v3740 = vunpack.c.l.s4 1966171168
      %v3741 = vunpack.c.0.s8 %v3740
      %v3742 = vlaneseq
      %v3743 = vshrl.u32 %v3742, 7
      %v3744 = vsub.s32 %v3741, %v3743
      %v3745 = vrot.slane %v3731, %v3744
      %v3746 = vcombine.high %v3738, %v3738
      %v3747 = vcombine.high %v3745, %v3745
      %v3749 = vunpack.c.l.s4 1966171168
      %v3750 = vunpack.c.0.s8 %v3749
      %v3751 = vlaneseq
      %v3752 = vshrl.u32 %v3751, 7
      %v3753 = vsub.s32 %v3750, %v3752
      %v3754 = vrot.slane %v3738, %v3753
      %v3756 = vunpack.c.l.s4 1966171168
      %v3757 = vunpack.c.0.s8 %v3756
      %v3758 = vlaneseq
      %v3759 = vshrl.u32 %v3758, 7
      %v3760 = vsub.s32 %v3757, %v3759
      %v3761 = vrot.slane %v3745, %v3760
      %v3763 = vunpack.c.l.s4 1966171168
      %v3764 = vunpack.c.0.s8 %v3763
      %v3765 = vlaneseq
      %v3766 = vshrl.u32 %v3765, 7
      %v3767 = vsub.s32 %v3764, %v3766
      %v3768 = vrot.slane %v3746, %v3767
      %v3770 = vunpack.c.l.s4 1966171168
      %v3771 = vunpack.c.0.s8 %v3770
      %v3772 = vlaneseq
      %v3773 = vshrl.u32 %v3772, 7
      %v3774 = vsub.s32 %v3771, %v3773
      %v3775 = vrot.slane %v3747, %v3774
      %v3776 = vcombine.high %v3754, %v3754
      %v3777 = vcombine.high %v3761, %v3761
      %v3778 = vcombine.high %v3768, %v3768
      %v3779 = vcombine.high %v3775, %v3775
      %v3781 = vunpack.c.l.s4 1966171168
      %v3782 = vunpack.c.0.s8 %v3781
      %v3783 = vlaneseq
      %v3784 = vshrl.u32 %v3783, 7
      %v3785 = vsub.s32 %v3782, %v3784
      %v3786 = vrot.slane %v3676, %v3785
      %v3787 = vcombine.high %v3786, %v3786
      %v3789 = vunpack.c.l.s4 1966171168
      %v3790 = vunpack.c.0.s8 %v3789
      %v3791 = vlaneseq
      %v3792 = vshrl.u32 %v3791, 7
      %v3793 = vsub.s32 %v3790, %v3792
      %v3794 = vrot.slane %v3786, %v3793
      %v3796 = vunpack.c.l.s4 1966171168
      %v3797 = vunpack.c.0.s8 %v3796
      %v3798 = vlaneseq
      %v3799 = vshrl.u32 %v3798, 7
      %v3800 = vsub.s32 %v3797, %v3799
      %v3801 = vrot.slane %v3787, %v3800
      %3820 = vst.msk [vmem:[#allocation2 + $0xc] sm:$0x1] %vm575, %v3705
      %3821 = vst.msk [vmem:[#allocation2 + $0x1c] sm:$0x1] %vm575, %v3719
      %3822 = vst.msk [vmem:[#allocation2 + $0x2c] sm:$0x1] %vm575, %v3727
      %3823 = vst.msk [vmem:[#allocation2 + $0x3c] sm:$0x1] %vm575, %v3729
      %3824 = vst.msk [vmem:[#allocation2 + $0x4c] sm:$0x1] %vm575, %v3712
      %3825 = vst.msk [vmem:[#allocation2 + $0x5c] sm:$0x1] %vm575, %v3726
      %3826 = vst.msk [vmem:[#allocation2 + $0x6c] sm:$0x1] %vm575, %v3728
      %3827 = vst.msk [vmem:[#allocation2 + $0x7c] sm:$0x1] %vm575, %v3730
      %3828 = vst.msk [vmem:[#allocation2 + $0x8c] sm:$0x1] %vm575, %v3754
      %3829 = vst.msk [vmem:[#allocation2 + $0x9c] sm:$0x1] %vm575, %v3768
      %3830 = vst.msk [vmem:[#allocation2 + $0xac] sm:$0x1] %vm575, %v3776
      %3831 = vst.msk [vmem:[#allocation2 + $0xbc] sm:$0x1] %vm575, %v3778
      %3832 = vst.msk [vmem:[#allocation2 + $0xcc] sm:$0x1] %vm575, %v3761
      %3833 = vst.msk [vmem:[#allocation2 + $0xdc] sm:$0x1] %vm575, %v3775
      %3834 = vst.msk [vmem:[#allocation2 + $0xec] sm:$0x1] %vm575, %v3777
      %3835 = vst.msk [vmem:[#allocation2 + $0xfc] sm:$0x1] %vm575, %v3779
      %3836 = vst.msk [vmem:[#allocation2 + $0x10c] sm:$0x1] %vm575, %v3794
      %3837 = vst.msk [vmem:[#allocation2 + $0x11c] sm:$0x1] %vm575, %v3801
      %v3838 = vrot.slane %v260, 5
      %v3839 = vrot.slane %v262, 4
      %v3840 = vsel %vm308, %v3839, %v3838
      %v3841 = vrot.slane %v264, 3
      %v3842 = vsel %vm311, %v3841, %v3840
      %v3843 = vrot.slane %v266, 2
      %v3844 = vsel %vm314, %v3843, %v3842
      %v3845 = vrot.slane %v268, 1
      %v3846 = vsel %vm317, %v3845, %v3844
      %v3847 = vsel %vm320, %v270, %v3846
      %v3848 = vrot.slane %v272, 7
      %v3849 = vsel %vm323, %v3848, %v3847
      %v3850 = vrot.slane %v274, 6
      %v3851 = vsel %vm326, %v3850, %v3849
      %v3852 = vrot.slane %v276, 5
      %v3853 = vrot.slane %v278, 4
      %v3854 = vsel %vm308, %v3853, %v3852
      %v3855 = vrot.slane %v280, 3
      %v3856 = vsel %vm311, %v3855, %v3854
      %v3857 = vrot.slane %v282, 2
      %v3858 = vsel %vm314, %v3857, %v3856
      %v3859 = vrot.slane %v284, 1
      %v3860 = vsel %vm317, %v3859, %v3858
      %v3861 = vsel %vm320, %v286, %v3860
      %v3862 = vrot.slane %v288, 7
      %v3863 = vsel %vm323, %v3862, %v3861
      %v3864 = vrot.slane %v290, 6
      %v3865 = vsel %vm326, %v3864, %v3863
      %3868 = vmatprep.subr.mxu0 0.0
      %3869 = vmatpush1.msra.mxu0 %v3851
      %3870 = vmatprep.subr.mxu0 0.0
      %3871 = vmatpush1.msra.mxu0 %v3865
      %3872 = vmatprep.subr.mxu0 0.0
      %3873 = vmatpush1.msra.mxu0 0.0
      %3874 = vmatprep.subr.mxu0 0.0
      %3875 = vmatpush1.msra.mxu0 0.0
      %3876 = vmatprep.subr.mxu0 0.0
      %3877 = vmatpush1.msra.mxu0 0.0
      %3878 = vmatprep.subr.mxu0 0.0
      %3879 = vmatpush1.msra.mxu0 0.0
      %3880 = vmatprep.subr.mxu0 0.0
      %3881 = vmatpush1.msra.mxu0 0.0
      %3882 = vmatprep.subr.mxu0 0.0
      %3883 = vmatpush1.msra.mxu0 0.0
      %3884 = vmatprep.subr.mxu0 0.0
      %3885 = vmatpush1.msra.mxu0 0.0
      %3886 = vmatprep.subr.mxu0 0.0
      %3887 = vmatpush1.msra.mxu0 0.0
      %3888 = vmatprep.subr.mxu0 0.0
      %3889 = vmatpush1.msra.mxu0 0.0
      %3890 = vmatprep.subr.mxu0 0.0
      %3891 = vmatpush1.msra.mxu0 0.0
      %3892 = vmatprep.subr.mxu0 0.0
      %3893 = vmatpush1.msra.mxu0 0.0
      %3894 = vmatprep.subr.mxu0 0.0
      %3895 = vmatpush1.msra.mxu0 0.0
      %3896 = vmatprep.subr.mxu0 0.0
      %3897 = vmatpush1.msra.mxu0 0.0
      %3898 = vmatprep.subr.mxu0 0.0
      %3899 = vmatpush1.msra.mxu0 0.0
      %3900 = vmatprep.subr.mxu0 0.0
      %3901 = vmatpush1.msra.mxu0 0.0
      %3902 = vmatprep.subr.mxu0 0.0
      %3903 = vmatpush1.msra.mxu0 0.0
      %3904 = vmatprep.subr.mxu0 0.0
      %3905 = vmatpush1.msra.mxu0 0.0
      %3906 = vmatprep.subr.mxu0 0.0
      %3907 = vmatpush1.msra.mxu0 0.0
      %3908 = vmatprep.subr.mxu0 0.0
      %3909 = vmatpush1.msra.mxu0 0.0
      %3910 = vmatprep.subr.mxu0 0.0
      %3911 = vmatpush1.msra.mxu0 0.0
      %3912 = vmatprep.subr.mxu0 0.0
      %3913 = vmatpush1.msra.mxu0 0.0
      %3914 = vmatprep.subr.mxu0 0.0
      %3915 = vmatpush1.msra.mxu0 0.0
      %3916 = vmatprep.subr.mxu0 0.0
      %3917 = vmatpush1.msra.mxu0 0.0
      %3918 = vmatprep.subr.mxu0 0.0
      %3919 = vmatpush1.msra.mxu0 0.0
      %3920 = vmatprep.subr.mxu0 0.0
      %3921 = vmatpush1.msra.mxu0 0.0
      %3922 = vmatprep.subr.mxu0 0.0
      %3923 = vmatpush1.msra.mxu0 0.0
      %3924 = vmatprep.subr.mxu0 0.0
      %3925 = vmatpush1.msra.mxu0 0.0
      %3926 = vmatprep.subr.mxu0 0.0
      %3927 = vmatpush1.msra.mxu0 0.0
      %3928 = vmatprep.subr.mxu0 0.0
      %3929 = vmatpush1.msra.mxu0 0.0
      %3930 = vmatprep.subr.mxu0 0.0
      %3931 = vmatpush1.msra.mxu0 0.0
      %3932 = vmatprep.mubr.f32.mxu0 0.0
      %3933 = vmatmul.mubr.f32.gmra.mrb[0].mxu0 %v346
      %v3934 = vpop.f32.mrb[0].mxu0
      %v3935 = vadd.f32 0.0, %v3934
      %v3936 = vpop.f32.mrb[0].mxu0
      %3937 = vmatprep.mubr.f32.mxu0 0.0
      %3938 = vmatmul.mubr.f32.gmra.mrb[0].mxu0 %v349
      %v3939 = vpop.f32.mrb[0].mxu0
      %v3940 = vadd.f32 0.0, %v3939
      %v3941 = vpop.f32.mrb[0].mxu0
      %3942 = vmatprep.mubr.f32.mxu0 0.0
      %3943 = vmatmul.mubr.f32.gmra.mrb[0].mxu0 %v352
      %v3944 = vpop.f32.mrb[0].mxu0
      %v3945 = vadd.f32 0.0, %v3944
      %v3946 = vpop.f32.mrb[0].mxu0
      %3947 = vdwg.mxu0
      %v3951 = vcombine.high %v3935, %v3935
      %v3953 = vunpack.c.l.s4 1966171168
      %v3954 = vunpack.c.0.s8 %v3953
      %v3955 = vlaneseq
      %v3956 = vshrl.u32 %v3955, 7
      %v3957 = vsub.s32 %v3954, %v3956
      %v3958 = vrot.slane %v3935, %v3957
      %v3960 = vunpack.c.l.s4 1966171168
      %v3961 = vunpack.c.0.s8 %v3960
      %v3962 = vlaneseq
      %v3963 = vshrl.u32 %v3962, 7
      %v3964 = vsub.s32 %v3961, %v3963
      %v3965 = vrot.slane %v3951, %v3964
      %v3966 = vcombine.high %v3958, %v3958
      %v3967 = vcombine.high %v3965, %v3965
      %v3969 = vunpack.c.l.s4 1966171168
      %v3970 = vunpack.c.0.s8 %v3969
      %v3971 = vlaneseq
      %v3972 = vshrl.u32 %v3971, 7
      %v3973 = vsub.s32 %v3970, %v3972
      %v3974 = vrot.slane %v3958, %v3973
      %v3976 = vunpack.c.l.s4 1966171168
      %v3977 = vunpack.c.0.s8 %v3976
      %v3978 = vlaneseq
      %v3979 = vshrl.u32 %v3978, 7
      %v3980 = vsub.s32 %v3977, %v3979
      %v3981 = vrot.slane %v3965, %v3980
      %v3983 = vunpack.c.l.s4 1966171168
      %v3984 = vunpack.c.0.s8 %v3983
      %v3985 = vlaneseq
      %v3986 = vshrl.u32 %v3985, 7
      %v3987 = vsub.s32 %v3984, %v3986
      %v3988 = vrot.slane %v3966, %v3987
      %v3990 = vunpack.c.l.s4 1966171168
      %v3991 = vunpack.c.0.s8 %v3990
      %v3992 = vlaneseq
      %v3993 = vshrl.u32 %v3992, 7
      %v3994 = vsub.s32 %v3991, %v3993
      %v3995 = vrot.slane %v3967, %v3994
      %v3996 = vcombine.high %v3974, %v3974
      %v3997 = vcombine.high %v3981, %v3981
      %v3998 = vcombine.high %v3988, %v3988
      %v3999 = vcombine.high %v3995, %v3995
      %v4000 = vcombine.high %v3940, %v3940
      %v4002 = vunpack.c.l.s4 1966171168
      %v4003 = vunpack.c.0.s8 %v4002
      %v4004 = vlaneseq
      %v4005 = vshrl.u32 %v4004, 7
      %v4006 = vsub.s32 %v4003, %v4005
      %v4007 = vrot.slane %v3940, %v4006
      %v4009 = vunpack.c.l.s4 1966171168
      %v4010 = vunpack.c.0.s8 %v4009
      %v4011 = vlaneseq
      %v4012 = vshrl.u32 %v4011, 7
      %v4013 = vsub.s32 %v4010, %v4012
      %v4014 = vrot.slane %v4000, %v4013
      %v4015 = vcombine.high %v4007, %v4007
      %v4016 = vcombine.high %v4014, %v4014
      %v4018 = vunpack.c.l.s4 1966171168
      %v4019 = vunpack.c.0.s8 %v4018
      %v4020 = vlaneseq
      %v4021 = vshrl.u32 %v4020, 7
      %v4022 = vsub.s32 %v4019, %v4021
      %v4023 = vrot.slane %v4007, %v4022
      %v4025 = vunpack.c.l.s4 1966171168
      %v4026 = vunpack.c.0.s8 %v4025
      %v4027 = vlaneseq
      %v4028 = vshrl.u32 %v4027, 7
      %v4029 = vsub.s32 %v4026, %v4028
      %v4030 = vrot.slane %v4014, %v4029
      %v4032 = vunpack.c.l.s4 1966171168
      %v4033 = vunpack.c.0.s8 %v4032
      %v4034 = vlaneseq
      %v4035 = vshrl.u32 %v4034, 7
      %v4036 = vsub.s32 %v4033, %v4035
      %v4037 = vrot.slane %v4015, %v4036
      %v4039 = vunpack.c.l.s4 1966171168
      %v4040 = vunpack.c.0.s8 %v4039
      %v4041 = vlaneseq
      %v4042 = vshrl.u32 %v4041, 7
      %v4043 = vsub.s32 %v4040, %v4042
      %v4044 = vrot.slane %v4016, %v4043
      %v4045 = vcombine.high %v4023, %v4023
      %v4046 = vcombine.high %v4030, %v4030
      %v4047 = vcombine.high %v4037, %v4037
      %v4048 = vcombine.high %v4044, %v4044
      %v4050 = vunpack.c.l.s4 1966171168
      %v4051 = vunpack.c.0.s8 %v4050
      %v4052 = vlaneseq
      %v4053 = vshrl.u32 %v4052, 7
      %v4054 = vsub.s32 %v4051, %v4053
      %v4055 = vrot.slane %v3945, %v4054
      %v4056 = vcombine.high %v4055, %v4055
      %v4058 = vunpack.c.l.s4 1966171168
      %v4059 = vunpack.c.0.s8 %v4058
      %v4060 = vlaneseq
      %v4061 = vshrl.u32 %v4060, 7
      %v4062 = vsub.s32 %v4059, %v4061
      %v4063 = vrot.slane %v4055, %v4062
      %v4065 = vunpack.c.l.s4 1966171168
      %v4066 = vunpack.c.0.s8 %v4065
      %v4067 = vlaneseq
      %v4068 = vshrl.u32 %v4067, 7
      %v4069 = vsub.s32 %v4066, %v4068
      %v4070 = vrot.slane %v4056, %v4069
      %4089 = vst.msk [vmem:[#allocation2 + $0xd] sm:$0x1] %vm575, %v3974
      %4090 = vst.msk [vmem:[#allocation2 + $0x1d] sm:$0x1] %vm575, %v3988
      %4091 = vst.msk [vmem:[#allocation2 + $0x2d] sm:$0x1] %vm575, %v3996
      %4092 = vst.msk [vmem:[#allocation2 + $0x3d] sm:$0x1] %vm575, %v3998
      %4093 = vst.msk [vmem:[#allocation2 + $0x4d] sm:$0x1] %vm575, %v3981
      %4094 = vst.msk [vmem:[#allocation2 + $0x5d] sm:$0x1] %vm575, %v3995
      %4095 = vst.msk [vmem:[#allocation2 + $0x6d] sm:$0x1] %vm575, %v3997
      %4096 = vst.msk [vmem:[#allocation2 + $0x7d] sm:$0x1] %vm575, %v3999
      %4097 = vst.msk [vmem:[#allocation2 + $0x8d] sm:$0x1] %vm575, %v4023
      %4098 = vst.msk [vmem:[#allocation2 + $0x9d] sm:$0x1] %vm575, %v4037
      %4099 = vst.msk [vmem:[#allocation2 + $0xad] sm:$0x1] %vm575, %v4045
      %4100 = vst.msk [vmem:[#allocation2 + $0xbd] sm:$0x1] %vm575, %v4047
      %4101 = vst.msk [vmem:[#allocation2 + $0xcd] sm:$0x1] %vm575, %v4030
      %4102 = vst.msk [vmem:[#allocation2 + $0xdd] sm:$0x1] %vm575, %v4044
      %4103 = vst.msk [vmem:[#allocation2 + $0xed] sm:$0x1] %vm575, %v4046
      %4104 = vst.msk [vmem:[#allocation2 + $0xfd] sm:$0x1] %vm575, %v4048
      %4105 = vst.msk [vmem:[#allocation2 + $0x10d] sm:$0x1] %vm575, %v4063
      %4106 = vst.msk [vmem:[#allocation2 + $0x11d] sm:$0x1] %vm575, %v4070
      %v4107 = vrot.slane %v260, 6
      %v4108 = vrot.slane %v262, 5
      %v4109 = vsel %vm308, %v4108, %v4107
      %v4110 = vrot.slane %v264, 4
      %v4111 = vsel %vm311, %v4110, %v4109
      %v4112 = vrot.slane %v266, 3
      %v4113 = vsel %vm314, %v4112, %v4111
      %v4114 = vrot.slane %v268, 2
      %v4115 = vsel %vm317, %v4114, %v4113
      %v4116 = vrot.slane %v270, 1
      %v4117 = vsel %vm320, %v4116, %v4115
      %v4118 = vsel %vm323, %v272, %v4117
      %v4119 = vrot.slane %v274, 7
      %v4120 = vsel %vm326, %v4119, %v4118
      %v4121 = vrot.slane %v276, 6
      %v4122 = vrot.slane %v278, 5
      %v4123 = vsel %vm308, %v4122, %v4121
      %v4124 = vrot.slane %v280, 4
      %v4125 = vsel %vm311, %v4124, %v4123
      %v4126 = vrot.slane %v282, 3
      %v4127 = vsel %vm314, %v4126, %v4125
      %v4128 = vrot.slane %v284, 2
      %v4129 = vsel %vm317, %v4128, %v4127
      %v4130 = vrot.slane %v286, 1
      %v4131 = vsel %vm320, %v4130, %v4129
      %v4132 = vsel %vm323, %v288, %v4131
      %v4133 = vrot.slane %v290, 7
      %v4134 = vsel %vm326, %v4133, %v4132
      %4137 = vmatprep.subr.mxu0 0.0
      %4138 = vmatpush1.msra.mxu0 %v4120
      %4139 = vmatprep.subr.mxu0 0.0
      %4140 = vmatpush1.msra.mxu0 %v4134
      %4141 = vmatprep.subr.mxu0 0.0
      %4142 = vmatpush1.msra.mxu0 0.0
      %4143 = vmatprep.subr.mxu0 0.0
      %4144 = vmatpush1.msra.mxu0 0.0
      %4145 = vmatprep.subr.mxu0 0.0
      %4146 = vmatpush1.msra.mxu0 0.0
      %4147 = vmatprep.subr.mxu0 0.0
      %4148 = vmatpush1.msra.mxu0 0.0
      %4149 = vmatprep.subr.mxu0 0.0
      %4150 = vmatpush1.msra.mxu0 0.0
      %4151 = vmatprep.subr.mxu0 0.0
      %4152 = vmatpush1.msra.mxu0 0.0
      %4153 = vmatprep.subr.mxu0 0.0
      %4154 = vmatpush1.msra.mxu0 0.0
      %4155 = vmatprep.subr.mxu0 0.0
      %4156 = vmatpush1.msra.mxu0 0.0
      %4157 = vmatprep.subr.mxu0 0.0
      %4158 = vmatpush1.msra.mxu0 0.0
      %4159 = vmatprep.subr.mxu0 0.0
      %4160 = vmatpush1.msra.mxu0 0.0
      %4161 = vmatprep.subr.mxu0 0.0
      %4162 = vmatpush1.msra.mxu0 0.0
      %4163 = vmatprep.subr.mxu0 0.0
      %4164 = vmatpush1.msra.mxu0 0.0
      %4165 = vmatprep.subr.mxu0 0.0
      %4166 = vmatpush1.msra.mxu0 0.0
      %4167 = vmatprep.subr.mxu0 0.0
      %4168 = vmatpush1.msra.mxu0 0.0
      %4169 = vmatprep.subr.mxu0 0.0
      %4170 = vmatpush1.msra.mxu0 0.0
      %4171 = vmatprep.subr.mxu0 0.0
      %4172 = vmatpush1.msra.mxu0 0.0
      %4173 = vmatprep.subr.mxu0 0.0
      %4174 = vmatpush1.msra.mxu0 0.0
      %4175 = vmatprep.subr.mxu0 0.0
      %4176 = vmatpush1.msra.mxu0 0.0
      %4177 = vmatprep.subr.mxu0 0.0
      %4178 = vmatpush1.msra.mxu0 0.0
      %4179 = vmatprep.subr.mxu0 0.0
      %4180 = vmatpush1.msra.mxu0 0.0
      %4181 = vmatprep.subr.mxu0 0.0
      %4182 = vmatpush1.msra.mxu0 0.0
      %4183 = vmatprep.subr.mxu0 0.0
      %4184 = vmatpush1.msra.mxu0 0.0
      %4185 = vmatprep.subr.mxu0 0.0
      %4186 = vmatpush1.msra.mxu0 0.0
      %4187 = vmatprep.subr.mxu0 0.0
      %4188 = vmatpush1.msra.mxu0 0.0
      %4189 = vmatprep.subr.mxu0 0.0
      %4190 = vmatpush1.msra.mxu0 0.0
      %4191 = vmatprep.subr.mxu0 0.0
      %4192 = vmatpush1.msra.mxu0 0.0
      %4193 = vmatprep.subr.mxu0 0.0
      %4194 = vmatpush1.msra.mxu0 0.0
      %4195 = vmatprep.subr.mxu0 0.0
      %4196 = vmatpush1.msra.mxu0 0.0
      %4197 = vmatprep.subr.mxu0 0.0
      %4198 = vmatpush1.msra.mxu0 0.0
      %4199 = vmatprep.subr.mxu0 0.0
      %4200 = vmatpush1.msra.mxu0 0.0
      %4201 = vmatprep.mubr.f32.mxu0 0.0
      %4202 = vmatmul.mubr.f32.gmra.mrb[0].mxu0 %v346
      %v4203 = vpop.f32.mrb[0].mxu0
      %v4204 = vadd.f32 0.0, %v4203
      %v4205 = vpop.f32.mrb[0].mxu0
      %4206 = vmatprep.mubr.f32.mxu0 0.0
      %4207 = vmatmul.mubr.f32.gmra.mrb[0].mxu0 %v349
      %v4208 = vpop.f32.mrb[0].mxu0
      %v4209 = vadd.f32 0.0, %v4208
      %v4210 = vpop.f32.mrb[0].mxu0
      %4211 = vmatprep.mubr.f32.mxu0 0.0
      %4212 = vmatmul.mubr.f32.gmra.mrb[0].mxu0 %v352
      %v4213 = vpop.f32.mrb[0].mxu0
      %v4214 = vadd.f32 0.0, %v4213
      %v4215 = vpop.f32.mrb[0].mxu0
      %4216 = vdwg.mxu0
      %v4220 = vcombine.high %v4204, %v4204
      %v4222 = vunpack.c.l.s4 1966171168
      %v4223 = vunpack.c.0.s8 %v4222
      %v4224 = vlaneseq
      %v4225 = vshrl.u32 %v4224, 7
      %v4226 = vsub.s32 %v4223, %v4225
      %v4227 = vrot.slane %v4204, %v4226
      %v4229 = vunpack.c.l.s4 1966171168
      %v4230 = vunpack.c.0.s8 %v4229
      %v4231 = vlaneseq
      %v4232 = vshrl.u32 %v4231, 7
      %v4233 = vsub.s32 %v4230, %v4232
      %v4234 = vrot.slane %v4220, %v4233
      %v4235 = vcombine.high %v4227, %v4227
      %v4236 = vcombine.high %v4234, %v4234
      %v4238 = vunpack.c.l.s4 1966171168
      %v4239 = vunpack.c.0.s8 %v4238
      %v4240 = vlaneseq
      %v4241 = vshrl.u32 %v4240, 7
      %v4242 = vsub.s32 %v4239, %v4241
      %v4243 = vrot.slane %v4227, %v4242
      %v4245 = vunpack.c.l.s4 1966171168
      %v4246 = vunpack.c.0.s8 %v4245
      %v4247 = vlaneseq
      %v4248 = vshrl.u32 %v4247, 7
      %v4249 = vsub.s32 %v4246, %v4248
      %v4250 = vrot.slane %v4234, %v4249
      %v4252 = vunpack.c.l.s4 1966171168
      %v4253 = vunpack.c.0.s8 %v4252
      %v4254 = vlaneseq
      %v4255 = vshrl.u32 %v4254, 7
      %v4256 = vsub.s32 %v4253, %v4255
      %v4257 = vrot.slane %v4235, %v4256
      %v4259 = vunpack.c.l.s4 1966171168
      %v4260 = vunpack.c.0.s8 %v4259
      %v4261 = vlaneseq
      %v4262 = vshrl.u32 %v4261, 7
      %v4263 = vsub.s32 %v4260, %v4262
      %v4264 = vrot.slane %v4236, %v4263
      %v4265 = vcombine.high %v4243, %v4243
      %v4266 = vcombine.high %v4250, %v4250
      %v4267 = vcombine.high %v4257, %v4257
      %v4268 = vcombine.high %v4264, %v4264
      %v4269 = vcombine.high %v4209, %v4209
      %v4271 = vunpack.c.l.s4 1966171168
      %v4272 = vunpack.c.0.s8 %v4271
      %v4273 = vlaneseq
      %v4274 = vshrl.u32 %v4273, 7
      %v4275 = vsub.s32 %v4272, %v4274
      %v4276 = vrot.slane %v4209, %v4275
      %v4278 = vunpack.c.l.s4 1966171168
      %v4279 = vunpack.c.0.s8 %v4278
      %v4280 = vlaneseq
      %v4281 = vshrl.u32 %v4280, 7
      %v4282 = vsub.s32 %v4279, %v4281
      %v4283 = vrot.slane %v4269, %v4282
      %v4284 = vcombine.high %v4276, %v4276
      %v4285 = vcombine.high %v4283, %v4283
      %v4287 = vunpack.c.l.s4 1966171168
      %v4288 = vunpack.c.0.s8 %v4287
      %v4289 = vlaneseq
      %v4290 = vshrl.u32 %v4289, 7
      %v4291 = vsub.s32 %v4288, %v4290
      %v4292 = vrot.slane %v4276, %v4291
      %v4294 = vunpack.c.l.s4 1966171168
      %v4295 = vunpack.c.0.s8 %v4294
      %v4296 = vlaneseq
      %v4297 = vshrl.u32 %v4296, 7
      %v4298 = vsub.s32 %v4295, %v4297
      %v4299 = vrot.slane %v4283, %v4298
      %v4301 = vunpack.c.l.s4 1966171168
      %v4302 = vunpack.c.0.s8 %v4301
      %v4303 = vlaneseq
      %v4304 = vshrl.u32 %v4303, 7
      %v4305 = vsub.s32 %v4302, %v4304
      %v4306 = vrot.slane %v4284, %v4305
      %v4308 = vunpack.c.l.s4 1966171168
      %v4309 = vunpack.c.0.s8 %v4308
      %v4310 = vlaneseq
      %v4311 = vshrl.u32 %v4310, 7
      %v4312 = vsub.s32 %v4309, %v4311
      %v4313 = vrot.slane %v4285, %v4312
      %v4314 = vcombine.high %v4292, %v4292
      %v4315 = vcombine.high %v4299, %v4299
      %v4316 = vcombine.high %v4306, %v4306
      %v4317 = vcombine.high %v4313, %v4313
      %v4319 = vunpack.c.l.s4 1966171168
      %v4320 = vunpack.c.0.s8 %v4319
      %v4321 = vlaneseq
      %v4322 = vshrl.u32 %v4321, 7
      %v4323 = vsub.s32 %v4320, %v4322
      %v4324 = vrot.slane %v4214, %v4323
      %v4325 = vcombine.high %v4324, %v4324
      %v4327 = vunpack.c.l.s4 1966171168
      %v4328 = vunpack.c.0.s8 %v4327
      %v4329 = vlaneseq
      %v4330 = vshrl.u32 %v4329, 7
      %v4331 = vsub.s32 %v4328, %v4330
      %v4332 = vrot.slane %v4324, %v4331
      %v4334 = vunpack.c.l.s4 1966171168
      %v4335 = vunpack.c.0.s8 %v4334
      %v4336 = vlaneseq
      %v4337 = vshrl.u32 %v4336, 7
      %v4338 = vsub.s32 %v4335, %v4337
      %v4339 = vrot.slane %v4325, %v4338
      %4358 = vst.msk [vmem:[#allocation2 + $0xe] sm:$0x1] %vm575, %v4243
      %4359 = vst.msk [vmem:[#allocation2 + $0x1e] sm:$0x1] %vm575, %v4257
      %4360 = vst.msk [vmem:[#allocation2 + $0x2e] sm:$0x1] %vm575, %v4265
      %4361 = vst.msk [vmem:[#allocation2 + $0x3e] sm:$0x1] %vm575, %v4267
      %4362 = vst.msk [vmem:[#allocation2 + $0x4e] sm:$0x1] %vm575, %v4250
      %4363 = vst.msk [vmem:[#allocation2 + $0x5e] sm:$0x1] %vm575, %v4264
      %4364 = vst.msk [vmem:[#allocation2 + $0x6e] sm:$0x1] %vm575, %v4266
      %4365 = vst.msk [vmem:[#allocation2 + $0x7e] sm:$0x1] %vm575, %v4268
      %4366 = vst.msk [vmem:[#allocation2 + $0x8e] sm:$0x1] %vm575, %v4292
      %4367 = vst.msk [vmem:[#allocation2 + $0x9e] sm:$0x1] %vm575, %v4306
      %4368 = vst.msk [vmem:[#allocation2 + $0xae] sm:$0x1] %vm575, %v4314
      %4369 = vst.msk [vmem:[#allocation2 + $0xbe] sm:$0x1] %vm575, %v4316
      %4370 = vst.msk [vmem:[#allocation2 + $0xce] sm:$0x1] %vm575, %v4299
      %4371 = vst.msk [vmem:[#allocation2 + $0xde] sm:$0x1] %vm575, %v4313
      %4372 = vst.msk [vmem:[#allocation2 + $0xee] sm:$0x1] %vm575, %v4315
      %4373 = vst.msk [vmem:[#allocation2 + $0xfe] sm:$0x1] %vm575, %v4317
      %4374 = vst.msk [vmem:[#allocation2 + $0x10e] sm:$0x1] %vm575, %v4332
      %4375 = vst.msk [vmem:[#allocation2 + $0x11e] sm:$0x1] %vm575, %v4339
      %v4376 = vrot.slane %v260, 7
      %v4377 = vrot.slane %v262, 6
      %v4378 = vsel %vm308, %v4377, %v4376
      %v4379 = vrot.slane %v264, 5
      %v4380 = vsel %vm311, %v4379, %v4378
      %v4381 = vrot.slane %v266, 4
      %v4382 = vsel %vm314, %v4381, %v4380
      %v4383 = vrot.slane %v268, 3
      %v4384 = vsel %vm317, %v4383, %v4382
      %v4385 = vrot.slane %v270, 2
      %v4386 = vsel %vm320, %v4385, %v4384
      %v4387 = vrot.slane %v272, 1
      %v4388 = vsel %vm323, %v4387, %v4386
      %v4389 = vsel %vm326, %v274, %v4388
      %v4390 = vrot.slane %v276, 7
      %v4391 = vrot.slane %v278, 6
      %v4392 = vsel %vm308, %v4391, %v4390
      %v4393 = vrot.slane %v280, 5
      %v4394 = vsel %vm311, %v4393, %v4392
      %v4395 = vrot.slane %v282, 4
      %v4396 = vsel %vm314, %v4395, %v4394
      %v4397 = vrot.slane %v284, 3
      %v4398 = vsel %vm317, %v4397, %v4396
      %v4399 = vrot.slane %v286, 2
      %v4400 = vsel %vm320, %v4399, %v4398
      %v4401 = vrot.slane %v288, 1
      %v4402 = vsel %vm323, %v4401, %v4400
      %v4403 = vsel %vm326, %v290, %v4402
      %4406 = vmatprep.subr.mxu0 0.0
      %4407 = vmatpush1.msra.mxu0 %v4389
      %4408 = vmatprep.subr.mxu0 0.0
      %4409 = vmatpush1.msra.mxu0 %v4403
      %4410 = vmatprep.subr.mxu0 0.0
      %4411 = vmatpush1.msra.mxu0 0.0
      %4412 = vmatprep.subr.mxu0 0.0
      %4413 = vmatpush1.msra.mxu0 0.0
      %4414 = vmatprep.subr.mxu0 0.0
      %4415 = vmatpush1.msra.mxu0 0.0
      %4416 = vmatprep.subr.mxu0 0.0
      %4417 = vmatpush1.msra.mxu0 0.0
      %4418 = vmatprep.subr.mxu0 0.0
      %4419 = vmatpush1.msra.mxu0 0.0
      %4420 = vmatprep.subr.mxu0 0.0
      %4421 = vmatpush1.msra.mxu0 0.0
      %4422 = vmatprep.subr.mxu0 0.0
      %4423 = vmatpush1.msra.mxu0 0.0
      %4424 = vmatprep.subr.mxu0 0.0
      %4425 = vmatpush1.msra.mxu0 0.0
      %4426 = vmatprep.subr.mxu0 0.0
      %4427 = vmatpush1.msra.mxu0 0.0
      %4428 = vmatprep.subr.mxu0 0.0
      %4429 = vmatpush1.msra.mxu0 0.0
      %4430 = vmatprep.subr.mxu0 0.0
      %4431 = vmatpush1.msra.mxu0 0.0
      %4432 = vmatprep.subr.mxu0 0.0
      %4433 = vmatpush1.msra.mxu0 0.0
      %4434 = vmatprep.subr.mxu0 0.0
      %4435 = vmatpush1.msra.mxu0 0.0
      %4436 = vmatprep.subr.mxu0 0.0
      %4437 = vmatpush1.msra.mxu0 0.0
      %4438 = vmatprep.subr.mxu0 0.0
      %4439 = vmatpush1.msra.mxu0 0.0
      %4440 = vmatprep.subr.mxu0 0.0
      %4441 = vmatpush1.msra.mxu0 0.0
      %4442 = vmatprep.subr.mxu0 0.0
      %4443 = vmatpush1.msra.mxu0 0.0
      %4444 = vmatprep.subr.mxu0 0.0
      %4445 = vmatpush1.msra.mxu0 0.0
      %4446 = vmatprep.subr.mxu0 0.0
      %4447 = vmatpush1.msra.mxu0 0.0
      %4448 = vmatprep.subr.mxu0 0.0
      %4449 = vmatpush1.msra.mxu0 0.0
      %4450 = vmatprep.subr.mxu0 0.0
      %4451 = vmatpush1.msra.mxu0 0.0
      %4452 = vmatprep.subr.mxu0 0.0
      %4453 = vmatpush1.msra.mxu0 0.0
      %4454 = vmatprep.subr.mxu0 0.0
      %4455 = vmatpush1.msra.mxu0 0.0
      %4456 = vmatprep.subr.mxu0 0.0
      %4457 = vmatpush1.msra.mxu0 0.0
      %4458 = vmatprep.subr.mxu0 0.0
      %4459 = vmatpush1.msra.mxu0 0.0
      %4460 = vmatprep.subr.mxu0 0.0
      %4461 = vmatpush1.msra.mxu0 0.0
      %4462 = vmatprep.subr.mxu0 0.0
      %4463 = vmatpush1.msra.mxu0 0.0
      %4464 = vmatprep.subr.mxu0 0.0
      %4465 = vmatpush1.msra.mxu0 0.0
      %4466 = vmatprep.subr.mxu0 0.0
      %4467 = vmatpush1.msra.mxu0 0.0
      %4468 = vmatprep.subr.mxu0 0.0
      %4469 = vmatpush1.msra.mxu0 0.0
      %4470 = vmatprep.mubr.f32.mxu0 0.0
      %4471 = vmatmul.mubr.f32.gmra.mrb[0].mxu0 %v346
      %v4472 = vpop.f32.mrb[0].mxu0
      %v4473 = vadd.f32 0.0, %v4472
      %v4474 = vpop.f32.mrb[0].mxu0
      %4475 = vmatprep.mubr.f32.mxu0 0.0
      %4476 = vmatmul.mubr.f32.gmra.mrb[0].mxu0 %v349
      %v4477 = vpop.f32.mrb[0].mxu0
      %v4478 = vadd.f32 0.0, %v4477
      %v4479 = vpop.f32.mrb[0].mxu0
      %4480 = vmatprep.mubr.f32.mxu0 0.0
      %4481 = vmatmul.mubr.f32.gmra.mrb[0].mxu0 %v352
      %v4482 = vpop.f32.mrb[0].mxu0
      %v4483 = vadd.f32 0.0, %v4482
      %v4484 = vpop.f32.mrb[0].mxu0
      %4485 = vdwg.mxu0
      %v4489 = vcombine.high %v4473, %v4473
      %v4491 = vunpack.c.l.s4 1966171168
      %v4492 = vunpack.c.0.s8 %v4491
      %v4493 = vlaneseq
      %v4494 = vshrl.u32 %v4493, 7
      %v4495 = vsub.s32 %v4492, %v4494
      %v4496 = vrot.slane %v4473, %v4495
      %v4498 = vunpack.c.l.s4 1966171168
      %v4499 = vunpack.c.0.s8 %v4498
      %v4500 = vlaneseq
      %v4501 = vshrl.u32 %v4500, 7
      %v4502 = vsub.s32 %v4499, %v4501
      %v4503 = vrot.slane %v4489, %v4502
      %v4504 = vcombine.high %v4496, %v4496
      %v4505 = vcombine.high %v4503, %v4503
      %v4507 = vunpack.c.l.s4 1966171168
      %v4508 = vunpack.c.0.s8 %v4507
      %v4509 = vlaneseq
      %v4510 = vshrl.u32 %v4509, 7
      %v4511 = vsub.s32 %v4508, %v4510
      %v4512 = vrot.slane %v4496, %v4511
      %v4514 = vunpack.c.l.s4 1966171168
      %v4515 = vunpack.c.0.s8 %v4514
      %v4516 = vlaneseq
      %v4517 = vshrl.u32 %v4516, 7
      %v4518 = vsub.s32 %v4515, %v4517
      %v4519 = vrot.slane %v4503, %v4518
      %v4521 = vunpack.c.l.s4 1966171168
      %v4522 = vunpack.c.0.s8 %v4521
      %v4523 = vlaneseq
      %v4524 = vshrl.u32 %v4523, 7
      %v4525 = vsub.s32 %v4522, %v4524
      %v4526 = vrot.slane %v4504, %v4525
      %v4528 = vunpack.c.l.s4 1966171168
      %v4529 = vunpack.c.0.s8 %v4528
      %v4530 = vlaneseq
      %v4531 = vshrl.u32 %v4530, 7
      %v4532 = vsub.s32 %v4529, %v4531
      %v4533 = vrot.slane %v4505, %v4532
      %v4534 = vcombine.high %v4512, %v4512
      %v4535 = vcombine.high %v4519, %v4519
      %v4536 = vcombine.high %v4526, %v4526
      %v4537 = vcombine.high %v4533, %v4533
      %v4538 = vcombine.high %v4478, %v4478
      %v4540 = vunpack.c.l.s4 1966171168
      %v4541 = vunpack.c.0.s8 %v4540
      %v4542 = vlaneseq
      %v4543 = vshrl.u32 %v4542, 7
      %v4544 = vsub.s32 %v4541, %v4543
      %v4545 = vrot.slane %v4478, %v4544
      %v4547 = vunpack.c.l.s4 1966171168
      %v4548 = vunpack.c.0.s8 %v4547
      %v4549 = vlaneseq
      %v4550 = vshrl.u32 %v4549, 7
      %v4551 = vsub.s32 %v4548, %v4550
      %v4552 = vrot.slane %v4538, %v4551
      %v4553 = vcombine.high %v4545, %v4545
      %v4554 = vcombine.high %v4552, %v4552
      %v4556 = vunpack.c.l.s4 1966171168
      %v4557 = vunpack.c.0.s8 %v4556
      %v4558 = vlaneseq
      %v4559 = vshrl.u32 %v4558, 7
      %v4560 = vsub.s32 %v4557, %v4559
      %v4561 = vrot.slane %v4545, %v4560
      %v4563 = vunpack.c.l.s4 1966171168
      %v4564 = vunpack.c.0.s8 %v4563
      %v4565 = vlaneseq
      %v4566 = vshrl.u32 %v4565, 7
      %v4567 = vsub.s32 %v4564, %v4566
      %v4568 = vrot.slane %v4552, %v4567
      %v4570 = vunpack.c.l.s4 1966171168
      %v4571 = vunpack.c.0.s8 %v4570
      %v4572 = vlaneseq
      %v4573 = vshrl.u32 %v4572, 7
      %v4574 = vsub.s32 %v4571, %v4573
      %v4575 = vrot.slane %v4553, %v4574
      %v4577 = vunpack.c.l.s4 1966171168
      %v4578 = vunpack.c.0.s8 %v4577
      %v4579 = vlaneseq
      %v4580 = vshrl.u32 %v4579, 7
      %v4581 = vsub.s32 %v4578, %v4580
      %v4582 = vrot.slane %v4554, %v4581
      %v4583 = vcombine.high %v4561, %v4561
      %v4584 = vcombine.high %v4568, %v4568
      %v4585 = vcombine.high %v4575, %v4575
      %v4586 = vcombine.high %v4582, %v4582
      %v4588 = vunpack.c.l.s4 1966171168
      %v4589 = vunpack.c.0.s8 %v4588
      %v4590 = vlaneseq
      %v4591 = vshrl.u32 %v4590, 7
      %v4592 = vsub.s32 %v4589, %v4591
      %v4593 = vrot.slane %v4483, %v4592
      %v4594 = vcombine.high %v4593, %v4593
      %v4596 = vunpack.c.l.s4 1966171168
      %v4597 = vunpack.c.0.s8 %v4596
      %v4598 = vlaneseq
      %v4599 = vshrl.u32 %v4598, 7
      %v4600 = vsub.s32 %v4597, %v4599
      %v4601 = vrot.slane %v4593, %v4600
      %v4603 = vunpack.c.l.s4 1966171168
      %v4604 = vunpack.c.0.s8 %v4603
      %v4605 = vlaneseq
      %v4606 = vshrl.u32 %v4605, 7
      %v4607 = vsub.s32 %v4604, %v4606
      %v4608 = vrot.slane %v4594, %v4607
      %4627 = vst.msk [vmem:[#allocation2 + $0xf] sm:$0x1] %vm575, %v4512
      %4628 = vst.msk [vmem:[#allocation2 + $0x1f] sm:$0x1] %vm575, %v4526
      %4629 = vst.msk [vmem:[#allocation2 + $0x2f] sm:$0x1] %vm575, %v4534
      %4630 = vst.msk [vmem:[#allocation2 + $0x3f] sm:$0x1] %vm575, %v4536
      %4631 = vst.msk [vmem:[#allocation2 + $0x4f] sm:$0x1] %vm575, %v4519
      %4632 = vst.msk [vmem:[#allocation2 + $0x5f] sm:$0x1] %vm575, %v4533
      %4633 = vst.msk [vmem:[#allocation2 + $0x6f] sm:$0x1] %vm575, %v4535
      %4634 = vst.msk [vmem:[#allocation2 + $0x7f] sm:$0x1] %vm575, %v4537
      %4635 = vst.msk [vmem:[#allocation2 + $0x8f] sm:$0x1] %vm575, %v4561
      %4636 = vst.msk [vmem:[#allocation2 + $0x9f] sm:$0x1] %vm575, %v4575
      %4637 = vst.msk [vmem:[#allocation2 + $0xaf] sm:$0x1] %vm575, %v4583
      %4638 = vst.msk [vmem:[#allocation2 + $0xbf] sm:$0x1] %vm575, %v4585
      %4639 = vst.msk [vmem:[#allocation2 + $0xcf] sm:$0x1] %vm575, %v4568
      %4640 = vst.msk [vmem:[#allocation2 + $0xdf] sm:$0x1] %vm575, %v4582
      %4641 = vst.msk [vmem:[#allocation2 + $0xef] sm:$0x1] %vm575, %v4584
      %4642 = vst.msk [vmem:[#allocation2 + $0xff] sm:$0x1] %vm575, %v4586
      %4643 = vst.msk [vmem:[#allocation2 + $0x10f] sm:$0x1] %vm575, %v4601
      %4644 = vst.msk [vmem:[#allocation2 + $0x11f] sm:$0x1] %vm575, %v4608
      %v4645 = vld [vmem:[#allocation2] sm:$0xff]
      %v4646 = vld [vmem:[#allocation2 + $0x8] sm:$0xff]
      %v4648 = vsel %vm344, %v254, 0
      %v4651 = vsel %vm344, %v255, 0
      %v4654 = vsel %vm344, %v256, 0
      %v4657 = vsel %vm344, %v257, 0
      %v4660 = vsel %vm344, %v258, 0
      %4662 = vmatprep.subr.mxu0 0.0
      %4663 = vmatpush1.msra.mxu0 %v4645
      %4664 = vmatprep.subr.mxu0 0.0
      %4665 = vmatpush1.msra.mxu0 %v4646
      %4666 = vmatprep.subr.mxu0 0.0
      %4667 = vmatpush1.msra.mxu0 0.0
      %4668 = vmatprep.subr.mxu0 0.0
      %4669 = vmatpush1.msra.mxu0 0.0
      %4670 = vmatprep.subr.mxu0 0.0
      %4671 = vmatpush1.msra.mxu0 0.0
      %4672 = vmatprep.subr.mxu0 0.0
      %4673 = vmatpush1.msra.mxu0 0.0
      %4674 = vmatprep.subr.mxu0 0.0
      %4675 = vmatpush1.msra.mxu0 0.0
      %4676 = vmatprep.subr.mxu0 0.0
      %4677 = vmatpush1.msra.mxu0 0.0
      %4678 = vmatprep.subr.mxu0 0.0
      %4679 = vmatpush1.msra.mxu0 0.0
      %4680 = vmatprep.subr.mxu0 0.0
      %4681 = vmatpush1.msra.mxu0 0.0
      %4682 = vmatprep.subr.mxu0 0.0
      %4683 = vmatpush1.msra.mxu0 0.0
      %4684 = vmatprep.subr.mxu0 0.0
      %4685 = vmatpush1.msra.mxu0 0.0
      %4686 = vmatprep.subr.mxu0 0.0
      %4687 = vmatpush1.msra.mxu0 0.0
      %4688 = vmatprep.subr.mxu0 0.0
      %4689 = vmatpush1.msra.mxu0 0.0
      %4690 = vmatprep.subr.mxu0 0.0
      %4691 = vmatpush1.msra.mxu0 0.0
      %4692 = vmatprep.subr.mxu0 0.0
      %4693 = vmatpush1.msra.mxu0 0.0
      %4694 = vmatprep.subr.mxu0 0.0
      %4695 = vmatpush1.msra.mxu0 0.0
      %4696 = vmatprep.subr.mxu0 0.0
      %4697 = vmatpush1.msra.mxu0 0.0
      %4698 = vmatprep.subr.mxu0 0.0
      %4699 = vmatpush1.msra.mxu0 0.0
      %4700 = vmatprep.subr.mxu0 0.0
      %4701 = vmatpush1.msra.mxu0 0.0
      %4702 = vmatprep.subr.mxu0 0.0
      %4703 = vmatpush1.msra.mxu0 0.0
      %4704 = vmatprep.subr.mxu0 0.0
      %4705 = vmatpush1.msra.mxu0 0.0
      %4706 = vmatprep.subr.mxu0 0.0
      %4707 = vmatpush1.msra.mxu0 0.0
      %4708 = vmatprep.subr.mxu0 0.0
      %4709 = vmatpush1.msra.mxu0 0.0
      %4710 = vmatprep.subr.mxu0 0.0
      %4711 = vmatpush1.msra.mxu0 0.0
      %4712 = vmatprep.subr.mxu0 0.0
      %4713 = vmatpush1.msra.mxu0 0.0
      %4714 = vmatprep.subr.mxu0 0.0
      %4715 = vmatpush1.msra.mxu0 0.0
      %4716 = vmatprep.subr.mxu0 0.0
      %4717 = vmatpush1.msra.mxu0 0.0
      %4718 = vmatprep.subr.mxu0 0.0
      %4719 = vmatpush1.msra.mxu0 0.0
      %4720 = vmatprep.subr.mxu0 0.0
      %4721 = vmatpush1.msra.mxu0 0.0
      %4722 = vmatprep.subr.mxu0 0.0
      %4723 = vmatpush1.msra.mxu0 0.0
      %4724 = vmatprep.subr.mxu0 0.0
      %4725 = vmatpush1.msra.mxu0 0.0
      %4726 = vmatprep.mubr.f32.mxu0 0.0
      %4727 = vmatmul.mubr.f32.gmra.mrb[0].mxu0 %v4648
      %v4728 = vpop.f32.mrb[0].mxu0
      %v4729 = vadd.f32 0.0, %v4728
      %v4730 = vpop.f32.mrb[0].mxu0
      %4731 = vmatprep.mubr.f32.mxu0 0.0
      %4732 = vmatmul.mubr.f32.gmra.mrb[0].mxu0 %v4651
      %v4733 = vpop.f32.mrb[0].mxu0
      %v4734 = vadd.f32 0.0, %v4733
      %v4735 = vpop.f32.mrb[0].mxu0
      %4736 = vmatprep.mubr.f32.mxu0 0.0
      %4737 = vmatmul.mubr.f32.gmra.mrb[0].mxu0 %v4654
      %v4738 = vpop.f32.mrb[0].mxu0
      %v4739 = vadd.f32 0.0, %v4738
      %v4740 = vpop.f32.mrb[0].mxu0
      %4741 = vmatprep.mubr.f32.mxu0 0.0
      %4742 = vmatmul.mubr.f32.gmra.mrb[0].mxu0 %v4657
      %v4743 = vpop.f32.mrb[0].mxu0
      %v4744 = vadd.f32 0.0, %v4743
      %v4745 = vpop.f32.mrb[0].mxu0
      %4746 = vmatprep.mubr.f32.mxu0 0.0
      %4747 = vmatmul.mubr.f32.gmra.mrb[0].mxu0 %v4660
      %v4748 = vpop.f32.mrb[0].mxu0
      %v4749 = vadd.f32 0.0, %v4748
      %v4750 = vpop.f32.mrb[0].mxu0
      %4751 = vdwg.mxu0
      %v4752 = vpack.c.bf16 %v4734, %v4729
      %v4753 = vpack.c.bf16 %v4744, %v4739
      %v4754 = vpack.c.bf16 %v4749, %v4749
      %vm4755 = vcmask 64512
      %4756 = vst.msk [vmem:[#allocation3] sm:$0xff] %vm4755, %v4752
      %4757 = vst.msk [vmem:[#allocation3 + $0x8] sm:$0xff] %vm4755, %v4753
      %vm4758 = vsmask.f32 7424
      %v4760 = vshrl.u32 %v4752, 16
      %v4762 = vshll.u32 %v4752, 16
      %v4764 = vrot.slane %v4762, 1
      %v4765 = vor.u32 %v4760, %v4764
      %v4767 = vshll.u32 %v4753, 16
      %v4769 = vrot.slane %v4767, 1
      %v4770 = vsel %vm4758, %v4765, %v4769
      %v4771 = vshrl.u32 %v4753, 16
      %v4773 = vor.u32 %v4771, %v4769
      %v4775 = vshll.u32 %v4754, 16
      %v4777 = vrot.slane %v4775, 1
      %v4778 = vsel %vm4758, %v4773, %v4777
      %4779 = vrot.lane.b32.xlu0 %v4770, 8
      %v4780 = vpop.permute.xlu0 %4779
      %4781 = vrot.lane.b32.xlu0 %v4778, 8
      %v4782 = vpop.permute.xlu0 %4781
      %vm4785 = vcmask 130112
      %4786 = vst.msk [vmem:[#allocation3] sm:$0xff] %vm4785, %v4780
      %4787 = vst.msk [vmem:[#allocation3 + $0x8] sm:$0xff] %vm4785, %v4782
      %vm4791 = vcmask 1046528
      %v4792 = vrot.slane %v4752, 1
      %v4793 = vrot.slane %v4753, 1
      %v4794 = vsel %vm4791, %v4792, %v4793
      %v4795 = vrot.slane %v4754, 1
      %v4796 = vsel %vm4791, %v4793, %v4795
      %4797 = vrot.lane.b32.xlu0 %v4794, 16
      %v4798 = vpop.permute.xlu0 %4797
      %4799 = vrot.lane.b32.xlu0 %v4796, 16
      %v4800 = vpop.permute.xlu0 %4799
      %vm4803 = vcmask 195712
      %4804 = vst.msk [vmem:[#allocation3] sm:$0xff] %vm4803, %v4798
      %4805 = vst.msk [vmem:[#allocation3 + $0x8] sm:$0xff] %vm4803, %v4800
      %s4806 = scalar_lea.vmem [#allocation2], 16
      %v4807 = vld [vmem:[%s4806] sm:$0xff]
      %v4808 = vld [vmem:[%s4806 + $0x8] sm:$0xff]
      %4809 = vmatprep.subr.mxu0 0.0
      %4810 = vmatpush1.msra.mxu0 %v4807
      %4811 = vmatprep.subr.mxu0 0.0
      %4812 = vmatpush1.msra.mxu0 %v4808
      %4813 = vmatprep.subr.mxu0 0.0
      %4814 = vmatpush1.msra.mxu0 0.0
      %4815 = vmatprep.subr.mxu0 0.0
      %4816 = vmatpush1.msra.mxu0 0.0
      %4817 = vmatprep.subr.mxu0 0.0
      %4818 = vmatpush1.msra.mxu0 0.0
      %4819 = vmatprep.subr.mxu0 0.0
      %4820 = vmatpush1.msra.mxu0 0.0
      %4821 = vmatprep.subr.mxu0 0.0
      %4822 = vmatpush1.msra.mxu0 0.0
      %4823 = vmatprep.subr.mxu0 0.0
      %4824 = vmatpush1.msra.mxu0 0.0
      %4825 = vmatprep.subr.mxu0 0.0
      %4826 = vmatpush1.msra.mxu0 0.0
      %4827 = vmatprep.subr.mxu0 0.0
      %4828 = vmatpush1.msra.mxu0 0.0
      %4829 = vmatprep.subr.mxu0 0.0
      %4830 = vmatpush1.msra.mxu0 0.0
      %4831 = vmatprep.subr.mxu0 0.0
      %4832 = vmatpush1.msra.mxu0 0.0
      %4833 = vmatprep.subr.mxu0 0.0
      %4834 = vmatpush1.msra.mxu0 0.0
      %4835 = vmatprep.subr.mxu0 0.0
      %4836 = vmatpush1.msra.mxu0 0.0
      %4837 = vmatprep.subr.mxu0 0.0
      %4838 = vmatpush1.msra.mxu0 0.0
      %4839 = vmatprep.subr.mxu0 0.0
      %4840 = vmatpush1.msra.mxu0 0.0
      %4841 = vmatprep.subr.mxu0 0.0
      %4842 = vmatpush1.msra.mxu0 0.0
      %4843 = vmatprep.subr.mxu0 0.0
      %4844 = vmatpush1.msra.mxu0 0.0
      %4845 = vmatprep.subr.mxu0 0.0
      %4846 = vmatpush1.msra.mxu0 0.0
      %4847 = vmatprep.subr.mxu0 0.0
      %4848 = vmatpush1.msra.mxu0 0.0
      %4849 = vmatprep.subr.mxu0 0.0
      %4850 = vmatpush1.msra.mxu0 0.0
      %4851 = vmatprep.subr.mxu0 0.0
      %4852 = vmatpush1.msra.mxu0 0.0
      %4853 = vmatprep.subr.mxu0 0.0
      %4854 = vmatpush1.msra.mxu0 0.0
      %4855 = vmatprep.subr.mxu0 0.0
      %4856 = vmatpush1.msra.mxu0 0.0
      %4857 = vmatprep.subr.mxu0 0.0
      %4858 = vmatpush1.msra.mxu0 0.0
      %4859 = vmatprep.subr.mxu0 0.0
      %4860 = vmatpush1.msra.mxu0 0.0
      %4861 = vmatprep.subr.mxu0 0.0
      %4862 = vmatpush1.msra.mxu0 0.0
      %4863 = vmatprep.subr.mxu0 0.0
      %4864 = vmatpush1.msra.mxu0 0.0
      %4865 = vmatprep.subr.mxu0 0.0
      %4866 = vmatpush1.msra.mxu0 0.0
      %4867 = vmatprep.subr.mxu0 0.0
      %4868 = vmatpush1.msra.mxu0 0.0
      %4869 = vmatprep.subr.mxu0 0.0
      %4870 = vmatpush1.msra.mxu0 0.0
      %4871 = vmatprep.subr.mxu0 0.0
      %4872 = vmatpush1.msra.mxu0 0.0
      %4873 = vmatprep.mubr.f32.mxu0 0.0
      %4874 = vmatmul.mubr.f32.gmra.mrb[0].mxu0 %v4648
      %v4875 = vpop.f32.mrb[0].mxu0
      %v4876 = vadd.f32 0.0, %v4875
      %v4877 = vpop.f32.mrb[0].mxu0
      %4878 = vmatprep.mubr.f32.mxu0 0.0
      %4879 = vmatmul.mubr.f32.gmra.mrb[0].mxu0 %v4651
      %v4880 = vpop.f32.mrb[0].mxu0
      %v4881 = vadd.f32 0.0, %v4880
      %v4882 = vpop.f32.mrb[0].mxu0
      %4883 = vmatprep.mubr.f32.mxu0 0.0
      %4884 = vmatmul.mubr.f32.gmra.mrb[0].mxu0 %v4654
      %v4885 = vpop.f32.mrb[0].mxu0
      %v4886 = vadd.f32 0.0, %v4885
      %v4887 = vpop.f32.mrb[0].mxu0
      %4888 = vmatprep.mubr.f32.mxu0 0.0
      %4889 = vmatmul.mubr.f32.gmra.mrb[0].mxu0 %v4657
      %v4890 = vpop.f32.mrb[0].mxu0
      %v4891 = vadd.f32 0.0, %v4890
      %v4892 = vpop.f32.mrb[0].mxu0
      %4893 = vmatprep.mubr.f32.mxu0 0.0
      %4894 = vmatmul.mubr.f32.gmra.mrb[0].mxu0 %v4660
      %v4895 = vpop.f32.mrb[0].mxu0
      %v4896 = vadd.f32 0.0, %v4895
      %v4897 = vpop.f32.mrb[0].mxu0
      %4898 = vdwg.mxu0
      %v4899 = vpack.c.bf16 %v4881, %v4876
      %v4900 = vpack.c.bf16 %v4891, %v4886
      %v4901 = vpack.c.bf16 %v4896, %v4896
      %s4902 = scalar_lea.vmem [#allocation3], 16
      %4903 = vst.msk [vmem:[%s4902] sm:$0xff] %vm4755, %v4899
      %4904 = vst.msk [vmem:[%s4902 + $0x8] sm:$0xff] %vm4755, %v4900
      %v4906 = vshrl.u32 %v4899, 16
      %v4908 = vshll.u32 %v4899, 16
      %v4910 = vrot.slane %v4908, 1
      %v4911 = vor.u32 %v4906, %v4910
      %v4913 = vshll.u32 %v4900, 16
      %v4915 = vrot.slane %v4913, 1
      %v4916 = vsel %vm4758, %v4911, %v4915
      %v4917 = vshrl.u32 %v4900, 16
      %v4919 = vor.u32 %v4917, %v4915
      %v4921 = vshll.u32 %v4901, 16
      %v4923 = vrot.slane %v4921, 1
      %v4924 = vsel %vm4758, %v4919, %v4923
      %4925 = vrot.lane.b32.xlu0 %v4916, 8
      %v4926 = vpop.permute.xlu0 %4925
      %4927 = vrot.lane.b32.xlu0 %v4924, 8
      %v4928 = vpop.permute.xlu0 %4927
      %4931 = vst.msk [vmem:[%s4902] sm:$0xff] %vm4785, %v4926
      %4932 = vst.msk [vmem:[%s4902 + $0x8] sm:$0xff] %vm4785, %v4928
      %v4936 = vrot.slane %v4899, 1
      %v4937 = vrot.slane %v4900, 1
      %v4938 = vsel %vm4791, %v4936, %v4937
      %v4939 = vrot.slane %v4901, 1
      %v4940 = vsel %vm4791, %v4937, %v4939
      %4941 = vrot.lane.b32.xlu0 %v4938, 16
      %v4942 = vpop.permute.xlu0 %4941
      %4943 = vrot.lane.b32.xlu0 %v4940, 16
      %v4944 = vpop.permute.xlu0 %4943
      %4947 = vst.msk [vmem:[%s4902] sm:$0xff] %vm4803, %v4942
      %4948 = vst.msk [vmem:[%s4902 + $0x8] sm:$0xff] %vm4803, %v4944
      %s4949 = scalar_lea.vmem [#allocation2], 32
      %v4950 = vld [vmem:[%s4949] sm:$0xff]
      %v4951 = vld [vmem:[%s4949 + $0x8] sm:$0xff]
      %4952 = vmatprep.subr.mxu0 0.0
      %4953 = vmatpush1.msra.mxu0 %v4950
      %4954 = vmatprep.subr.mxu0 0.0
      %4955 = vmatpush1.msra.mxu0 %v4951
      %4956 = vmatprep.subr.mxu0 0.0
      %4957 = vmatpush1.msra.mxu0 0.0
      %4958 = vmatprep.subr.mxu0 0.0
      %4959 = vmatpush1.msra.mxu0 0.0
      %4960 = vmatprep.subr.mxu0 0.0
      %4961 = vmatpush1.msra.mxu0 0.0
      %4962 = vmatprep.subr.mxu0 0.0
      %4963 = vmatpush1.msra.mxu0 0.0
      %4964 = vmatprep.subr.mxu0 0.0
      %4965 = vmatpush1.msra.mxu0 0.0
      %4966 = vmatprep.subr.mxu0 0.0
      %4967 = vmatpush1.msra.mxu0 0.0
      %4968 = vmatprep.subr.mxu0 0.0
      %4969 = vmatpush1.msra.mxu0 0.0
      %4970 = vmatprep.subr.mxu0 0.0
      %4971 = vmatpush1.msra.mxu0 0.0
      %4972 = vmatprep.subr.mxu0 0.0
      %4973 = vmatpush1.msra.mxu0 0.0
      %4974 = vmatprep.subr.mxu0 0.0
      %4975 = vmatpush1.msra.mxu0 0.0
      %4976 = vmatprep.subr.mxu0 0.0
      %4977 = vmatpush1.msra.mxu0 0.0
      %4978 = vmatprep.subr.mxu0 0.0
      %4979 = vmatpush1.msra.mxu0 0.0
      %4980 = vmatprep.subr.mxu0 0.0
      %4981 = vmatpush1.msra.mxu0 0.0
      %4982 = vmatprep.subr.mxu0 0.0
      %4983 = vmatpush1.msra.mxu0 0.0
      %4984 = vmatprep.subr.mxu0 0.0
      %4985 = vmatpush1.msra.mxu0 0.0
      %4986 = vmatprep.subr.mxu0 0.0
      %4987 = vmatpush1.msra.mxu0 0.0
      %4988 = vmatprep.subr.mxu0 0.0
      %4989 = vmatpush1.msra.mxu0 0.0
      %4990 = vmatprep.subr.mxu0 0.0
      %4991 = vmatpush1.msra.mxu0 0.0
      %4992 = vmatprep.subr.mxu0 0.0
      %4993 = vmatpush1.msra.mxu0 0.0
      %4994 = vmatprep.subr.mxu0 0.0
      %4995 = vmatpush1.msra.mxu0 0.0
      %4996 = vmatprep.subr.mxu0 0.0
      %4997 = vmatpush1.msra.mxu0 0.0
      %4998 = vmatprep.subr.mxu0 0.0
      %4999 = vmatpush1.msra.mxu0 0.0
      %5000 = vmatprep.subr.mxu0 0.0
      %5001 = vmatpush1.msra.mxu0 0.0
      %5002 = vmatprep.subr.mxu0 0.0
      %5003 = vmatpush1.msra.mxu0 0.0
      %5004 = vmatprep.subr.mxu0 0.0
      %5005 = vmatpush1.msra.mxu0 0.0
      %5006 = vmatprep.subr.mxu0 0.0
      %5007 = vmatpush1.msra.mxu0 0.0
      %5008 = vmatprep.subr.mxu0 0.0
      %5009 = vmatpush1.msra.mxu0 0.0
      %5010 = vmatprep.subr.mxu0 0.0
      %5011 = vmatpush1.msra.mxu0 0.0
      %5012 = vmatprep.subr.mxu0 0.0
      %5013 = vmatpush1.msra.mxu0 0.0
      %5014 = vmatprep.subr.mxu0 0.0
      %5015 = vmatpush1.msra.mxu0 0.0
      %5016 = vmatprep.mubr.f32.mxu0 0.0
      %5017 = vmatmul.mubr.f32.gmra.mrb[0].mxu0 %v4648
      %v5018 = vpop.f32.mrb[0].mxu0
      %v5019 = vadd.f32 0.0, %v5018
      %v5020 = vpop.f32.mrb[0].mxu0
      %5021 = vmatprep.mubr.f32.mxu0 0.0
      %5022 = vmatmul.mubr.f32.gmra.mrb[0].mxu0 %v4651
      %v5023 = vpop.f32.mrb[0].mxu0
      %v5024 = vadd.f32 0.0, %v5023
      %v5025 = vpop.f32.mrb[0].mxu0
      %5026 = vmatprep.mubr.f32.mxu0 0.0
      %5027 = vmatmul.mubr.f32.gmra.mrb[0].mxu0 %v4654
      %v5028 = vpop.f32.mrb[0].mxu0
      %v5029 = vadd.f32 0.0, %v5028
      %v5030 = vpop.f32.mrb[0].mxu0
      %5031 = vmatprep.mubr.f32.mxu0 0.0
      %5032 = vmatmul.mubr.f32.gmra.mrb[0].mxu0 %v4657
      %v5033 = vpop.f32.mrb[0].mxu0
      %v5034 = vadd.f32 0.0, %v5033
      %v5035 = vpop.f32.mrb[0].mxu0
      %5036 = vmatprep.mubr.f32.mxu0 0.0
      %5037 = vmatmul.mubr.f32.gmra.mrb[0].mxu0 %v4660
      %v5038 = vpop.f32.mrb[0].mxu0
      %v5039 = vadd.f32 0.0, %v5038
      %v5040 = vpop.f32.mrb[0].mxu0
      %5041 = vdwg.mxu0
      %v5042 = vpack.c.bf16 %v5024, %v5019
      %v5043 = vpack.c.bf16 %v5034, %v5029
      %v5044 = vpack.c.bf16 %v5039, %v5039
      %s5045 = scalar_lea.vmem [#allocation3], 32
      %5046 = vst.msk [vmem:[%s5045] sm:$0xff] %vm4755, %v5042
      %5047 = vst.msk [vmem:[%s5045 + $0x8] sm:$0xff] %vm4755, %v5043
      %v5049 = vshrl.u32 %v5042, 16
      %v5051 = vshll.u32 %v5042, 16
      %v5053 = vrot.slane %v5051, 1
      %v5054 = vor.u32 %v5049, %v5053
      %v5056 = vshll.u32 %v5043, 16
      %v5058 = vrot.slane %v5056, 1
      %v5059 = vsel %vm4758, %v5054, %v5058
      %v5060 = vshrl.u32 %v5043, 16
      %v5062 = vor.u32 %v5060, %v5058
      %v5064 = vshll.u32 %v5044, 16
      %v5066 = vrot.slane %v5064, 1
      %v5067 = vsel %vm4758, %v5062, %v5066
      %5068 = vrot.lane.b32.xlu0 %v5059, 8
      %v5069 = vpop.permute.xlu0 %5068
      %5070 = vrot.lane.b32.xlu0 %v5067, 8
      %v5071 = vpop.permute.xlu0 %5070
      %5074 = vst.msk [vmem:[%s5045] sm:$0xff] %vm4785, %v5069
      %5075 = vst.msk [vmem:[%s5045 + $0x8] sm:$0xff] %vm4785, %v5071
      %v5079 = vrot.slane %v5042, 1
      %v5080 = vrot.slane %v5043, 1
      %v5081 = vsel %vm4791, %v5079, %v5080
      %v5082 = vrot.slane %v5044, 1
      %v5083 = vsel %vm4791, %v5080, %v5082
      %5084 = vrot.lane.b32.xlu0 %v5081, 16
      %v5085 = vpop.permute.xlu0 %5084
      %5086 = vrot.lane.b32.xlu0 %v5083, 16
      %v5087 = vpop.permute.xlu0 %5086
      %5090 = vst.msk [vmem:[%s5045] sm:$0xff] %vm4803, %v5085
      %5091 = vst.msk [vmem:[%s5045 + $0x8] sm:$0xff] %vm4803, %v5087
      %s5092 = scalar_lea.vmem [#allocation2], 48
      %v5093 = vld [vmem:[%s5092] sm:$0xff]
      %v5094 = vld [vmem:[%s5092 + $0x8] sm:$0xff]
      %5095 = vmatprep.subr.mxu0 0.0
      %5096 = vmatpush1.msra.mxu0 %v5093
      %5097 = vmatprep.subr.mxu0 0.0
      %5098 = vmatpush1.msra.mxu0 %v5094
      %5099 = vmatprep.subr.mxu0 0.0
      %5100 = vmatpush1.msra.mxu0 0.0
      %5101 = vmatprep.subr.mxu0 0.0
      %5102 = vmatpush1.msra.mxu0 0.0
      %5103 = vmatprep.subr.mxu0 0.0
      %5104 = vmatpush1.msra.mxu0 0.0
      %5105 = vmatprep.subr.mxu0 0.0
      %5106 = vmatpush1.msra.mxu0 0.0
      %5107 = vmatprep.subr.mxu0 0.0
      %5108 = vmatpush1.msra.mxu0 0.0
      %5109 = vmatprep.subr.mxu0 0.0
      %5110 = vmatpush1.msra.mxu0 0.0
      %5111 = vmatprep.subr.mxu0 0.0
      %5112 = vmatpush1.msra.mxu0 0.0
      %5113 = vmatprep.subr.mxu0 0.0
      %5114 = vmatpush1.msra.mxu0 0.0
      %5115 = vmatprep.subr.mxu0 0.0
      %5116 = vmatpush1.msra.mxu0 0.0
      %5117 = vmatprep.subr.mxu0 0.0
      %5118 = vmatpush1.msra.mxu0 0.0
      %5119 = vmatprep.subr.mxu0 0.0
      %5120 = vmatpush1.msra.mxu0 0.0
      %5121 = vmatprep.subr.mxu0 0.0
      %5122 = vmatpush1.msra.mxu0 0.0
      %5123 = vmatprep.subr.mxu0 0.0
      %5124 = vmatpush1.msra.mxu0 0.0
      %5125 = vmatprep.subr.mxu0 0.0
      %5126 = vmatpush1.msra.mxu0 0.0
      %5127 = vmatprep.subr.mxu0 0.0
      %5128 = vmatpush1.msra.mxu0 0.0
      %5129 = vmatprep.subr.mxu0 0.0
      %5130 = vmatpush1.msra.mxu0 0.0
      %5131 = vmatprep.subr.mxu0 0.0
      %5132 = vmatpush1.msra.mxu0 0.0
      %5133 = vmatprep.subr.mxu0 0.0
      %5134 = vmatpush1.msra.mxu0 0.0
      %5135 = vmatprep.subr.mxu0 0.0
      %5136 = vmatpush1.msra.mxu0 0.0
      %5137 = vmatprep.subr.mxu0 0.0
      %5138 = vmatpush1.msra.mxu0 0.0
      %5139 = vmatprep.subr.mxu0 0.0
      %5140 = vmatpush1.msra.mxu0 0.0
      %5141 = vmatprep.subr.mxu0 0.0
      %5142 = vmatpush1.msra.mxu0 0.0
      %5143 = vmatprep.subr.mxu0 0.0
      %5144 = vmatpush1.msra.mxu0 0.0
      %5145 = vmatprep.subr.mxu0 0.0
      %5146 = vmatpush1.msra.mxu0 0.0
      %5147 = vmatprep.subr.mxu0 0.0
      %5148 = vmatpush1.msra.mxu0 0.0
      %5149 = vmatprep.subr.mxu0 0.0
      %5150 = vmatpush1.msra.mxu0 0.0
      %5151 = vmatprep.subr.mxu0 0.0
      %5152 = vmatpush1.msra.mxu0 0.0
      %5153 = vmatprep.subr.mxu0 0.0
      %5154 = vmatpush1.msra.mxu0 0.0
      %5155 = vmatprep.subr.mxu0 0.0
      %5156 = vmatpush1.msra.mxu0 0.0
      %5157 = vmatprep.subr.mxu0 0.0
      %5158 = vmatpush1.msra.mxu0 0.0
      %5159 = vmatprep.mubr.f32.mxu0 0.0
      %5160 = vmatmul.mubr.f32.gmra.mrb[0].mxu0 %v4648
      %v5161 = vpop.f32.mrb[0].mxu0
      %v5162 = vadd.f32 0.0, %v5161
      %v5163 = vpop.f32.mrb[0].mxu0
      %5164 = vmatprep.mubr.f32.mxu0 0.0
      %5165 = vmatmul.mubr.f32.gmra.mrb[0].mxu0 %v4651
      %v5166 = vpop.f32.mrb[0].mxu0
      %v5167 = vadd.f32 0.0, %v5166
      %v5168 = vpop.f32.mrb[0].mxu0
      %5169 = vmatprep.mubr.f32.mxu0 0.0
      %5170 = vmatmul.mubr.f32.gmra.mrb[0].mxu0 %v4654
      %v5171 = vpop.f32.mrb[0].mxu0
      %v5172 = vadd.f32 0.0, %v5171
      %v5173 = vpop.f32.mrb[0].mxu0
      %5174 = vmatprep.mubr.f32.mxu0 0.0
      %5175 = vmatmul.mubr.f32.gmra.mrb[0].mxu0 %v4657
      %v5176 = vpop.f32.mrb[0].mxu0
      %v5177 = vadd.f32 0.0, %v5176
      %v5178 = vpop.f32.mrb[0].mxu0
      %5179 = vmatprep.mubr.f32.mxu0 0.0
      %5180 = vmatmul.mubr.f32.gmra.mrb[0].mxu0 %v4660
      %v5181 = vpop.f32.mrb[0].mxu0
      %v5182 = vadd.f32 0.0, %v5181
      %v5183 = vpop.f32.mrb[0].mxu0
      %5184 = vdwg.mxu0
      %v5185 = vpack.c.bf16 %v5167, %v5162
      %v5186 = vpack.c.bf16 %v5177, %v5172
      %v5187 = vpack.c.bf16 %v5182, %v5182
      %s5188 = scalar_lea.vmem [#allocation3], 48
      %5189 = vst.msk [vmem:[%s5188] sm:$0xff] %vm4755, %v5185
      %5190 = vst.msk [vmem:[%s5188 + $0x8] sm:$0xff] %vm4755, %v5186
      %v5192 = vshrl.u32 %v5185, 16
      %v5194 = vshll.u32 %v5185, 16
      %v5196 = vrot.slane %v5194, 1
      %v5197 = vor.u32 %v5192, %v5196
      %v5199 = vshll.u32 %v5186, 16
      %v5201 = vrot.slane %v5199, 1
      %v5202 = vsel %vm4758, %v5197, %v5201
      %v5203 = vshrl.u32 %v5186, 16
      %v5205 = vor.u32 %v5203, %v5201
      %v5207 = vshll.u32 %v5187, 16
      %v5209 = vrot.slane %v5207, 1
      %v5210 = vsel %vm4758, %v5205, %v5209
      %5211 = vrot.lane.b32.xlu0 %v5202, 8
      %v5212 = vpop.permute.xlu0 %5211
      %5213 = vrot.lane.b32.xlu0 %v5210, 8
      %v5214 = vpop.permute.xlu0 %5213
      %5217 = vst.msk [vmem:[%s5188] sm:$0xff] %vm4785, %v5212
      %5218 = vst.msk [vmem:[%s5188 + $0x8] sm:$0xff] %vm4785, %v5214
      %v5222 = vrot.slane %v5185, 1
      %v5223 = vrot.slane %v5186, 1
      %v5224 = vsel %vm4791, %v5222, %v5223
      %v5225 = vrot.slane %v5187, 1
      %v5226 = vsel %vm4791, %v5223, %v5225
      %5227 = vrot.lane.b32.xlu0 %v5224, 16
      %v5228 = vpop.permute.xlu0 %5227
      %5229 = vrot.lane.b32.xlu0 %v5226, 16
      %v5230 = vpop.permute.xlu0 %5229
      %5233 = vst.msk [vmem:[%s5188] sm:$0xff] %vm4803, %v5228
      %5234 = vst.msk [vmem:[%s5188 + $0x8] sm:$0xff] %vm4803, %v5230
      %s5235 = scalar_lea.vmem [#allocation2], 64
      %v5236 = vld [vmem:[%s5235] sm:$0xff]
      %v5237 = vld [vmem:[%s5235 + $0x8] sm:$0xff]
      %5238 = vmatprep.subr.mxu0 0.0
      %5239 = vmatpush1.msra.mxu0 %v5236
      %5240 = vmatprep.subr.mxu0 0.0
      %5241 = vmatpush1.msra.mxu0 %v5237
      %5242 = vmatprep.subr.mxu0 0.0
      %5243 = vmatpush1.msra.mxu0 0.0
      %5244 = vmatprep.subr.mxu0 0.0
      %5245 = vmatpush1.msra.mxu0 0.0
      %5246 = vmatprep.subr.mxu0 0.0
      %5247 = vmatpush1.msra.mxu0 0.0
      %5248 = vmatprep.subr.mxu0 0.0
      %5249 = vmatpush1.msra.mxu0 0.0
      %5250 = vmatprep.subr.mxu0 0.0
      %5251 = vmatpush1.msra.mxu0 0.0
      %5252 = vmatprep.subr.mxu0 0.0
      %5253 = vmatpush1.msra.mxu0 0.0
      %5254 = vmatprep.subr.mxu0 0.0
      %5255 = vmatpush1.msra.mxu0 0.0
      %5256 = vmatprep.subr.mxu0 0.0
      %5257 = vmatpush1.msra.mxu0 0.0
      %5258 = vmatprep.subr.mxu0 0.0
      %5259 = vmatpush1.msra.mxu0 0.0
      %5260 = vmatprep.subr.mxu0 0.0
      %5261 = vmatpush1.msra.mxu0 0.0
      %5262 = vmatprep.subr.mxu0 0.0
      %5263 = vmatpush1.msra.mxu0 0.0
      %5264 = vmatprep.subr.mxu0 0.0
      %5265 = vmatpush1.msra.mxu0 0.0
      %5266 = vmatprep.subr.mxu0 0.0
      %5267 = vmatpush1.msra.mxu0 0.0
      %5268 = vmatprep.subr.mxu0 0.0
      %5269 = vmatpush1.msra.mxu0 0.0
      %5270 = vmatprep.subr.mxu0 0.0
      %5271 = vmatpush1.msra.mxu0 0.0
      %5272 = vmatprep.subr.mxu0 0.0
      %5273 = vmatpush1.msra.mxu0 0.0
      %5274 = vmatprep.subr.mxu0 0.0
      %5275 = vmatpush1.msra.mxu0 0.0
      %5276 = vmatprep.subr.mxu0 0.0
      %5277 = vmatpush1.msra.mxu0 0.0
      %5278 = vmatprep.subr.mxu0 0.0
      %5279 = vmatpush1.msra.mxu0 0.0
      %5280 = vmatprep.subr.mxu0 0.0
      %5281 = vmatpush1.msra.mxu0 0.0
      %5282 = vmatprep.subr.mxu0 0.0
      %5283 = vmatpush1.msra.mxu0 0.0
      %5284 = vmatprep.subr.mxu0 0.0
      %5285 = vmatpush1.msra.mxu0 0.0
      %5286 = vmatprep.subr.mxu0 0.0
      %5287 = vmatpush1.msra.mxu0 0.0
      %5288 = vmatprep.subr.mxu0 0.0
      %5289 = vmatpush1.msra.mxu0 0.0
      %5290 = vmatprep.subr.mxu0 0.0
      %5291 = vmatpush1.msra.mxu0 0.0
      %5292 = vmatprep.subr.mxu0 0.0
      %5293 = vmatpush1.msra.mxu0 0.0
      %5294 = vmatprep.subr.mxu0 0.0
      %5295 = vmatpush1.msra.mxu0 0.0
      %5296 = vmatprep.subr.mxu0 0.0
      %5297 = vmatpush1.msra.mxu0 0.0
      %5298 = vmatprep.subr.mxu0 0.0
      %5299 = vmatpush1.msra.mxu0 0.0
      %5300 = vmatprep.subr.mxu0 0.0
      %5301 = vmatpush1.msra.mxu0 0.0
      %5302 = vmatprep.mubr.f32.mxu0 0.0
      %5303 = vmatmul.mubr.f32.gmra.mrb[0].mxu0 %v4648
      %v5304 = vpop.f32.mrb[0].mxu0
      %v5305 = vadd.f32 0.0, %v5304
      %v5306 = vpop.f32.mrb[0].mxu0
      %5307 = vmatprep.mubr.f32.mxu0 0.0
      %5308 = vmatmul.mubr.f32.gmra.mrb[0].mxu0 %v4651
      %v5309 = vpop.f32.mrb[0].mxu0
      %v5310 = vadd.f32 0.0, %v5309
      %v5311 = vpop.f32.mrb[0].mxu0
      %5312 = vmatprep.mubr.f32.mxu0 0.0
      %5313 = vmatmul.mubr.f32.gmra.mrb[0].mxu0 %v4654
      %v5314 = vpop.f32.mrb[0].mxu0
      %v5315 = vadd.f32 0.0, %v5314
      %v5316 = vpop.f32.mrb[0].mxu0
      %5317 = vmatprep.mubr.f32.mxu0 0.0
      %5318 = vmatmul.mubr.f32.gmra.mrb[0].mxu0 %v4657
      %v5319 = vpop.f32.mrb[0].mxu0
      %v5320 = vadd.f32 0.0, %v5319
      %v5321 = vpop.f32.mrb[0].mxu0
      %5322 = vmatprep.mubr.f32.mxu0 0.0
      %5323 = vmatmul.mubr.f32.gmra.mrb[0].mxu0 %v4660
      %v5324 = vpop.f32.mrb[0].mxu0
      %v5325 = vadd.f32 0.0, %v5324
      %v5326 = vpop.f32.mrb[0].mxu0
      %5327 = vdwg.mxu0
      %v5328 = vpack.c.bf16 %v5310, %v5305
      %v5329 = vpack.c.bf16 %v5320, %v5315
      %v5330 = vpack.c.bf16 %v5325, %v5325
      %s5331 = scalar_lea.vmem [#allocation3], 64
      %5332 = vst.msk [vmem:[%s5331] sm:$0xff] %vm4755, %v5328
      %5333 = vst.msk [vmem:[%s5331 + $0x8] sm:$0xff] %vm4755, %v5329
      %v5335 = vshrl.u32 %v5328, 16
      %v5337 = vshll.u32 %v5328, 16
      %v5339 = vrot.slane %v5337, 1
      %v5340 = vor.u32 %v5335, %v5339
      %v5342 = vshll.u32 %v5329, 16
      %v5344 = vrot.slane %v5342, 1
      %v5345 = vsel %vm4758, %v5340, %v5344
      %v5346 = vshrl.u32 %v5329, 16
      %v5348 = vor.u32 %v5346, %v5344
      %v5350 = vshll.u32 %v5330, 16
      %v5352 = vrot.slane %v5350, 1
      %v5353 = vsel %vm4758, %v5348, %v5352
      %5354 = vrot.lane.b32.xlu0 %v5345, 8
      %v5355 = vpop.permute.xlu0 %5354
      %5356 = vrot.lane.b32.xlu0 %v5353, 8
      %v5357 = vpop.permute.xlu0 %5356
      %5360 = vst.msk [vmem:[%s5331] sm:$0xff] %vm4785, %v5355
      %5361 = vst.msk [vmem:[%s5331 + $0x8] sm:$0xff] %vm4785, %v5357
      %v5365 = vrot.slane %v5328, 1
      %v5366 = vrot.slane %v5329, 1
      %v5367 = vsel %vm4791, %v5365, %v5366
      %v5368 = vrot.slane %v5330, 1
      %v5369 = vsel %vm4791, %v5366, %v5368
      %5370 = vrot.lane.b32.xlu0 %v5367, 16
      %v5371 = vpop.permute.xlu0 %5370
      %5372 = vrot.lane.b32.xlu0 %v5369, 16
      %v5373 = vpop.permute.xlu0 %5372
      %5376 = vst.msk [vmem:[%s5331] sm:$0xff] %vm4803, %v5371
      %5377 = vst.msk [vmem:[%s5331 + $0x8] sm:$0xff] %vm4803, %v5373
      %s5378 = scalar_lea.vmem [#allocation2], 80
      %v5379 = vld [vmem:[%s5378] sm:$0xff]
      %v5380 = vld [vmem:[%s5378 + $0x8] sm:$0xff]
      %5381 = vmatprep.subr.mxu0 0.0
      %5382 = vmatpush1.msra.mxu0 %v5379
      %5383 = vmatprep.subr.mxu0 0.0
      %5384 = vmatpush1.msra.mxu0 %v5380
      %5385 = vmatprep.subr.mxu0 0.0
      %5386 = vmatpush1.msra.mxu0 0.0
      %5387 = vmatprep.subr.mxu0 0.0
      %5388 = vmatpush1.msra.mxu0 0.0
      %5389 = vmatprep.subr.mxu0 0.0
      %5390 = vmatpush1.msra.mxu0 0.0
      %5391 = vmatprep.subr.mxu0 0.0
      %5392 = vmatpush1.msra.mxu0 0.0
      %5393 = vmatprep.subr.mxu0 0.0
      %5394 = vmatpush1.msra.mxu0 0.0
      %5395 = vmatprep.subr.mxu0 0.0
      %5396 = vmatpush1.msra.mxu0 0.0
      %5397 = vmatprep.subr.mxu0 0.0
      %5398 = vmatpush1.msra.mxu0 0.0
      %5399 = vmatprep.subr.mxu0 0.0
      %5400 = vmatpush1.msra.mxu0 0.0
      %5401 = vmatprep.subr.mxu0 0.0
      %5402 = vmatpush1.msra.mxu0 0.0
      %5403 = vmatprep.subr.mxu0 0.0
      %5404 = vmatpush1.msra.mxu0 0.0
      %5405 = vmatprep.subr.mxu0 0.0
      %5406 = vmatpush1.msra.mxu0 0.0
      %5407 = vmatprep.subr.mxu0 0.0
      %5408 = vmatpush1.msra.mxu0 0.0
      %5409 = vmatprep.subr.mxu0 0.0
      %5410 = vmatpush1.msra.mxu0 0.0
      %5411 = vmatprep.subr.mxu0 0.0
      %5412 = vmatpush1.msra.mxu0 0.0
      %5413 = vmatprep.subr.mxu0 0.0
      %5414 = vmatpush1.msra.mxu0 0.0
      %5415 = vmatprep.subr.mxu0 0.0
      %5416 = vmatpush1.msra.mxu0 0.0
      %5417 = vmatprep.subr.mxu0 0.0
      %5418 = vmatpush1.msra.mxu0 0.0
      %5419 = vmatprep.subr.mxu0 0.0
      %5420 = vmatpush1.msra.mxu0 0.0
      %5421 = vmatprep.subr.mxu0 0.0
      %5422 = vmatpush1.msra.mxu0 0.0
      %5423 = vmatprep.subr.mxu0 0.0
      %5424 = vmatpush1.msra.mxu0 0.0
      %5425 = vmatprep.subr.mxu0 0.0
      %5426 = vmatpush1.msra.mxu0 0.0
      %5427 = vmatprep.subr.mxu0 0.0
      %5428 = vmatpush1.msra.mxu0 0.0
      %5429 = vmatprep.subr.mxu0 0.0
      %5430 = vmatpush1.msra.mxu0 0.0
      %5431 = vmatprep.subr.mxu0 0.0
      %5432 = vmatpush1.msra.mxu0 0.0
      %5433 = vmatprep.subr.mxu0 0.0
      %5434 = vmatpush1.msra.mxu0 0.0
      %5435 = vmatprep.subr.mxu0 0.0
      %5436 = vmatpush1.msra.mxu0 0.0
      %5437 = vmatprep.subr.mxu0 0.0
      %5438 = vmatpush1.msra.mxu0 0.0
      %5439 = vmatprep.subr.mxu0 0.0
      %5440 = vmatpush1.msra.mxu0 0.0
      %5441 = vmatprep.subr.mxu0 0.0
      %5442 = vmatpush1.msra.mxu0 0.0
      %5443 = vmatprep.subr.mxu0 0.0
      %5444 = vmatpush1.msra.mxu0 0.0
      %5445 = vmatprep.mubr.f32.mxu0 0.0
      %5446 = vmatmul.mubr.f32.gmra.mrb[0].mxu0 %v4648
      %v5447 = vpop.f32.mrb[0].mxu0
      %v5448 = vadd.f32 0.0, %v5447
      %v5449 = vpop.f32.mrb[0].mxu0
      %5450 = vmatprep.mubr.f32.mxu0 0.0
      %5451 = vmatmul.mubr.f32.gmra.mrb[0].mxu0 %v4651
      %v5452 = vpop.f32.mrb[0].mxu0
      %v5453 = vadd.f32 0.0, %v5452
      %v5454 = vpop.f32.mrb[0].mxu0
      %5455 = vmatprep.mubr.f32.mxu0 0.0
      %5456 = vmatmul.mubr.f32.gmra.mrb[0].mxu0 %v4654
      %v5457 = vpop.f32.mrb[0].mxu0
      %v5458 = vadd.f32 0.0, %v5457
      %v5459 = vpop.f32.mrb[0].mxu0
      %5460 = vmatprep.mubr.f32.mxu0 0.0
      %5461 = vmatmul.mubr.f32.gmra.mrb[0].mxu0 %v4657
      %v5462 = vpop.f32.mrb[0].mxu0
      %v5463 = vadd.f32 0.0, %v5462
      %v5464 = vpop.f32.mrb[0].mxu0
      %5465 = vmatprep.mubr.f32.mxu0 0.0
      %5466 = vmatmul.mubr.f32.gmra.mrb[0].mxu0 %v4660
      %v5467 = vpop.f32.mrb[0].mxu0
      %v5468 = vadd.f32 0.0, %v5467
      %v5469 = vpop.f32.mrb[0].mxu0
      %5470 = vdwg.mxu0
      %v5471 = vpack.c.bf16 %v5453, %v5448
      %v5472 = vpack.c.bf16 %v5463, %v5458
      %v5473 = vpack.c.bf16 %v5468, %v5468
      %s5474 = scalar_lea.vmem [#allocation3], 80
      %5475 = vst.msk [vmem:[%s5474] sm:$0xff] %vm4755, %v5471
      %5476 = vst.msk [vmem:[%s5474 + $0x8] sm:$0xff] %vm4755, %v5472
      %v5478 = vshrl.u32 %v5471, 16
      %v5480 = vshll.u32 %v5471, 16
      %v5482 = vrot.slane %v5480, 1
      %v5483 = vor.u32 %v5478, %v5482
      %v5485 = vshll.u32 %v5472, 16
      %v5487 = vrot.slane %v5485, 1
      %v5488 = vsel %vm4758, %v5483, %v5487
      %v5489 = vshrl.u32 %v5472, 16
      %v5491 = vor.u32 %v5489, %v5487
      %v5493 = vshll.u32 %v5473, 16
      %v5495 = vrot.slane %v5493, 1
      %v5496 = vsel %vm4758, %v5491, %v5495
      %5497 = vrot.lane.b32.xlu0 %v5488, 8
      %v5498 = vpop.permute.xlu0 %5497
      %5499 = vrot.lane.b32.xlu0 %v5496, 8
      %v5500 = vpop.permute.xlu0 %5499
      %5503 = vst.msk [vmem:[%s5474] sm:$0xff] %vm4785, %v5498
      %5504 = vst.msk [vmem:[%s5474 + $0x8] sm:$0xff] %vm4785, %v5500
      %v5508 = vrot.slane %v5471, 1
      %v5509 = vrot.slane %v5472, 1
      %v5510 = vsel %vm4791, %v5508, %v5509
      %v5511 = vrot.slane %v5473, 1
      %v5512 = vsel %vm4791, %v5509, %v5511
      %5513 = vrot.lane.b32.xlu0 %v5510, 16
      %v5514 = vpop.permute.xlu0 %5513
      %5515 = vrot.lane.b32.xlu0 %v5512, 16
      %v5516 = vpop.permute.xlu0 %5515
      %5519 = vst.msk [vmem:[%s5474] sm:$0xff] %vm4803, %v5514
      %5520 = vst.msk [vmem:[%s5474 + $0x8] sm:$0xff] %vm4803, %v5516
      %s5521 = scalar_lea.vmem [#allocation2], 96
      %v5522 = vld [vmem:[%s5521] sm:$0xff]
      %v5523 = vld [vmem:[%s5521 + $0x8] sm:$0xff]
      %5524 = vmatprep.subr.mxu0 0.0
      %5525 = vmatpush1.msra.mxu0 %v5522
      %5526 = vmatprep.subr.mxu0 0.0
      %5527 = vmatpush1.msra.mxu0 %v5523
      %5528 = vmatprep.subr.mxu0 0.0
      %5529 = vmatpush1.msra.mxu0 0.0
      %5530 = vmatprep.subr.mxu0 0.0
      %5531 = vmatpush1.msra.mxu0 0.0
      %5532 = vmatprep.subr.mxu0 0.0
      %5533 = vmatpush1.msra.mxu0 0.0
      %5534 = vmatprep.subr.mxu0 0.0
      %5535 = vmatpush1.msra.mxu0 0.0
      %5536 = vmatprep.subr.mxu0 0.0
      %5537 = vmatpush1.msra.mxu0 0.0
      %5538 = vmatprep.subr.mxu0 0.0
      %5539 = vmatpush1.msra.mxu0 0.0
      %5540 = vmatprep.subr.mxu0 0.0
      %5541 = vmatpush1.msra.mxu0 0.0
      %5542 = vmatprep.subr.mxu0 0.0
      %5543 = vmatpush1.msra.mxu0 0.0
      %5544 = vmatprep.subr.mxu0 0.0
      %5545 = vmatpush1.msra.mxu0 0.0
      %5546 = vmatprep.subr.mxu0 0.0
      %5547 = vmatpush1.msra.mxu0 0.0
      %5548 = vmatprep.subr.mxu0 0.0
      %5549 = vmatpush1.msra.mxu0 0.0
      %5550 = vmatprep.subr.mxu0 0.0
      %5551 = vmatpush1.msra.mxu0 0.0
      %5552 = vmatprep.subr.mxu0 0.0
      %5553 = vmatpush1.msra.mxu0 0.0
      %5554 = vmatprep.subr.mxu0 0.0
      %5555 = vmatpush1.msra.mxu0 0.0
      %5556 = vmatprep.subr.mxu0 0.0
      %5557 = vmatpush1.msra.mxu0 0.0
      %5558 = vmatprep.subr.mxu0 0.0
      %5559 = vmatpush1.msra.mxu0 0.0
      %5560 = vmatprep.subr.mxu0 0.0
      %5561 = vmatpush1.msra.mxu0 0.0
      %5562 = vmatprep.subr.mxu0 0.0
      %5563 = vmatpush1.msra.mxu0 0.0
      %5564 = vmatprep.subr.mxu0 0.0
      %5565 = vmatpush1.msra.mxu0 0.0
      %5566 = vmatprep.subr.mxu0 0.0
      %5567 = vmatpush1.msra.mxu0 0.0
      %5568 = vmatprep.subr.mxu0 0.0
      %5569 = vmatpush1.msra.mxu0 0.0
      %5570 = vmatprep.subr.mxu0 0.0
      %5571 = vmatpush1.msra.mxu0 0.0
      %5572 = vmatprep.subr.mxu0 0.0
      %5573 = vmatpush1.msra.mxu0 0.0
      %5574 = vmatprep.subr.mxu0 0.0
      %5575 = vmatpush1.msra.mxu0 0.0
      %5576 = vmatprep.subr.mxu0 0.0
      %5577 = vmatpush1.msra.mxu0 0.0
      %5578 = vmatprep.subr.mxu0 0.0
      %5579 = vmatpush1.msra.mxu0 0.0
      %5580 = vmatprep.subr.mxu0 0.0
      %5581 = vmatpush1.msra.mxu0 0.0
      %5582 = vmatprep.subr.mxu0 0.0
      %5583 = vmatpush1.msra.mxu0 0.0
      %5584 = vmatprep.subr.mxu0 0.0
      %5585 = vmatpush1.msra.mxu0 0.0
      %5586 = vmatprep.subr.mxu0 0.0
      %5587 = vmatpush1.msra.mxu0 0.0
      %5588 = vmatprep.mubr.f32.mxu0 0.0
      %5589 = vmatmul.mubr.f32.gmra.mrb[0].mxu0 %v4648
      %v5590 = vpop.f32.mrb[0].mxu0
      %v5591 = vadd.f32 0.0, %v5590
      %v5592 = vpop.f32.mrb[0].mxu0
      %5593 = vmatprep.mubr.f32.mxu0 0.0
      %5594 = vmatmul.mubr.f32.gmra.mrb[0].mxu0 %v4651
      %v5595 = vpop.f32.mrb[0].mxu0
      %v5596 = vadd.f32 0.0, %v5595
      %v5597 = vpop.f32.mrb[0].mxu0
      %5598 = vmatprep.mubr.f32.mxu0 0.0
      %5599 = vmatmul.mubr.f32.gmra.mrb[0].mxu0 %v4654
      %v5600 = vpop.f32.mrb[0].mxu0
      %v5601 = vadd.f32 0.0, %v5600
      %v5602 = vpop.f32.mrb[0].mxu0
      %5603 = vmatprep.mubr.f32.mxu0 0.0
      %5604 = vmatmul.mubr.f32.gmra.mrb[0].mxu0 %v4657
      %v5605 = vpop.f32.mrb[0].mxu0
      %v5606 = vadd.f32 0.0, %v5605
      %v5607 = vpop.f32.mrb[0].mxu0
      %5608 = vmatprep.mubr.f32.mxu0 0.0
      %5609 = vmatmul.mubr.f32.gmra.mrb[0].mxu0 %v4660
      %v5610 = vpop.f32.mrb[0].mxu0
      %v5611 = vadd.f32 0.0, %v5610
      %v5612 = vpop.f32.mrb[0].mxu0
      %5613 = vdwg.mxu0
      %v5614 = vpack.c.bf16 %v5596, %v5591
      %v5615 = vpack.c.bf16 %v5606, %v5601
      %v5616 = vpack.c.bf16 %v5611, %v5611
      %s5617 = scalar_lea.vmem [#allocation3], 96
      %5618 = vst.msk [vmem:[%s5617] sm:$0xff] %vm4755, %v5614
      %5619 = vst.msk [vmem:[%s5617 + $0x8] sm:$0xff] %vm4755, %v5615
      %v5621 = vshrl.u32 %v5614, 16
      %v5623 = vshll.u32 %v5614, 16
      %v5625 = vrot.slane %v5623, 1
      %v5626 = vor.u32 %v5621, %v5625
      %v5628 = vshll.u32 %v5615, 16
      %v5630 = vrot.slane %v5628, 1
      %v5631 = vsel %vm4758, %v5626, %v5630
      %v5632 = vshrl.u32 %v5615, 16
      %v5634 = vor.u32 %v5632, %v5630
      %v5636 = vshll.u32 %v5616, 16
      %v5638 = vrot.slane %v5636, 1
      %v5639 = vsel %vm4758, %v5634, %v5638
      %5640 = vrot.lane.b32.xlu0 %v5631, 8
      %v5641 = vpop.permute.xlu0 %5640
      %5642 = vrot.lane.b32.xlu0 %v5639, 8
      %v5643 = vpop.permute.xlu0 %5642
      %5646 = vst.msk [vmem:[%s5617] sm:$0xff] %vm4785, %v5641
      %5647 = vst.msk [vmem:[%s5617 + $0x8] sm:$0xff] %vm4785, %v5643
      %v5651 = vrot.slane %v5614, 1
      %v5652 = vrot.slane %v5615, 1
      %v5653 = vsel %vm4791, %v5651, %v5652
      %v5654 = vrot.slane %v5616, 1
      %v5655 = vsel %vm4791, %v5652, %v5654
      %5656 = vrot.lane.b32.xlu0 %v5653, 16
      %v5657 = vpop.permute.xlu0 %5656
      %5658 = vrot.lane.b32.xlu0 %v5655, 16
      %v5659 = vpop.permute.xlu0 %5658
      %5662 = vst.msk [vmem:[%s5617] sm:$0xff] %vm4803, %v5657
      %5663 = vst.msk [vmem:[%s5617 + $0x8] sm:$0xff] %vm4803, %v5659
      %s5664 = scalar_lea.vmem [#allocation2], 112
      %v5665 = vld [vmem:[%s5664] sm:$0xff]
      %v5666 = vld [vmem:[%s5664 + $0x8] sm:$0xff]
      %5667 = vmatprep.subr.mxu0 0.0
      %5668 = vmatpush1.msra.mxu0 %v5665
      %5669 = vmatprep.subr.mxu0 0.0
      %5670 = vmatpush1.msra.mxu0 %v5666
      %5671 = vmatprep.subr.mxu0 0.0
      %5672 = vmatpush1.msra.mxu0 0.0
      %5673 = vmatprep.subr.mxu0 0.0
      %5674 = vmatpush1.msra.mxu0 0.0
      %5675 = vmatprep.subr.mxu0 0.0
      %5676 = vmatpush1.msra.mxu0 0.0
      %5677 = vmatprep.subr.mxu0 0.0
      %5678 = vmatpush1.msra.mxu0 0.0
      %5679 = vmatprep.subr.mxu0 0.0
      %5680 = vmatpush1.msra.mxu0 0.0
      %5681 = vmatprep.subr.mxu0 0.0
      %5682 = vmatpush1.msra.mxu0 0.0
      %5683 = vmatprep.subr.mxu0 0.0
      %5684 = vmatpush1.msra.mxu0 0.0
      %5685 = vmatprep.subr.mxu0 0.0
      %5686 = vmatpush1.msra.mxu0 0.0
      %5687 = vmatprep.subr.mxu0 0.0
      %5688 = vmatpush1.msra.mxu0 0.0
      %5689 = vmatprep.subr.mxu0 0.0
      %5690 = vmatpush1.msra.mxu0 0.0
      %5691 = vmatprep.subr.mxu0 0.0
      %5692 = vmatpush1.msra.mxu0 0.0
      %5693 = vmatprep.subr.mxu0 0.0
      %5694 = vmatpush1.msra.mxu0 0.0
      %5695 = vmatprep.subr.mxu0 0.0
      %5696 = vmatpush1.msra.mxu0 0.0
      %5697 = vmatprep.subr.mxu0 0.0
      %5698 = vmatpush1.msra.mxu0 0.0
      %5699 = vmatprep.subr.mxu0 0.0
      %5700 = vmatpush1.msra.mxu0 0.0
      %5701 = vmatprep.subr.mxu0 0.0
      %5702 = vmatpush1.msra.mxu0 0.0
      %5703 = vmatprep.subr.mxu0 0.0
      %5704 = vmatpush1.msra.mxu0 0.0
      %5705 = vmatprep.subr.mxu0 0.0
      %5706 = vmatpush1.msra.mxu0 0.0
      %5707 = vmatprep.subr.mxu0 0.0
      %5708 = vmatpush1.msra.mxu0 0.0
      %5709 = vmatprep.subr.mxu0 0.0
      %5710 = vmatpush1.msra.mxu0 0.0
      %5711 = vmatprep.subr.mxu0 0.0
      %5712 = vmatpush1.msra.mxu0 0.0
      %5713 = vmatprep.subr.mxu0 0.0
      %5714 = vmatpush1.msra.mxu0 0.0
      %5715 = vmatprep.subr.mxu0 0.0
      %5716 = vmatpush1.msra.mxu0 0.0
      %5717 = vmatprep.subr.mxu0 0.0
      %5718 = vmatpush1.msra.mxu0 0.0
      %5719 = vmatprep.subr.mxu0 0.0
      %5720 = vmatpush1.msra.mxu0 0.0
      %5721 = vmatprep.subr.mxu0 0.0
      %5722 = vmatpush1.msra.mxu0 0.0
      %5723 = vmatprep.subr.mxu0 0.0
      %5724 = vmatpush1.msra.mxu0 0.0
      %5725 = vmatprep.subr.mxu0 0.0
      %5726 = vmatpush1.msra.mxu0 0.0
      %5727 = vmatprep.subr.mxu0 0.0
      %5728 = vmatpush1.msra.mxu0 0.0
      %5729 = vmatprep.subr.mxu0 0.0
      %5730 = vmatpush1.msra.mxu0 0.0
      %5731 = vmatprep.mubr.f32.mxu0 0.0
      %5732 = vmatmul.mubr.f32.gmra.mrb[0].mxu0 %v4648
      %v5733 = vpop.f32.mrb[0].mxu0
      %v5734 = vadd.f32 0.0, %v5733
      %v5735 = vpop.f32.mrb[0].mxu0
      %5736 = vmatprep.mubr.f32.mxu0 0.0
      %5737 = vmatmul.mubr.f32.gmra.mrb[0].mxu0 %v4651
      %v5738 = vpop.f32.mrb[0].mxu0
      %v5739 = vadd.f32 0.0, %v5738
      %v5740 = vpop.f32.mrb[0].mxu0
      %5741 = vmatprep.mubr.f32.mxu0 0.0
      %5742 = vmatmul.mubr.f32.gmra.mrb[0].mxu0 %v4654
      %v5743 = vpop.f32.mrb[0].mxu0
      %v5744 = vadd.f32 0.0, %v5743
      %v5745 = vpop.f32.mrb[0].mxu0
      %5746 = vmatprep.mubr.f32.mxu0 0.0
      %5747 = vmatmul.mubr.f32.gmra.mrb[0].mxu0 %v4657
      %v5748 = vpop.f32.mrb[0].mxu0
      %v5749 = vadd.f32 0.0, %v5748
      %v5750 = vpop.f32.mrb[0].mxu0
      %5751 = vmatprep.mubr.f32.mxu0 0.0
      %5752 = vmatmul.mubr.f32.gmra.mrb[0].mxu0 %v4660
      %v5753 = vpop.f32.mrb[0].mxu0
      %v5754 = vadd.f32 0.0, %v5753
      %v5755 = vpop.f32.mrb[0].mxu0
      %5756 = vdwg.mxu0
      %v5757 = vpack.c.bf16 %v5739, %v5734
      %v5758 = vpack.c.bf16 %v5749, %v5744
      %v5759 = vpack.c.bf16 %v5754, %v5754
      %s5760 = scalar_lea.vmem [#allocation3], 112
      %5761 = vst.msk [vmem:[%s5760] sm:$0xff] %vm4755, %v5757
      %5762 = vst.msk [vmem:[%s5760 + $0x8] sm:$0xff] %vm4755, %v5758
      %v5764 = vshrl.u32 %v5757, 16
      %v5766 = vshll.u32 %v5757, 16
      %v5768 = vrot.slane %v5766, 1
      %v5769 = vor.u32 %v5764, %v5768
      %v5771 = vshll.u32 %v5758, 16
      %v5773 = vrot.slane %v5771, 1
      %v5774 = vsel %vm4758, %v5769, %v5773
      %v5775 = vshrl.u32 %v5758, 16
      %v5777 = vor.u32 %v5775, %v5773
      %v5779 = vshll.u32 %v5759, 16
      %v5781 = vrot.slane %v5779, 1
      %v5782 = vsel %vm4758, %v5777, %v5781
      %5783 = vrot.lane.b32.xlu0 %v5774, 8
      %v5784 = vpop.permute.xlu0 %5783
      %5785 = vrot.lane.b32.xlu0 %v5782, 8
      %v5786 = vpop.permute.xlu0 %5785
      %5789 = vst.msk [vmem:[%s5760] sm:$0xff] %vm4785, %v5784
      %5790 = vst.msk [vmem:[%s5760 + $0x8] sm:$0xff] %vm4785, %v5786
      %v5794 = vrot.slane %v5757, 1
      %v5795 = vrot.slane %v5758, 1
      %v5796 = vsel %vm4791, %v5794, %v5795
      %v5797 = vrot.slane %v5759, 1
      %v5798 = vsel %vm4791, %v5795, %v5797
      %5799 = vrot.lane.b32.xlu0 %v5796, 16
      %v5800 = vpop.permute.xlu0 %5799
      %5801 = vrot.lane.b32.xlu0 %v5798, 16
      %v5802 = vpop.permute.xlu0 %5801
      %5805 = vst.msk [vmem:[%s5760] sm:$0xff] %vm4803, %v5800
      %5806 = vst.msk [vmem:[%s5760 + $0x8] sm:$0xff] %vm4803, %v5802
      %s5807 = scalar_lea.vmem [#allocation2], 128
      %v5808 = vld [vmem:[%s5807] sm:$0xff]
      %v5809 = vld [vmem:[%s5807 + $0x8] sm:$0xff]
      %5810 = vmatprep.subr.mxu0 0.0
      %5811 = vmatpush1.msra.mxu0 %v5808
      %5812 = vmatprep.subr.mxu0 0.0
      %5813 = vmatpush1.msra.mxu0 %v5809
      %5814 = vmatprep.subr.mxu0 0.0
      %5815 = vmatpush1.msra.mxu0 0.0
      %5816 = vmatprep.subr.mxu0 0.0
      %5817 = vmatpush1.msra.mxu0 0.0
      %5818 = vmatprep.subr.mxu0 0.0
      %5819 = vmatpush1.msra.mxu0 0.0
      %5820 = vmatprep.subr.mxu0 0.0
      %5821 = vmatpush1.msra.mxu0 0.0
      %5822 = vmatprep.subr.mxu0 0.0
      %5823 = vmatpush1.msra.mxu0 0.0
      %5824 = vmatprep.subr.mxu0 0.0
      %5825 = vmatpush1.msra.mxu0 0.0
      %5826 = vmatprep.subr.mxu0 0.0
      %5827 = vmatpush1.msra.mxu0 0.0
      %5828 = vmatprep.subr.mxu0 0.0
      %5829 = vmatpush1.msra.mxu0 0.0
      %5830 = vmatprep.subr.mxu0 0.0
      %5831 = vmatpush1.msra.mxu0 0.0
      %5832 = vmatprep.subr.mxu0 0.0
      %5833 = vmatpush1.msra.mxu0 0.0
      %5834 = vmatprep.subr.mxu0 0.0
      %5835 = vmatpush1.msra.mxu0 0.0
      %5836 = vmatprep.subr.mxu0 0.0
      %5837 = vmatpush1.msra.mxu0 0.0
      %5838 = vmatprep.subr.mxu0 0.0
      %5839 = vmatpush1.msra.mxu0 0.0
      %5840 = vmatprep.subr.mxu0 0.0
      %5841 = vmatpush1.msra.mxu0 0.0
      %5842 = vmatprep.subr.mxu0 0.0
      %5843 = vmatpush1.msra.mxu0 0.0
      %5844 = vmatprep.subr.mxu0 0.0
      %5845 = vmatpush1.msra.mxu0 0.0
      %5846 = vmatprep.subr.mxu0 0.0
      %5847 = vmatpush1.msra.mxu0 0.0
      %5848 = vmatprep.subr.mxu0 0.0
      %5849 = vmatpush1.msra.mxu0 0.0
      %5850 = vmatprep.subr.mxu0 0.0
      %5851 = vmatpush1.msra.mxu0 0.0
      %5852 = vmatprep.subr.mxu0 0.0
      %5853 = vmatpush1.msra.mxu0 0.0
      %5854 = vmatprep.subr.mxu0 0.0
      %5855 = vmatpush1.msra.mxu0 0.0
      %5856 = vmatprep.subr.mxu0 0.0
      %5857 = vmatpush1.msra.mxu0 0.0
      %5858 = vmatprep.subr.mxu0 0.0
      %5859 = vmatpush1.msra.mxu0 0.0
      %5860 = vmatprep.subr.mxu0 0.0
      %5861 = vmatpush1.msra.mxu0 0.0
      %5862 = vmatprep.subr.mxu0 0.0
      %5863 = vmatpush1.msra.mxu0 0.0
      %5864 = vmatprep.subr.mxu0 0.0
      %5865 = vmatpush1.msra.mxu0 0.0
      %5866 = vmatprep.subr.mxu0 0.0
      %5867 = vmatpush1.msra.mxu0 0.0
      %5868 = vmatprep.subr.mxu0 0.0
      %5869 = vmatpush1.msra.mxu0 0.0
      %5870 = vmatprep.subr.mxu0 0.0
      %5871 = vmatpush1.msra.mxu0 0.0
      %5872 = vmatprep.subr.mxu0 0.0
      %5873 = vmatpush1.msra.mxu0 0.0
      %5874 = vmatprep.mubr.f32.mxu0 0.0
      %5875 = vmatmul.mubr.f32.gmra.mrb[0].mxu0 %v4648
      %v5876 = vpop.f32.mrb[0].mxu0
      %v5877 = vadd.f32 0.0, %v5876
      %v5878 = vpop.f32.mrb[0].mxu0
      %5879 = vmatprep.mubr.f32.mxu0 0.0
      %5880 = vmatmul.mubr.f32.gmra.mrb[0].mxu0 %v4651
      %v5881 = vpop.f32.mrb[0].mxu0
      %v5882 = vadd.f32 0.0, %v5881
      %v5883 = vpop.f32.mrb[0].mxu0
      %5884 = vmatprep.mubr.f32.mxu0 0.0
      %5885 = vmatmul.mubr.f32.gmra.mrb[0].mxu0 %v4654
      %v5886 = vpop.f32.mrb[0].mxu0
      %v5887 = vadd.f32 0.0, %v5886
      %v5888 = vpop.f32.mrb[0].mxu0
      %5889 = vmatprep.mubr.f32.mxu0 0.0
      %5890 = vmatmul.mubr.f32.gmra.mrb[0].mxu0 %v4657
      %v5891 = vpop.f32.mrb[0].mxu0
      %v5892 = vadd.f32 0.0, %v5891
      %v5893 = vpop.f32.mrb[0].mxu0
      %5894 = vmatprep.mubr.f32.mxu0 0.0
      %5895 = vmatmul.mubr.f32.gmra.mrb[0].mxu0 %v4660
      %v5896 = vpop.f32.mrb[0].mxu0
      %v5897 = vadd.f32 0.0, %v5896
      %v5898 = vpop.f32.mrb[0].mxu0
      %5899 = vdwg.mxu0
      %v5900 = vpack.c.bf16 %v5882, %v5877
      %v5901 = vpack.c.bf16 %v5892, %v5887
      %v5902 = vpack.c.bf16 %v5897, %v5897
      %s5903 = scalar_lea.vmem [#allocation3], 128
      %5904 = vst.msk [vmem:[%s5903] sm:$0xff] %vm4755, %v5900
      %5905 = vst.msk [vmem:[%s5903 + $0x8] sm:$0xff] %vm4755, %v5901
      %v5907 = vshrl.u32 %v5900, 16
      %v5909 = vshll.u32 %v5900, 16
      %v5911 = vrot.slane %v5909, 1
      %v5912 = vor.u32 %v5907, %v5911
      %v5914 = vshll.u32 %v5901, 16
      %v5916 = vrot.slane %v5914, 1
      %v5917 = vsel %vm4758, %v5912, %v5916
      %v5918 = vshrl.u32 %v5901, 16
      %v5920 = vor.u32 %v5918, %v5916
      %v5922 = vshll.u32 %v5902, 16
      %v5924 = vrot.slane %v5922, 1
      %v5925 = vsel %vm4758, %v5920, %v5924
      %5926 = vrot.lane.b32.xlu0 %v5917, 8
      %v5927 = vpop.permute.xlu0 %5926
      %5928 = vrot.lane.b32.xlu0 %v5925, 8
      %v5929 = vpop.permute.xlu0 %5928
      %5932 = vst.msk [vmem:[%s5903] sm:$0xff] %vm4785, %v5927
      %5933 = vst.msk [vmem:[%s5903 + $0x8] sm:$0xff] %vm4785, %v5929
      %v5937 = vrot.slane %v5900, 1
      %v5938 = vrot.slane %v5901, 1
      %v5939 = vsel %vm4791, %v5937, %v5938
      %v5940 = vrot.slane %v5902, 1
      %v5941 = vsel %vm4791, %v5938, %v5940
      %5942 = vrot.lane.b32.xlu0 %v5939, 16
      %v5943 = vpop.permute.xlu0 %5942
      %5944 = vrot.lane.b32.xlu0 %v5941, 16
      %v5945 = vpop.permute.xlu0 %5944
      %5948 = vst.msk [vmem:[%s5903] sm:$0xff] %vm4803, %v5943
      %5949 = vst.msk [vmem:[%s5903 + $0x8] sm:$0xff] %vm4803, %v5945
      %s5950 = scalar_lea.vmem [#allocation2], 144
      %v5951 = vld [vmem:[%s5950] sm:$0xff]
      %v5952 = vld [vmem:[%s5950 + $0x8] sm:$0xff]
      %5953 = vmatprep.subr.mxu0 0.0
      %5954 = vmatpush1.msra.mxu0 %v5951
      %5955 = vmatprep.subr.mxu0 0.0
      %5956 = vmatpush1.msra.mxu0 %v5952
      %5957 = vmatprep.subr.mxu0 0.0
      %5958 = vmatpush1.msra.mxu0 0.0
      %5959 = vmatprep.subr.mxu0 0.0
      %5960 = vmatpush1.msra.mxu0 0.0
      %5961 = vmatprep.subr.mxu0 0.0
      %5962 = vmatpush1.msra.mxu0 0.0
      %5963 = vmatprep.subr.mxu0 0.0
      %5964 = vmatpush1.msra.mxu0 0.0
      %5965 = vmatprep.subr.mxu0 0.0
      %5966 = vmatpush1.msra.mxu0 0.0
      %5967 = vmatprep.subr.mxu0 0.0
      %5968 = vmatpush1.msra.mxu0 0.0
      %5969 = vmatprep.subr.mxu0 0.0
      %5970 = vmatpush1.msra.mxu0 0.0
      %5971 = vmatprep.subr.mxu0 0.0
      %5972 = vmatpush1.msra.mxu0 0.0
      %5973 = vmatprep.subr.mxu0 0.0
      %5974 = vmatpush1.msra.mxu0 0.0
      %5975 = vmatprep.subr.mxu0 0.0
      %5976 = vmatpush1.msra.mxu0 0.0
      %5977 = vmatprep.subr.mxu0 0.0
      %5978 = vmatpush1.msra.mxu0 0.0
      %5979 = vmatprep.subr.mxu0 0.0
      %5980 = vmatpush1.msra.mxu0 0.0
      %5981 = vmatprep.subr.mxu0 0.0
      %5982 = vmatpush1.msra.mxu0 0.0
      %5983 = vmatprep.subr.mxu0 0.0
      %5984 = vmatpush1.msra.mxu0 0.0
      %5985 = vmatprep.subr.mxu0 0.0
      %5986 = vmatpush1.msra.mxu0 0.0
      %5987 = vmatprep.subr.mxu0 0.0
      %5988 = vmatpush1.msra.mxu0 0.0
      %5989 = vmatprep.subr.mxu0 0.0
      %5990 = vmatpush1.msra.mxu0 0.0
      %5991 = vmatprep.subr.mxu0 0.0
      %5992 = vmatpush1.msra.mxu0 0.0
      %5993 = vmatprep.subr.mxu0 0.0
      %5994 = vmatpush1.msra.mxu0 0.0
      %5995 = vmatprep.subr.mxu0 0.0
      %5996 = vmatpush1.msra.mxu0 0.0
      %5997 = vmatprep.subr.mxu0 0.0
      %5998 = vmatpush1.msra.mxu0 0.0
      %5999 = vmatprep.subr.mxu0 0.0
      %6000 = vmatpush1.msra.mxu0 0.0
      %6001 = vmatprep.subr.mxu0 0.0
      %6002 = vmatpush1.msra.mxu0 0.0
      %6003 = vmatprep.subr.mxu0 0.0
      %6004 = vmatpush1.msra.mxu0 0.0
      %6005 = vmatprep.subr.mxu0 0.0
      %6006 = vmatpush1.msra.mxu0 0.0
      %6007 = vmatprep.subr.mxu0 0.0
      %6008 = vmatpush1.msra.mxu0 0.0
      %6009 = vmatprep.subr.mxu0 0.0
      %6010 = vmatpush1.msra.mxu0 0.0
      %6011 = vmatprep.subr.mxu0 0.0
      %6012 = vmatpush1.msra.mxu0 0.0
      %6013 = vmatprep.subr.mxu0 0.0
      %6014 = vmatpush1.msra.mxu0 0.0
      %6015 = vmatprep.subr.mxu0 0.0
      %6016 = vmatpush1.msra.mxu0 0.0
      %6017 = vmatprep.mubr.f32.mxu0 0.0
      %6018 = vmatmul.mubr.f32.gmra.mrb[0].mxu0 %v4648
      %v6019 = vpop.f32.mrb[0].mxu0
      %v6020 = vadd.f32 0.0, %v6019
      %v6021 = vpop.f32.mrb[0].mxu0
      %6022 = vmatprep.mubr.f32.mxu0 0.0
      %6023 = vmatmul.mubr.f32.gmra.mrb[0].mxu0 %v4651
      %v6024 = vpop.f32.mrb[0].mxu0
      %v6025 = vadd.f32 0.0, %v6024
      %v6026 = vpop.f32.mrb[0].mxu0
      %6027 = vmatprep.mubr.f32.mxu0 0.0
      %6028 = vmatmul.mubr.f32.gmra.mrb[0].mxu0 %v4654
      %v6029 = vpop.f32.mrb[0].mxu0
      %v6030 = vadd.f32 0.0, %v6029
      %v6031 = vpop.f32.mrb[0].mxu0
      %6032 = vmatprep.mubr.f32.mxu0 0.0
      %6033 = vmatmul.mubr.f32.gmra.mrb[0].mxu0 %v4657
      %v6034 = vpop.f32.mrb[0].mxu0
      %v6035 = vadd.f32 0.0, %v6034
      %v6036 = vpop.f32.mrb[0].mxu0
      %6037 = vmatprep.mubr.f32.mxu0 0.0
      %6038 = vmatmul.mubr.f32.gmra.mrb[0].mxu0 %v4660
      %v6039 = vpop.f32.mrb[0].mxu0
      %v6040 = vadd.f32 0.0, %v6039
      %v6041 = vpop.f32.mrb[0].mxu0
      %6042 = vdwg.mxu0
      %v6043 = vpack.c.bf16 %v6025, %v6020
      %v6044 = vpack.c.bf16 %v6035, %v6030
      %v6045 = vpack.c.bf16 %v6040, %v6040
      %s6046 = scalar_lea.vmem [#allocation3], 144
      %6047 = vst.msk [vmem:[%s6046] sm:$0xff] %vm4755, %v6043
      %6048 = vst.msk [vmem:[%s6046 + $0x8] sm:$0xff] %vm4755, %v6044
      %v6050 = vshrl.u32 %v6043, 16
      %v6052 = vshll.u32 %v6043, 16
      %v6054 = vrot.slane %v6052, 1
      %v6055 = vor.u32 %v6050, %v6054
      %v6057 = vshll.u32 %v6044, 16
      %v6059 = vrot.slane %v6057, 1
      %v6060 = vsel %vm4758, %v6055, %v6059
      %v6061 = vshrl.u32 %v6044, 16
      %v6063 = vor.u32 %v6061, %v6059
      %v6065 = vshll.u32 %v6045, 16
      %v6067 = vrot.slane %v6065, 1
      %v6068 = vsel %vm4758, %v6063, %v6067
      %6069 = vrot.lane.b32.xlu0 %v6060, 8
      %v6070 = vpop.permute.xlu0 %6069
      %6071 = vrot.lane.b32.xlu0 %v6068, 8
      %v6072 = vpop.permute.xlu0 %6071
      %6075 = vst.msk [vmem:[%s6046] sm:$0xff] %vm4785, %v6070
      %6076 = vst.msk [vmem:[%s6046 + $0x8] sm:$0xff] %vm4785, %v6072
      %v6080 = vrot.slane %v6043, 1
      %v6081 = vrot.slane %v6044, 1
      %v6082 = vsel %vm4791, %v6080, %v6081
      %v6083 = vrot.slane %v6045, 1
      %v6084 = vsel %vm4791, %v6081, %v6083
      %6085 = vrot.lane.b32.xlu0 %v6082, 16
      %v6086 = vpop.permute.xlu0 %6085
      %6087 = vrot.lane.b32.xlu0 %v6084, 16
      %v6088 = vpop.permute.xlu0 %6087
      %6091 = vst.msk [vmem:[%s6046] sm:$0xff] %vm4803, %v6086
      %6092 = vst.msk [vmem:[%s6046 + $0x8] sm:$0xff] %vm4803, %v6088
      %s6093 = scalar_lea.vmem [#allocation2], 160
      %v6094 = vld [vmem:[%s6093] sm:$0xff]
      %v6095 = vld [vmem:[%s6093 + $0x8] sm:$0xff]
      %6096 = vmatprep.subr.mxu0 0.0
      %6097 = vmatpush1.msra.mxu0 %v6094
      %6098 = vmatprep.subr.mxu0 0.0
      %6099 = vmatpush1.msra.mxu0 %v6095
      %6100 = vmatprep.subr.mxu0 0.0
      %6101 = vmatpush1.msra.mxu0 0.0
      %6102 = vmatprep.subr.mxu0 0.0
      %6103 = vmatpush1.msra.mxu0 0.0
      %6104 = vmatprep.subr.mxu0 0.0
      %6105 = vmatpush1.msra.mxu0 0.0
      %6106 = vmatprep.subr.mxu0 0.0
      %6107 = vmatpush1.msra.mxu0 0.0
      %6108 = vmatprep.subr.mxu0 0.0
      %6109 = vmatpush1.msra.mxu0 0.0
      %6110 = vmatprep.subr.mxu0 0.0
      %6111 = vmatpush1.msra.mxu0 0.0
      %6112 = vmatprep.subr.mxu0 0.0
      %6113 = vmatpush1.msra.mxu0 0.0
      %6114 = vmatprep.subr.mxu0 0.0
      %6115 = vmatpush1.msra.mxu0 0.0
      %6116 = vmatprep.subr.mxu0 0.0
      %6117 = vmatpush1.msra.mxu0 0.0
      %6118 = vmatprep.subr.mxu0 0.0
      %6119 = vmatpush1.msra.mxu0 0.0
      %6120 = vmatprep.subr.mxu0 0.0
      %6121 = vmatpush1.msra.mxu0 0.0
      %6122 = vmatprep.subr.mxu0 0.0
      %6123 = vmatpush1.msra.mxu0 0.0
      %6124 = vmatprep.subr.mxu0 0.0
      %6125 = vmatpush1.msra.mxu0 0.0
      %6126 = vmatprep.subr.mxu0 0.0
      %6127 = vmatpush1.msra.mxu0 0.0
      %6128 = vmatprep.subr.mxu0 0.0
      %6129 = vmatpush1.msra.mxu0 0.0
      %6130 = vmatprep.subr.mxu0 0.0
      %6131 = vmatpush1.msra.mxu0 0.0
      %6132 = vmatprep.subr.mxu0 0.0
      %6133 = vmatpush1.msra.mxu0 0.0
      %6134 = vmatprep.subr.mxu0 0.0
      %6135 = vmatpush1.msra.mxu0 0.0
      %6136 = vmatprep.subr.mxu0 0.0
      %6137 = vmatpush1.msra.mxu0 0.0
      %6138 = vmatprep.subr.mxu0 0.0
      %6139 = vmatpush1.msra.mxu0 0.0
      %6140 = vmatprep.subr.mxu0 0.0
      %6141 = vmatpush1.msra.mxu0 0.0
      %6142 = vmatprep.subr.mxu0 0.0
      %6143 = vmatpush1.msra.mxu0 0.0
      %6144 = vmatprep.subr.mxu0 0.0
      %6145 = vmatpush1.msra.mxu0 0.0
      %6146 = vmatprep.subr.mxu0 0.0
      %6147 = vmatpush1.msra.mxu0 0.0
      %6148 = vmatprep.subr.mxu0 0.0
      %6149 = vmatpush1.msra.mxu0 0.0
      %6150 = vmatprep.subr.mxu0 0.0
      %6151 = vmatpush1.msra.mxu0 0.0
      %6152 = vmatprep.subr.mxu0 0.0
      %6153 = vmatpush1.msra.mxu0 0.0
      %6154 = vmatprep.subr.mxu0 0.0
      %6155 = vmatpush1.msra.mxu0 0.0
      %6156 = vmatprep.subr.mxu0 0.0
      %6157 = vmatpush1.msra.mxu0 0.0
      %6158 = vmatprep.subr.mxu0 0.0
      %6159 = vmatpush1.msra.mxu0 0.0
      %6160 = vmatprep.mubr.f32.mxu0 0.0
      %6161 = vmatmul.mubr.f32.gmra.mrb[0].mxu0 %v4648
      %v6162 = vpop.f32.mrb[0].mxu0
      %v6163 = vadd.f32 0.0, %v6162
      %v6164 = vpop.f32.mrb[0].mxu0
      %6165 = vmatprep.mubr.f32.mxu0 0.0
      %6166 = vmatmul.mubr.f32.gmra.mrb[0].mxu0 %v4651
      %v6167 = vpop.f32.mrb[0].mxu0
      %v6168 = vadd.f32 0.0, %v6167
      %v6169 = vpop.f32.mrb[0].mxu0
      %6170 = vmatprep.mubr.f32.mxu0 0.0
      %6171 = vmatmul.mubr.f32.gmra.mrb[0].mxu0 %v4654
      %v6172 = vpop.f32.mrb[0].mxu0
      %v6173 = vadd.f32 0.0, %v6172
      %v6174 = vpop.f32.mrb[0].mxu0
      %6175 = vmatprep.mubr.f32.mxu0 0.0
      %6176 = vmatmul.mubr.f32.gmra.mrb[0].mxu0 %v4657
      %v6177 = vpop.f32.mrb[0].mxu0
      %v6178 = vadd.f32 0.0, %v6177
      %v6179 = vpop.f32.mrb[0].mxu0
      %6180 = vmatprep.mubr.f32.mxu0 0.0
      %6181 = vmatmul.mubr.f32.gmra.mrb[0].mxu0 %v4660
      %v6182 = vpop.f32.mrb[0].mxu0
      %v6183 = vadd.f32 0.0, %v6182
      %v6184 = vpop.f32.mrb[0].mxu0
      %6185 = vdwg.mxu0
      %v6186 = vpack.c.bf16 %v6168, %v6163
      %v6187 = vpack.c.bf16 %v6178, %v6173
      %v6188 = vpack.c.bf16 %v6183, %v6183
      %s6189 = scalar_lea.vmem [#allocation3], 160
      %6190 = vst.msk [vmem:[%s6189] sm:$0xff] %vm4755, %v6186
      %6191 = vst.msk [vmem:[%s6189 + $0x8] sm:$0xff] %vm4755, %v6187
      %v6193 = vshrl.u32 %v6186, 16
      %v6195 = vshll.u32 %v6186, 16
      %v6197 = vrot.slane %v6195, 1
      %v6198 = vor.u32 %v6193, %v6197
      %v6200 = vshll.u32 %v6187, 16
      %v6202 = vrot.slane %v6200, 1
      %v6203 = vsel %vm4758, %v6198, %v6202
      %v6204 = vshrl.u32 %v6187, 16
      %v6206 = vor.u32 %v6204, %v6202
      %v6208 = vshll.u32 %v6188, 16
      %v6210 = vrot.slane %v6208, 1
      %v6211 = vsel %vm4758, %v6206, %v6210
      %6212 = vrot.lane.b32.xlu0 %v6203, 8
      %v6213 = vpop.permute.xlu0 %6212
      %6214 = vrot.lane.b32.xlu0 %v6211, 8
      %v6215 = vpop.permute.xlu0 %6214
      %6218 = vst.msk [vmem:[%s6189] sm:$0xff] %vm4785, %v6213
      %6219 = vst.msk [vmem:[%s6189 + $0x8] sm:$0xff] %vm4785, %v6215
      %v6223 = vrot.slane %v6186, 1
      %v6224 = vrot.slane %v6187, 1
      %v6225 = vsel %vm4791, %v6223, %v6224
      %v6226 = vrot.slane %v6188, 1
      %v6227 = vsel %vm4791, %v6224, %v6226
      %6228 = vrot.lane.b32.xlu0 %v6225, 16
      %v6229 = vpop.permute.xlu0 %6228
      %6230 = vrot.lane.b32.xlu0 %v6227, 16
      %v6231 = vpop.permute.xlu0 %6230
      %6234 = vst.msk [vmem:[%s6189] sm:$0xff] %vm4803, %v6229
      %6235 = vst.msk [vmem:[%s6189 + $0x8] sm:$0xff] %vm4803, %v6231
      %s6236 = scalar_lea.vmem [#allocation2], 176
      %v6237 = vld [vmem:[%s6236] sm:$0xff]
      %v6238 = vld [vmem:[%s6236 + $0x8] sm:$0xff]
      %6239 = vmatprep.subr.mxu0 0.0
      %6240 = vmatpush1.msra.mxu0 %v6237
      %6241 = vmatprep.subr.mxu0 0.0
      %6242 = vmatpush1.msra.mxu0 %v6238
      %6243 = vmatprep.subr.mxu0 0.0
      %6244 = vmatpush1.msra.mxu0 0.0
      %6245 = vmatprep.subr.mxu0 0.0
      %6246 = vmatpush1.msra.mxu0 0.0
      %6247 = vmatprep.subr.mxu0 0.0
      %6248 = vmatpush1.msra.mxu0 0.0
      %6249 = vmatprep.subr.mxu0 0.0
      %6250 = vmatpush1.msra.mxu0 0.0
      %6251 = vmatprep.subr.mxu0 0.0
      %6252 = vmatpush1.msra.mxu0 0.0
      %6253 = vmatprep.subr.mxu0 0.0
      %6254 = vmatpush1.msra.mxu0 0.0
      %6255 = vmatprep.subr.mxu0 0.0
      %6256 = vmatpush1.msra.mxu0 0.0
      %6257 = vmatprep.subr.mxu0 0.0
      %6258 = vmatpush1.msra.mxu0 0.0
      %6259 = vmatprep.subr.mxu0 0.0
      %6260 = vmatpush1.msra.mxu0 0.0
      %6261 = vmatprep.subr.mxu0 0.0
      %6262 = vmatpush1.msra.mxu0 0.0
      %6263 = vmatprep.subr.mxu0 0.0
      %6264 = vmatpush1.msra.mxu0 0.0
      %6265 = vmatprep.subr.mxu0 0.0
      %6266 = vmatpush1.msra.mxu0 0.0
      %6267 = vmatprep.subr.mxu0 0.0
      %6268 = vmatpush1.msra.mxu0 0.0
      %6269 = vmatprep.subr.mxu0 0.0
      %6270 = vmatpush1.msra.mxu0 0.0
      %6271 = vmatprep.subr.mxu0 0.0
      %6272 = vmatpush1.msra.mxu0 0.0
      %6273 = vmatprep.subr.mxu0 0.0
      %6274 = vmatpush1.msra.mxu0 0.0
      %6275 = vmatprep.subr.mxu0 0.0
      %6276 = vmatpush1.msra.mxu0 0.0
      %6277 = vmatprep.subr.mxu0 0.0
      %6278 = vmatpush1.msra.mxu0 0.0
      %6279 = vmatprep.subr.mxu0 0.0
      %6280 = vmatpush1.msra.mxu0 0.0
      %6281 = vmatprep.subr.mxu0 0.0
      %6282 = vmatpush1.msra.mxu0 0.0
      %6283 = vmatprep.subr.mxu0 0.0
      %6284 = vmatpush1.msra.mxu0 0.0
      %6285 = vmatprep.subr.mxu0 0.0
      %6286 = vmatpush1.msra.mxu0 0.0
      %6287 = vmatprep.subr.mxu0 0.0
      %6288 = vmatpush1.msra.mxu0 0.0
      %6289 = vmatprep.subr.mxu0 0.0
      %6290 = vmatpush1.msra.mxu0 0.0
      %6291 = vmatprep.subr.mxu0 0.0
      %6292 = vmatpush1.msra.mxu0 0.0
      %6293 = vmatprep.subr.mxu0 0.0
      %6294 = vmatpush1.msra.mxu0 0.0
      %6295 = vmatprep.subr.mxu0 0.0
      %6296 = vmatpush1.msra.mxu0 0.0
      %6297 = vmatprep.subr.mxu0 0.0
      %6298 = vmatpush1.msra.mxu0 0.0
      %6299 = vmatprep.subr.mxu0 0.0
      %6300 = vmatpush1.msra.mxu0 0.0
      %6301 = vmatprep.subr.mxu0 0.0
      %6302 = vmatpush1.msra.mxu0 0.0
      %6303 = vmatprep.mubr.f32.mxu0 0.0
      %6304 = vmatmul.mubr.f32.gmra.mrb[0].mxu0 %v4648
      %v6305 = vpop.f32.mrb[0].mxu0
      %v6306 = vadd.f32 0.0, %v6305
      %v6307 = vpop.f32.mrb[0].mxu0
      %6308 = vmatprep.mubr.f32.mxu0 0.0
      %6309 = vmatmul.mubr.f32.gmra.mrb[0].mxu0 %v4651
      %v6310 = vpop.f32.mrb[0].mxu0
      %v6311 = vadd.f32 0.0, %v6310
      %v6312 = vpop.f32.mrb[0].mxu0
      %6313 = vmatprep.mubr.f32.mxu0 0.0
      %6314 = vmatmul.mubr.f32.gmra.mrb[0].mxu0 %v4654
      %v6315 = vpop.f32.mrb[0].mxu0
      %v6316 = vadd.f32 0.0, %v6315
      %v6317 = vpop.f32.mrb[0].mxu0
      %6318 = vmatprep.mubr.f32.mxu0 0.0
      %6319 = vmatmul.mubr.f32.gmra.mrb[0].mxu0 %v4657
      %v6320 = vpop.f32.mrb[0].mxu0
      %v6321 = vadd.f32 0.0, %v6320
      %v6322 = vpop.f32.mrb[0].mxu0
      %6323 = vmatprep.mubr.f32.mxu0 0.0
      %6324 = vmatmul.mubr.f32.gmra.mrb[0].mxu0 %v4660
      %v6325 = vpop.f32.mrb[0].mxu0
      %v6326 = vadd.f32 0.0, %v6325
      %v6327 = vpop.f32.mrb[0].mxu0
      %6328 = vdwg.mxu0
      %v6329 = vpack.c.bf16 %v6311, %v6306
      %v6330 = vpack.c.bf16 %v6321, %v6316
      %v6331 = vpack.c.bf16 %v6326, %v6326
      %s6332 = scalar_lea.vmem [#allocation3], 176
      %6333 = vst.msk [vmem:[%s6332] sm:$0xff] %vm4755, %v6329
      %6334 = vst.msk [vmem:[%s6332 + $0x8] sm:$0xff] %vm4755, %v6330
      %v6336 = vshrl.u32 %v6329, 16
      %v6338 = vshll.u32 %v6329, 16
      %v6340 = vrot.slane %v6338, 1
      %v6341 = vor.u32 %v6336, %v6340
      %v6343 = vshll.u32 %v6330, 16
      %v6345 = vrot.slane %v6343, 1
      %v6346 = vsel %vm4758, %v6341, %v6345
      %v6347 = vshrl.u32 %v6330, 16
      %v6349 = vor.u32 %v6347, %v6345
      %v6351 = vshll.u32 %v6331, 16
      %v6353 = vrot.slane %v6351, 1
      %v6354 = vsel %vm4758, %v6349, %v6353
      %6355 = vrot.lane.b32.xlu0 %v6346, 8
      %v6356 = vpop.permute.xlu0 %6355
      %6357 = vrot.lane.b32.xlu0 %v6354, 8
      %v6358 = vpop.permute.xlu0 %6357
      %6361 = vst.msk [vmem:[%s6332] sm:$0xff] %vm4785, %v6356
      %6362 = vst.msk [vmem:[%s6332 + $0x8] sm:$0xff] %vm4785, %v6358
      %v6366 = vrot.slane %v6329, 1
      %v6367 = vrot.slane %v6330, 1
      %v6368 = vsel %vm4791, %v6366, %v6367
      %v6369 = vrot.slane %v6331, 1
      %v6370 = vsel %vm4791, %v6367, %v6369
      %6371 = vrot.lane.b32.xlu0 %v6368, 16
      %v6372 = vpop.permute.xlu0 %6371
      %6373 = vrot.lane.b32.xlu0 %v6370, 16
      %v6374 = vpop.permute.xlu0 %6373
      %6377 = vst.msk [vmem:[%s6332] sm:$0xff] %vm4803, %v6372
      %6378 = vst.msk [vmem:[%s6332 + $0x8] sm:$0xff] %vm4803, %v6374
      %s6379 = scalar_lea.vmem [#allocation2], 192
      %v6380 = vld [vmem:[%s6379] sm:$0xff]
      %v6381 = vld [vmem:[%s6379 + $0x8] sm:$0xff]
      %6382 = vmatprep.subr.mxu0 0.0
      %6383 = vmatpush1.msra.mxu0 %v6380
      %6384 = vmatprep.subr.mxu0 0.0
      %6385 = vmatpush1.msra.mxu0 %v6381
      %6386 = vmatprep.subr.mxu0 0.0
      %6387 = vmatpush1.msra.mxu0 0.0
      %6388 = vmatprep.subr.mxu0 0.0
      %6389 = vmatpush1.msra.mxu0 0.0
      %6390 = vmatprep.subr.mxu0 0.0
      %6391 = vmatpush1.msra.mxu0 0.0
      %6392 = vmatprep.subr.mxu0 0.0
      %6393 = vmatpush1.msra.mxu0 0.0
      %6394 = vmatprep.subr.mxu0 0.0
      %6395 = vmatpush1.msra.mxu0 0.0
      %6396 = vmatprep.subr.mxu0 0.0
      %6397 = vmatpush1.msra.mxu0 0.0
      %6398 = vmatprep.subr.mxu0 0.0
      %6399 = vmatpush1.msra.mxu0 0.0
      %6400 = vmatprep.subr.mxu0 0.0
      %6401 = vmatpush1.msra.mxu0 0.0
      %6402 = vmatprep.subr.mxu0 0.0
      %6403 = vmatpush1.msra.mxu0 0.0
      %6404 = vmatprep.subr.mxu0 0.0
      %6405 = vmatpush1.msra.mxu0 0.0
      %6406 = vmatprep.subr.mxu0 0.0
      %6407 = vmatpush1.msra.mxu0 0.0
      %6408 = vmatprep.subr.mxu0 0.0
      %6409 = vmatpush1.msra.mxu0 0.0
      %6410 = vmatprep.subr.mxu0 0.0
      %6411 = vmatpush1.msra.mxu0 0.0
      %6412 = vmatprep.subr.mxu0 0.0
      %6413 = vmatpush1.msra.mxu0 0.0
      %6414 = vmatprep.subr.mxu0 0.0
      %6415 = vmatpush1.msra.mxu0 0.0
      %6416 = vmatprep.subr.mxu0 0.0
      %6417 = vmatpush1.msra.mxu0 0.0
      %6418 = vmatprep.subr.mxu0 0.0
      %6419 = vmatpush1.msra.mxu0 0.0
      %6420 = vmatprep.subr.mxu0 0.0
      %6421 = vmatpush1.msra.mxu0 0.0
      %6422 = vmatprep.subr.mxu0 0.0
      %6423 = vmatpush1.msra.mxu0 0.0
      %6424 = vmatprep.subr.mxu0 0.0
      %6425 = vmatpush1.msra.mxu0 0.0
      %6426 = vmatprep.subr.mxu0 0.0
      %6427 = vmatpush1.msra.mxu0 0.0
      %6428 = vmatprep.subr.mxu0 0.0
      %6429 = vmatpush1.msra.mxu0 0.0
      %6430 = vmatprep.subr.mxu0 0.0
      %6431 = vmatpush1.msra.mxu0 0.0
      %6432 = vmatprep.subr.mxu0 0.0
      %6433 = vmatpush1.msra.mxu0 0.0
      %6434 = vmatprep.subr.mxu0 0.0
      %6435 = vmatpush1.msra.mxu0 0.0
      %6436 = vmatprep.subr.mxu0 0.0
      %6437 = vmatpush1.msra.mxu0 0.0
      %6438 = vmatprep.subr.mxu0 0.0
      %6439 = vmatpush1.msra.mxu0 0.0
      %6440 = vmatprep.subr.mxu0 0.0
      %6441 = vmatpush1.msra.mxu0 0.0
      %6442 = vmatprep.subr.mxu0 0.0
      %6443 = vmatpush1.msra.mxu0 0.0
      %6444 = vmatprep.subr.mxu0 0.0
      %6445 = vmatpush1.msra.mxu0 0.0
      %6446 = vmatprep.mubr.f32.mxu0 0.0
      %6447 = vmatmul.mubr.f32.gmra.mrb[0].mxu0 %v4648
      %v6448 = vpop.f32.mrb[0].mxu0
      %v6449 = vadd.f32 0.0, %v6448
      %v6450 = vpop.f32.mrb[0].mxu0
      %6451 = vmatprep.mubr.f32.mxu0 0.0
      %6452 = vmatmul.mubr.f32.gmra.mrb[0].mxu0 %v4651
      %v6453 = vpop.f32.mrb[0].mxu0
      %v6454 = vadd.f32 0.0, %v6453
      %v6455 = vpop.f32.mrb[0].mxu0
      %6456 = vmatprep.mubr.f32.mxu0 0.0
      %6457 = vmatmul.mubr.f32.gmra.mrb[0].mxu0 %v4654
      %v6458 = vpop.f32.mrb[0].mxu0
      %v6459 = vadd.f32 0.0, %v6458
      %v6460 = vpop.f32.mrb[0].mxu0
      %6461 = vmatprep.mubr.f32.mxu0 0.0
      %6462 = vmatmul.mubr.f32.gmra.mrb[0].mxu0 %v4657
      %v6463 = vpop.f32.mrb[0].mxu0
      %v6464 = vadd.f32 0.0, %v6463
      %v6465 = vpop.f32.mrb[0].mxu0
      %6466 = vmatprep.mubr.f32.mxu0 0.0
      %6467 = vmatmul.mubr.f32.gmra.mrb[0].mxu0 %v4660
      %v6468 = vpop.f32.mrb[0].mxu0
      %v6469 = vadd.f32 0.0, %v6468
      %v6470 = vpop.f32.mrb[0].mxu0
      %6471 = vdwg.mxu0
      %v6472 = vpack.c.bf16 %v6454, %v6449
      %v6473 = vpack.c.bf16 %v6464, %v6459
      %v6474 = vpack.c.bf16 %v6469, %v6469
      %s6475 = scalar_lea.vmem [#allocation3], 192
      %6476 = vst.msk [vmem:[%s6475] sm:$0xff] %vm4755, %v6472
      %6477 = vst.msk [vmem:[%s6475 + $0x8] sm:$0xff] %vm4755, %v6473
      %v6479 = vshrl.u32 %v6472, 16
      %v6481 = vshll.u32 %v6472, 16
      %v6483 = vrot.slane %v6481, 1
      %v6484 = vor.u32 %v6479, %v6483
      %v6486 = vshll.u32 %v6473, 16
      %v6488 = vrot.slane %v6486, 1
      %v6489 = vsel %vm4758, %v6484, %v6488
      %v6490 = vshrl.u32 %v6473, 16
      %v6492 = vor.u32 %v6490, %v6488
      %v6494 = vshll.u32 %v6474, 16
      %v6496 = vrot.slane %v6494, 1
      %v6497 = vsel %vm4758, %v6492, %v6496
      %6498 = vrot.lane.b32.xlu0 %v6489, 8
      %v6499 = vpop.permute.xlu0 %6498
      %6500 = vrot.lane.b32.xlu0 %v6497, 8
      %v6501 = vpop.permute.xlu0 %6500
      %6504 = vst.msk [vmem:[%s6475] sm:$0xff] %vm4785, %v6499
      %6505 = vst.msk [vmem:[%s6475 + $0x8] sm:$0xff] %vm4785, %v6501
      %v6509 = vrot.slane %v6472, 1
      %v6510 = vrot.slane %v6473, 1
      %v6511 = vsel %vm4791, %v6509, %v6510
      %v6512 = vrot.slane %v6474, 1
      %v6513 = vsel %vm4791, %v6510, %v6512
      %6514 = vrot.lane.b32.xlu0 %v6511, 16
      %v6515 = vpop.permute.xlu0 %6514
      %6516 = vrot.lane.b32.xlu0 %v6513, 16
      %v6517 = vpop.permute.xlu0 %6516
      %6520 = vst.msk [vmem:[%s6475] sm:$0xff] %vm4803, %v6515
      %6521 = vst.msk [vmem:[%s6475 + $0x8] sm:$0xff] %vm4803, %v6517
      %s6522 = scalar_lea.vmem [#allocation2], 208
      %v6523 = vld [vmem:[%s6522] sm:$0xff]
      %v6524 = vld [vmem:[%s6522 + $0x8] sm:$0xff]
      %6525 = vmatprep.subr.mxu0 0.0
      %6526 = vmatpush1.msra.mxu0 %v6523
      %6527 = vmatprep.subr.mxu0 0.0
      %6528 = vmatpush1.msra.mxu0 %v6524
      %6529 = vmatprep.subr.mxu0 0.0
      %6530 = vmatpush1.msra.mxu0 0.0
      %6531 = vmatprep.subr.mxu0 0.0
      %6532 = vmatpush1.msra.mxu0 0.0
      %6533 = vmatprep.subr.mxu0 0.0
      %6534 = vmatpush1.msra.mxu0 0.0
      %6535 = vmatprep.subr.mxu0 0.0
      %6536 = vmatpush1.msra.mxu0 0.0
      %6537 = vmatprep.subr.mxu0 0.0
      %6538 = vmatpush1.msra.mxu0 0.0
      %6539 = vmatprep.subr.mxu0 0.0
      %6540 = vmatpush1.msra.mxu0 0.0
      %6541 = vmatprep.subr.mxu0 0.0
      %6542 = vmatpush1.msra.mxu0 0.0
      %6543 = vmatprep.subr.mxu0 0.0
      %6544 = vmatpush1.msra.mxu0 0.0
      %6545 = vmatprep.subr.mxu0 0.0
      %6546 = vmatpush1.msra.mxu0 0.0
      %6547 = vmatprep.subr.mxu0 0.0
      %6548 = vmatpush1.msra.mxu0 0.0
      %6549 = vmatprep.subr.mxu0 0.0
      %6550 = vmatpush1.msra.mxu0 0.0
      %6551 = vmatprep.subr.mxu0 0.0
      %6552 = vmatpush1.msra.mxu0 0.0
      %6553 = vmatprep.subr.mxu0 0.0
      %6554 = vmatpush1.msra.mxu0 0.0
      %6555 = vmatprep.subr.mxu0 0.0
      %6556 = vmatpush1.msra.mxu0 0.0
      %6557 = vmatprep.subr.mxu0 0.0
      %6558 = vmatpush1.msra.mxu0 0.0
      %6559 = vmatprep.subr.mxu0 0.0
      %6560 = vmatpush1.msra.mxu0 0.0
      %6561 = vmatprep.subr.mxu0 0.0
      %6562 = vmatpush1.msra.mxu0 0.0
      %6563 = vmatprep.subr.mxu0 0.0
      %6564 = vmatpush1.msra.mxu0 0.0
      %6565 = vmatprep.subr.mxu0 0.0
      %6566 = vmatpush1.msra.mxu0 0.0
      %6567 = vmatprep.subr.mxu0 0.0
      %6568 = vmatpush1.msra.mxu0 0.0
      %6569 = vmatprep.subr.mxu0 0.0
      %6570 = vmatpush1.msra.mxu0 0.0
      %6571 = vmatprep.subr.mxu0 0.0
      %6572 = vmatpush1.msra.mxu0 0.0
      %6573 = vmatprep.subr.mxu0 0.0
      %6574 = vmatpush1.msra.mxu0 0.0
      %6575 = vmatprep.subr.mxu0 0.0
      %6576 = vmatpush1.msra.mxu0 0.0
      %6577 = vmatprep.subr.mxu0 0.0
      %6578 = vmatpush1.msra.mxu0 0.0
      %6579 = vmatprep.subr.mxu0 0.0
      %6580 = vmatpush1.msra.mxu0 0.0
      %6581 = vmatprep.subr.mxu0 0.0
      %6582 = vmatpush1.msra.mxu0 0.0
      %6583 = vmatprep.subr.mxu0 0.0
      %6584 = vmatpush1.msra.mxu0 0.0
      %6585 = vmatprep.subr.mxu0 0.0
      %6586 = vmatpush1.msra.mxu0 0.0
      %6587 = vmatprep.subr.mxu0 0.0
      %6588 = vmatpush1.msra.mxu0 0.0
      %6589 = vmatprep.mubr.f32.mxu0 0.0
      %6590 = vmatmul.mubr.f32.gmra.mrb[0].mxu0 %v4648
      %v6591 = vpop.f32.mrb[0].mxu0
      %v6592 = vadd.f32 0.0, %v6591
      %v6593 = vpop.f32.mrb[0].mxu0
      %6594 = vmatprep.mubr.f32.mxu0 0.0
      %6595 = vmatmul.mubr.f32.gmra.mrb[0].mxu0 %v4651
      %v6596 = vpop.f32.mrb[0].mxu0
      %v6597 = vadd.f32 0.0, %v6596
      %v6598 = vpop.f32.mrb[0].mxu0
      %6599 = vmatprep.mubr.f32.mxu0 0.0
      %6600 = vmatmul.mubr.f32.gmra.mrb[0].mxu0 %v4654
      %v6601 = vpop.f32.mrb[0].mxu0
      %v6602 = vadd.f32 0.0, %v6601
      %v6603 = vpop.f32.mrb[0].mxu0
      %6604 = vmatprep.mubr.f32.mxu0 0.0
      %6605 = vmatmul.mubr.f32.gmra.mrb[0].mxu0 %v4657
      %v6606 = vpop.f32.mrb[0].mxu0
      %v6607 = vadd.f32 0.0, %v6606
      %v6608 = vpop.f32.mrb[0].mxu0
      %6609 = vmatprep.mubr.f32.mxu0 0.0
      %6610 = vmatmul.mubr.f32.gmra.mrb[0].mxu0 %v4660
      %v6611 = vpop.f32.mrb[0].mxu0
      %v6612 = vadd.f32 0.0, %v6611
      %v6613 = vpop.f32.mrb[0].mxu0
      %6614 = vdwg.mxu0
      %v6615 = vpack.c.bf16 %v6597, %v6592
      %v6616 = vpack.c.bf16 %v6607, %v6602
      %v6617 = vpack.c.bf16 %v6612, %v6612
      %s6618 = scalar_lea.vmem [#allocation3], 208
      %6619 = vst.msk [vmem:[%s6618] sm:$0xff] %vm4755, %v6615
      %6620 = vst.msk [vmem:[%s6618 + $0x8] sm:$0xff] %vm4755, %v6616
      %v6622 = vshrl.u32 %v6615, 16
      %v6624 = vshll.u32 %v6615, 16
      %v6626 = vrot.slane %v6624, 1
      %v6627 = vor.u32 %v6622, %v6626
      %v6629 = vshll.u32 %v6616, 16
      %v6631 = vrot.slane %v6629, 1
      %v6632 = vsel %vm4758, %v6627, %v6631
      %v6633 = vshrl.u32 %v6616, 16
      %v6635 = vor.u32 %v6633, %v6631
      %v6637 = vshll.u32 %v6617, 16
      %v6639 = vrot.slane %v6637, 1
      %v6640 = vsel %vm4758, %v6635, %v6639
      %6641 = vrot.lane.b32.xlu0 %v6632, 8
      %v6642 = vpop.permute.xlu0 %6641
      %6643 = vrot.lane.b32.xlu0 %v6640, 8
      %v6644 = vpop.permute.xlu0 %6643
      %6647 = vst.msk [vmem:[%s6618] sm:$0xff] %vm4785, %v6642
      %6648 = vst.msk [vmem:[%s6618 + $0x8] sm:$0xff] %vm4785, %v6644
      %v6652 = vrot.slane %v6615, 1
      %v6653 = vrot.slane %v6616, 1
      %v6654 = vsel %vm4791, %v6652, %v6653
      %v6655 = vrot.slane %v6617, 1
      %v6656 = vsel %vm4791, %v6653, %v6655
      %6657 = vrot.lane.b32.xlu0 %v6654, 16
      %v6658 = vpop.permute.xlu0 %6657
      %6659 = vrot.lane.b32.xlu0 %v6656, 16
      %v6660 = vpop.permute.xlu0 %6659
      %6663 = vst.msk [vmem:[%s6618] sm:$0xff] %vm4803, %v6658
      %6664 = vst.msk [vmem:[%s6618 + $0x8] sm:$0xff] %vm4803, %v6660
      %s6665 = scalar_lea.vmem [#allocation2], 224
      %v6666 = vld [vmem:[%s6665] sm:$0xff]
      %v6667 = vld [vmem:[%s6665 + $0x8] sm:$0xff]
      %6668 = vmatprep.subr.mxu0 0.0
      %6669 = vmatpush1.msra.mxu0 %v6666
      %6670 = vmatprep.subr.mxu0 0.0
      %6671 = vmatpush1.msra.mxu0 %v6667
      %6672 = vmatprep.subr.mxu0 0.0
      %6673 = vmatpush1.msra.mxu0 0.0
      %6674 = vmatprep.subr.mxu0 0.0
      %6675 = vmatpush1.msra.mxu0 0.0
      %6676 = vmatprep.subr.mxu0 0.0
      %6677 = vmatpush1.msra.mxu0 0.0
      %6678 = vmatprep.subr.mxu0 0.0
      %6679 = vmatpush1.msra.mxu0 0.0
      %6680 = vmatprep.subr.mxu0 0.0
      %6681 = vmatpush1.msra.mxu0 0.0
      %6682 = vmatprep.subr.mxu0 0.0
      %6683 = vmatpush1.msra.mxu0 0.0
      %6684 = vmatprep.subr.mxu0 0.0
      %6685 = vmatpush1.msra.mxu0 0.0
      %6686 = vmatprep.subr.mxu0 0.0
      %6687 = vmatpush1.msra.mxu0 0.0
      %6688 = vmatprep.subr.mxu0 0.0
      %6689 = vmatpush1.msra.mxu0 0.0
      %6690 = vmatprep.subr.mxu0 0.0
      %6691 = vmatpush1.msra.mxu0 0.0
      %6692 = vmatprep.subr.mxu0 0.0
      %6693 = vmatpush1.msra.mxu0 0.0
      %6694 = vmatprep.subr.mxu0 0.0
      %6695 = vmatpush1.msra.mxu0 0.0
      %6696 = vmatprep.subr.mxu0 0.0
      %6697 = vmatpush1.msra.mxu0 0.0
      %6698 = vmatprep.subr.mxu0 0.0
      %6699 = vmatpush1.msra.mxu0 0.0
      %6700 = vmatprep.subr.mxu0 0.0
      %6701 = vmatpush1.msra.mxu0 0.0
      %6702 = vmatprep.subr.mxu0 0.0
      %6703 = vmatpush1.msra.mxu0 0.0
      %6704 = vmatprep.subr.mxu0 0.0
      %6705 = vmatpush1.msra.mxu0 0.0
      %6706 = vmatprep.subr.mxu0 0.0
      %6707 = vmatpush1.msra.mxu0 0.0
      %6708 = vmatprep.subr.mxu0 0.0
      %6709 = vmatpush1.msra.mxu0 0.0
      %6710 = vmatprep.subr.mxu0 0.0
      %6711 = vmatpush1.msra.mxu0 0.0
      %6712 = vmatprep.subr.mxu0 0.0
      %6713 = vmatpush1.msra.mxu0 0.0
      %6714 = vmatprep.subr.mxu0 0.0
      %6715 = vmatpush1.msra.mxu0 0.0
      %6716 = vmatprep.subr.mxu0 0.0
      %6717 = vmatpush1.msra.mxu0 0.0
      %6718 = vmatprep.subr.mxu0 0.0
      %6719 = vmatpush1.msra.mxu0 0.0
      %6720 = vmatprep.subr.mxu0 0.0
      %6721 = vmatpush1.msra.mxu0 0.0
      %6722 = vmatprep.subr.mxu0 0.0
      %6723 = vmatpush1.msra.mxu0 0.0
      %6724 = vmatprep.subr.mxu0 0.0
      %6725 = vmatpush1.msra.mxu0 0.0
      %6726 = vmatprep.subr.mxu0 0.0
      %6727 = vmatpush1.msra.mxu0 0.0
      %6728 = vmatprep.subr.mxu0 0.0
      %6729 = vmatpush1.msra.mxu0 0.0
      %6730 = vmatprep.subr.mxu0 0.0
      %6731 = vmatpush1.msra.mxu0 0.0
      %6732 = vmatprep.mubr.f32.mxu0 0.0
      %6733 = vmatmul.mubr.f32.gmra.mrb[0].mxu0 %v4648
      %v6734 = vpop.f32.mrb[0].mxu0
      %v6735 = vadd.f32 0.0, %v6734
      %v6736 = vpop.f32.mrb[0].mxu0
      %6737 = vmatprep.mubr.f32.mxu0 0.0
      %6738 = vmatmul.mubr.f32.gmra.mrb[0].mxu0 %v4651
      %v6739 = vpop.f32.mrb[0].mxu0
      %v6740 = vadd.f32 0.0, %v6739
      %v6741 = vpop.f32.mrb[0].mxu0
      %6742 = vmatprep.mubr.f32.mxu0 0.0
      %6743 = vmatmul.mubr.f32.gmra.mrb[0].mxu0 %v4654
      %v6744 = vpop.f32.mrb[0].mxu0
      %v6745 = vadd.f32 0.0, %v6744
      %v6746 = vpop.f32.mrb[0].mxu0
      %6747 = vmatprep.mubr.f32.mxu0 0.0
      %6748 = vmatmul.mubr.f32.gmra.mrb[0].mxu0 %v4657
      %v6749 = vpop.f32.mrb[0].mxu0
      %v6750 = vadd.f32 0.0, %v6749
      %v6751 = vpop.f32.mrb[0].mxu0
      %6752 = vmatprep.mubr.f32.mxu0 0.0
      %6753 = vmatmul.mubr.f32.gmra.mrb[0].mxu0 %v4660
      %v6754 = vpop.f32.mrb[0].mxu0
      %v6755 = vadd.f32 0.0, %v6754
      %v6756 = vpop.f32.mrb[0].mxu0
      %6757 = vdwg.mxu0
      %v6758 = vpack.c.bf16 %v6740, %v6735
      %v6759 = vpack.c.bf16 %v6750, %v6745
      %v6760 = vpack.c.bf16 %v6755, %v6755
      %s6761 = scalar_lea.vmem [#allocation3], 224
      %6762 = vst.msk [vmem:[%s6761] sm:$0xff] %vm4755, %v6758
      %6763 = vst.msk [vmem:[%s6761 + $0x8] sm:$0xff] %vm4755, %v6759
      %v6765 = vshrl.u32 %v6758, 16
      %v6767 = vshll.u32 %v6758, 16
      %v6769 = vrot.slane %v6767, 1
      %v6770 = vor.u32 %v6765, %v6769
      %v6772 = vshll.u32 %v6759, 16
      %v6774 = vrot.slane %v6772, 1
      %v6775 = vsel %vm4758, %v6770, %v6774
      %v6776 = vshrl.u32 %v6759, 16
      %v6778 = vor.u32 %v6776, %v6774
      %v6780 = vshll.u32 %v6760, 16
      %v6782 = vrot.slane %v6780, 1
      %v6783 = vsel %vm4758, %v6778, %v6782
      %6784 = vrot.lane.b32.xlu0 %v6775, 8
      %v6785 = vpop.permute.xlu0 %6784
      %6786 = vrot.lane.b32.xlu0 %v6783, 8
      %v6787 = vpop.permute.xlu0 %6786
      %6790 = vst.msk [vmem:[%s6761] sm:$0xff] %vm4785, %v6785
      %6791 = vst.msk [vmem:[%s6761 + $0x8] sm:$0xff] %vm4785, %v6787
      %v6795 = vrot.slane %v6758, 1
      %v6796 = vrot.slane %v6759, 1
      %v6797 = vsel %vm4791, %v6795, %v6796
      %v6798 = vrot.slane %v6760, 1
      %v6799 = vsel %vm4791, %v6796, %v6798
      %6800 = vrot.lane.b32.xlu0 %v6797, 16
      %v6801 = vpop.permute.xlu0 %6800
      %6802 = vrot.lane.b32.xlu0 %v6799, 16
      %v6803 = vpop.permute.xlu0 %6802
      %6806 = vst.msk [vmem:[%s6761] sm:$0xff] %vm4803, %v6801
      %6807 = vst.msk [vmem:[%s6761 + $0x8] sm:$0xff] %vm4803, %v6803
      %s6808 = scalar_lea.vmem [#allocation2], 240
      %v6809 = vld [vmem:[%s6808] sm:$0xff]
      %v6810 = vld [vmem:[%s6808 + $0x8] sm:$0xff]
      %6811 = vmatprep.subr.mxu0 0.0
      %6812 = vmatpush1.msra.mxu0 %v6809
      %6813 = vmatprep.subr.mxu0 0.0
      %6814 = vmatpush1.msra.mxu0 %v6810
      %6815 = vmatprep.subr.mxu0 0.0
      %6816 = vmatpush1.msra.mxu0 0.0
      %6817 = vmatprep.subr.mxu0 0.0
      %6818 = vmatpush1.msra.mxu0 0.0
      %6819 = vmatprep.subr.mxu0 0.0
      %6820 = vmatpush1.msra.mxu0 0.0
      %6821 = vmatprep.subr.mxu0 0.0
      %6822 = vmatpush1.msra.mxu0 0.0
      %6823 = vmatprep.subr.mxu0 0.0
      %6824 = vmatpush1.msra.mxu0 0.0
      %6825 = vmatprep.subr.mxu0 0.0
      %6826 = vmatpush1.msra.mxu0 0.0
      %6827 = vmatprep.subr.mxu0 0.0
      %6828 = vmatpush1.msra.mxu0 0.0
      %6829 = vmatprep.subr.mxu0 0.0
      %6830 = vmatpush1.msra.mxu0 0.0
      %6831 = vmatprep.subr.mxu0 0.0
      %6832 = vmatpush1.msra.mxu0 0.0
      %6833 = vmatprep.subr.mxu0 0.0
      %6834 = vmatpush1.msra.mxu0 0.0
      %6835 = vmatprep.subr.mxu0 0.0
      %6836 = vmatpush1.msra.mxu0 0.0
      %6837 = vmatprep.subr.mxu0 0.0
      %6838 = vmatpush1.msra.mxu0 0.0
      %6839 = vmatprep.subr.mxu0 0.0
      %6840 = vmatpush1.msra.mxu0 0.0
      %6841 = vmatprep.subr.mxu0 0.0
      %6842 = vmatpush1.msra.mxu0 0.0
      %6843 = vmatprep.subr.mxu0 0.0
      %6844 = vmatpush1.msra.mxu0 0.0
      %6845 = vmatprep.subr.mxu0 0.0
      %6846 = vmatpush1.msra.mxu0 0.0
      %6847 = vmatprep.subr.mxu0 0.0
      %6848 = vmatpush1.msra.mxu0 0.0
      %6849 = vmatprep.subr.mxu0 0.0
      %6850 = vmatpush1.msra.mxu0 0.0
      %6851 = vmatprep.subr.mxu0 0.0
      %6852 = vmatpush1.msra.mxu0 0.0
      %6853 = vmatprep.subr.mxu0 0.0
      %6854 = vmatpush1.msra.mxu0 0.0
      %6855 = vmatprep.subr.mxu0 0.0
      %6856 = vmatpush1.msra.mxu0 0.0
      %6857 = vmatprep.subr.mxu0 0.0
      %6858 = vmatpush1.msra.mxu0 0.0
      %6859 = vmatprep.subr.mxu0 0.0
      %6860 = vmatpush1.msra.mxu0 0.0
      %6861 = vmatprep.subr.mxu0 0.0
      %6862 = vmatpush1.msra.mxu0 0.0
      %6863 = vmatprep.subr.mxu0 0.0
      %6864 = vmatpush1.msra.mxu0 0.0
      %6865 = vmatprep.subr.mxu0 0.0
      %6866 = vmatpush1.msra.mxu0 0.0
      %6867 = vmatprep.subr.mxu0 0.0
      %6868 = vmatpush1.msra.mxu0 0.0
      %6869 = vmatprep.subr.mxu0 0.0
      %6870 = vmatpush1.msra.mxu0 0.0
      %6871 = vmatprep.subr.mxu0 0.0
      %6872 = vmatpush1.msra.mxu0 0.0
      %6873 = vmatprep.subr.mxu0 0.0
      %6874 = vmatpush1.msra.mxu0 0.0
      %6875 = vmatprep.mubr.f32.mxu0 0.0
      %6876 = vmatmul.mubr.f32.gmra.mrb[0].mxu0 %v4648
      %v6877 = vpop.f32.mrb[0].mxu0
      %v6878 = vadd.f32 0.0, %v6877
      %v6879 = vpop.f32.mrb[0].mxu0
      %6880 = vmatprep.mubr.f32.mxu0 0.0
      %6881 = vmatmul.mubr.f32.gmra.mrb[0].mxu0 %v4651
      %v6882 = vpop.f32.mrb[0].mxu0
      %v6883 = vadd.f32 0.0, %v6882
      %v6884 = vpop.f32.mrb[0].mxu0
      %6885 = vmatprep.mubr.f32.mxu0 0.0
      %6886 = vmatmul.mubr.f32.gmra.mrb[0].mxu0 %v4654
      %v6887 = vpop.f32.mrb[0].mxu0
      %v6888 = vadd.f32 0.0, %v6887
      %v6889 = vpop.f32.mrb[0].mxu0
      %6890 = vmatprep.mubr.f32.mxu0 0.0
      %6891 = vmatmul.mubr.f32.gmra.mrb[0].mxu0 %v4657
      %v6892 = vpop.f32.mrb[0].mxu0
      %v6893 = vadd.f32 0.0, %v6892
      %v6894 = vpop.f32.mrb[0].mxu0
      %6895 = vmatprep.mubr.f32.mxu0 0.0
      %6896 = vmatmul.mubr.f32.gmra.mrb[0].mxu0 %v4660
      %v6897 = vpop.f32.mrb[0].mxu0
      %v6898 = vadd.f32 0.0, %v6897
      %v6899 = vpop.f32.mrb[0].mxu0
      %6900 = vdwg.mxu0
      %v6901 = vpack.c.bf16 %v6883, %v6878
      %v6902 = vpack.c.bf16 %v6893, %v6888
      %v6903 = vpack.c.bf16 %v6898, %v6898
      %s6904 = scalar_lea.vmem [#allocation3], 240
      %6905 = vst.msk [vmem:[%s6904] sm:$0xff] %vm4755, %v6901
      %6906 = vst.msk [vmem:[%s6904 + $0x8] sm:$0xff] %vm4755, %v6902
      %v6908 = vshrl.u32 %v6901, 16
      %v6910 = vshll.u32 %v6901, 16
      %v6912 = vrot.slane %v6910, 1
      %v6913 = vor.u32 %v6908, %v6912
      %v6915 = vshll.u32 %v6902, 16
      %v6917 = vrot.slane %v6915, 1
      %v6918 = vsel %vm4758, %v6913, %v6917
      %v6919 = vshrl.u32 %v6902, 16
      %v6921 = vor.u32 %v6919, %v6917
      %v6923 = vshll.u32 %v6903, 16
      %v6925 = vrot.slane %v6923, 1
      %v6926 = vsel %vm4758, %v6921, %v6925
      %6927 = vrot.lane.b32.xlu0 %v6918, 8
      %v6928 = vpop.permute.xlu0 %6927
      %6929 = vrot.lane.b32.xlu0 %v6926, 8
      %v6930 = vpop.permute.xlu0 %6929
      %6933 = vst.msk [vmem:[%s6904] sm:$0xff] %vm4785, %v6928
      %6934 = vst.msk [vmem:[%s6904 + $0x8] sm:$0xff] %vm4785, %v6930
      %v6938 = vrot.slane %v6901, 1
      %v6939 = vrot.slane %v6902, 1
      %v6940 = vsel %vm4791, %v6938, %v6939
      %v6941 = vrot.slane %v6903, 1
      %v6942 = vsel %vm4791, %v6939, %v6941
      %6943 = vrot.lane.b32.xlu0 %v6940, 16
      %v6944 = vpop.permute.xlu0 %6943
      %6945 = vrot.lane.b32.xlu0 %v6942, 16
      %v6946 = vpop.permute.xlu0 %6945
      %6949 = vst.msk [vmem:[%s6904] sm:$0xff] %vm4803, %v6944
      %6950 = vst.msk [vmem:[%s6904 + $0x8] sm:$0xff] %vm4803, %v6946
      %s6951 = scalar_lea.vmem [#allocation2], 256
      %v6952 = vld [vmem:[%s6951] sm:$0xff]
      %v6953 = vld [vmem:[%s6951 + $0x8] sm:$0xff]
      %6954 = vmatprep.subr.mxu0 0.0
      %6955 = vmatpush1.msra.mxu0 %v6952
      %6956 = vmatprep.subr.mxu0 0.0
      %6957 = vmatpush1.msra.mxu0 %v6953
      %6958 = vmatprep.subr.mxu0 0.0
      %6959 = vmatpush1.msra.mxu0 0.0
      %6960 = vmatprep.subr.mxu0 0.0
      %6961 = vmatpush1.msra.mxu0 0.0
      %6962 = vmatprep.subr.mxu0 0.0
      %6963 = vmatpush1.msra.mxu0 0.0
      %6964 = vmatprep.subr.mxu0 0.0
      %6965 = vmatpush1.msra.mxu0 0.0
      %6966 = vmatprep.subr.mxu0 0.0
      %6967 = vmatpush1.msra.mxu0 0.0
      %6968 = vmatprep.subr.mxu0 0.0
      %6969 = vmatpush1.msra.mxu0 0.0
      %6970 = vmatprep.subr.mxu0 0.0
      %6971 = vmatpush1.msra.mxu0 0.0
      %6972 = vmatprep.subr.mxu0 0.0
      %6973 = vmatpush1.msra.mxu0 0.0
      %6974 = vmatprep.subr.mxu0 0.0
      %6975 = vmatpush1.msra.mxu0 0.0
      %6976 = vmatprep.subr.mxu0 0.0
      %6977 = vmatpush1.msra.mxu0 0.0
      %6978 = vmatprep.subr.mxu0 0.0
      %6979 = vmatpush1.msra.mxu0 0.0
      %6980 = vmatprep.subr.mxu0 0.0
      %6981 = vmatpush1.msra.mxu0 0.0
      %6982 = vmatprep.subr.mxu0 0.0
      %6983 = vmatpush1.msra.mxu0 0.0
      %6984 = vmatprep.subr.mxu0 0.0
      %6985 = vmatpush1.msra.mxu0 0.0
      %6986 = vmatprep.subr.mxu0 0.0
      %6987 = vmatpush1.msra.mxu0 0.0
      %6988 = vmatprep.subr.mxu0 0.0
      %6989 = vmatpush1.msra.mxu0 0.0
      %6990 = vmatprep.subr.mxu0 0.0
      %6991 = vmatpush1.msra.mxu0 0.0
      %6992 = vmatprep.subr.mxu0 0.0
      %6993 = vmatpush1.msra.mxu0 0.0
      %6994 = vmatprep.subr.mxu0 0.0
      %6995 = vmatpush1.msra.mxu0 0.0
      %6996 = vmatprep.subr.mxu0 0.0
      %6997 = vmatpush1.msra.mxu0 0.0
      %6998 = vmatprep.subr.mxu0 0.0
      %6999 = vmatpush1.msra.mxu0 0.0
      %7000 = vmatprep.subr.mxu0 0.0
      %7001 = vmatpush1.msra.mxu0 0.0
      %7002 = vmatprep.subr.mxu0 0.0
      %7003 = vmatpush1.msra.mxu0 0.0
      %7004 = vmatprep.subr.mxu0 0.0
      %7005 = vmatpush1.msra.mxu0 0.0
      %7006 = vmatprep.subr.mxu0 0.0
      %7007 = vmatpush1.msra.mxu0 0.0
      %7008 = vmatprep.subr.mxu0 0.0
      %7009 = vmatpush1.msra.mxu0 0.0
      %7010 = vmatprep.subr.mxu0 0.0
      %7011 = vmatpush1.msra.mxu0 0.0
      %7012 = vmatprep.subr.mxu0 0.0
      %7013 = vmatpush1.msra.mxu0 0.0
      %7014 = vmatprep.subr.mxu0 0.0
      %7015 = vmatpush1.msra.mxu0 0.0
      %7016 = vmatprep.subr.mxu0 0.0
      %7017 = vmatpush1.msra.mxu0 0.0
      %7018 = vmatprep.mubr.f32.mxu0 0.0
      %7019 = vmatmul.mubr.f32.gmra.mrb[0].mxu0 %v4648
      %v7020 = vpop.f32.mrb[0].mxu0
      %v7021 = vadd.f32 0.0, %v7020
      %v7022 = vpop.f32.mrb[0].mxu0
      %7023 = vmatprep.mubr.f32.mxu0 0.0
      %7024 = vmatmul.mubr.f32.gmra.mrb[0].mxu0 %v4651
      %v7025 = vpop.f32.mrb[0].mxu0
      %v7026 = vadd.f32 0.0, %v7025
      %v7027 = vpop.f32.mrb[0].mxu0
      %7028 = vmatprep.mubr.f32.mxu0 0.0
      %7029 = vmatmul.mubr.f32.gmra.mrb[0].mxu0 %v4654
      %v7030 = vpop.f32.mrb[0].mxu0
      %v7031 = vadd.f32 0.0, %v7030
      %v7032 = vpop.f32.mrb[0].mxu0
      %7033 = vmatprep.mubr.f32.mxu0 0.0
      %7034 = vmatmul.mubr.f32.gmra.mrb[0].mxu0 %v4657
      %v7035 = vpop.f32.mrb[0].mxu0
      %v7036 = vadd.f32 0.0, %v7035
      %v7037 = vpop.f32.mrb[0].mxu0
      %7038 = vmatprep.mubr.f32.mxu0 0.0
      %7039 = vmatmul.mubr.f32.gmra.mrb[0].mxu0 %v4660
      %v7040 = vpop.f32.mrb[0].mxu0
      %v7041 = vadd.f32 0.0, %v7040
      %v7042 = vpop.f32.mrb[0].mxu0
      %7043 = vdwg.mxu0
      %v7044 = vpack.c.bf16 %v7026, %v7021
      %v7045 = vpack.c.bf16 %v7036, %v7031
      %v7046 = vpack.c.bf16 %v7041, %v7041
      %s7047 = scalar_lea.vmem [#allocation3], 256
      %7048 = vst.msk [vmem:[%s7047] sm:$0xff] %vm4755, %v7044
      %7049 = vst.msk [vmem:[%s7047 + $0x8] sm:$0xff] %vm4755, %v7045
      %v7051 = vshrl.u32 %v7044, 16
      %v7053 = vshll.u32 %v7044, 16
      %v7055 = vrot.slane %v7053, 1
      %v7056 = vor.u32 %v7051, %v7055
      %v7058 = vshll.u32 %v7045, 16
      %v7060 = vrot.slane %v7058, 1
      %v7061 = vsel %vm4758, %v7056, %v7060
      %v7062 = vshrl.u32 %v7045, 16
      %v7064 = vor.u32 %v7062, %v7060
      %v7066 = vshll.u32 %v7046, 16
      %v7068 = vrot.slane %v7066, 1
      %v7069 = vsel %vm4758, %v7064, %v7068
      %7070 = vrot.lane.b32.xlu0 %v7061, 8
      %v7071 = vpop.permute.xlu0 %7070
      %7072 = vrot.lane.b32.xlu0 %v7069, 8
      %v7073 = vpop.permute.xlu0 %7072
      %7076 = vst.msk [vmem:[%s7047] sm:$0xff] %vm4785, %v7071
      %7077 = vst.msk [vmem:[%s7047 + $0x8] sm:$0xff] %vm4785, %v7073
      %v7081 = vrot.slane %v7044, 1
      %v7082 = vrot.slane %v7045, 1
      %v7083 = vsel %vm4791, %v7081, %v7082
      %v7084 = vrot.slane %v7046, 1
      %v7085 = vsel %vm4791, %v7082, %v7084
      %7086 = vrot.lane.b32.xlu0 %v7083, 16
      %v7087 = vpop.permute.xlu0 %7086
      %7088 = vrot.lane.b32.xlu0 %v7085, 16
      %v7089 = vpop.permute.xlu0 %7088
      %7092 = vst.msk [vmem:[%s7047] sm:$0xff] %vm4803, %v7087
      %7093 = vst.msk [vmem:[%s7047 + $0x8] sm:$0xff] %vm4803, %v7089
      %s7094 = scalar_lea.vmem [#allocation2], 272
      %v7095 = vld [vmem:[%s7094] sm:$0xff]
      %v7096 = vld [vmem:[%s7094 + $0x8] sm:$0xff]
      %7097 = vmatprep.subr.mxu0 0.0
      %7098 = vmatpush1.msra.mxu0 %v7095
      %7099 = vmatprep.subr.mxu0 0.0
      %7100 = vmatpush1.msra.mxu0 %v7096
      %7101 = vmatprep.subr.mxu0 0.0
      %7102 = vmatpush1.msra.mxu0 0.0
      %7103 = vmatprep.subr.mxu0 0.0
      %7104 = vmatpush1.msra.mxu0 0.0
      %7105 = vmatprep.subr.mxu0 0.0
      %7106 = vmatpush1.msra.mxu0 0.0
      %7107 = vmatprep.subr.mxu0 0.0
      %7108 = vmatpush1.msra.mxu0 0.0
      %7109 = vmatprep.subr.mxu0 0.0
      %7110 = vmatpush1.msra.mxu0 0.0
      %7111 = vmatprep.subr.mxu0 0.0
      %7112 = vmatpush1.msra.mxu0 0.0
      %7113 = vmatprep.subr.mxu0 0.0
      %7114 = vmatpush1.msra.mxu0 0.0
      %7115 = vmatprep.subr.mxu0 0.0
      %7116 = vmatpush1.msra.mxu0 0.0
      %7117 = vmatprep.subr.mxu0 0.0
      %7118 = vmatpush1.msra.mxu0 0.0
      %7119 = vmatprep.subr.mxu0 0.0
      %7120 = vmatpush1.msra.mxu0 0.0
      %7121 = vmatprep.subr.mxu0 0.0
      %7122 = vmatpush1.msra.mxu0 0.0
      %7123 = vmatprep.subr.mxu0 0.0
      %7124 = vmatpush1.msra.mxu0 0.0
      %7125 = vmatprep.subr.mxu0 0.0
      %7126 = vmatpush1.msra.mxu0 0.0
      %7127 = vmatprep.subr.mxu0 0.0
      %7128 = vmatpush1.msra.mxu0 0.0
      %7129 = vmatprep.subr.mxu0 0.0
      %7130 = vmatpush1.msra.mxu0 0.0
      %7131 = vmatprep.subr.mxu0 0.0
      %7132 = vmatpush1.msra.mxu0 0.0
      %7133 = vmatprep.subr.mxu0 0.0
      %7134 = vmatpush1.msra.mxu0 0.0
      %7135 = vmatprep.subr.mxu0 0.0
      %7136 = vmatpush1.msra.mxu0 0.0
      %7137 = vmatprep.subr.mxu0 0.0
      %7138 = vmatpush1.msra.mxu0 0.0
      %7139 = vmatprep.subr.mxu0 0.0
      %7140 = vmatpush1.msra.mxu0 0.0
      %7141 = vmatprep.subr.mxu0 0.0
      %7142 = vmatpush1.msra.mxu0 0.0
      %7143 = vmatprep.subr.mxu0 0.0
      %7144 = vmatpush1.msra.mxu0 0.0
      %7145 = vmatprep.subr.mxu0 0.0
      %7146 = vmatpush1.msra.mxu0 0.0
      %7147 = vmatprep.subr.mxu0 0.0
      %7148 = vmatpush1.msra.mxu0 0.0
      %7149 = vmatprep.subr.mxu0 0.0
      %7150 = vmatpush1.msra.mxu0 0.0
      %7151 = vmatprep.subr.mxu0 0.0
      %7152 = vmatpush1.msra.mxu0 0.0
      %7153 = vmatprep.subr.mxu0 0.0
      %7154 = vmatpush1.msra.mxu0 0.0
      %7155 = vmatprep.subr.mxu0 0.0
      %7156 = vmatpush1.msra.mxu0 0.0
      %7157 = vmatprep.subr.mxu0 0.0
      %7158 = vmatpush1.msra.mxu0 0.0
      %7159 = vmatprep.subr.mxu0 0.0
      %7160 = vmatpush1.msra.mxu0 0.0
      %7161 = vmatprep.mubr.f32.mxu0 0.0
      %7162 = vmatmul.mubr.f32.gmra.mrb[0].mxu0 %v4648
      %v7163 = vpop.f32.mrb[0].mxu0
      %v7164 = vadd.f32 0.0, %v7163
      %v7165 = vpop.f32.mrb[0].mxu0
      %7166 = vmatprep.mubr.f32.mxu0 0.0
      %7167 = vmatmul.mubr.f32.gmra.mrb[0].mxu0 %v4651
      %v7168 = vpop.f32.mrb[0].mxu0
      %v7169 = vadd.f32 0.0, %v7168
      %v7170 = vpop.f32.mrb[0].mxu0
      %7171 = vmatprep.mubr.f32.mxu0 0.0
      %7172 = vmatmul.mubr.f32.gmra.mrb[0].mxu0 %v4654
      %v7173 = vpop.f32.mrb[0].mxu0
      %v7174 = vadd.f32 0.0, %v7173
      %v7175 = vpop.f32.mrb[0].mxu0
      %7176 = vmatprep.mubr.f32.mxu0 0.0
      %7177 = vmatmul.mubr.f32.gmra.mrb[0].mxu0 %v4657
      %v7178 = vpop.f32.mrb[0].mxu0
      %v7179 = vadd.f32 0.0, %v7178
      %v7180 = vpop.f32.mrb[0].mxu0
      %7181 = vmatprep.mubr.f32.mxu0 0.0
      %7182 = vmatmul.mubr.f32.gmra.mrb[0].mxu0 %v4660
      %v7183 = vpop.f32.mrb[0].mxu0
      %v7184 = vadd.f32 0.0, %v7183
      %v7185 = vpop.f32.mrb[0].mxu0
      %7186 = vdwg.mxu0
      %v7187 = vpack.c.bf16 %v7169, %v7164
      %v7188 = vpack.c.bf16 %v7179, %v7174
      %v7189 = vpack.c.bf16 %v7184, %v7184
      %s7190 = scalar_lea.vmem [#allocation3], 272
      %7191 = vst.msk [vmem:[%s7190] sm:$0xff] %vm4755, %v7187
      %7192 = vst.msk [vmem:[%s7190 + $0x8] sm:$0xff] %vm4755, %v7188
      %v7194 = vshrl.u32 %v7187, 16
      %v7196 = vshll.u32 %v7187, 16
      %v7198 = vrot.slane %v7196, 1
      %v7199 = vor.u32 %v7194, %v7198
      %v7201 = vshll.u32 %v7188, 16
      %v7203 = vrot.slane %v7201, 1
      %v7204 = vsel %vm4758, %v7199, %v7203
      %v7205 = vshrl.u32 %v7188, 16
      %v7207 = vor.u32 %v7205, %v7203
      %v7209 = vshll.u32 %v7189, 16
      %v7211 = vrot.slane %v7209, 1
      %v7212 = vsel %vm4758, %v7207, %v7211
      %7213 = vrot.lane.b32.xlu0 %v7204, 8
      %v7214 = vpop.permute.xlu0 %7213
      %7215 = vrot.lane.b32.xlu0 %v7212, 8
      %v7216 = vpop.permute.xlu0 %7215
      %7219 = vst.msk [vmem:[%s7190] sm:$0xff] %vm4785, %v7214
      %7220 = vst.msk [vmem:[%s7190 + $0x8] sm:$0xff] %vm4785, %v7216
      %v7224 = vrot.slane %v7187, 1
      %v7225 = vrot.slane %v7188, 1
      %v7226 = vsel %vm4791, %v7224, %v7225
      %v7227 = vrot.slane %v7189, 1
      %v7228 = vsel %vm4791, %v7225, %v7227
      %7229 = vrot.lane.b32.xlu0 %v7226, 16
      %v7230 = vpop.permute.xlu0 %7229
      %7231 = vrot.lane.b32.xlu0 %v7228, 16
      %v7232 = vpop.permute.xlu0 %7231
      %7235 = vst.msk [vmem:[%s7190] sm:$0xff] %vm4803, %v7230
      %7236 = vst.msk [vmem:[%s7190 + $0x8] sm:$0xff] %vm4803, %v7232
      %v7237 = vld [vmem:[#allocation3] sm:$0xff]
      %v7238 = vld [vmem:[#allocation3 + $0x8] sm:$0xff]
      %v7239 = vld [vmem:[#allocation3 + $0x10] sm:$0xff]
      %v7240 = vld [vmem:[#allocation3 + $0x18] sm:$0xff]
      %v7241 = vld [vmem:[#allocation3 + $0x20] sm:$0xff]
      %v7242 = vld [vmem:[#allocation3 + $0x28] sm:$0xff]
      %v7243 = vld [vmem:[#allocation3 + $0x30] sm:$0xff]
      %v7244 = vld [vmem:[#allocation3 + $0x38] sm:$0xff]
      %v7245 = vld [vmem:[#allocation3 + $0x40] sm:$0xff]
      %v7246 = vld [vmem:[#allocation3 + $0x48] sm:$0xff]
      %v7247 = vld [vmem:[#allocation3 + $0x50] sm:$0xff]
      %v7248 = vld [vmem:[#allocation3 + $0x58] sm:$0xff]
      %v7249 = vld [vmem:[#allocation3 + $0x60] sm:$0xff]
      %v7250 = vld [vmem:[#allocation3 + $0x68] sm:$0xff]
      %v7251 = vld [vmem:[#allocation3 + $0x70] sm:$0xff]
      %v7252 = vld [vmem:[#allocation3 + $0x78] sm:$0xff]
      %v7253 = vld [vmem:[#allocation3 + $0x80] sm:$0xff]
      %v7254 = vld [vmem:[#allocation3 + $0x88] sm:$0xff]
      %v7255 = vld [vmem:[#allocation3 + $0x90] sm:$0xff]
      %v7256 = vld [vmem:[#allocation3 + $0x98] sm:$0xff]
      %v7257 = vld [vmem:[#allocation3 + $0xa0] sm:$0xff]
      %v7258 = vld [vmem:[#allocation3 + $0xa8] sm:$0xff]
      %v7259 = vld [vmem:[#allocation3 + $0xb0] sm:$0xff]
      %v7260 = vld [vmem:[#allocation3 + $0xb8] sm:$0xff]
      %v7261 = vld [vmem:[#allocation3 + $0xc0] sm:$0xff]
      %v7262 = vld [vmem:[#allocation3 + $0xc8] sm:$0xff]
      %v7263 = vld [vmem:[#allocation3 + $0xd0] sm:$0xff]
      %v7264 = vld [vmem:[#allocation3 + $0xd8] sm:$0xff]
      %v7265 = vld [vmem:[#allocation3 + $0xe0] sm:$0xff]
      %v7266 = vld [vmem:[#allocation3 + $0xe8] sm:$0xff]
      %v7267 = vld [vmem:[#allocation3 + $0xf0] sm:$0xff]
      %v7268 = vld [vmem:[#allocation3 + $0xf8] sm:$0xff]
      %v7269 = vld [vmem:[%s3] sm:$0xf]
      %v7270 = vld [vmem:[%s3 + $0x4] sm:$0xf]
      %v7271 = vld [vmem:[%s3 + $0x8] sm:$0xf]
      %v7272 = vld [vmem:[%s4902] sm:$0xff]
      %v7273 = vld [vmem:[%s4902 + $0x8] sm:$0xff]
      %v7274 = vld [vmem:[%s4902 + $0x10] sm:$0xff]
      %v7275 = vld [vmem:[%s4902 + $0x18] sm:$0xff]
      %v7276 = vld [vmem:[%s4902 + $0x20] sm:$0xff]
      %v7277 = vld [vmem:[%s4902 + $0x28] sm:$0xff]
      %v7278 = vld [vmem:[%s4902 + $0x30] sm:$0xff]
      %v7279 = vld [vmem:[%s4902 + $0x38] sm:$0xff]
      %v7280 = vld [vmem:[%s4902 + $0x40] sm:$0xff]
      %v7281 = vld [vmem:[%s4902 + $0x48] sm:$0xff]
      %v7282 = vld [vmem:[%s4902 + $0x50] sm:$0xff]
      %v7283 = vld [vmem:[%s4902 + $0x58] sm:$0xff]
      %v7284 = vld [vmem:[%s4902 + $0x60] sm:$0xff]
      %v7285 = vld [vmem:[%s4902 + $0x68] sm:$0xff]
      %v7286 = vld [vmem:[%s4902 + $0x70] sm:$0xff]
      %v7287 = vld [vmem:[%s4902 + $0x78] sm:$0xff]
      %v7288 = vld [vmem:[%s4902 + $0x80] sm:$0xff]
      %v7289 = vld [vmem:[%s4902 + $0x88] sm:$0xff]
      %v7290 = vld [vmem:[%s4902 + $0x90] sm:$0xff]
      %v7291 = vld [vmem:[%s4902 + $0x98] sm:$0xff]
      %v7292 = vld [vmem:[%s4902 + $0xa0] sm:$0xff]
      %v7293 = vld [vmem:[%s4902 + $0xa8] sm:$0xff]
      %v7294 = vld [vmem:[%s4902 + $0xb0] sm:$0xff]
      %v7295 = vld [vmem:[%s4902 + $0xb8] sm:$0xff]
      %v7296 = vld [vmem:[%s4902 + $0xc0] sm:$0xff]
      %v7297 = vld [vmem:[%s4902 + $0xc8] sm:$0xff]
      %v7298 = vld [vmem:[%s4902 + $0xd0] sm:$0xff]
      %v7299 = vld [vmem:[%s4902 + $0xd8] sm:$0xff]
      %v7300 = vld [vmem:[%s4902 + $0xe0] sm:$0xff]
      %v7301 = vld [vmem:[%s4902 + $0xe8] sm:$0xff]
      %v7302 = vld [vmem:[%s4902 + $0xf0] sm:$0xff]
      %v7303 = vld [vmem:[%s4902 + $0xf8] sm:$0xff]
      %s7304 = scalar_lea.vmem %s3, 12
      %v7305 = vld [vmem:[%s7304] sm:$0xf]
      %v7306 = vld [vmem:[%s7304 + $0x4] sm:$0xf]
      %v7307 = vld [vmem:[%s7304 + $0x8] sm:$0xf]
      %v7311 = vunpack.c.l.b16 %v7305
      %v7312 = vunpack.c.l.b16 %v7306
      %v7313 = vunpack.c.l.b16 %v7307
      %v7314 = vpack.c.b16 %v7312, %v7311
      %v7315 = vpack.c.b16 %v7313, %v7313
      %vm7317 = vcmask 195584
      %v7319 = vsel %vm7317, %v7272, 0
      %v7322 = vsel %vm7317, %v7273, 0
      %v7325 = vsel %vm7317, %v7274, 0
      %v7328 = vsel %vm7317, %v7275, 0
      %v7331 = vsel %vm7317, %v7276, 0
      %v7334 = vsel %vm7317, %v7277, 0
      %v7337 = vsel %vm7317, %v7278, 0
      %v7340 = vsel %vm7317, %v7279, 0
      %v7343 = vsel %vm7317, %v7280, 0
      %v7346 = vsel %vm7317, %v7281, 0
      %v7349 = vsel %vm7317, %v7282, 0
      %v7352 = vsel %vm7317, %v7283, 0
      %v7355 = vsel %vm7317, %v7284, 0
      %v7358 = vsel %vm7317, %v7285, 0
      %v7361 = vsel %vm7317, %v7286, 0
      %v7364 = vsel %vm7317, %v7287, 0
      %v7367 = vsel %vm7317, %v7288, 0
      %v7370 = vsel %vm7317, %v7289, 0
      %v7373 = vsel %vm7317, %v7290, 0
      %v7376 = vsel %vm7317, %v7291, 0
      %v7379 = vsel %vm7317, %v7292, 0
      %v7382 = vsel %vm7317, %v7293, 0
      %v7385 = vsel %vm7317, %v7294, 0
      %v7388 = vsel %vm7317, %v7295, 0
      %v7391 = vsel %vm7317, %v7296, 0
      %v7394 = vsel %vm7317, %v7297, 0
      %v7397 = vsel %vm7317, %v7298, 0
      %v7400 = vsel %vm7317, %v7299, 0
      %v7403 = vsel %vm7317, %v7300, 0
      %v7406 = vsel %vm7317, %v7301, 0
      %v7409 = vsel %vm7317, %v7302, 0
      %v7412 = vsel %vm7317, %v7303, 0
      %vm7414 = vcmask 1043456
      %v7416 = vsel %vm7414, %v7315, 0
      %7418 = vmatprep.subr.bf16.mxu0 0
      %7419 = vmatpush1.bf16.msra.mxu0 %v7314
      %7420 = vmatprep.subr.bf16.mxu0 0
      %7421 = vmatpush1.bf16.msra.mxu0 %v7416
      %7422 = vmatprep.subr.bf16.mxu0 0
      %7423 = vmatpush1.bf16.msra.mxu0 0
      %7424 = vmatprep.subr.bf16.mxu0 0
      %7425 = vmatpush1.bf16.msra.mxu0 0
      %7426 = vmatprep.subr.bf16.mxu0 0
      %7427 = vmatpush1.bf16.msra.mxu0 0
      %7428 = vmatprep.subr.bf16.mxu0 0
      %7429 = vmatpush1.bf16.msra.mxu0 0
      %7430 = vmatprep.subr.bf16.mxu0 0
      %7431 = vmatpush1.bf16.msra.mxu0 0
      %7432 = vmatprep.subr.bf16.mxu0 0
      %7433 = vmatpush1.bf16.msra.mxu0 0
      %7434 = vmatprep.subr.bf16.mxu0 0
      %7435 = vmatpush1.bf16.msra.mxu0 0
      %7436 = vmatprep.subr.bf16.mxu0 0
      %7437 = vmatpush1.bf16.msra.mxu0 0
      %7438 = vmatprep.subr.bf16.mxu0 0
      %7439 = vmatpush1.bf16.msra.mxu0 0
      %7440 = vmatprep.subr.bf16.mxu0 0
      %7441 = vmatpush1.bf16.msra.mxu0 0
      %7442 = vmatprep.subr.bf16.mxu0 0
      %7443 = vmatpush1.bf16.msra.mxu0 0
      %7444 = vmatprep.subr.bf16.mxu0 0
      %7445 = vmatpush1.bf16.msra.mxu0 0
      %7446 = vmatprep.subr.bf16.mxu0 0
      %7447 = vmatpush1.bf16.msra.mxu0 0
      %7448 = vmatprep.subr.bf16.mxu0 0
      %7449 = vmatpush1.bf16.msra.mxu0 0
      %7450 = vmatprep.mubr.bf16.mxu0 0
      %7451 = vmatmul.mubr.bf16.gmra.mrb[0].mxu0 %v7319
      %v7452 = vpop.f32.mrb[0].mxu0
      %v7453 = vadd.f32 0.0, %v7452
      %v7454 = vpop.f32.mrb[0].mxu0
      %v7455 = vpop.f32.mrb[0].mxu0
      %v7456 = vadd.f32 0.0, %v7455
      %v7457 = vpop.f32.mrb[0].mxu0
      %7458 = vmatprep.mubr.bf16.mxu0 0
      %7459 = vmatmul.mubr.bf16.gmra.mrb[0].mxu0 %v7322
      %v7460 = vpop.f32.mrb[0].mxu0
      %v7461 = vadd.f32 0.0, %v7460
      %v7462 = vpop.f32.mrb[0].mxu0
      %v7463 = vpop.f32.mrb[0].mxu0
      %v7464 = vadd.f32 0.0, %v7463
      %v7465 = vpop.f32.mrb[0].mxu0
      %7466 = vmatprep.mubr.bf16.mxu0 0
      %7467 = vmatmul.mubr.bf16.gmra.mrb[0].mxu0 %v7325
      %v7468 = vpop.f32.mrb[0].mxu0
      %v7469 = vadd.f32 0.0, %v7468
      %v7470 = vpop.f32.mrb[0].mxu0
      %v7471 = vpop.f32.mrb[0].mxu0
      %v7472 = vadd.f32 0.0, %v7471
      %v7473 = vpop.f32.mrb[0].mxu0
      %7474 = vmatprep.mubr.bf16.mxu0 0
      %7475 = vmatmul.mubr.bf16.gmra.mrb[0].mxu0 %v7328
      %v7476 = vpop.f32.mrb[0].mxu0
      %v7477 = vadd.f32 0.0, %v7476
      %v7478 = vpop.f32.mrb[0].mxu0
      %v7479 = vpop.f32.mrb[0].mxu0
      %v7480 = vadd.f32 0.0, %v7479
      %v7481 = vpop.f32.mrb[0].mxu0
      %7482 = vmatprep.mubr.bf16.mxu0 0
      %7483 = vmatmul.mubr.bf16.gmra.mrb[0].mxu0 %v7331
      %v7484 = vpop.f32.mrb[0].mxu0
      %v7485 = vadd.f32 0.0, %v7484
      %v7486 = vpop.f32.mrb[0].mxu0
      %v7487 = vpop.f32.mrb[0].mxu0
      %v7488 = vadd.f32 0.0, %v7487
      %v7489 = vpop.f32.mrb[0].mxu0
      %7490 = vmatprep.mubr.bf16.mxu0 0
      %7491 = vmatmul.mubr.bf16.gmra.mrb[0].mxu0 %v7334
      %v7492 = vpop.f32.mrb[0].mxu0
      %v7493 = vadd.f32 0.0, %v7492
      %v7494 = vpop.f32.mrb[0].mxu0
      %v7495 = vpop.f32.mrb[0].mxu0
      %v7496 = vadd.f32 0.0, %v7495
      %v7497 = vpop.f32.mrb[0].mxu0
      %7498 = vmatprep.mubr.bf16.mxu0 0
      %7499 = vmatmul.mubr.bf16.gmra.mrb[0].mxu0 %v7337
      %v7500 = vpop.f32.mrb[0].mxu0
      %v7501 = vadd.f32 0.0, %v7500
      %v7502 = vpop.f32.mrb[0].mxu0
      %v7503 = vpop.f32.mrb[0].mxu0
      %v7504 = vadd.f32 0.0, %v7503
      %v7505 = vpop.f32.mrb[0].mxu0
      %7506 = vmatprep.mubr.bf16.mxu0 0
      %7507 = vmatmul.mubr.bf16.gmra.mrb[0].mxu0 %v7340
      %v7508 = vpop.f32.mrb[0].mxu0
      %v7509 = vadd.f32 0.0, %v7508
      %v7510 = vpop.f32.mrb[0].mxu0
      %v7511 = vpop.f32.mrb[0].mxu0
      %v7512 = vadd.f32 0.0, %v7511
      %v7513 = vpop.f32.mrb[0].mxu0
      %7514 = vmatprep.mubr.bf16.mxu0 0
      %7515 = vmatmul.mubr.bf16.gmra.mrb[0].mxu0 %v7343
      %v7516 = vpop.f32.mrb[0].mxu0
      %v7517 = vadd.f32 0.0, %v7516
      %v7518 = vpop.f32.mrb[0].mxu0
      %v7519 = vpop.f32.mrb[0].mxu0
      %v7520 = vadd.f32 0.0, %v7519
      %v7521 = vpop.f32.mrb[0].mxu0
      %7522 = vmatprep.mubr.bf16.mxu0 0
      %7523 = vmatmul.mubr.bf16.gmra.mrb[0].mxu0 %v7346
      %v7524 = vpop.f32.mrb[0].mxu0
      %v7525 = vadd.f32 0.0, %v7524
      %v7526 = vpop.f32.mrb[0].mxu0
      %v7527 = vpop.f32.mrb[0].mxu0
      %v7528 = vadd.f32 0.0, %v7527
      %v7529 = vpop.f32.mrb[0].mxu0
      %7530 = vmatprep.mubr.bf16.mxu0 0
      %7531 = vmatmul.mubr.bf16.gmra.mrb[0].mxu0 %v7349
      %v7532 = vpop.f32.mrb[0].mxu0
      %v7533 = vadd.f32 0.0, %v7532
      %v7534 = vpop.f32.mrb[0].mxu0
      %v7535 = vpop.f32.mrb[0].mxu0
      %v7536 = vadd.f32 0.0, %v7535
      %v7537 = vpop.f32.mrb[0].mxu0
      %7538 = vmatprep.mubr.bf16.mxu0 0
      %7539 = vmatmul.mubr.bf16.gmra.mrb[0].mxu0 %v7352
      %v7540 = vpop.f32.mrb[0].mxu0
      %v7541 = vadd.f32 0.0, %v7540
      %v7542 = vpop.f32.mrb[0].mxu0
      %v7543 = vpop.f32.mrb[0].mxu0
      %v7544 = vadd.f32 0.0, %v7543
      %v7545 = vpop.f32.mrb[0].mxu0
      %7546 = vmatprep.mubr.bf16.mxu0 0
      %7547 = vmatmul.mubr.bf16.gmra.mrb[0].mxu0 %v7355
      %v7548 = vpop.f32.mrb[0].mxu0
      %v7549 = vadd.f32 0.0, %v7548
      %v7550 = vpop.f32.mrb[0].mxu0
      %v7551 = vpop.f32.mrb[0].mxu0
      %v7552 = vadd.f32 0.0, %v7551
      %v7553 = vpop.f32.mrb[0].mxu0
      %7554 = vmatprep.mubr.bf16.mxu0 0
      %7555 = vmatmul.mubr.bf16.gmra.mrb[0].mxu0 %v7358
      %v7556 = vpop.f32.mrb[0].mxu0
      %v7557 = vadd.f32 0.0, %v7556
      %v7558 = vpop.f32.mrb[0].mxu0
      %v7559 = vpop.f32.mrb[0].mxu0
      %v7560 = vadd.f32 0.0, %v7559
      %v7561 = vpop.f32.mrb[0].mxu0
      %7562 = vmatprep.mubr.bf16.mxu0 0
      %7563 = vmatmul.mubr.bf16.gmra.mrb[0].mxu0 %v7361
      %v7564 = vpop.f32.mrb[0].mxu0
      %v7565 = vadd.f32 0.0, %v7564
      %v7566 = vpop.f32.mrb[0].mxu0
      %v7567 = vpop.f32.mrb[0].mxu0
      %v7568 = vadd.f32 0.0, %v7567
      %v7569 = vpop.f32.mrb[0].mxu0
      %7570 = vmatprep.mubr.bf16.mxu0 0
      %7571 = vmatmul.mubr.bf16.gmra.mrb[0].mxu0 %v7364
      %v7572 = vpop.f32.mrb[0].mxu0
      %v7573 = vadd.f32 0.0, %v7572
      %v7574 = vpop.f32.mrb[0].mxu0
      %v7575 = vpop.f32.mrb[0].mxu0
      %v7576 = vadd.f32 0.0, %v7575
      %v7577 = vpop.f32.mrb[0].mxu0
      %7578 = vmatprep.mubr.bf16.mxu0 0
      %7579 = vmatmul.mubr.bf16.gmra.mrb[0].mxu0 %v7367
      %v7580 = vpop.f32.mrb[0].mxu0
      %v7581 = vadd.f32 0.0, %v7580
      %v7582 = vpop.f32.mrb[0].mxu0
      %v7583 = vpop.f32.mrb[0].mxu0
      %v7584 = vadd.f32 0.0, %v7583
      %v7585 = vpop.f32.mrb[0].mxu0
      %7586 = vmatprep.mubr.bf16.mxu0 0
      %7587 = vmatmul.mubr.bf16.gmra.mrb[0].mxu0 %v7370
      %v7588 = vpop.f32.mrb[0].mxu0
      %v7589 = vadd.f32 0.0, %v7588
      %v7590 = vpop.f32.mrb[0].mxu0
      %v7591 = vpop.f32.mrb[0].mxu0
      %v7592 = vadd.f32 0.0, %v7591
      %v7593 = vpop.f32.mrb[0].mxu0
      %7594 = vmatprep.mubr.bf16.mxu0 0
      %7595 = vmatmul.mubr.bf16.gmra.mrb[0].mxu0 %v7373
      %v7596 = vpop.f32.mrb[0].mxu0
      %v7597 = vadd.f32 0.0, %v7596
      %v7598 = vpop.f32.mrb[0].mxu0
      %v7599 = vpop.f32.mrb[0].mxu0
      %v7600 = vadd.f32 0.0, %v7599
      %v7601 = vpop.f32.mrb[0].mxu0
      %7602 = vmatprep.mubr.bf16.mxu0 0
      %7603 = vmatmul.mubr.bf16.gmra.mrb[0].mxu0 %v7376
      %v7604 = vpop.f32.mrb[0].mxu0
      %v7605 = vadd.f32 0.0, %v7604
      %v7606 = vpop.f32.mrb[0].mxu0
      %v7607 = vpop.f32.mrb[0].mxu0
      %v7608 = vadd.f32 0.0, %v7607
      %v7609 = vpop.f32.mrb[0].mxu0
      %7610 = vmatprep.mubr.bf16.mxu0 0
      %7611 = vmatmul.mubr.bf16.gmra.mrb[0].mxu0 %v7379
      %v7612 = vpop.f32.mrb[0].mxu0
      %v7613 = vadd.f32 0.0, %v7612
      %v7614 = vpop.f32.mrb[0].mxu0
      %v7615 = vpop.f32.mrb[0].mxu0
      %v7616 = vadd.f32 0.0, %v7615
      %v7617 = vpop.f32.mrb[0].mxu0
      %7618 = vmatprep.mubr.bf16.mxu0 0
      %7619 = vmatmul.mubr.bf16.gmra.mrb[0].mxu0 %v7382
      %v7620 = vpop.f32.mrb[0].mxu0
      %v7621 = vadd.f32 0.0, %v7620
      %v7622 = vpop.f32.mrb[0].mxu0
      %v7623 = vpop.f32.mrb[0].mxu0
      %v7624 = vadd.f32 0.0, %v7623
      %v7625 = vpop.f32.mrb[0].mxu0
      %7626 = vmatprep.mubr.bf16.mxu0 0
      %7627 = vmatmul.mubr.bf16.gmra.mrb[0].mxu0 %v7385
      %v7628 = vpop.f32.mrb[0].mxu0
      %v7629 = vadd.f32 0.0, %v7628
      %v7630 = vpop.f32.mrb[0].mxu0
      %v7631 = vpop.f32.mrb[0].mxu0
      %v7632 = vadd.f32 0.0, %v7631
      %v7633 = vpop.f32.mrb[0].mxu0
      %7634 = vmatprep.mubr.bf16.mxu0 0
      %7635 = vmatmul.mubr.bf16.gmra.mrb[0].mxu0 %v7388
      %v7636 = vpop.f32.mrb[0].mxu0
      %v7637 = vadd.f32 0.0, %v7636
      %v7638 = vpop.f32.mrb[0].mxu0
      %v7639 = vpop.f32.mrb[0].mxu0
      %v7640 = vadd.f32 0.0, %v7639
      %v7641 = vpop.f32.mrb[0].mxu0
      %7642 = vmatprep.mubr.bf16.mxu0 0
      %7643 = vmatmul.mubr.bf16.gmra.mrb[0].mxu0 %v7391
      %v7644 = vpop.f32.mrb[0].mxu0
      %v7645 = vadd.f32 0.0, %v7644
      %v7646 = vpop.f32.mrb[0].mxu0
      %v7647 = vpop.f32.mrb[0].mxu0
      %v7648 = vadd.f32 0.0, %v7647
      %v7649 = vpop.f32.mrb[0].mxu0
      %7650 = vmatprep.mubr.bf16.mxu0 0
      %7651 = vmatmul.mubr.bf16.gmra.mrb[0].mxu0 %v7394
      %v7652 = vpop.f32.mrb[0].mxu0
      %v7653 = vadd.f32 0.0, %v7652
      %v7654 = vpop.f32.mrb[0].mxu0
      %v7655 = vpop.f32.mrb[0].mxu0
      %v7656 = vadd.f32 0.0, %v7655
      %v7657 = vpop.f32.mrb[0].mxu0
      %7658 = vmatprep.mubr.bf16.mxu0 0
      %7659 = vmatmul.mubr.bf16.gmra.mrb[0].mxu0 %v7397
      %v7660 = vpop.f32.mrb[0].mxu0
      %v7661 = vadd.f32 0.0, %v7660
      %v7662 = vpop.f32.mrb[0].mxu0
      %v7663 = vpop.f32.mrb[0].mxu0
      %v7664 = vadd.f32 0.0, %v7663
      %v7665 = vpop.f32.mrb[0].mxu0
      %7666 = vmatprep.mubr.bf16.mxu0 0
      %7667 = vmatmul.mubr.bf16.gmra.mrb[0].mxu0 %v7400
      %v7668 = vpop.f32.mrb[0].mxu0
      %v7669 = vadd.f32 0.0, %v7668
      %v7670 = vpop.f32.mrb[0].mxu0
      %v7671 = vpop.f32.mrb[0].mxu0
      %v7672 = vadd.f32 0.0, %v7671
      %v7673 = vpop.f32.mrb[0].mxu0
      %7674 = vmatprep.mubr.bf16.mxu0 0
      %7675 = vmatmul.mubr.bf16.gmra.mrb[0].mxu0 %v7403
      %v7676 = vpop.f32.mrb[0].mxu0
      %v7677 = vadd.f32 0.0, %v7676
      %v7678 = vpop.f32.mrb[0].mxu0
      %v7679 = vpop.f32.mrb[0].mxu0
      %v7680 = vadd.f32 0.0, %v7679
      %v7681 = vpop.f32.mrb[0].mxu0
      %7682 = vmatprep.mubr.bf16.mxu0 0
      %7683 = vmatmul.mubr.bf16.gmra.mrb[0].mxu0 %v7406
      %v7684 = vpop.f32.mrb[0].mxu0
      %v7685 = vadd.f32 0.0, %v7684
      %v7686 = vpop.f32.mrb[0].mxu0
      %v7687 = vpop.f32.mrb[0].mxu0
      %v7688 = vadd.f32 0.0, %v7687
      %v7689 = vpop.f32.mrb[0].mxu0
      %7690 = vmatprep.mubr.bf16.mxu0 0
      %7691 = vmatmul.mubr.bf16.gmra.mrb[0].mxu0 %v7409
      %v7692 = vpop.f32.mrb[0].mxu0
      %v7693 = vadd.f32 0.0, %v7692
      %v7694 = vpop.f32.mrb[0].mxu0
      %v7695 = vpop.f32.mrb[0].mxu0
      %v7696 = vadd.f32 0.0, %v7695
      %v7697 = vpop.f32.mrb[0].mxu0
      %7698 = vmatprep.mubr.bf16.mxu0 0
      %7699 = vmatmul.mubr.bf16.gmra.mrb[0].mxu0 %v7412
      %v7700 = vpop.f32.mrb[0].mxu0
      %v7701 = vadd.f32 0.0, %v7700
      %v7702 = vpop.f32.mrb[0].mxu0
      %v7703 = vpop.f32.mrb[0].mxu0
      %v7704 = vadd.f32 0.0, %v7703
      %v7705 = vpop.f32.mrb[0].mxu0
      %7706 = vdwg.mxu0
      %v7710 = vunpack.c.l.b16 %v7269
      %v7711 = vunpack.c.l.b16 %v7270
      %v7712 = vunpack.c.l.b16 %v7271
      %v7713 = vpack.c.b16 %v7711, %v7710
      %v7714 = vpack.c.b16 %v7712, %v7712
      %v7717 = vsel %vm7317, %v7237, 0
      %v7720 = vsel %vm7317, %v7238, 0
      %v7723 = vsel %vm7317, %v7239, 0
      %v7726 = vsel %vm7317, %v7240, 0
      %v7729 = vsel %vm7317, %v7241, 0
      %v7732 = vsel %vm7317, %v7242, 0
      %v7735 = vsel %vm7317, %v7243, 0
      %v7738 = vsel %vm7317, %v7244, 0
      %v7741 = vsel %vm7317, %v7245, 0
      %v7744 = vsel %vm7317, %v7246, 0
      %v7747 = vsel %vm7317, %v7247, 0
      %v7750 = vsel %vm7317, %v7248, 0
      %v7753 = vsel %vm7317, %v7249, 0
      %v7756 = vsel %vm7317, %v7250, 0
      %v7759 = vsel %vm7317, %v7251, 0
      %v7762 = vsel %vm7317, %v7252, 0
      %v7765 = vsel %vm7317, %v7253, 0
      %v7768 = vsel %vm7317, %v7254, 0
      %v7771 = vsel %vm7317, %v7255, 0
      %v7774 = vsel %vm7317, %v7256, 0
      %v7777 = vsel %vm7317, %v7257, 0
      %v7780 = vsel %vm7317, %v7258, 0
      %v7783 = vsel %vm7317, %v7259, 0
      %v7786 = vsel %vm7317, %v7260, 0
      %v7789 = vsel %vm7317, %v7261, 0
      %v7792 = vsel %vm7317, %v7262, 0
      %v7795 = vsel %vm7317, %v7263, 0
      %v7798 = vsel %vm7317, %v7264, 0
      %v7801 = vsel %vm7317, %v7265, 0
      %v7804 = vsel %vm7317, %v7266, 0
      %v7807 = vsel %vm7317, %v7267, 0
      %v7810 = vsel %vm7317, %v7268, 0
      %v7813 = vsel %vm7414, %v7714, 0
      %7815 = vmatprep.subr.bf16.mxu0 0
      %7816 = vmatpush1.bf16.msra.mxu0 %v7713
      %7817 = vmatprep.subr.bf16.mxu0 0
      %7818 = vmatpush1.bf16.msra.mxu0 %v7813
      %7819 = vmatprep.subr.bf16.mxu0 0
      %7820 = vmatpush1.bf16.msra.mxu0 0
      %7821 = vmatprep.subr.bf16.mxu0 0
      %7822 = vmatpush1.bf16.msra.mxu0 0
      %7823 = vmatprep.subr.bf16.mxu0 0
      %7824 = vmatpush1.bf16.msra.mxu0 0
      %7825 = vmatprep.subr.bf16.mxu0 0
      %7826 = vmatpush1.bf16.msra.mxu0 0
      %7827 = vmatprep.subr.bf16.mxu0 0
      %7828 = vmatpush1.bf16.msra.mxu0 0
      %7829 = vmatprep.subr.bf16.mxu0 0
      %7830 = vmatpush1.bf16.msra.mxu0 0
      %7831 = vmatprep.subr.bf16.mxu0 0
      %7832 = vmatpush1.bf16.msra.mxu0 0
      %7833 = vmatprep.subr.bf16.mxu0 0
      %7834 = vmatpush1.bf16.msra.mxu0 0
      %7835 = vmatprep.subr.bf16.mxu0 0
      %7836 = vmatpush1.bf16.msra.mxu0 0
      %7837 = vmatprep.subr.bf16.mxu0 0
      %7838 = vmatpush1.bf16.msra.mxu0 0
      %7839 = vmatprep.subr.bf16.mxu0 0
      %7840 = vmatpush1.bf16.msra.mxu0 0
      %7841 = vmatprep.subr.bf16.mxu0 0
      %7842 = vmatpush1.bf16.msra.mxu0 0
      %7843 = vmatprep.subr.bf16.mxu0 0
      %7844 = vmatpush1.bf16.msra.mxu0 0
      %7845 = vmatprep.subr.bf16.mxu0 0
      %7846 = vmatpush1.bf16.msra.mxu0 0
      %7847 = vmatprep.mubr.bf16.mxu0 0
      %7848 = vmatmul.mubr.bf16.gmra.mrb[0].mxu0 %v7717
      %v7849 = vpop.f32.mrb[0].mxu0
      %v7850 = vadd.f32 %v7453, %v7849
      %v7851 = vpop.f32.mrb[0].mxu0
      %v7852 = vpop.f32.mrb[0].mxu0
      %v7853 = vadd.f32 %v7456, %v7852
      %v7854 = vpop.f32.mrb[0].mxu0
      %7855 = vmatprep.mubr.bf16.mxu0 0
      %7856 = vmatmul.mubr.bf16.gmra.mrb[0].mxu0 %v7720
      %v7857 = vpop.f32.mrb[0].mxu0
      %v7858 = vadd.f32 %v7461, %v7857
      %v7859 = vpop.f32.mrb[0].mxu0
      %v7860 = vpop.f32.mrb[0].mxu0
      %v7861 = vadd.f32 %v7464, %v7860
      %v7862 = vpop.f32.mrb[0].mxu0
      %7863 = vmatprep.mubr.bf16.mxu0 0
      %7864 = vmatmul.mubr.bf16.gmra.mrb[0].mxu0 %v7723
      %v7865 = vpop.f32.mrb[0].mxu0
      %v7866 = vadd.f32 %v7469, %v7865
      %v7867 = vpop.f32.mrb[0].mxu0
      %v7868 = vpop.f32.mrb[0].mxu0
      %v7869 = vadd.f32 %v7472, %v7868
      %v7870 = vpop.f32.mrb[0].mxu0
      %7871 = vmatprep.mubr.bf16.mxu0 0
      %7872 = vmatmul.mubr.bf16.gmra.mrb[0].mxu0 %v7726
      %v7873 = vpop.f32.mrb[0].mxu0
      %v7874 = vadd.f32 %v7477, %v7873
      %v7875 = vpop.f32.mrb[0].mxu0
      %v7876 = vpop.f32.mrb[0].mxu0
      %v7877 = vadd.f32 %v7480, %v7876
      %v7878 = vpop.f32.mrb[0].mxu0
      %7879 = vmatprep.mubr.bf16.mxu0 0
      %7880 = vmatmul.mubr.bf16.gmra.mrb[0].mxu0 %v7729
      %v7881 = vpop.f32.mrb[0].mxu0
      %v7882 = vadd.f32 %v7485, %v7881
      %v7883 = vpop.f32.mrb[0].mxu0
      %v7884 = vpop.f32.mrb[0].mxu0
      %v7885 = vadd.f32 %v7488, %v7884
      %v7886 = vpop.f32.mrb[0].mxu0
      %7887 = vmatprep.mubr.bf16.mxu0 0
      %7888 = vmatmul.mubr.bf16.gmra.mrb[0].mxu0 %v7732
      %v7889 = vpop.f32.mrb[0].mxu0
      %v7890 = vadd.f32 %v7493, %v7889
      %v7891 = vpop.f32.mrb[0].mxu0
      %v7892 = vpop.f32.mrb[0].mxu0
      %v7893 = vadd.f32 %v7496, %v7892
      %v7894 = vpop.f32.mrb[0].mxu0
      %7895 = vmatprep.mubr.bf16.mxu0 0
      %7896 = vmatmul.mubr.bf16.gmra.mrb[0].mxu0 %v7735
      %v7897 = vpop.f32.mrb[0].mxu0
      %v7898 = vadd.f32 %v7501, %v7897
      %v7899 = vpop.f32.mrb[0].mxu0
      %v7900 = vpop.f32.mrb[0].mxu0
      %v7901 = vadd.f32 %v7504, %v7900
      %v7902 = vpop.f32.mrb[0].mxu0
      %7903 = vmatprep.mubr.bf16.mxu0 0
      %7904 = vmatmul.mubr.bf16.gmra.mrb[0].mxu0 %v7738
      %v7905 = vpop.f32.mrb[0].mxu0
      %v7906 = vadd.f32 %v7509, %v7905
      %v7907 = vpop.f32.mrb[0].mxu0
      %v7908 = vpop.f32.mrb[0].mxu0
      %v7909 = vadd.f32 %v7512, %v7908
      %v7910 = vpop.f32.mrb[0].mxu0
      %7911 = vmatprep.mubr.bf16.mxu0 0
      %7912 = vmatmul.mubr.bf16.gmra.mrb[0].mxu0 %v7741
      %v7913 = vpop.f32.mrb[0].mxu0
      %v7914 = vadd.f32 %v7517, %v7913
      %v7915 = vpop.f32.mrb[0].mxu0
      %v7916 = vpop.f32.mrb[0].mxu0
      %v7917 = vadd.f32 %v7520, %v7916
      %v7918 = vpop.f32.mrb[0].mxu0
      %7919 = vmatprep.mubr.bf16.mxu0 0
      %7920 = vmatmul.mubr.bf16.gmra.mrb[0].mxu0 %v7744
      %v7921 = vpop.f32.mrb[0].mxu0
      %v7922 = vadd.f32 %v7525, %v7921
      %v7923 = vpop.f32.mrb[0].mxu0
      %v7924 = vpop.f32.mrb[0].mxu0
      %v7925 = vadd.f32 %v7528, %v7924
      %v7926 = vpop.f32.mrb[0].mxu0
      %7927 = vmatprep.mubr.bf16.mxu0 0
      %7928 = vmatmul.mubr.bf16.gmra.mrb[0].mxu0 %v7747
      %v7929 = vpop.f32.mrb[0].mxu0
      %v7930 = vadd.f32 %v7533, %v7929
      %v7931 = vpop.f32.mrb[0].mxu0
      %v7932 = vpop.f32.mrb[0].mxu0
      %v7933 = vadd.f32 %v7536, %v7932
      %v7934 = vpop.f32.mrb[0].mxu0
      %7935 = vmatprep.mubr.bf16.mxu0 0
      %7936 = vmatmul.mubr.bf16.gmra.mrb[0].mxu0 %v7750
      %v7937 = vpop.f32.mrb[0].mxu0
      %v7938 = vadd.f32 %v7541, %v7937
      %v7939 = vpop.f32.mrb[0].mxu0
      %v7940 = vpop.f32.mrb[0].mxu0
      %v7941 = vadd.f32 %v7544, %v7940
      %v7942 = vpop.f32.mrb[0].mxu0
      %7943 = vmatprep.mubr.bf16.mxu0 0
      %7944 = vmatmul.mubr.bf16.gmra.mrb[0].mxu0 %v7753
      %v7945 = vpop.f32.mrb[0].mxu0
      %v7946 = vadd.f32 %v7549, %v7945
      %v7947 = vpop.f32.mrb[0].mxu0
      %v7948 = vpop.f32.mrb[0].mxu0
      %v7949 = vadd.f32 %v7552, %v7948
      %v7950 = vpop.f32.mrb[0].mxu0
      %7951 = vmatprep.mubr.bf16.mxu0 0
      %7952 = vmatmul.mubr.bf16.gmra.mrb[0].mxu0 %v7756
      %v7953 = vpop.f32.mrb[0].mxu0
      %v7954 = vadd.f32 %v7557, %v7953
      %v7955 = vpop.f32.mrb[0].mxu0
      %v7956 = vpop.f32.mrb[0].mxu0
      %v7957 = vadd.f32 %v7560, %v7956
      %v7958 = vpop.f32.mrb[0].mxu0
      %7959 = vmatprep.mubr.bf16.mxu0 0
      %7960 = vmatmul.mubr.bf16.gmra.mrb[0].mxu0 %v7759
      %v7961 = vpop.f32.mrb[0].mxu0
      %v7962 = vadd.f32 %v7565, %v7961
      %v7963 = vpop.f32.mrb[0].mxu0
      %v7964 = vpop.f32.mrb[0].mxu0
      %v7965 = vadd.f32 %v7568, %v7964
      %v7966 = vpop.f32.mrb[0].mxu0
      %7967 = vmatprep.mubr.bf16.mxu0 0
      %7968 = vmatmul.mubr.bf16.gmra.mrb[0].mxu0 %v7762
      %v7969 = vpop.f32.mrb[0].mxu0
      %v7970 = vadd.f32 %v7573, %v7969
      %v7971 = vpop.f32.mrb[0].mxu0
      %v7972 = vpop.f32.mrb[0].mxu0
      %v7973 = vadd.f32 %v7576, %v7972
      %v7974 = vpop.f32.mrb[0].mxu0
      %7975 = vmatprep.mubr.bf16.mxu0 0
      %7976 = vmatmul.mubr.bf16.gmra.mrb[0].mxu0 %v7765
      %v7977 = vpop.f32.mrb[0].mxu0
      %v7978 = vadd.f32 %v7581, %v7977
      %v7979 = vpop.f32.mrb[0].mxu0
      %v7980 = vpop.f32.mrb[0].mxu0
      %v7981 = vadd.f32 %v7584, %v7980
      %v7982 = vpop.f32.mrb[0].mxu0
      %7983 = vmatprep.mubr.bf16.mxu0 0
      %7984 = vmatmul.mubr.bf16.gmra.mrb[0].mxu0 %v7768
      %v7985 = vpop.f32.mrb[0].mxu0
      %v7986 = vadd.f32 %v7589, %v7985
      %v7987 = vpop.f32.mrb[0].mxu0
      %v7988 = vpop.f32.mrb[0].mxu0
      %v7989 = vadd.f32 %v7592, %v7988
      %v7990 = vpop.f32.mrb[0].mxu0
      %7991 = vmatprep.mubr.bf16.mxu0 0
      %7992 = vmatmul.mubr.bf16.gmra.mrb[0].mxu0 %v7771
      %v7993 = vpop.f32.mrb[0].mxu0
      %v7994 = vadd.f32 %v7597, %v7993
      %v7995 = vpop.f32.mrb[0].mxu0
      %v7996 = vpop.f32.mrb[0].mxu0
      %v7997 = vadd.f32 %v7600, %v7996
      %v7998 = vpop.f32.mrb[0].mxu0
      %7999 = vmatprep.mubr.bf16.mxu0 0
      %8000 = vmatmul.mubr.bf16.gmra.mrb[0].mxu0 %v7774
      %v8001 = vpop.f32.mrb[0].mxu0
      %v8002 = vadd.f32 %v7605, %v8001
      %v8003 = vpop.f32.mrb[0].mxu0
      %v8004 = vpop.f32.mrb[0].mxu0
      %v8005 = vadd.f32 %v7608, %v8004
      %v8006 = vpop.f32.mrb[0].mxu0
      %8007 = vmatprep.mubr.bf16.mxu0 0
      %8008 = vmatmul.mubr.bf16.gmra.mrb[0].mxu0 %v7777
      %v8009 = vpop.f32.mrb[0].mxu0
      %v8010 = vadd.f32 %v7613, %v8009
      %v8011 = vpop.f32.mrb[0].mxu0
      %v8012 = vpop.f32.mrb[0].mxu0
      %v8013 = vadd.f32 %v7616, %v8012
      %v8014 = vpop.f32.mrb[0].mxu0
      %8015 = vmatprep.mubr.bf16.mxu0 0
      %8016 = vmatmul.mubr.bf16.gmra.mrb[0].mxu0 %v7780
      %v8017 = vpop.f32.mrb[0].mxu0
      %v8018 = vadd.f32 %v7621, %v8017
      %v8019 = vpop.f32.mrb[0].mxu0
      %v8020 = vpop.f32.mrb[0].mxu0
      %v8021 = vadd.f32 %v7624, %v8020
      %v8022 = vpop.f32.mrb[0].mxu0
      %8023 = vmatprep.mubr.bf16.mxu0 0
      %8024 = vmatmul.mubr.bf16.gmra.mrb[0].mxu0 %v7783
      %v8025 = vpop.f32.mrb[0].mxu0
      %v8026 = vadd.f32 %v7629, %v8025
      %v8027 = vpop.f32.mrb[0].mxu0
      %v8028 = vpop.f32.mrb[0].mxu0
      %v8029 = vadd.f32 %v7632, %v8028
      %v8030 = vpop.f32.mrb[0].mxu0
      %8031 = vmatprep.mubr.bf16.mxu0 0
      %8032 = vmatmul.mubr.bf16.gmra.mrb[0].mxu0 %v7786
      %v8033 = vpop.f32.mrb[0].mxu0
      %v8034 = vadd.f32 %v7637, %v8033
      %v8035 = vpop.f32.mrb[0].mxu0
      %v8036 = vpop.f32.mrb[0].mxu0
      %v8037 = vadd.f32 %v7640, %v8036
      %v8038 = vpop.f32.mrb[0].mxu0
      %8039 = vmatprep.mubr.bf16.mxu0 0
      %8040 = vmatmul.mubr.bf16.gmra.mrb[0].mxu0 %v7789
      %v8041 = vpop.f32.mrb[0].mxu0
      %v8042 = vadd.f32 %v7645, %v8041
      %v8043 = vpop.f32.mrb[0].mxu0
      %v8044 = vpop.f32.mrb[0].mxu0
      %v8045 = vadd.f32 %v7648, %v8044
      %v8046 = vpop.f32.mrb[0].mxu0
      %8047 = vmatprep.mubr.bf16.mxu0 0
      %8048 = vmatmul.mubr.bf16.gmra.mrb[0].mxu0 %v7792
      %v8049 = vpop.f32.mrb[0].mxu0
      %v8050 = vadd.f32 %v7653, %v8049
      %v8051 = vpop.f32.mrb[0].mxu0
      %v8052 = vpop.f32.mrb[0].mxu0
      %v8053 = vadd.f32 %v7656, %v8052
      %v8054 = vpop.f32.mrb[0].mxu0
      %8055 = vmatprep.mubr.bf16.mxu0 0
      %8056 = vmatmul.mubr.bf16.gmra.mrb[0].mxu0 %v7795
      %v8057 = vpop.f32.mrb[0].mxu0
      %v8058 = vadd.f32 %v7661, %v8057
      %v8059 = vpop.f32.mrb[0].mxu0
      %v8060 = vpop.f32.mrb[0].mxu0
      %v8061 = vadd.f32 %v7664, %v8060
      %v8062 = vpop.f32.mrb[0].mxu0
      %8063 = vmatprep.mubr.bf16.mxu0 0
      %8064 = vmatmul.mubr.bf16.gmra.mrb[0].mxu0 %v7798
      %v8065 = vpop.f32.mrb[0].mxu0
      %v8066 = vadd.f32 %v7669, %v8065
      %v8067 = vpop.f32.mrb[0].mxu0
      %v8068 = vpop.f32.mrb[0].mxu0
      %v8069 = vadd.f32 %v7672, %v8068
      %v8070 = vpop.f32.mrb[0].mxu0
      %8071 = vmatprep.mubr.bf16.mxu0 0
      %8072 = vmatmul.mubr.bf16.gmra.mrb[0].mxu0 %v7801
      %v8073 = vpop.f32.mrb[0].mxu0
      %v8074 = vadd.f32 %v7677, %v8073
      %v8075 = vpop.f32.mrb[0].mxu0
      %v8076 = vpop.f32.mrb[0].mxu0
      %v8077 = vadd.f32 %v7680, %v8076
      %v8078 = vpop.f32.mrb[0].mxu0
      %8079 = vmatprep.mubr.bf16.mxu0 0
      %8080 = vmatmul.mubr.bf16.gmra.mrb[0].mxu0 %v7804
      %v8081 = vpop.f32.mrb[0].mxu0
      %v8082 = vadd.f32 %v7685, %v8081
      %v8083 = vpop.f32.mrb[0].mxu0
      %v8084 = vpop.f32.mrb[0].mxu0
      %v8085 = vadd.f32 %v7688, %v8084
      %v8086 = vpop.f32.mrb[0].mxu0
      %8087 = vmatprep.mubr.bf16.mxu0 0
      %8088 = vmatmul.mubr.bf16.gmra.mrb[0].mxu0 %v7807
      %v8089 = vpop.f32.mrb[0].mxu0
      %v8090 = vadd.f32 %v7693, %v8089
      %v8091 = vpop.f32.mrb[0].mxu0
      %v8092 = vpop.f32.mrb[0].mxu0
      %v8093 = vadd.f32 %v7696, %v8092
      %v8094 = vpop.f32.mrb[0].mxu0
      %8095 = vmatprep.mubr.bf16.mxu0 0
      %8096 = vmatmul.mubr.bf16.gmra.mrb[0].mxu0 %v7810
      %v8097 = vpop.f32.mrb[0].mxu0
      %v8098 = vadd.f32 %v7701, %v8097
      %v8099 = vpop.f32.mrb[0].mxu0
      %v8100 = vpop.f32.mrb[0].mxu0
      %v8101 = vadd.f32 %v7704, %v8100
      %v8102 = vpop.f32.mrb[0].mxu0
      %8103 = vdwg.mxu0
      %v8104 = vld [vmem:[%s5045] sm:$0xff]
      %v8105 = vld [vmem:[%s5045 + $0x8] sm:$0xff]
      %v8106 = vld [vmem:[%s5045 + $0x10] sm:$0xff]
      %v8107 = vld [vmem:[%s5045 + $0x18] sm:$0xff]
      %v8108 = vld [vmem:[%s5045 + $0x20] sm:$0xff]
      %v8109 = vld [vmem:[%s5045 + $0x28] sm:$0xff]
      %v8110 = vld [vmem:[%s5045 + $0x30] sm:$0xff]
      %v8111 = vld [vmem:[%s5045 + $0x38] sm:$0xff]
      %v8112 = vld [vmem:[%s5045 + $0x40] sm:$0xff]
      %v8113 = vld [vmem:[%s5045 + $0x48] sm:$0xff]
      %v8114 = vld [vmem:[%s5045 + $0x50] sm:$0xff]
      %v8115 = vld [vmem:[%s5045 + $0x58] sm:$0xff]
      %v8116 = vld [vmem:[%s5045 + $0x60] sm:$0xff]
      %v8117 = vld [vmem:[%s5045 + $0x68] sm:$0xff]
      %v8118 = vld [vmem:[%s5045 + $0x70] sm:$0xff]
      %v8119 = vld [vmem:[%s5045 + $0x78] sm:$0xff]
      %v8120 = vld [vmem:[%s5045 + $0x80] sm:$0xff]
      %v8121 = vld [vmem:[%s5045 + $0x88] sm:$0xff]
      %v8122 = vld [vmem:[%s5045 + $0x90] sm:$0xff]
      %v8123 = vld [vmem:[%s5045 + $0x98] sm:$0xff]
      %v8124 = vld [vmem:[%s5045 + $0xa0] sm:$0xff]
      %v8125 = vld [vmem:[%s5045 + $0xa8] sm:$0xff]
      %v8126 = vld [vmem:[%s5045 + $0xb0] sm:$0xff]
      %v8127 = vld [vmem:[%s5045 + $0xb8] sm:$0xff]
      %v8128 = vld [vmem:[%s5045 + $0xc0] sm:$0xff]
      %v8129 = vld [vmem:[%s5045 + $0xc8] sm:$0xff]
      %v8130 = vld [vmem:[%s5045 + $0xd0] sm:$0xff]
      %v8131 = vld [vmem:[%s5045 + $0xd8] sm:$0xff]
      %v8132 = vld [vmem:[%s5045 + $0xe0] sm:$0xff]
      %v8133 = vld [vmem:[%s5045 + $0xe8] sm:$0xff]
      %v8134 = vld [vmem:[%s5045 + $0xf0] sm:$0xff]
      %v8135 = vld [vmem:[%s5045 + $0xf8] sm:$0xff]
      %s8136 = scalar_lea.vmem %s3, 24
      %v8137 = vld [vmem:[%s8136] sm:$0xf]
      %v8138 = vld [vmem:[%s8136 + $0x4] sm:$0xf]
      %v8139 = vld [vmem:[%s8136 + $0x8] sm:$0xf]
      %v8143 = vunpack.c.l.b16 %v8137
      %v8144 = vunpack.c.l.b16 %v8138
      %v8145 = vunpack.c.l.b16 %v8139
      %v8146 = vpack.c.b16 %v8144, %v8143
      %v8147 = vpack.c.b16 %v8145, %v8145
      %v8150 = vsel %vm7317, %v8104, 0
      %v8153 = vsel %vm7317, %v8105, 0
      %v8156 = vsel %vm7317, %v8106, 0
      %v8159 = vsel %vm7317, %v8107, 0
      %v8162 = vsel %vm7317, %v8108, 0
      %v8165 = vsel %vm7317, %v8109, 0
      %v8168 = vsel %vm7317, %v8110, 0
      %v8171 = vsel %vm7317, %v8111, 0
      %v8174 = vsel %vm7317, %v8112, 0
      %v8177 = vsel %vm7317, %v8113, 0
      %v8180 = vsel %vm7317, %v8114, 0
      %v8183 = vsel %vm7317, %v8115, 0
      %v8186 = vsel %vm7317, %v8116, 0
      %v8189 = vsel %vm7317, %v8117, 0
      %v8192 = vsel %vm7317, %v8118, 0
      %v8195 = vsel %vm7317, %v8119, 0
      %v8198 = vsel %vm7317, %v8120, 0
      %v8201 = vsel %vm7317, %v8121, 0
      %v8204 = vsel %vm7317, %v8122, 0
      %v8207 = vsel %vm7317, %v8123, 0
      %v8210 = vsel %vm7317, %v8124, 0
      %v8213 = vsel %vm7317, %v8125, 0
      %v8216 = vsel %vm7317, %v8126, 0
      %v8219 = vsel %vm7317, %v8127, 0
      %v8222 = vsel %vm7317, %v8128, 0
      %v8225 = vsel %vm7317, %v8129, 0
      %v8228 = vsel %vm7317, %v8130, 0
      %v8231 = vsel %vm7317, %v8131, 0
      %v8234 = vsel %vm7317, %v8132, 0
      %v8237 = vsel %vm7317, %v8133, 0
      %v8240 = vsel %vm7317, %v8134, 0
      %v8243 = vsel %vm7317, %v8135, 0
      %v8246 = vsel %vm7414, %v8147, 0
      %8248 = vmatprep.subr.bf16.mxu0 0
      %8249 = vmatpush1.bf16.msra.mxu0 %v8146
      %8250 = vmatprep.subr.bf16.mxu0 0
      %8251 = vmatpush1.bf16.msra.mxu0 %v8246
      %8252 = vmatprep.subr.bf16.mxu0 0
      %8253 = vmatpush1.bf16.msra.mxu0 0
      %8254 = vmatprep.subr.bf16.mxu0 0
      %8255 = vmatpush1.bf16.msra.mxu0 0
      %8256 = vmatprep.subr.bf16.mxu0 0
      %8257 = vmatpush1.bf16.msra.mxu0 0
      %8258 = vmatprep.subr.bf16.mxu0 0
      %8259 = vmatpush1.bf16.msra.mxu0 0
      %8260 = vmatprep.subr.bf16.mxu0 0
      %8261 = vmatpush1.bf16.msra.mxu0 0
      %8262 = vmatprep.subr.bf16.mxu0 0
      %8263 = vmatpush1.bf16.msra.mxu0 0
      %8264 = vmatprep.subr.bf16.mxu0 0
      %8265 = vmatpush1.bf16.msra.mxu0 0
      %8266 = vmatprep.subr.bf16.mxu0 0
      %8267 = vmatpush1.bf16.msra.mxu0 0
      %8268 = vmatprep.subr.bf16.mxu0 0
      %8269 = vmatpush1.bf16.msra.mxu0 0
      %8270 = vmatprep.subr.bf16.mxu0 0
      %8271 = vmatpush1.bf16.msra.mxu0 0
      %8272 = vmatprep.subr.bf16.mxu0 0
      %8273 = vmatpush1.bf16.msra.mxu0 0
      %8274 = vmatprep.subr.bf16.mxu0 0
      %8275 = vmatpush1.bf16.msra.mxu0 0
      %8276 = vmatprep.subr.bf16.mxu0 0
      %8277 = vmatpush1.bf16.msra.mxu0 0
      %8278 = vmatprep.subr.bf16.mxu0 0
      %8279 = vmatpush1.bf16.msra.mxu0 0
      %8280 = vmatprep.mubr.bf16.mxu0 0
      %8281 = vmatmul.mubr.bf16.gmra.mrb[0].mxu0 %v8150
      %v8282 = vpop.f32.mrb[0].mxu0
      %v8283 = vadd.f32 0.0, %v8282
      %v8284 = vpop.f32.mrb[0].mxu0
      %v8285 = vpop.f32.mrb[0].mxu0
      %v8286 = vadd.f32 0.0, %v8285
      %v8287 = vpop.f32.mrb[0].mxu0
      %8288 = vmatprep.mubr.bf16.mxu0 0
      %8289 = vmatmul.mubr.bf16.gmra.mrb[0].mxu0 %v8153
      %v8290 = vpop.f32.mrb[0].mxu0
      %v8291 = vadd.f32 0.0, %v8290
      %v8292 = vpop.f32.mrb[0].mxu0
      %v8293 = vpop.f32.mrb[0].mxu0
      %v8294 = vadd.f32 0.0, %v8293
      %v8295 = vpop.f32.mrb[0].mxu0
      %8296 = vmatprep.mubr.bf16.mxu0 0
      %8297 = vmatmul.mubr.bf16.gmra.mrb[0].mxu0 %v8156
      %v8298 = vpop.f32.mrb[0].mxu0
      %v8299 = vadd.f32 0.0, %v8298
      %v8300 = vpop.f32.mrb[0].mxu0
      %v8301 = vpop.f32.mrb[0].mxu0
      %v8302 = vadd.f32 0.0, %v8301
      %v8303 = vpop.f32.mrb[0].mxu0
      %8304 = vmatprep.mubr.bf16.mxu0 0
      %8305 = vmatmul.mubr.bf16.gmra.mrb[0].mxu0 %v8159
      %v8306 = vpop.f32.mrb[0].mxu0
      %v8307 = vadd.f32 0.0, %v8306
      %v8308 = vpop.f32.mrb[0].mxu0
      %v8309 = vpop.f32.mrb[0].mxu0
      %v8310 = vadd.f32 0.0, %v8309
      %v8311 = vpop.f32.mrb[0].mxu0
      %8312 = vmatprep.mubr.bf16.mxu0 0
      %8313 = vmatmul.mubr.bf16.gmra.mrb[0].mxu0 %v8162
      %v8314 = vpop.f32.mrb[0].mxu0
      %v8315 = vadd.f32 0.0, %v8314
      %v8316 = vpop.f32.mrb[0].mxu0
      %v8317 = vpop.f32.mrb[0].mxu0
      %v8318 = vadd.f32 0.0, %v8317
      %v8319 = vpop.f32.mrb[0].mxu0
      %8320 = vmatprep.mubr.bf16.mxu0 0
      %8321 = vmatmul.mubr.bf16.gmra.mrb[0].mxu0 %v8165
      %v8322 = vpop.f32.mrb[0].mxu0
      %v8323 = vadd.f32 0.0, %v8322
      %v8324 = vpop.f32.mrb[0].mxu0
      %v8325 = vpop.f32.mrb[0].mxu0
      %v8326 = vadd.f32 0.0, %v8325
      %v8327 = vpop.f32.mrb[0].mxu0
      %8328 = vmatprep.mubr.bf16.mxu0 0
      %8329 = vmatmul.mubr.bf16.gmra.mrb[0].mxu0 %v8168
      %v8330 = vpop.f32.mrb[0].mxu0
      %v8331 = vadd.f32 0.0, %v8330
      %v8332 = vpop.f32.mrb[0].mxu0
      %v8333 = vpop.f32.mrb[0].mxu0
      %v8334 = vadd.f32 0.0, %v8333
      %v8335 = vpop.f32.mrb[0].mxu0
      %8336 = vmatprep.mubr.bf16.mxu0 0
      %8337 = vmatmul.mubr.bf16.gmra.mrb[0].mxu0 %v8171
      %v8338 = vpop.f32.mrb[0].mxu0
      %v8339 = vadd.f32 0.0, %v8338
      %v8340 = vpop.f32.mrb[0].mxu0
      %v8341 = vpop.f32.mrb[0].mxu0
      %v8342 = vadd.f32 0.0, %v8341
      %v8343 = vpop.f32.mrb[0].mxu0
      %8344 = vmatprep.mubr.bf16.mxu0 0
      %8345 = vmatmul.mubr.bf16.gmra.mrb[0].mxu0 %v8174
      %v8346 = vpop.f32.mrb[0].mxu0
      %v8347 = vadd.f32 0.0, %v8346
      %v8348 = vpop.f32.mrb[0].mxu0
      %v8349 = vpop.f32.mrb[0].mxu0
      %v8350 = vadd.f32 0.0, %v8349
      %v8351 = vpop.f32.mrb[0].mxu0
      %8352 = vmatprep.mubr.bf16.mxu0 0
      %8353 = vmatmul.mubr.bf16.gmra.mrb[0].mxu0 %v8177
      %v8354 = vpop.f32.mrb[0].mxu0
      %v8355 = vadd.f32 0.0, %v8354
      %v8356 = vpop.f32.mrb[0].mxu0
      %v8357 = vpop.f32.mrb[0].mxu0
      %v8358 = vadd.f32 0.0, %v8357
      %v8359 = vpop.f32.mrb[0].mxu0
      %8360 = vmatprep.mubr.bf16.mxu0 0
      %8361 = vmatmul.mubr.bf16.gmra.mrb[0].mxu0 %v8180
      %v8362 = vpop.f32.mrb[0].mxu0
      %v8363 = vadd.f32 0.0, %v8362
      %v8364 = vpop.f32.mrb[0].mxu0
      %v8365 = vpop.f32.mrb[0].mxu0
      %v8366 = vadd.f32 0.0, %v8365
      %v8367 = vpop.f32.mrb[0].mxu0
      %8368 = vmatprep.mubr.bf16.mxu0 0
      %8369 = vmatmul.mubr.bf16.gmra.mrb[0].mxu0 %v8183
      %v8370 = vpop.f32.mrb[0].mxu0
      %v8371 = vadd.f32 0.0, %v8370
      %v8372 = vpop.f32.mrb[0].mxu0
      %v8373 = vpop.f32.mrb[0].mxu0
      %v8374 = vadd.f32 0.0, %v8373
      %v8375 = vpop.f32.mrb[0].mxu0
      %8376 = vmatprep.mubr.bf16.mxu0 0
      %8377 = vmatmul.mubr.bf16.gmra.mrb[0].mxu0 %v8186
      %v8378 = vpop.f32.mrb[0].mxu0
      %v8379 = vadd.f32 0.0, %v8378
      %v8380 = vpop.f32.mrb[0].mxu0
      %v8381 = vpop.f32.mrb[0].mxu0
      %v8382 = vadd.f32 0.0, %v8381
      %v8383 = vpop.f32.mrb[0].mxu0
      %8384 = vmatprep.mubr.bf16.mxu0 0
      %8385 = vmatmul.mubr.bf16.gmra.mrb[0].mxu0 %v8189
      %v8386 = vpop.f32.mrb[0].mxu0
      %v8387 = vadd.f32 0.0, %v8386
      %v8388 = vpop.f32.mrb[0].mxu0
      %v8389 = vpop.f32.mrb[0].mxu0
      %v8390 = vadd.f32 0.0, %v8389
      %v8391 = vpop.f32.mrb[0].mxu0
      %8392 = vmatprep.mubr.bf16.mxu0 0
      %8393 = vmatmul.mubr.bf16.gmra.mrb[0].mxu0 %v8192
      %v8394 = vpop.f32.mrb[0].mxu0
      %v8395 = vadd.f32 0.0, %v8394
      %v8396 = vpop.f32.mrb[0].mxu0
      %v8397 = vpop.f32.mrb[0].mxu0
      %v8398 = vadd.f32 0.0, %v8397
      %v8399 = vpop.f32.mrb[0].mxu0
      %8400 = vmatprep.mubr.bf16.mxu0 0
      %8401 = vmatmul.mubr.bf16.gmra.mrb[0].mxu0 %v8195
      %v8402 = vpop.f32.mrb[0].mxu0
      %v8403 = vadd.f32 0.0, %v8402
      %v8404 = vpop.f32.mrb[0].mxu0
      %v8405 = vpop.f32.mrb[0].mxu0
      %v8406 = vadd.f32 0.0, %v8405
      %v8407 = vpop.f32.mrb[0].mxu0
      %8408 = vmatprep.mubr.bf16.mxu0 0
      %8409 = vmatmul.mubr.bf16.gmra.mrb[0].mxu0 %v8198
      %v8410 = vpop.f32.mrb[0].mxu0
      %v8411 = vadd.f32 0.0, %v8410
      %v8412 = vpop.f32.mrb[0].mxu0
      %v8413 = vpop.f32.mrb[0].mxu0
      %v8414 = vadd.f32 0.0, %v8413
      %v8415 = vpop.f32.mrb[0].mxu0
      %8416 = vmatprep.mubr.bf16.mxu0 0
      %8417 = vmatmul.mubr.bf16.gmra.mrb[0].mxu0 %v8201
      %v8418 = vpop.f32.mrb[0].mxu0
      %v8419 = vadd.f32 0.0, %v8418
      %v8420 = vpop.f32.mrb[0].mxu0
      %v8421 = vpop.f32.mrb[0].mxu0
      %v8422 = vadd.f32 0.0, %v8421
      %v8423 = vpop.f32.mrb[0].mxu0
      %8424 = vmatprep.mubr.bf16.mxu0 0
      %8425 = vmatmul.mubr.bf16.gmra.mrb[0].mxu0 %v8204
      %v8426 = vpop.f32.mrb[0].mxu0
      %v8427 = vadd.f32 0.0, %v8426
      %v8428 = vpop.f32.mrb[0].mxu0
      %v8429 = vpop.f32.mrb[0].mxu0
      %v8430 = vadd.f32 0.0, %v8429
      %v8431 = vpop.f32.mrb[0].mxu0
      %8432 = vmatprep.mubr.bf16.mxu0 0
      %8433 = vmatmul.mubr.bf16.gmra.mrb[0].mxu0 %v8207
      %v8434 = vpop.f32.mrb[0].mxu0
      %v8435 = vadd.f32 0.0, %v8434
      %v8436 = vpop.f32.mrb[0].mxu0
      %v8437 = vpop.f32.mrb[0].mxu0
      %v8438 = vadd.f32 0.0, %v8437
      %v8439 = vpop.f32.mrb[0].mxu0
      %8440 = vmatprep.mubr.bf16.mxu0 0
      %8441 = vmatmul.mubr.bf16.gmra.mrb[0].mxu0 %v8210
      %v8442 = vpop.f32.mrb[0].mxu0
      %v8443 = vadd.f32 0.0, %v8442
      %v8444 = vpop.f32.mrb[0].mxu0
      %v8445 = vpop.f32.mrb[0].mxu0
      %v8446 = vadd.f32 0.0, %v8445
      %v8447 = vpop.f32.mrb[0].mxu0
      %8448 = vmatprep.mubr.bf16.mxu0 0
      %8449 = vmatmul.mubr.bf16.gmra.mrb[0].mxu0 %v8213
      %v8450 = vpop.f32.mrb[0].mxu0
      %v8451 = vadd.f32 0.0, %v8450
      %v8452 = vpop.f32.mrb[0].mxu0
      %v8453 = vpop.f32.mrb[0].mxu0
      %v8454 = vadd.f32 0.0, %v8453
      %v8455 = vpop.f32.mrb[0].mxu0
      %8456 = vmatprep.mubr.bf16.mxu0 0
      %8457 = vmatmul.mubr.bf16.gmra.mrb[0].mxu0 %v8216
      %v8458 = vpop.f32.mrb[0].mxu0
      %v8459 = vadd.f32 0.0, %v8458
      %v8460 = vpop.f32.mrb[0].mxu0
      %v8461 = vpop.f32.mrb[0].mxu0
      %v8462 = vadd.f32 0.0, %v8461
      %v8463 = vpop.f32.mrb[0].mxu0
      %8464 = vmatprep.mubr.bf16.mxu0 0
      %8465 = vmatmul.mubr.bf16.gmra.mrb[0].mxu0 %v8219
      %v8466 = vpop.f32.mrb[0].mxu0
      %v8467 = vadd.f32 0.0, %v8466
      %v8468 = vpop.f32.mrb[0].mxu0
      %v8469 = vpop.f32.mrb[0].mxu0
      %v8470 = vadd.f32 0.0, %v8469
      %v8471 = vpop.f32.mrb[0].mxu0
      %8472 = vmatprep.mubr.bf16.mxu0 0
      %8473 = vmatmul.mubr.bf16.gmra.mrb[0].mxu0 %v8222
      %v8474 = vpop.f32.mrb[0].mxu0
      %v8475 = vadd.f32 0.0, %v8474
      %v8476 = vpop.f32.mrb[0].mxu0
      %v8477 = vpop.f32.mrb[0].mxu0
      %v8478 = vadd.f32 0.0, %v8477
      %v8479 = vpop.f32.mrb[0].mxu0
      %8480 = vmatprep.mubr.bf16.mxu0 0
      %8481 = vmatmul.mubr.bf16.gmra.mrb[0].mxu0 %v8225
      %v8482 = vpop.f32.mrb[0].mxu0
      %v8483 = vadd.f32 0.0, %v8482
      %v8484 = vpop.f32.mrb[0].mxu0
      %v8485 = vpop.f32.mrb[0].mxu0
      %v8486 = vadd.f32 0.0, %v8485
      %v8487 = vpop.f32.mrb[0].mxu0
      %8488 = vmatprep.mubr.bf16.mxu0 0
      %8489 = vmatmul.mubr.bf16.gmra.mrb[0].mxu0 %v8228
      %v8490 = vpop.f32.mrb[0].mxu0
      %v8491 = vadd.f32 0.0, %v8490
      %v8492 = vpop.f32.mrb[0].mxu0
      %v8493 = vpop.f32.mrb[0].mxu0
      %v8494 = vadd.f32 0.0, %v8493
      %v8495 = vpop.f32.mrb[0].mxu0
      %8496 = vmatprep.mubr.bf16.mxu0 0
      %8497 = vmatmul.mubr.bf16.gmra.mrb[0].mxu0 %v8231
      %v8498 = vpop.f32.mrb[0].mxu0
      %v8499 = vadd.f32 0.0, %v8498
      %v8500 = vpop.f32.mrb[0].mxu0
      %v8501 = vpop.f32.mrb[0].mxu0
      %v8502 = vadd.f32 0.0, %v8501
      %v8503 = vpop.f32.mrb[0].mxu0
      %8504 = vmatprep.mubr.bf16.mxu0 0
      %8505 = vmatmul.mubr.bf16.gmra.mrb[0].mxu0 %v8234
      %v8506 = vpop.f32.mrb[0].mxu0
      %v8507 = vadd.f32 0.0, %v8506
      %v8508 = vpop.f32.mrb[0].mxu0
      %v8509 = vpop.f32.mrb[0].mxu0
      %v8510 = vadd.f32 0.0, %v8509
      %v8511 = vpop.f32.mrb[0].mxu0
      %8512 = vmatprep.mubr.bf16.mxu0 0
      %8513 = vmatmul.mubr.bf16.gmra.mrb[0].mxu0 %v8237
      %v8514 = vpop.f32.mrb[0].mxu0
      %v8515 = vadd.f32 0.0, %v8514
      %v8516 = vpop.f32.mrb[0].mxu0
      %v8517 = vpop.f32.mrb[0].mxu0
      %v8518 = vadd.f32 0.0, %v8517
      %v8519 = vpop.f32.mrb[0].mxu0
      %8520 = vmatprep.mubr.bf16.mxu0 0
      %8521 = vmatmul.mubr.bf16.gmra.mrb[0].mxu0 %v8240
      %v8522 = vpop.f32.mrb[0].mxu0
      %v8523 = vadd.f32 0.0, %v8522
      %v8524 = vpop.f32.mrb[0].mxu0
      %v8525 = vpop.f32.mrb[0].mxu0
      %v8526 = vadd.f32 0.0, %v8525
      %v8527 = vpop.f32.mrb[0].mxu0
      %8528 = vmatprep.mubr.bf16.mxu0 0
      %8529 = vmatmul.mubr.bf16.gmra.mrb[0].mxu0 %v8243
      %v8530 = vpop.f32.mrb[0].mxu0
      %v8531 = vadd.f32 0.0, %v8530
      %v8532 = vpop.f32.mrb[0].mxu0
      %v8533 = vpop.f32.mrb[0].mxu0
      %v8534 = vadd.f32 0.0, %v8533
      %v8535 = vpop.f32.mrb[0].mxu0
      %8536 = vdwg.mxu0
      %v8537 = vadd.f32 %v7850, %v8283
      %v8538 = vadd.f32 %v7853, %v8286
      %v8539 = vadd.f32 %v7858, %v8291
      %v8540 = vadd.f32 %v7861, %v8294
      %v8541 = vadd.f32 %v7866, %v8299
      %v8542 = vadd.f32 %v7869, %v8302
      %v8543 = vadd.f32 %v7874, %v8307
      %v8544 = vadd.f32 %v7877, %v8310
      %v8545 = vadd.f32 %v7882, %v8315
      %v8546 = vadd.f32 %v7885, %v8318
      %v8547 = vadd.f32 %v7890, %v8323
      %v8548 = vadd.f32 %v7893, %v8326
      %v8549 = vadd.f32 %v7898, %v8331
      %v8550 = vadd.f32 %v7901, %v8334
      %v8551 = vadd.f32 %v7906, %v8339
      %v8552 = vadd.f32 %v7909, %v8342
      %v8553 = vadd.f32 %v7914, %v8347
      %v8554 = vadd.f32 %v7917, %v8350
      %v8555 = vadd.f32 %v7922, %v8355
      %v8556 = vadd.f32 %v7925, %v8358
      %v8557 = vadd.f32 %v7930, %v8363
      %v8558 = vadd.f32 %v7933, %v8366
      %v8559 = vadd.f32 %v7938, %v8371
      %v8560 = vadd.f32 %v7941, %v8374
      %v8561 = vadd.f32 %v7946, %v8379
      %v8562 = vadd.f32 %v7949, %v8382
      %v8563 = vadd.f32 %v7954, %v8387
      %v8564 = vadd.f32 %v7957, %v8390
      %v8565 = vadd.f32 %v7962, %v8395
      %v8566 = vadd.f32 %v7965, %v8398
      %v8567 = vadd.f32 %v7970, %v8403
      %v8568 = vadd.f32 %v7973, %v8406
      %v8569 = vadd.f32 %v7978, %v8411
      %v8570 = vadd.f32 %v7981, %v8414
      %v8571 = vadd.f32 %v7986, %v8419
      %v8572 = vadd.f32 %v7989, %v8422
      %v8573 = vadd.f32 %v7994, %v8427
      %v8574 = vadd.f32 %v7997, %v8430
      %v8575 = vadd.f32 %v8002, %v8435
      %v8576 = vadd.f32 %v8005, %v8438
      %v8577 = vadd.f32 %v8010, %v8443
      %v8578 = vadd.f32 %v8013, %v8446
      %v8579 = vadd.f32 %v8018, %v8451
      %v8580 = vadd.f32 %v8021, %v8454
      %v8581 = vadd.f32 %v8026, %v8459
      %v8582 = vadd.f32 %v8029, %v8462
      %v8583 = vadd.f32 %v8034, %v8467
      %v8584 = vadd.f32 %v8037, %v8470
      %v8585 = vadd.f32 %v8042, %v8475
      %v8586 = vadd.f32 %v8045, %v8478
      %v8587 = vadd.f32 %v8050, %v8483
      %v8588 = vadd.f32 %v8053, %v8486
      %v8589 = vadd.f32 %v8058, %v8491
      %v8590 = vadd.f32 %v8061, %v8494
      %v8591 = vadd.f32 %v8066, %v8499
      %v8592 = vadd.f32 %v8069, %v8502
      %v8593 = vadd.f32 %v8074, %v8507
      %v8594 = vadd.f32 %v8077, %v8510
      %v8595 = vadd.f32 %v8082, %v8515
      %v8596 = vadd.f32 %v8085, %v8518
      %v8597 = vadd.f32 %v8090, %v8523
      %v8598 = vadd.f32 %v8093, %v8526
      %v8599 = vadd.f32 %v8098, %v8531
      %v8600 = vadd.f32 %v8101, %v8534
      %v8601 = vld [vmem:[%s4] sm:$0x1]
      %v8603 = vlaneseq
      %v8604 = vshrl.u32 %v8603, 7
      %v8605 = vsub.s32 0, %v8604
      %v8606 = vrot.slane %v8601, %v8605
      %v8608 = vadd.f32 %v8537, %v8606
      %v8609 = vadd.f32 %v8538, %v8606
      %v8610 = vadd.f32 %v8539, %v8606
      %v8611 = vadd.f32 %v8540, %v8606
      %v8612 = vadd.f32 %v8541, %v8606
      %v8613 = vadd.f32 %v8542, %v8606
      %v8614 = vadd.f32 %v8543, %v8606
      %v8615 = vadd.f32 %v8544, %v8606
      %v8616 = vadd.f32 %v8545, %v8606
      %v8617 = vadd.f32 %v8546, %v8606
      %v8618 = vadd.f32 %v8547, %v8606
      %v8619 = vadd.f32 %v8548, %v8606
      %v8620 = vadd.f32 %v8549, %v8606
      %v8621 = vadd.f32 %v8550, %v8606
      %v8622 = vadd.f32 %v8551, %v8606
      %v8623 = vadd.f32 %v8552, %v8606
      %v8624 = vadd.f32 %v8553, %v8606
      %v8625 = vadd.f32 %v8554, %v8606
      %v8626 = vadd.f32 %v8555, %v8606
      %v8627 = vadd.f32 %v8556, %v8606
      %v8628 = vadd.f32 %v8557, %v8606
      %v8629 = vadd.f32 %v8558, %v8606
      %v8630 = vadd.f32 %v8559, %v8606
      %v8631 = vadd.f32 %v8560, %v8606
      %v8632 = vadd.f32 %v8561, %v8606
      %v8633 = vadd.f32 %v8562, %v8606
      %v8634 = vadd.f32 %v8563, %v8606
      %v8635 = vadd.f32 %v8564, %v8606
      %v8636 = vadd.f32 %v8565, %v8606
      %v8637 = vadd.f32 %v8566, %v8606
      %v8638 = vadd.f32 %v8567, %v8606
      %v8639 = vadd.f32 %v8568, %v8606
      %v8640 = vadd.f32 %v8569, %v8606
      %v8641 = vadd.f32 %v8570, %v8606
      %v8642 = vadd.f32 %v8571, %v8606
      %v8643 = vadd.f32 %v8572, %v8606
      %v8644 = vadd.f32 %v8573, %v8606
      %v8645 = vadd.f32 %v8574, %v8606
      %v8646 = vadd.f32 %v8575, %v8606
      %v8647 = vadd.f32 %v8576, %v8606
      %v8648 = vadd.f32 %v8577, %v8606
      %v8649 = vadd.f32 %v8578, %v8606
      %v8650 = vadd.f32 %v8579, %v8606
      %v8651 = vadd.f32 %v8580, %v8606
      %v8652 = vadd.f32 %v8581, %v8606
      %v8653 = vadd.f32 %v8582, %v8606
      %v8654 = vadd.f32 %v8583, %v8606
      %v8655 = vadd.f32 %v8584, %v8606
      %v8656 = vadd.f32 %v8585, %v8606
      %v8657 = vadd.f32 %v8586, %v8606
      %v8658 = vadd.f32 %v8587, %v8606
      %v8659 = vadd.f32 %v8588, %v8606
      %v8660 = vadd.f32 %v8589, %v8606
      %v8661 = vadd.f32 %v8590, %v8606
      %v8662 = vadd.f32 %v8591, %v8606
      %v8663 = vadd.f32 %v8592, %v8606
      %v8664 = vadd.f32 %v8593, %v8606
      %v8665 = vadd.f32 %v8594, %v8606
      %v8666 = vadd.f32 %v8595, %v8606
      %v8667 = vadd.f32 %v8596, %v8606
      %v8668 = vadd.f32 %v8597, %v8606
      %v8669 = vadd.f32 %v8598, %v8606
      %v8670 = vadd.f32 %v8599, %v8606
      %v8671 = vadd.f32 %v8600, %v8606
      %vm8672 = vcmp.ge.f32.partialorder %v8608, 0.0
      %vm8673 = vcmp.ge.f32.partialorder %v8609, 0.0
      %vm8674 = vcmp.ge.f32.partialorder %v8610, 0.0
      %vm8675 = vcmp.ge.f32.partialorder %v8611, 0.0
      %vm8676 = vcmp.ge.f32.partialorder %v8612, 0.0
      %vm8677 = vcmp.ge.f32.partialorder %v8613, 0.0
      %vm8678 = vcmp.ge.f32.partialorder %v8614, 0.0
      %vm8679 = vcmp.ge.f32.partialorder %v8615, 0.0
      %vm8680 = vcmp.ge.f32.partialorder %v8616, 0.0
      %vm8681 = vcmp.ge.f32.partialorder %v8617, 0.0
      %vm8682 = vcmp.ge.f32.partialorder %v8618, 0.0
      %vm8683 = vcmp.ge.f32.partialorder %v8619, 0.0
      %vm8684 = vcmp.ge.f32.partialorder %v8620, 0.0
      %vm8685 = vcmp.ge.f32.partialorder %v8621, 0.0
      %vm8686 = vcmp.ge.f32.partialorder %v8622, 0.0
      %vm8687 = vcmp.ge.f32.partialorder %v8623, 0.0
      %vm8688 = vcmp.ge.f32.partialorder %v8624, 0.0
      %vm8689 = vcmp.ge.f32.partialorder %v8625, 0.0
      %vm8690 = vcmp.ge.f32.partialorder %v8626, 0.0
      %vm8691 = vcmp.ge.f32.partialorder %v8627, 0.0
      %vm8692 = vcmp.ge.f32.partialorder %v8628, 0.0
      %vm8693 = vcmp.ge.f32.partialorder %v8629, 0.0
      %vm8694 = vcmp.ge.f32.partialorder %v8630, 0.0
      %vm8695 = vcmp.ge.f32.partialorder %v8631, 0.0
      %vm8696 = vcmp.ge.f32.partialorder %v8632, 0.0
      %vm8697 = vcmp.ge.f32.partialorder %v8633, 0.0
      %vm8698 = vcmp.ge.f32.partialorder %v8634, 0.0
      %vm8699 = vcmp.ge.f32.partialorder %v8635, 0.0
      %vm8700 = vcmp.ge.f32.partialorder %v8636, 0.0
      %vm8701 = vcmp.ge.f32.partialorder %v8637, 0.0
      %vm8702 = vcmp.ge.f32.partialorder %v8638, 0.0
      %vm8703 = vcmp.ge.f32.partialorder %v8639, 0.0
      %vm8704 = vcmp.ge.f32.partialorder %v8640, 0.0
      %vm8705 = vcmp.ge.f32.partialorder %v8641, 0.0
      %vm8706 = vcmp.ge.f32.partialorder %v8642, 0.0
      %vm8707 = vcmp.ge.f32.partialorder %v8643, 0.0
      %vm8708 = vcmp.ge.f32.partialorder %v8644, 0.0
      %vm8709 = vcmp.ge.f32.partialorder %v8645, 0.0
      %vm8710 = vcmp.ge.f32.partialorder %v8646, 0.0
      %vm8711 = vcmp.ge.f32.partialorder %v8647, 0.0
      %vm8712 = vcmp.ge.f32.partialorder %v8648, 0.0
      %vm8713 = vcmp.ge.f32.partialorder %v8649, 0.0
      %vm8714 = vcmp.ge.f32.partialorder %v8650, 0.0
      %vm8715 = vcmp.ge.f32.partialorder %v8651, 0.0
      %vm8716 = vcmp.ge.f32.partialorder %v8652, 0.0
      %vm8717 = vcmp.ge.f32.partialorder %v8653, 0.0
      %vm8718 = vcmp.ge.f32.partialorder %v8654, 0.0
      %vm8719 = vcmp.ge.f32.partialorder %v8655, 0.0
      %vm8720 = vcmp.ge.f32.partialorder %v8656, 0.0
      %vm8721 = vcmp.ge.f32.partialorder %v8657, 0.0
      %vm8722 = vcmp.ge.f32.partialorder %v8658, 0.0
      %vm8723 = vcmp.ge.f32.partialorder %v8659, 0.0
      %vm8724 = vcmp.ge.f32.partialorder %v8660, 0.0
      %vm8725 = vcmp.ge.f32.partialorder %v8661, 0.0
      %vm8726 = vcmp.ge.f32.partialorder %v8662, 0.0
      %vm8727 = vcmp.ge.f32.partialorder %v8663, 0.0
      %vm8728 = vcmp.ge.f32.partialorder %v8664, 0.0
      %vm8729 = vcmp.ge.f32.partialorder %v8665, 0.0
      %vm8730 = vcmp.ge.f32.partialorder %v8666, 0.0
      %vm8731 = vcmp.ge.f32.partialorder %v8667, 0.0
      %vm8732 = vcmp.ge.f32.partialorder %v8668, 0.0
      %vm8733 = vcmp.ge.f32.partialorder %v8669, 0.0
      %vm8734 = vcmp.ge.f32.partialorder %v8670, 0.0
      %vm8735 = vcmp.ge.f32.partialorder %v8671, 0.0
      %v8736 = vmul.f32 %v8608, 0.2
      %v8737 = vmul.f32 %v8609, 0.2
      %v8738 = vmul.f32 %v8610, 0.2
      %v8739 = vmul.f32 %v8611, 0.2
      %v8740 = vmul.f32 %v8612, 0.2
      %v8741 = vmul.f32 %v8613, 0.2
      %v8742 = vmul.f32 %v8614, 0.2
      %v8743 = vmul.f32 %v8615, 0.2
      %v8744 = vmul.f32 %v8616, 0.2
      %v8745 = vmul.f32 %v8617, 0.2
      %v8746 = vmul.f32 %v8618, 0.2
      %v8747 = vmul.f32 %v8619, 0.2
      %v8748 = vmul.f32 %v8620, 0.2
      %v8749 = vmul.f32 %v8621, 0.2
      %v8750 = vmul.f32 %v8622, 0.2
      %v8751 = vmul.f32 %v8623, 0.2
      %v8752 = vmul.f32 %v8624, 0.2
      %v8753 = vmul.f32 %v8625, 0.2
      %v8754 = vmul.f32 %v8626, 0.2
      %v8755 = vmul.f32 %v8627, 0.2
      %v8756 = vmul.f32 %v8628, 0.2
      %v8757 = vmul.f32 %v8629, 0.2
      %v8758 = vmul.f32 %v8630, 0.2
      %v8759 = vmul.f32 %v8631, 0.2
      %v8760 = vmul.f32 %v8632, 0.2
      %v8761 = vmul.f32 %v8633, 0.2
      %v8762 = vmul.f32 %v8634, 0.2
      %v8763 = vmul.f32 %v8635, 0.2
      %v8764 = vmul.f32 %v8636, 0.2
      %v8765 = vmul.f32 %v8637, 0.2
      %v8766 = vmul.f32 %v8638, 0.2
      %v8767 = vmul.f32 %v8639, 0.2
      %v8768 = vmul.f32 %v8640, 0.2
      %v8769 = vmul.f32 %v8641, 0.2
      %v8770 = vmul.f32 %v8642, 0.2
      %v8771 = vmul.f32 %v8643, 0.2
      %v8772 = vmul.f32 %v8644, 0.2
      %v8773 = vmul.f32 %v8645, 0.2
      %v8774 = vmul.f32 %v8646, 0.2
      %v8775 = vmul.f32 %v8647, 0.2
      %v8776 = vmul.f32 %v8648, 0.2
      %v8777 = vmul.f32 %v8649, 0.2
      %v8778 = vmul.f32 %v8650, 0.2
      %v8779 = vmul.f32 %v8651, 0.2
      %v8780 = vmul.f32 %v8652, 0.2
      %v8781 = vmul.f32 %v8653, 0.2
      %v8782 = vmul.f32 %v8654, 0.2
      %v8783 = vmul.f32 %v8655, 0.2
      %v8784 = vmul.f32 %v8656, 0.2
      %v8785 = vmul.f32 %v8657, 0.2
      %v8786 = vmul.f32 %v8658, 0.2
      %v8787 = vmul.f32 %v8659, 0.2
      %v8788 = vmul.f32 %v8660, 0.2
      %v8789 = vmul.f32 %v8661, 0.2
      %v8790 = vmul.f32 %v8662, 0.2
      %v8791 = vmul.f32 %v8663, 0.2
      %v8792 = vmul.f32 %v8664, 0.2
      %v8793 = vmul.f32 %v8665, 0.2
      %v8794 = vmul.f32 %v8666, 0.2
      %v8795 = vmul.f32 %v8667, 0.2
      %v8796 = vmul.f32 %v8668, 0.2
      %v8797 = vmul.f32 %v8669, 0.2
      %v8798 = vmul.f32 %v8670, 0.2
      %v8799 = vmul.f32 %v8671, 0.2
      %v8800 = vsel %vm8672, %v8608, %v8736
      %v8801 = vsel %vm8673, %v8609, %v8737
      %v8802 = vsel %vm8674, %v8610, %v8738
      %v8803 = vsel %vm8675, %v8611, %v8739
      %v8804 = vsel %vm8676, %v8612, %v8740
      %v8805 = vsel %vm8677, %v8613, %v8741
      %v8806 = vsel %vm8678, %v8614, %v8742
      %v8807 = vsel %vm8679, %v8615, %v8743
      %v8808 = vsel %vm8680, %v8616, %v8744
      %v8809 = vsel %vm8681, %v8617, %v8745
      %v8810 = vsel %vm8682, %v8618, %v8746
      %v8811 = vsel %vm8683, %v8619, %v8747
      %v8812 = vsel %vm8684, %v8620, %v8748
      %v8813 = vsel %vm8685, %v8621, %v8749
      %v8814 = vsel %vm8686, %v8622, %v8750
      %v8815 = vsel %vm8687, %v8623, %v8751
      %v8816 = vsel %vm8688, %v8624, %v8752
      %v8817 = vsel %vm8689, %v8625, %v8753
      %v8818 = vsel %vm8690, %v8626, %v8754
      %v8819 = vsel %vm8691, %v8627, %v8755
      %v8820 = vsel %vm8692, %v8628, %v8756
      %v8821 = vsel %vm8693, %v8629, %v8757
      %v8822 = vsel %vm8694, %v8630, %v8758
      %v8823 = vsel %vm8695, %v8631, %v8759
      %v8824 = vsel %vm8696, %v8632, %v8760
      %v8825 = vsel %vm8697, %v8633, %v8761
      %v8826 = vsel %vm8698, %v8634, %v8762
      %v8827 = vsel %vm8699, %v8635, %v8763
      %v8828 = vsel %vm8700, %v8636, %v8764
      %v8829 = vsel %vm8701, %v8637, %v8765
      %v8830 = vsel %vm8702, %v8638, %v8766
      %v8831 = vsel %vm8703, %v8639, %v8767
      %v8832 = vsel %vm8704, %v8640, %v8768
      %v8833 = vsel %vm8705, %v8641, %v8769
      %v8834 = vsel %vm8706, %v8642, %v8770
      %v8835 = vsel %vm8707, %v8643, %v8771
      %v8836 = vsel %vm8708, %v8644, %v8772
      %v8837 = vsel %vm8709, %v8645, %v8773
      %v8838 = vsel %vm8710, %v8646, %v8774
      %v8839 = vsel %vm8711, %v8647, %v8775
      %v8840 = vsel %vm8712, %v8648, %v8776
      %v8841 = vsel %vm8713, %v8649, %v8777
      %v8842 = vsel %vm8714, %v8650, %v8778
      %v8843 = vsel %vm8715, %v8651, %v8779
      %v8844 = vsel %vm8716, %v8652, %v8780
      %v8845 = vsel %vm8717, %v8653, %v8781
      %v8846 = vsel %vm8718, %v8654, %v8782
      %v8847 = vsel %vm8719, %v8655, %v8783
      %v8848 = vsel %vm8720, %v8656, %v8784
      %v8849 = vsel %vm8721, %v8657, %v8785
      %v8850 = vsel %vm8722, %v8658, %v8786
      %v8851 = vsel %vm8723, %v8659, %v8787
      %v8852 = vsel %vm8724, %v8660, %v8788
      %v8853 = vsel %vm8725, %v8661, %v8789
      %v8854 = vsel %vm8726, %v8662, %v8790
      %v8855 = vsel %vm8727, %v8663, %v8791
      %v8856 = vsel %vm8728, %v8664, %v8792
      %v8857 = vsel %vm8729, %v8665, %v8793
      %v8858 = vsel %vm8730, %v8666, %v8794
      %v8859 = vsel %vm8731, %v8667, %v8795
      %v8860 = vsel %vm8732, %v8668, %v8796
      %v8861 = vsel %vm8733, %v8669, %v8797
      %v8862 = vsel %vm8734, %v8670, %v8798
      %v8863 = vsel %vm8735, %v8671, %v8799
      %8864 = vst.msk [vmem:[%s246] sm:$0xff] %vm4755, %v8800
      %8865 = vst.msk [vmem:[%s246 + $0x8] sm:$0xff] %vm4755, %v8801
      %8866 = vst.msk [vmem:[%s246 + $0x10] sm:$0xff] %vm4755, %v8802
      %8867 = vst.msk [vmem:[%s246 + $0x18] sm:$0xff] %vm4755, %v8803
      %8868 = vst.msk [vmem:[%s246 + $0x20] sm:$0xff] %vm4755, %v8804
      %8869 = vst.msk [vmem:[%s246 + $0x28] sm:$0xff] %vm4755, %v8805
      %8870 = vst.msk [vmem:[%s246 + $0x30] sm:$0xff] %vm4755, %v8806
      %8871 = vst.msk [vmem:[%s246 + $0x38] sm:$0xff] %vm4755, %v8807
      %8872 = vst.msk [vmem:[%s246 + $0x40] sm:$0xff] %vm4755, %v8808
      %8873 = vst.msk [vmem:[%s246 + $0x48] sm:$0xff] %vm4755, %v8809
      %8874 = vst.msk [vmem:[%s246 + $0x50] sm:$0xff] %vm4755, %v8810
      %8875 = vst.msk [vmem:[%s246 + $0x58] sm:$0xff] %vm4755, %v8811
      %8876 = vst.msk [vmem:[%s246 + $0x60] sm:$0xff] %vm4755, %v8812
      %8877 = vst.msk [vmem:[%s246 + $0x68] sm:$0xff] %vm4755, %v8813
      %8878 = vst.msk [vmem:[%s246 + $0x70] sm:$0xff] %vm4755, %v8814
      %8879 = vst.msk [vmem:[%s246 + $0x78] sm:$0xff] %vm4755, %v8815
      %8880 = vst.msk [vmem:[%s246 + $0x80] sm:$0xff] %vm4755, %v8816
      %8881 = vst.msk [vmem:[%s246 + $0x88] sm:$0xff] %vm4755, %v8817
      %8882 = vst.msk [vmem:[%s246 + $0x90] sm:$0xff] %vm4755, %v8818
      %8883 = vst.msk [vmem:[%s246 + $0x98] sm:$0xff] %vm4755, %v8819
      %8884 = vst.msk [vmem:[%s246 + $0xa0] sm:$0xff] %vm4755, %v8820
      %8885 = vst.msk [vmem:[%s246 + $0xa8] sm:$0xff] %vm4755, %v8821
      %8886 = vst.msk [vmem:[%s246 + $0xb0] sm:$0xff] %vm4755, %v8822
      %8887 = vst.msk [vmem:[%s246 + $0xb8] sm:$0xff] %vm4755, %v8823
      %8888 = vst.msk [vmem:[%s246 + $0xc0] sm:$0xff] %vm4755, %v8824
      %8889 = vst.msk [vmem:[%s246 + $0xc8] sm:$0xff] %vm4755, %v8825
      %8890 = vst.msk [vmem:[%s246 + $0xd0] sm:$0xff] %vm4755, %v8826
      %8891 = vst.msk [vmem:[%s246 + $0xd8] sm:$0xff] %vm4755, %v8827
      %8892 = vst.msk [vmem:[%s246 + $0xe0] sm:$0xff] %vm4755, %v8828
      %8893 = vst.msk [vmem:[%s246 + $0xe8] sm:$0xff] %vm4755, %v8829
      %8894 = vst.msk [vmem:[%s246 + $0xf0] sm:$0xff] %vm4755, %v8830
      %8895 = vst.msk [vmem:[%s246 + $0xf8] sm:$0xff] %vm4755, %v8831
      %8896 = vst.msk [vmem:[%s246 + $0x100] sm:$0xff] %vm4755, %v8832
      %8897 = vst.msk [vmem:[%s246 + $0x108] sm:$0xff] %vm4755, %v8833
      %8898 = vst.msk [vmem:[%s246 + $0x110] sm:$0xff] %vm4755, %v8834
      %8899 = vst.msk [vmem:[%s246 + $0x118] sm:$0xff] %vm4755, %v8835
      %8900 = vst.msk [vmem:[%s246 + $0x120] sm:$0xff] %vm4755, %v8836
      %8901 = vst.msk [vmem:[%s246 + $0x128] sm:$0xff] %vm4755, %v8837
      %8902 = vst.msk [vmem:[%s246 + $0x130] sm:$0xff] %vm4755, %v8838
      %8903 = vst.msk [vmem:[%s246 + $0x138] sm:$0xff] %vm4755, %v8839
      %8904 = vst.msk [vmem:[%s246 + $0x140] sm:$0xff] %vm4755, %v8840
      %8905 = vst.msk [vmem:[%s246 + $0x148] sm:$0xff] %vm4755, %v8841
      %8906 = vst.msk [vmem:[%s246 + $0x150] sm:$0xff] %vm4755, %v8842
      %8907 = vst.msk [vmem:[%s246 + $0x158] sm:$0xff] %vm4755, %v8843
      %8908 = vst.msk [vmem:[%s246 + $0x160] sm:$0xff] %vm4755, %v8844
      %8909 = vst.msk [vmem:[%s246 + $0x168] sm:$0xff] %vm4755, %v8845
      %8910 = vst.msk [vmem:[%s246 + $0x170] sm:$0xff] %vm4755, %v8846
      %8911 = vst.msk [vmem:[%s246 + $0x178] sm:$0xff] %vm4755, %v8847
      %8912 = vst.msk [vmem:[%s246 + $0x180] sm:$0xff] %vm4755, %v8848
      %8913 = vst.msk [vmem:[%s246 + $0x188] sm:$0xff] %vm4755, %v8849
      %8914 = vst.msk [vmem:[%s246 + $0x190] sm:$0xff] %vm4755, %v8850
      %8915 = vst.msk [vmem:[%s246 + $0x198] sm:$0xff] %vm4755, %v8851
      %8916 = vst.msk [vmem:[%s246 + $0x1a0] sm:$0xff] %vm4755, %v8852
      %8917 = vst.msk [vmem:[%s246 + $0x1a8] sm:$0xff] %vm4755, %v8853
      %8918 = vst.msk [vmem:[%s246 + $0x1b0] sm:$0xff] %vm4755, %v8854
      %8919 = vst.msk [vmem:[%s246 + $0x1b8] sm:$0xff] %vm4755, %v8855
      %8920 = vst.msk [vmem:[%s246 + $0x1c0] sm:$0xff] %vm4755, %v8856
      %8921 = vst.msk [vmem:[%s246 + $0x1c8] sm:$0xff] %vm4755, %v8857
      %8922 = vst.msk [vmem:[%s246 + $0x1d0] sm:$0xff] %vm4755, %v8858
      %8923 = vst.msk [vmem:[%s246 + $0x1d8] sm:$0xff] %vm4755, %v8859
      %8924 = vst.msk [vmem:[%s246 + $0x1e0] sm:$0xff] %vm4755, %v8860
      %8925 = vst.msk [vmem:[%s246 + $0x1e8] sm:$0xff] %vm4755, %v8861
      %8926 = vst.msk [vmem:[%s246 + $0x1f0] sm:$0xff] %vm4755, %v8862
      %8927 = vst.msk [vmem:[%s246 + $0x1f8] sm:$0xff] %vm4755, %v8863
      %s8928 = smul.u32 64, %s21
      %p8929 = scmp.lt.s32.totalorder %s20, 1
      %s8930 = scalar_select %p8929, %s20, 1
      %p8931 = scmp.lt.s32.totalorder %s8928, 127
      %s8932 = scalar_select %p8931, %s8928, 127
      %s8933 = smul.addr %s8930, 128
      %s8934 = sadd.s32 %s8932, %s8933
      %s8935 = smul.addr %s8934, 8
      %s8936 = scalar_lea.vmem %s5, %s8935
      // Predicated region
      $region41: #{tpu_custom_call.1} parent=39 // pred_check
        %p8937 = pneg %p158
      $region42: #{tpu_custom_call.1} parent=39 // pred_check_branch
        %8939 = sbr.rel (%p8937) target = $region44
      $region43: #{tpu_custom_call.1} parent=39 // pred_region
        %s8940 = smul.u32 64, %s21
      $region44: #{tpu_custom_call.1} parent=39 // pred_fallthru
        _
    $region40: #{tpu_custom_call.1} parent=5 // pred_fallthru
      _
    %p8941 = scmp.le.s32.totalorder 2, %s11
    // Predicated region
    $region45: #{tpu_custom_call.1} parent=5 // pred_check
      %p8942 = pneg %p8941
    $region46: #{tpu_custom_call.1} parent=5 // pred_check_branch
      %8944 = sbr.rel (%p8942) target = $region48
    $region47: #{tpu_custom_call.1} parent=5 // pred_region
      %s8945 = ssub.s32 %s11, 2
      // Predicated region
      $region49: #{tpu_custom_call.1} parent=47 // pred_check
        %p8946 = pneg %p164
      $region50: #{tpu_custom_call.1} parent=47 // pred_check_branch
        %8948 = sbr.rel (%p8946) target = $region52
      $region51: #{tpu_custom_call.1} parent=47 // pred_region
        %s8949 = smul.u32 64, %s23
        %p8950 = scmp.lt.s32.totalorder %s22, 1
        %s8951 = scalar_select %p8950, %s22, 1
        %p8952 = scmp.lt.s32.totalorder %s8949, 127
        %s8953 = scalar_select %p8952, %s8949, 127
        %s8954 = smul.addr %s8951, 128
        %s8955 = sadd.s32 %s8953, %s8954
        %s8956 = smul.addr %s8955, 8
        %s8957 = scalar_lea.vmem %s5, %s8956
      $region52: #{tpu_custom_call.1} parent=47 // pred_fallthru
        _
    $region48: #{tpu_custom_call.1} parent=5 // pred_fallthru
      _
  $region6: #{tpu_custom_call.1} parent=0 // loop_footer
    %s15 = sadd.s32 1, %s11
  $region7: #{tpu_custom_call.1} parent=0 // loop_footer_branch
    %10 = sbr.rel target = $region3
  $region8: #{tpu_custom_call.1} parent=0 // loop_exit
    _

</llo_original>
